<compile_context>
chip_gen: v7x
topology: tpu7x:2x2x1
jax: 0.10.0
libtpu: 0.0.40
codegen_flags: <defaults>
</compile_context>

<pallas_src>
import functools
import math

import jax
import jax.numpy as jnp
from jax import lax
from jax.experimental import pallas as pl
from jax.experimental.pallas import tpu as pltpu


_PAR1 = pltpu.CompilerParams(dimension_semantics=("parallel",))
_PAR2 = pltpu.CompilerParams(dimension_semantics=("parallel", "parallel"))


# ---------------------------------------------------------------------------
# helpers
# ---------------------------------------------------------------------------
def _rep1(shape):
    z = (0,) * len(shape)
    return pl.BlockSpec(tuple(shape), lambda b: z)


def _rep2(shape):
    z = (0,) * len(shape)
    return pl.BlockSpec(tuple(shape), lambda b, l: z)


def _bat1(shape):
    z = (0,) * (len(shape) - 1)
    return pl.BlockSpec((1,) + tuple(shape[1:]), lambda b: (b,) + z)


def _row2(tl, tail):
    tail = tuple(tail)
    z = (0,) * len(tail)
    return pl.BlockSpec((1, tl) + tail, lambda b, l: (b, l) + z)


def _row_tile(L, pref=256):
    for t in (pref, 128, 64, 32, 16, 8):
        if t <= L and L % t == 0:
            return t
    return L


def _scan_chunk(L):
    # 8-32 rows per chunk (full-sublane VPU tiles); must divide L.
    for t in (32, 16, 8):
        if L % t == 0:
            return t
    return 1  # degenerate fallback for odd L (still correct)


def _erf_approx(x):
    # Abramowitz-Stegun 7.1.26 polynomial (|err| < 1.5e-7) -> exact-GELU in kernel.
    a1, a2, a3, a4, a5 = 0.254829592, -0.284496736, 1.421413741, -1.453152027, 1.061405429
    p = 0.3275911
    s = jnp.where(x >= 0.0, 1.0, -1.0)
    ax = jnp.abs(x)
    t = 1.0 / (1.0 + p * ax)
    poly = ((((a5 * t + a4) * t + a3) * t + a2) * t + a1) * t
    return s * (1.0 - poly * jnp.exp(-ax * ax))


def _pad_flat(x):
    # [B, H, W, C] -> [B, (H+2)*(W+2)+8, C]: single zero-padded plane,
    # row-flattened on the padded width so every 3x3 tap is ONE contiguous
    # sublane slice of length H*(W+2).  Tail rows keep the (dy=2,dx=2) tap in
    # bounds.  (Replaces the old 3x dx-replicated layout -> ~3x less HBM read.)
    B, H, W, C = x.shape
    xp = jnp.pad(x, ((0, 0), (1, 1), (1, 1), (0, 0))).reshape(B, (H + 2) * (W + 2), C)
    return jnp.pad(xp, ((0, 0), (0, 8), (0, 0)))


def _extract_valid(acc, H, W):
    # padded-width grid [H*(W+2), C] -> valid [H*W, C] (static slices + concat;
    # avoids risky minor-dim reshapes in Mosaic).
    Wp = W + 2
    return jnp.concatenate([acc[r * Wp:r * Wp + W, :] for r in range(H)], axis=0)


# ---------------------------------------------------------------------------
# Pallas kernels
# ---------------------------------------------------------------------------
def _ln_inproj_kernel(x_ref, w_ref, b_ref, wm_ref, ox_ref, oz_ref, *, eps, D):
    x = x_ref[0].astype(jnp.float32)                               # [TL, C]
    mu = jnp.mean(x, axis=-1, keepdims=True)
    xc = x - mu
    var = jnp.mean(xc * xc, axis=-1, keepdims=True)
    xn = xc * lax.rsqrt(var + eps) * w_ref[...] + b_ref[...]
    xz = jnp.dot(xn.astype(jnp.bfloat16), wm_ref[...],
                 preferred_element_type=jnp.float32)               # [TL, 2D]
    ox_ref[0] = xz[:, :D].astype(ox_ref.dtype)
    oz_ref[0] = xz[:, D:].astype(oz_ref.dtype)


def _dwconv_silu_kernel(xf_ref, w_ref, b_ref, o_ref, *, H, W):
    # xf_ref: [1, (H+2)*(W+2)+8, D] single padded plane; each tap is a
    # contiguous sublane-offset slice of length H*(W+2).
    Wp = W + 2
    Lp = H * Wp
    Dch = o_ref.shape[-1]
    acc = jnp.zeros((Lp, Dch), jnp.float32)
    for dy in range(3):
        for dx in range(3):
            k = dy * 3 + dx
            tap = xf_ref[0, pl.ds(dy * Wp + dx, Lp), :].astype(jnp.float32)
            acc = acc + tap * w_ref[k:k + 1, :]
    acc = acc + b_ref[...]
    v = _extract_valid(acc, H, W)
    o_ref[0] = (v * jax.nn.sigmoid(v)).astype(o_ref.dtype)         # SiLU


def _xproj_scan_kernel(xs_ref, w_all_ref, at_ref, dv_ref, db_ref, y_ref,
                       delta_sc, du_sc, bc_sc, *, L, N, D, TL):
    ND = N * D
    xs = xs_ref[0].astype(jnp.float32)                             # u = xs, [L, D]
    # ONE wide fused matmul: [dt_proj-folded | B | C] columns.
    proj = jnp.dot(xs.astype(jnp.bfloat16), w_all_ref[...],
                   preferred_element_type=jnp.float32)             # [L, D+2N]
    delta = proj[:, :D] + db_ref[...]
    delta = jnp.where(delta > 20.0, delta,
                      jnp.log(1.0 + jnp.exp(jnp.minimum(delta, 20.0))))   # softplus
    delta_sc[...] = delta
    du_sc[...] = delta * xs
    bc_sc[...] = proj[:, D:]                                       # [L, 2N] = [B | C]

    def chunk(c, h_carry):
        off = pl.multiple_of(c * TL, TL)
        d_c = delta_sc[pl.ds(off, TL), :]                          # [TL, D]
        du_c = du_sc[pl.ds(off, TL), :]                            # [TL, D]
        bc_c = bc_sc[pl.ds(off, TL), :]                            # [TL, 2N]
        u_c = xs_ref[0, pl.ds(off, TL), :].astype(jnp.float32)     # [TL, D]
        # lane layout n*D+d (n-major): delta/du broadcast over n via lane tiling,
        # Bs broadcast over d via per-group lane-1 slices (no D-replicated weights).
        a_c = jnp.exp(jnp.concatenate([d_c] * N, axis=-1) * at_ref[...])       # [TL, ND]
        b_c = jnp.concatenate([bc_c[:, n:n + 1] * du_c for n in range(N)],
                              axis=-1)                                          # [TL, ND]
        # intra-chunk inclusive scan of h <- a*h + b, on full [TL, ND] tiles
        # (Hillis-Steele; log2(TL) stages of full-sublane VPU work).
        A_cum, B_cum = a_c, b_c
        s = 1
        while s < TL:
            pad1 = jnp.ones((s, ND), jnp.float32)
            pad0 = jnp.zeros((s, ND), jnp.float32)
            A_sh = jnp.concatenate([pad1, A_cum[:TL - s, :]], axis=0)
            B_sh = jnp.concatenate([pad0, B_cum[:TL - s, :]], axis=0)
            B_cum = A_cum * B_sh + B_cum
            A_cum = A_cum * A_sh
            s *= 2
        h_rows = B_cum + A_cum * h_carry                           # [TL, ND]
        # C-contraction as a sum over the N lane-groups (no identity matmul).
        y_c = dv_ref[...] * u_c
        for n in range(N):
            y_c = y_c + bc_c[:, N + n:N + n + 1] * h_rows[:, n * D:(n + 1) * D]
        y_ref[0, pl.ds(off, TL), :] = y_c.astype(y_ref.dtype)
        return h_rows[TL - 1:TL, :]

    lax.fori_loop(0, L // TL, chunk, jnp.zeros((1, ND), jnp.float32))


def _tail_kernel(y_ref, z_ref, inp_ref, onw_ref, onb_ref, wo_ref, ss_ref,
                 ln2w_ref, ln2b_ref, x1_ref, x1n_ref, *, eps_on, eps_ln2):
    # out_norm -> y*SiLU(z) -> out_proj -> skip_scale residual -> ln_2 (for CAB)
    y = y_ref[0].astype(jnp.float32)
    mu = jnp.mean(y, axis=-1, keepdims=True)
    yc = y - mu
    var = jnp.mean(yc * yc, axis=-1, keepdims=True)
    yn = yc * lax.rsqrt(var + eps_on) * onw_ref[...] + onb_ref[...]
    z = z_ref[0].astype(jnp.float32)
    yg = yn * (z * jax.nn.sigmoid(z))
    out = jnp.dot(yg.astype(jnp.bfloat16), wo_ref[...],
                  preferred_element_type=jnp.float32)              # [TL, C]
    x1 = inp_ref[0].astype(jnp.float32) * ss_ref[...] + out
    x1_ref[0] = x1.astype(x1_ref.dtype)
    mu2 = jnp.mean(x1, axis=-1, keepdims=True)
    xc2 = x1 - mu2
    var2 = jnp.mean(xc2 * xc2, axis=-1, keepdims=True)
    x1n = xc2 * lax.rsqrt(var2 + eps_ln2) * ln2w_ref[...] + ln2b_ref[...]
    x1n_ref[0] = x1n.astype(x1n_ref.dtype)                         # bf16 (matmul operand)


def _conv3x3_gelu_kernel(xf_ref, w_ref, b_ref, o_ref, *, H, W):
    # 3x3 conv as 3 deep-K matmuls (K = 3*Cin, dx taps concatenated on lanes).
    Wp = W + 2
    Lp = H * Wp
    Cout = o_ref.shape[-1]
    acc = jnp.zeros((Lp, Cout), jnp.float32)
    for dy in range(3):
        taps = jnp.concatenate(
            [xf_ref[0, pl.ds(dy * Wp + dx, Lp), :].astype(jnp.bfloat16)
             for dx in range(3)], axis=-1)                         # [Lp, 3*Cin]
        acc = acc + jnp.dot(taps, w_ref[dy], preferred_element_type=jnp.float32)
    acc = acc + b_ref[...]
    v = _extract_valid(acc, H, W)
    v = 0.5 * v * (1.0 + _erf_approx(v * 0.7071067811865476))      # exact GELU
    o_ref[0] = v.astype(o_ref.dtype)


def _conv3x3_ca_res_kernel(xf_ref, w_ref, b_ref, w1_ref, b1_ref, w2_ref, b2_ref,
                           x1_ref, ss_ref, o_ref, *, H, W):
    # conv2 (3x3, deep-K) + ChannelAttention + final skip_scale2 residual.
    Wp = W + 2
    Lp = H * Wp
    C = o_ref.shape[-1]
    acc = jnp.zeros((Lp, C), jnp.float32)
    for dy in range(3):
        taps = jnp.concatenate(
            [xf_ref[0, pl.ds(dy * Wp + dx, Lp), :].astype(jnp.bfloat16)
             for dx in range(3)], axis=-1)
        acc = acc + jnp.dot(taps, w_ref[dy], preferred_element_type=jnp.float32)
    acc = acc + b_ref[...]
    v = _extract_valid(acc, H, W)                                  # valid conv2 out [L, C]
    # ChannelAttention: avgpool -> 1x1 conv -> ReLU -> 1x1 conv -> sigmoid
    # (degenerate Ca = C//30 shapes -> keep on VPU, no MXU dispatch)
    pooled = jnp.mean(v, axis=0, keepdims=True)                    # [1, C]
    s = jnp.sum(pooled * w1_ref[...], axis=-1, keepdims=True) + b1_ref[...]   # [Ca, 1]
    s = jnp.maximum(s, 0.0)
    att = jax.nn.sigmoid(jnp.sum(s * w2_ref[...], axis=0, keepdims=True)
                         + b2_ref[...])                            # [1, C]
    cab = v * att
    o_ref[0] = (x1_ref[0].astype(jnp.float32) * ss_ref[...] + cab).astype(o_ref.dtype)


# ---------------------------------------------------------------------------
# Pallas wrappers
# ---------------------------------------------------------------------------
def ln_inproj(x, w, b, w_in, eps):
    B, L, C = x.shape
    D = w_in.shape[1] // 2
    tl = _row_tile(L)
    return pl.pallas_call(
        functools.partial(_ln_inproj_kernel, eps=eps, D=D),
        grid=(B, L // tl),
        in_specs=[_row2(tl, (C,)), _rep2((1, C)), _rep2((1, C)), _rep2(w_in.shape)],
        out_specs=(_row2(tl, (D,)), _row2(tl, (D,))),
        out_shape=(jax.ShapeDtypeStruct((B, L, D), jnp.float32),
                   jax.ShapeDtypeStruct((B, L, D), jnp.float32)),
        compiler_params=_PAR2,
    )(x, w.reshape(1, C), b.reshape(1, C), w_in)


def depthwise_conv_silu(x, w, b):
    B, H, W, D = x.shape
    xf = _pad_flat(x)
    PF = xf.shape[1]
    return pl.pallas_call(
        functools.partial(_dwconv_silu_kernel, H=H, W=W),
        grid=(B,),
        in_specs=[pl.BlockSpec((1, PF, D), lambda b: (b, 0, 0)),
                  _rep1((9, D)), _rep1((1, D))],
        out_specs=_bat1((B, H * W, D)),
        out_shape=jax.ShapeDtypeStruct((B, H * W, D), jnp.float32),
        compiler_params=_PAR1,
    )(xf, w.reshape(9, D), b.reshape(1, D))


def selective_scan(xs, w_all, at_flat, dv, db, N):
    B, L, D = xs.shape
    TL = _scan_chunk(L)
    return pl.pallas_call(
        functools.partial(_xproj_scan_kernel, L=L, N=N, D=D, TL=TL),
        grid=(B,),
        in_specs=[_bat1(xs.shape), _rep1(w_all.shape), _rep1(at_flat.shape),
                  _rep1(dv.shape), _rep1(db.shape)],
        out_specs=_bat1((B, L, D)),
        out_shape=jax.ShapeDtypeStruct((B, L, D), jnp.float32),
        scratch_shapes=[pltpu.VMEM((L, D), jnp.float32),
                        pltpu.VMEM((L, D), jnp.float32),
                        pltpu.VMEM((L, 2 * N), jnp.float32)],
        compiler_params=_PAR1,
    )(xs, w_all, at_flat, dv, db)


def tail_fused(y, z, inp, onw, onb, w_out, ss, ln2w, ln2b):
    B, L, D = y.shape
    C = inp.shape[-1]
    tl = _row_tile(L)
    return pl.pallas_call(
        functools.partial(_tail_kernel, eps_on=1e-5, eps_ln2=1e-5),
        grid=(B, L // tl),
        in_specs=[_row2(tl, (D,)), _row2(tl, (D,)), _row2(tl, (C,)),
                  _rep2((1, D)), _rep2((1, D)), _rep2(w_out.shape),
                  _rep2((1, C)), _rep2((1, C)), _rep2((1, C))],
        out_specs=(_row2(tl, (C,)), _row2(tl, (C,))),
        out_shape=(jax.ShapeDtypeStruct((B, L, C), jnp.float32),
                   jax.ShapeDtypeStruct((B, L, C), jnp.bfloat16)),
        compiler_params=_PAR2,
    )(y, z, inp, onw.reshape(1, D), onb.reshape(1, D), w_out, ss.reshape(1, C),
      ln2w.reshape(1, C), ln2b.reshape(1, C))


def conv3x3_gelu(x, w, b):
    B, H, W, Cin = x.shape
    Cout = w.shape[-1]
    xf = _pad_flat(x)
    PF = xf.shape[1]
    w3 = w.reshape(3, 3 * Cin, Cout).astype(jnp.bfloat16)          # per-dy deep-K weight
    return pl.pallas_call(
        functools.partial(_conv3x3_gelu_kernel, H=H, W=W),
        grid=(B,),
        in_specs=[pl.BlockSpec((1, PF, Cin), lambda b: (b, 0, 0)),
                  _rep1(w3.shape), _rep1((1, Cout))],
        out_specs=_bat1((B, H * W, Cout)),
        out_shape=jax.ShapeDtypeStruct((B, H * W, Cout), jnp.bfloat16),
        compiler_params=_PAR1,
    )(xf, w3, b.reshape(1, Cout))


def conv3x3_ca_residual(x, w, b, w1t, b1, w2t, b2, x1, ss2):
    B, H, W, Cin = x.shape
    C = w.shape[-1]
    Ca = w1t.shape[0]
    L = H * W
    xf = _pad_flat(x)
    PF = xf.shape[1]
    w3 = w.reshape(3, 3 * Cin, C).astype(jnp.bfloat16)
    return pl.pallas_call(
        functools.partial(_conv3x3_ca_res_kernel, H=H, W=W),
        grid=(B,),
        in_specs=[pl.BlockSpec((1, PF, Cin), lambda b: (b, 0, 0)),
                  _rep1(w3.shape), _rep1((1, C)),
                  _rep1((Ca, C)), _rep1((Ca, 1)), _rep1((Ca, C)), _rep1((1, C)),
                  _bat1((B, L, C)), _rep1((1, C))],
        out_specs=_bat1((B, L, C)),
        out_shape=jax.ShapeDtypeStruct((B, L, C), jnp.float32),
        compiler_params=_PAR1,
    )(xf, w3, b.reshape(1, C), w1t, b1.reshape(Ca, 1), w2t, b2.reshape(1, C),
      x1, ss2.reshape(1, C))


# ---------------------------------------------------------------------------
# VSSBlock forward (glue + Pallas kernels)
# ---------------------------------------------------------------------------
def vss_block_forward(inp, x_size, p):
    # inp: [B, L, C] token sequence, x_size = (H, W), L = H * W
    B, L, C = inp.shape
    H, W = x_size
    e = p["ess2d"]
    D, N, R = e["d_inner"], e["d_state"], e["dt_rank"]
    g = D // 4

    # derived / folded parameter forms (params are jit constants -> folded once)
    w_in = e["in_proj_w"].astype(jnp.bfloat16)                          # [C, 2D]
    w_out = e["out_proj_w"].astype(jnp.bfloat16)                        # [D, C]
    w_dt = e["x_proj_w"][:, :R] @ e["dt_proj_w"]                        # dt_proj folded, [D, D]
    # one fused x_proj weight: [dt | B | C] columns -> single wide bf16 matmul
    w_all = jnp.concatenate(
        [w_dt, e["x_proj_w"][:, R:R + N], e["x_proj_w"][:, R + N:R + 2 * N]],
        axis=1).astype(jnp.bfloat16)                                    # [D, D+2N]
    at_flat = jnp.transpose(-jnp.exp(e["A_logs"])).reshape(1, N * D)    # lane n*D+d = A[d,n]
    dv = e["Ds"].reshape(1, D)
    db = e["dt_proj_b"].reshape(1, D)

    # kernel 1: ln_1 (eps=1e-6) + in_proj (x and z as separate lane-dense outputs)
    x_in, z = ln_inproj(inp, p["ln1_w"], p["ln1_b"], w_in, 1e-6)        # [B, L, D] each

    # kernel 2: depthwise 3x3 conv + SiLU (single padded plane, no replication)
    xc = depthwise_conv_silu(x_in.reshape(B, H, W, D), e["conv_w"], e["conv_b"])

    # four scan directions over disjoint d_inner/4 channel groups ("Efficient SS2D", K=1)
    # TODO(synk): direction transposes/reversals stay as XLA glue; in-kernel
    # lax.rev / non-minor transposes have no guaranteed Mosaic lowering.
    xc4 = xc.reshape(B, H, W, D)
    x_hw = xc[..., 0 * g:1 * g]
    x_wh = jnp.transpose(xc4[..., 1 * g:2 * g], (0, 2, 1, 3)).reshape(B, L, g)
    x_hwr = xc[..., 2 * g:3 * g][:, ::-1, :]
    x_whr = jnp.transpose(xc4[..., 3 * g:4 * g], (0, 2, 1, 3)).reshape(B, L, g)[:, ::-1, :]
    xs = jnp.concatenate([x_hw, x_wh, x_hwr, x_whr], axis=-1)           # [B, L, D]

    # kernel 3: fused x_proj (+ folded dt_proj) + streamed chunked selective scan
    out_y = selective_scan(xs, w_all, at_flat, dv, db, N)               # [B, L, D]

    # invert the four scan directions, reassemble channels
    y_hw = out_y[..., 0 * g:1 * g]
    y_wh = jnp.transpose(out_y[..., 1 * g:2 * g].reshape(B, W, H, g),
                         (0, 2, 1, 3)).reshape(B, L, g)
    y_hwr = out_y[:, ::-1, 2 * g:3 * g]
    y_whr = jnp.transpose(out_y[:, ::-1, 3 * g:4 * g].reshape(B, W, H, g),
                          (0, 2, 1, 3)).reshape(B, L, g)
    y = jnp.concatenate([y_hw, y_wh, y_hwr, y_whr], axis=-1)            # [B, L, D]

    # kernel 4: out_norm + gate + out_proj + skip_scale residual + ln_2
    x1, x1n = tail_fused(y, z, inp, e["out_norm_w"], e["out_norm_b"], w_out,
                         p["skip_scale"], p["ln2_w"], p["ln2_b"])       # f32, bf16

    # kernels 5/6: CAB conv1+GELU, conv2 + ChannelAttention + skip_scale2 residual
    # TODO(synk): conv1->conv2 (and ln+in_proj->dwconv) could be fused further by
    # building the padded plane in-kernel; kept as separate calls for clarity.
    Cc = p["cab_w1"].shape[-1]
    c1 = conv3x3_gelu(x1n.reshape(B, H, W, C), p["cab_w1"], p["cab_b1"])   # bf16
    x2 = conv3x3_ca_residual(c1.reshape(B, H, W, Cc), p["cab_w2"], p["cab_b2"],
                             p["ca_w1"], p["ca_b1"], p["ca_w2"], p["ca_b2"],
                             x1, p["skip_scale2"])
    return x2                                                            # [B, L, C]


# ---------------------------------------------------------------------------
# deterministic synthetic parameters (shapes per the PyTorch __init__)
# ---------------------------------------------------------------------------
def _dt_bias_init(key, d_inner, dt_min=0.001, dt_max=0.1, dt_init_floor=1e-4):
    dt = jnp.exp(jax.random.uniform(key, (d_inner,), jnp.float32)
                 * (jnp.log(dt_max) - jnp.log(dt_min)) + jnp.log(dt_min))
    dt = jnp.maximum(dt, dt_init_floor)
    return dt + jnp.log(-jnp.expm1(-dt))


def init_params(key, hidden_dim, d_state=16, expand=2.0,
                compress_ratio=3, squeeze_factor=30):
    C = hidden_dim
    D = int(expand * C)                   # d_inner
    R = int(math.ceil(C / 16))            # dt_rank
    assert D % 4 == 0
    ks = jax.random.split(key, 13)

    def uni(k, shape, scale):
        return jax.random.uniform(k, shape, jnp.float32, -scale, scale)

    Cc = C // compress_ratio
    Ca = max(C // squeeze_factor, 1)
    return {
        "ln1_w": jnp.ones((C,), jnp.float32), "ln1_b": jnp.zeros((C,), jnp.float32),
        "ln2_w": jnp.ones((C,), jnp.float32), "ln2_b": jnp.zeros((C,), jnp.float32),
        "skip_scale": jnp.ones((C,), jnp.float32),
        "skip_scale2": jnp.ones((C,), jnp.float32),
        # CAB 3x3 convs, weights stored as [ky, kx, Cin, Cout]
        "cab_w1": uni(ks[0], (3, 3, C, Cc), 0.06),
        "cab_b1": uni(ks[1], (Cc,), 0.06),
        "cab_w2": uni(ks[2], (3, 3, Cc, C), 0.1),
        "cab_b2": uni(ks[3], (C,), 0.1),
        # ChannelAttention 1x1 convs stored as [Ca, C] (second one transposed)
        "ca_w1": uni(ks[4], (Ca, C), 0.18),
        "ca_b1": jnp.zeros((Ca,), jnp.float32),
        "ca_w2": uni(ks[5], (Ca, C), 0.5),
        "ca_b2": jnp.zeros((C,), jnp.float32),
        "ess2d": {
            "d_inner": D, "d_state": d_state, "dt_rank": R,
            "in_proj_w": uni(ks[6], (C, 2 * D), C ** -0.5),
            "conv_w": uni(ks[7], (3, 3, D), 1.0 / 3.0),     # depthwise [ky, kx, D]
            "conv_b": uni(ks[8], (D,), 1.0 / 3.0),
            "x_proj_w": uni(ks[9], (D, R + 2 * d_state), D ** -0.5),
            "dt_proj_w": uni(ks[10], (R, D), R ** -0.5),
            "dt_proj_b": _dt_bias_init(ks[11], D),
            "A_logs": jnp.log(jnp.tile(
                jnp.arange(1, d_state + 1, dtype=jnp.float32)[None, :], (D, 1))),
            "Ds": jnp.ones((D,), jnp.float32),
            "out_norm_w": jnp.ones((D,), jnp.float32),
            "out_norm_b": jnp.zeros((D,), jnp.float32),
            "out_proj_w": uni(ks[12], (D, C), D ** -0.5),
        },
    }


if __name__ == "__main__":
    key = jax.random.PRNGKey(0)
    kp, kx = jax.random.split(key)
    B, H, W, C = 2, 8, 8, 32
    params = init_params(kp, hidden_dim=C)
    x = jax.random.normal(kx, (B, H * W, C), jnp.float32)   # [B, L, C]

    fwd = jax.jit(lambda a: vss_block_forward(a, (H, W), params))
    out = jax.block_until_ready(fwd(x))
    assert out.shape == (B, H * W, C) and out.dtype == jnp.float32
    assert bool(jnp.all(jnp.isfinite(out)))
    print("KERNEL_OK")
</pallas_src>

<mosaic_0001>
module attributes {stable_mosaic.version = 11 : i64} {
  func.func @_ln_inproj_kernel(%arg0: i32, %arg1: i32, %arg2: memref<1x64x32xf32, #tpu.memory_space<vmem>>, %arg3: memref<1x32xf32, #tpu.memory_space<vmem>>, %arg4: memref<1x32xf32, #tpu.memory_space<vmem>>, %arg5: memref<32x128xbf16, #tpu.memory_space<vmem>>, %arg6: memref<1x64x64xf32, #tpu.memory_space<vmem>>, %arg7: memref<1x64x64xf32, #tpu.memory_space<vmem>>) attributes {dimension_semantics = [#tpu.dimension_semantics<parallel>, #tpu.dimension_semantics<parallel>], iteration_bounds = array<i64: 2, 1>, scalar_prefetch = 0 : i64, scratch_operands = 0 : i64, tpu.core_type = #tpu.core_type<tc>, window_params = [{transform_indices = @transform_0, window_bounds = array<i64: 1, 64, 32>}, {pipeline_mode = #tpu.pipeline_mode<synchronous>, transform_indices = @transform_1, window_bounds = array<i64: 1, 32>}, {pipeline_mode = #tpu.pipeline_mode<synchronous>, transform_indices = @transform_2, window_bounds = array<i64: 1, 32>}, {pipeline_mode = #tpu.pipeline_mode<synchronous>, transform_indices = @transform_3, window_bounds = array<i64: 32, 128>}, {transform_indices = @transform_4, window_bounds = array<i64: 1, 64, 64>}, {transform_indices = @transform_5, window_bounds = array<i64: 1, 64, 64>}]} {
    %c0 = arith.constant 0 : index
    %c0_0 = arith.constant 0 : index
    %c0_1 = arith.constant 0 : index
    %0 = vector.load %arg2[%c0, %c0_0, %c0_1] : memref<1x64x32xf32, #tpu.memory_space<vmem>>, vector<1x64x32xf32>
    %1 = vector.shape_cast %0 : vector<1x64x32xf32> to vector<64x32xf32>
    %cst = arith.constant dense<0.000000e+00> : vector<64xf32>
    %2 = vector.multi_reduction <add>, %1, %cst [1] : vector<64x32xf32> to vector<64xf32>
    %3 = vector.shape_cast %2 : vector<64xf32> to vector<64x1xf32>
    %cst_2 = arith.constant 3.200000e+01 : f32
    %4 = vector.broadcast %cst_2 : f32 to vector<64x1xf32>
    %5 = arith.divf %3, %4 : vector<64x1xf32>
    %6 = vector.broadcast %5 : vector<64x1xf32> to vector<64x32xf32>
    %7 = arith.subf %1, %6 : vector<64x32xf32>
    %8 = arith.mulf %7, %7 : vector<64x32xf32>
    %cst_3 = arith.constant dense<0.000000e+00> : vector<64xf32>
    %9 = vector.multi_reduction <add>, %8, %cst_3 [1] : vector<64x32xf32> to vector<64xf32>
    %10 = vector.shape_cast %9 : vector<64xf32> to vector<64x1xf32>
    %cst_4 = arith.constant 3.200000e+01 : f32
    %11 = vector.broadcast %cst_4 : f32 to vector<64x1xf32>
    %12 = arith.divf %10, %11 : vector<64x1xf32>
    %cst_5 = arith.constant 9.99999997E-7 : f32
    %13 = vector.broadcast %cst_5 : f32 to vector<64x1xf32>
    %14 = arith.addf %12, %13 : vector<64x1xf32>
    %15 = math.rsqrt %14 : vector<64x1xf32>
    %16 = vector.broadcast %15 : vector<64x1xf32> to vector<64x32xf32>
    %17 = arith.mulf %7, %16 : vector<64x32xf32>
    %c0_6 = arith.constant 0 : index
    %c0_7 = arith.constant 0 : index
    %18 = vector.load %arg3[%c0_6, %c0_7] : memref<1x32xf32, #tpu.memory_space<vmem>>, vector<1x32xf32>
    %19 = vector.broadcast %18 : vector<1x32xf32> to vector<64x32xf32>
    %20 = arith.mulf %17, %19 : vector<64x32xf32>
    %c0_8 = arith.constant 0 : index
    %c0_9 = arith.constant 0 : index
    %21 = vector.load %arg4[%c0_8, %c0_9] : memref<1x32xf32, #tpu.memory_space<vmem>>, vector<1x32xf32>
    %22 = vector.broadcast %21 : vector<1x32xf32> to vector<64x32xf32>
    %23 = arith.addf %20, %22 : vector<64x32xf32>
    %24 = arith.truncf %23 : vector<64x32xf32> to vector<64x32xbf16>
    %c0_10 = arith.constant 0 : index
    %c0_11 = arith.constant 0 : index
    %25 = vector.load %arg5[%c0_10, %c0_11] : memref<32x128xbf16, #tpu.memory_space<vmem>>, vector<32x128xbf16>
    %cst_12 = arith.constant dense<0.000000e+00> : vector<64x128xf32>
    %26 = tpu.matmul %24, %25, %cst_12 {dimension_numbers = #tpu.dot_dimension_numbers<[1], [0], [0], [1], [0, 0, 1, 1], [], []>} : vector<64x32xbf16>, vector<32x128xbf16>, vector<64x128xf32> -> vector<64x128xf32>
    %27 = vector.extract_strided_slice %26 {offsets = [0, 0], sizes = [64, 64], strides = [1, 1]} : vector<64x128xf32> to vector<64x64xf32>
    %c0_13 = arith.constant 0 : index
    %c0_14 = arith.constant 0 : index
    %c0_15 = arith.constant 0 : index
    %28 = vector.load %arg6[%c0_13, %c0_14, %c0_15] : memref<1x64x64xf32, #tpu.memory_space<vmem>>, vector<1x64x64xf32>
    %29 = vector.shape_cast %28 : vector<1x64x64xf32> to vector<64x64xf32>
    %30 = vector.shape_cast %27 : vector<64x64xf32> to vector<1x64x64xf32>
    tpu.vector_store %arg6[%c0_13, %c0_14, %c0_15], %30 {strides = array<i32>} : memref<1x64x64xf32, #tpu.memory_space<vmem>>, vector<1x64x64xf32>,
    %31 = vector.extract_strided_slice %26 {offsets = [0, 64], sizes = [64, 64], strides = [1, 1]} : vector<64x128xf32> to vector<64x64xf32>
    %c0_16 = arith.constant 0 : index
    %c0_17 = arith.constant 0 : index
    %c0_18 = arith.constant 0 : index
    %32 = vector.load %arg7[%c0_16, %c0_17, %c0_18] : memref<1x64x64xf32, #tpu.memory_space<vmem>>, vector<1x64x64xf32>
    %33 = vector.shape_cast %32 : vector<1x64x64xf32> to vector<64x64xf32>
    %34 = vector.shape_cast %31 : vector<64x64xf32> to vector<1x64x64xf32>
    tpu.vector_store %arg7[%c0_16, %c0_17, %c0_18], %34 {strides = array<i32>} : memref<1x64x64xf32, #tpu.memory_space<vmem>>, vector<1x64x64xf32>,
    return
  }
  func.func @transform_0(%arg0: i32, %arg1: i32) -> (i32, i32, i32) {
    %c0_i32 = arith.constant 0 : i32
    %c0_i32_0 = arith.constant 0 : i32
    return %arg0, %arg1, %c0_i32 : i32, i32, i32
  }
  func.func @transform_1(%arg0: i32, %arg1: i32) -> (i32, i32) {
    %c0_i32 = arith.constant 0 : i32
    %c0_i32_0 = arith.constant 0 : i32
    %c0_i32_1 = arith.constant 0 : i32
    return %c0_i32, %c0_i32_0 : i32, i32
  }
  func.func @transform_2(%arg0: i32, %arg1: i32) -> (i32, i32) {
    %c0_i32 = arith.constant 0 : i32
    %c0_i32_0 = arith.constant 0 : i32
    %c0_i32_1 = arith.constant 0 : i32
    return %c0_i32, %c0_i32_0 : i32, i32
  }
  func.func @transform_3(%arg0: i32, %arg1: i32) -> (i32, i32) {
    %c0_i32 = arith.constant 0 : i32
    %c0_i32_0 = arith.constant 0 : i32
    %c0_i32_1 = arith.constant 0 : i32
    return %c0_i32, %c0_i32_0 : i32, i32
  }
  func.func @transform_4(%arg0: i32, %arg1: i32) -> (i32, i32, i32) {
    %c0_i32 = arith.constant 0 : i32
    %c0_i32_0 = arith.constant 0 : i32
    return %arg0, %arg1, %c0_i32 : i32, i32, i32
  }
  func.func @transform_5(%arg0: i32, %arg1: i32) -> (i32, i32, i32) {
    %c0_i32 = arith.constant 0 : i32
    %c0_i32_0 = arith.constant 0 : i32
    return %arg0, %arg1, %c0_i32 : i32, i32, i32
  }
}

module attributes {stable_mosaic.version = 11 : i64} {
  func.func @_dwconv_silu_kernel(%arg0: i32, %arg1: memref<1x108x64xf32, #tpu.memory_space<vmem>>, %arg2: memref<9x64xf32, #tpu.memory_space<vmem>>, %arg3: memref<1x64xf32, #tpu.memory_space<vmem>>, %arg4: memref<1x64x64xf32, #tpu.memory_space<vmem>>) attributes {dimension_semantics = [#tpu.dimension_semantics<parallel>], iteration_bounds = array<i64: 2>, scalar_prefetch = 0 : i64, scratch_operands = 0 : i64, tpu.core_type = #tpu.core_type<tc>, window_params = [{transform_indices = @transform_0, window_bounds = array<i64: 1, 108, 64>}, {pipeline_mode = #tpu.pipeline_mode<synchronous>, transform_indices = @transform_1, window_bounds = array<i64: 9, 64>}, {pipeline_mode = #tpu.pipeline_mode<synchronous>, transform_indices = @transform_2, window_bounds = array<i64: 1, 64>}, {transform_indices = @transform_3, window_bounds = array<i64: 1, 64, 64>}]} {
    %cst = arith.constant 0.000000e+00 : f32
    %0 = vector.broadcast %cst : f32 to vector<80x64xf32>
    %c0 = arith.constant 0 : index
    %c0_0 = arith.constant 0 : index
    %c0_1 = arith.constant 0 : index
    %1 = vector.load %arg1[%c0, %c0_0, %c0_1] : memref<1x108x64xf32, #tpu.memory_space<vmem>>, vector<1x80x64xf32>
    %2 = vector.shape_cast %1 : vector<1x80x64xf32> to vector<80x64xf32>
    %c0_2 = arith.constant 0 : index
    %c0_3 = arith.constant 0 : index
    %3 = vector.load %arg2[%c0_2, %c0_3] : memref<9x64xf32, #tpu.memory_space<vmem>>, vector<1x64xf32>
    %4 = vector.broadcast %3 : vector<1x64xf32> to vector<80x64xf32>
    %5 = arith.mulf %2, %4 : vector<80x64xf32>
    %6 = arith.addf %0, %5 : vector<80x64xf32>
    %c0_4 = arith.constant 0 : index
    %c1 = arith.constant 1 : index
    %c0_5 = arith.constant 0 : index
    %7 = vector.load %arg1[%c0_4, %c1, %c0_5] : memref<1x108x64xf32, #tpu.memory_space<vmem>>, vector<1x80x64xf32>
    %8 = vector.shape_cast %7 : vector<1x80x64xf32> to vector<80x64xf32>
    %c1_6 = arith.constant 1 : index
    %c0_7 = arith.constant 0 : index
    %9 = vector.load %arg2[%c1_6, %c0_7] : memref<9x64xf32, #tpu.memory_space<vmem>>, vector<1x64xf32>
    %10 = vector.broadcast %9 : vector<1x64xf32> to vector<80x64xf32>
    %11 = arith.mulf %8, %10 : vector<80x64xf32>
    %12 = arith.addf %6, %11 : vector<80x64xf32>
    %c0_8 = arith.constant 0 : index
    %c2 = arith.constant 2 : index
    %c0_9 = arith.constant 0 : index
    %13 = vector.load %arg1[%c0_8, %c2, %c0_9] : memref<1x108x64xf32, #tpu.memory_space<vmem>>, vector<1x80x64xf32>
    %14 = vector.shape_cast %13 : vector<1x80x64xf32> to vector<80x64xf32>
    %c2_10 = arith.constant 2 : index
    %c0_11 = arith.constant 0 : index
    %15 = vector.load %arg2[%c2_10, %c0_11] : memref<9x64xf32, #tpu.memory_space<vmem>>, vector<1x64xf32>
    %16 = vector.broadcast %15 : vector<1x64xf32> to vector<80x64xf32>
    %17 = arith.mulf %14, %16 : vector<80x64xf32>
    %18 = arith.addf %12, %17 : vector<80x64xf32>
    %c0_12 = arith.constant 0 : index
    %c10 = arith.constant 10 : index
    %c0_13 = arith.constant 0 : index
    %19 = vector.load %arg1[%c0_12, %c10, %c0_13] : memref<1x108x64xf32, #tpu.memory_space<vmem>>, vector<1x80x64xf32>
    %20 = vector.shape_cast %19 : vector<1x80x64xf32> to vector<80x64xf32>
    %c3 = arith.constant 3 : index
    %c0_14 = arith.constant 0 : index
    %21 = vector.load %arg2[%c3, %c0_14] : memref<9x64xf32, #tpu.memory_space<vmem>>, vector<1x64xf32>
    %22 = vector.broadcast %21 : vector<1x64xf32> to vector<80x64xf32>
    %23 = arith.mulf %20, %22 : vector<80x64xf32>
    %24 = arith.addf %18, %23 : vector<80x64xf32>
    %c0_15 = arith.constant 0 : index
    %c11 = arith.constant 11 : index
    %c0_16 = arith.constant 0 : index
    %25 = vector.load %arg1[%c0_15, %c11, %c0_16] : memref<1x108x64xf32, #tpu.memory_space<vmem>>, vector<1x80x64xf32>
    %26 = vector.shape_cast %25 : vector<1x80x64xf32> to vector<80x64xf32>
    %c4 = arith.constant 4 : index
    %c0_17 = arith.constant 0 : index
    %27 = vector.load %arg2[%c4, %c0_17] : memref<9x64xf32, #tpu.memory_space<vmem>>, vector<1x64xf32>
    %28 = vector.broadcast %27 : vector<1x64xf32> to vector<80x64xf32>
    %29 = arith.mulf %26, %28 : vector<80x64xf32>
    %30 = arith.addf %24, %29 : vector<80x64xf32>
    %c0_18 = arith.constant 0 : index
    %c12 = arith.constant 12 : index
    %c0_19 = arith.constant 0 : index
    %31 = vector.load %arg1[%c0_18, %c12, %c0_19] : memref<1x108x64xf32, #tpu.memory_space<vmem>>, vector<1x80x64xf32>
    %32 = vector.shape_cast %31 : vector<1x80x64xf32> to vector<80x64xf32>
    %c5 = arith.constant 5 : index
    %c0_20 = arith.constant 0 : index
    %33 = vector.load %arg2[%c5, %c0_20] : memref<9x64xf32, #tpu.memory_space<vmem>>, vector<1x64xf32>
    %34 = vector.broadcast %33 : vector<1x64xf32> to vector<80x64xf32>
    %35 = arith.mulf %32, %34 : vector<80x64xf32>
    %36 = arith.addf %30, %35 : vector<80x64xf32>
    %c0_21 = arith.constant 0 : index
    %c20 = arith.constant 20 : index
    %c0_22 = arith.constant 0 : index
    %37 = vector.load %arg1[%c0_21, %c20, %c0_22] : memref<1x108x64xf32, #tpu.memory_space<vmem>>, vector<1x80x64xf32>
    %38 = vector.shape_cast %37 : vector<1x80x64xf32> to vector<80x64xf32>
    %c6 = arith.constant 6 : index
    %c0_23 = arith.constant 0 : index
    %39 = vector.load %arg2[%c6, %c0_23] : memref<9x64xf32, #tpu.memory_space<vmem>>, vector<1x64xf32>
    %40 = vector.broadcast %39 : vector<1x64xf32> to vector<80x64xf32>
    %41 = arith.mulf %38, %40 : vector<80x64xf32>
    %42 = arith.addf %36, %41 : vector<80x64xf32>
    %c0_24 = arith.constant 0 : index
    %c21 = arith.constant 21 : index
    %c0_25 = arith.constant 0 : index
    %43 = vector.load %arg1[%c0_24, %c21, %c0_25] : memref<1x108x64xf32, #tpu.memory_space<vmem>>, vector<1x80x64xf32>
    %44 = vector.shape_cast %43 : vector<1x80x64xf32> to vector<80x64xf32>
    %c7 = arith.constant 7 : index
    %c0_26 = arith.constant 0 : index
    %45 = vector.load %arg2[%c7, %c0_26] : memref<9x64xf32, #tpu.memory_space<vmem>>, vector<1x64xf32>
    %46 = vector.broadcast %45 : vector<1x64xf32> to vector<80x64xf32>
    %47 = arith.mulf %44, %46 : vector<80x64xf32>
    %48 = arith.addf %42, %47 : vector<80x64xf32>
    %c0_27 = arith.constant 0 : index
    %c22 = arith.constant 22 : index
    %c0_28 = arith.constant 0 : index
    %49 = vector.load %arg1[%c0_27, %c22, %c0_28] : memref<1x108x64xf32, #tpu.memory_space<vmem>>, vector<1x80x64xf32>
    %50 = vector.shape_cast %49 : vector<1x80x64xf32> to vector<80x64xf32>
    %c8 = arith.constant 8 : index
    %c0_29 = arith.constant 0 : index
    %51 = vector.load %arg2[%c8, %c0_29] : memref<9x64xf32, #tpu.memory_space<vmem>>, vector<1x64xf32>
    %52 = vector.broadcast %51 : vector<1x64xf32> to vector<80x64xf32>
    %53 = arith.mulf %50, %52 : vector<80x64xf32>
    %54 = arith.addf %48, %53 : vector<80x64xf32>
    %c0_30 = arith.constant 0 : index
    %c0_31 = arith.constant 0 : index
    %55 = vector.load %arg3[%c0_30, %c0_31] : memref<1x64xf32, #tpu.memory_space<vmem>>, vector<1x64xf32>
    %56 = vector.broadcast %55 : vector<1x64xf32> to vector<80x64xf32>
    %57 = arith.addf %54, %56 : vector<80x64xf32>
    %58 = vector.extract_strided_slice %57 {offsets = [0, 0], sizes = [8, 64], strides = [1, 1]} : vector<80x64xf32> to vector<8x64xf32>
    %59 = vector.extract_strided_slice %57 {offsets = [10, 0], sizes = [8, 64], strides = [1, 1]} : vector<80x64xf32> to vector<8x64xf32>
    %60 = vector.extract_strided_slice %57 {offsets = [20, 0], sizes = [8, 64], strides = [1, 1]} : vector<80x64xf32> to vector<8x64xf32>
    %61 = vector.extract_strided_slice %57 {offsets = [30, 0], sizes = [8, 64], strides = [1, 1]} : vector<80x64xf32> to vector<8x64xf32>
    %62 = vector.extract_strided_slice %57 {offsets = [40, 0], sizes = [8, 64], strides = [1, 1]} : vector<80x64xf32> to vector<8x64xf32>
    %63 = vector.extract_strided_slice %57 {offsets = [50, 0], sizes = [8, 64], strides = [1, 1]} : vector<80x64xf32> to vector<8x64xf32>
    %64 = vector.extract_strided_slice %57 {offsets = [60, 0], sizes = [8, 64], strides = [1, 1]} : vector<80x64xf32> to vector<8x64xf32>
    %65 = vector.extract_strided_slice %57 {offsets = [70, 0], sizes = [8, 64], strides = [1, 1]} : vector<80x64xf32> to vector<8x64xf32>
    %66 = tpu.concatenate %58, %59, %60, %61, %62, %63, %64, %65 in 0 : vector<8x64xf32>, vector<8x64xf32>, vector<8x64xf32>, vector<8x64xf32>, vector<8x64xf32>, vector<8x64xf32>, vector<8x64xf32>, vector<8x64xf32> -> vector<64x64xf32>
    %67 = arith.negf %66 : vector<64x64xf32>
    %68 = math.exp %67 : vector<64x64xf32>
    %cst_32 = arith.constant 1.000000e+00 : f32
    %69 = vector.broadcast %cst_32 : f32 to vector<64x64xf32>
    %70 = arith.addf %69, %68 : vector<64x64xf32>
    %71 = arith.divf %69, %70 : vector<64x64xf32>
    %72 = arith.mulf %66, %71 : vector<64x64xf32>
    %c0_33 = arith.constant 0 : index
    %c0_34 = arith.constant 0 : index
    %c0_35 = arith.constant 0 : index
    %73 = vector.load %arg4[%c0_33, %c0_34, %c0_35] : memref<1x64x64xf32, #tpu.memory_space<vmem>>, vector<1x64x64xf32>
    %74 = vector.shape_cast %73 : vector<1x64x64xf32> to vector<64x64xf32>
    %75 = vector.shape_cast %72 : vector<64x64xf32> to vector<1x64x64xf32>
    tpu.vector_store %arg4[%c0_33, %c0_34, %c0_35], %75 {strides = array<i32>} : memref<1x64x64xf32, #tpu.memory_space<vmem>>, vector<1x64x64xf32>,
    return
  }
  func.func @transform_0(%arg0: i32) -> (i32, i32, i32) {
    %c0_i32 = arith.constant 0 : i32
    %c0_i32_0 = arith.constant 0 : i32
    %c0_i32_1 = arith.constant 0 : i32
    return %arg0, %c0_i32, %c0_i32_0 : i32, i32, i32
  }
  func.func @transform_1(%arg0: i32) -> (i32, i32) {
    %c0_i32 = arith.constant 0 : i32
    %c0_i32_0 = arith.constant 0 : i32
    %c0_i32_1 = arith.constant 0 : i32
    return %c0_i32, %c0_i32_0 : i32, i32
  }
  func.func @transform_2(%arg0: i32) -> (i32, i32) {
    %c0_i32 = arith.constant 0 : i32
    %c0_i32_0 = arith.constant 0 : i32
    %c0_i32_1 = arith.constant 0 : i32
    return %c0_i32, %c0_i32_0 : i32, i32
  }
  func.func @transform_3(%arg0: i32) -> (i32, i32, i32) {
    %c0_i32 = arith.constant 0 : i32
    %c0_i32_0 = arith.constant 0 : i32
    %c0_i32_1 = arith.constant 0 : i32
    return %arg0, %c0_i32, %c0_i32_0 : i32, i32, i32
  }
}

module attributes {stable_mosaic.version = 11 : i64} {
  func.func @_xproj_scan_kernel(%arg0: i32, %arg1: memref<1x64x64xf32, #tpu.memory_space<vmem>>, %arg2: memref<64x96xbf16, #tpu.memory_space<vmem>>, %arg3: memref<1x1024xf32, #tpu.memory_space<vmem>>, %arg4: memref<1x64xf32, #tpu.memory_space<vmem>>, %arg5: memref<1x64xf32, #tpu.memory_space<vmem>>, %arg6: memref<1x64x64xf32, #tpu.memory_space<vmem>>, %arg7: memref<64x64xf32, #tpu.memory_space<vmem>>, %arg8: memref<64x64xf32, #tpu.memory_space<vmem>>, %arg9: memref<64x32xf32, #tpu.memory_space<vmem>>) attributes {dimension_semantics = [#tpu.dimension_semantics<parallel>], iteration_bounds = array<i64: 2>, scalar_prefetch = 0 : i64, scratch_operands = 3 : i64, tpu.core_type = #tpu.core_type<tc>, window_params = [{transform_indices = @transform_0, window_bounds = array<i64: 1, 64, 64>}, {pipeline_mode = #tpu.pipeline_mode<synchronous>, transform_indices = @transform_1, window_bounds = array<i64: 64, 96>}, {pipeline_mode = #tpu.pipeline_mode<synchronous>, transform_indices = @transform_2, window_bounds = array<i64: 1, 1024>}, {pipeline_mode = #tpu.pipeline_mode<synchronous>, transform_indices = @transform_3, window_bounds = array<i64: 1, 64>}, {pipeline_mode = #tpu.pipeline_mode<synchronous>, transform_indices = @transform_4, window_bounds = array<i64: 1, 64>}, {transform_indices = @transform_5, window_bounds = array<i64: 1, 64, 64>}]} {
    %c0 = arith.constant 0 : index
    %c0_0 = arith.constant 0 : index
    %c0_1 = arith.constant 0 : index
    %0 = vector.load %arg1[%c0, %c0_0, %c0_1] : memref<1x64x64xf32, #tpu.memory_space<vmem>>, vector<1x64x64xf32>
    %1 = vector.shape_cast %0 : vector<1x64x64xf32> to vector<64x64xf32>
    %2 = arith.truncf %1 : vector<64x64xf32> to vector<64x64xbf16>
    %c0_2 = arith.constant 0 : index
    %c0_3 = arith.constant 0 : index
    %3 = vector.load %arg2[%c0_2, %c0_3] : memref<64x96xbf16, #tpu.memory_space<vmem>>, vector<64x96xbf16>
    %cst = arith.constant dense<0.000000e+00> : vector<64x96xf32>
    %4 = tpu.matmul %2, %3, %cst {dimension_numbers = #tpu.dot_dimension_numbers<[1], [0], [0], [1], [0, 0, 1, 1], [], []>} : vector<64x64xbf16>, vector<64x96xbf16>, vector<64x96xf32> -> vector<64x96xf32>
    %5 = vector.extract_strided_slice %4 {offsets = [0, 0], sizes = [64, 64], strides = [1, 1]} : vector<64x96xf32> to vector<64x64xf32>
    %c0_4 = arith.constant 0 : index
    %c0_5 = arith.constant 0 : index
    %6 = vector.load %arg5[%c0_4, %c0_5] : memref<1x64xf32, #tpu.memory_space<vmem>>, vector<1x64xf32>
    %7 = vector.broadcast %6 : vector<1x64xf32> to vector<64x64xf32>
    %8 = arith.addf %5, %7 : vector<64x64xf32>
    %cst_6 = arith.constant 2.000000e+01 : f32
    %9 = vector.broadcast %cst_6 : f32 to vector<64x64xf32>
    %10 = arith.cmpf ogt, %8, %9 : vector<64x64xf32>
    %cst_7 = arith.constant 2.000000e+01 : f32
    %11 = vector.broadcast %cst_7 : f32 to vector<64x64xf32>
    %12 = arith.minimumf %8, %11 : vector<64x64xf32>
    %13 = math.exp %12 : vector<64x64xf32>
    %cst_8 = arith.constant 1.000000e+00 : f32
    %14 = vector.broadcast %cst_8 : f32 to vector<64x64xf32>
    %15 = arith.addf %14, %13 : vector<64x64xf32>
    %16 = math.log %15 : vector<64x64xf32>
    %17 = arith.select %10, %8, %16 : vector<64x64xi1>, vector<64x64xf32>
    %c0_9 = arith.constant 0 : index
    %c0_10 = arith.constant 0 : index
    %18 = vector.load %arg7[%c0_9, %c0_10] : memref<64x64xf32, #tpu.memory_space<vmem>>, vector<64x64xf32>
    tpu.vector_store %arg7[%c0_9, %c0_10], %17 {strides = array<i32>} : memref<64x64xf32, #tpu.memory_space<vmem>>, vector<64x64xf32>,
    %19 = arith.mulf %17, %1 : vector<64x64xf32>
    %c0_11 = arith.constant 0 : index
    %c0_12 = arith.constant 0 : index
    %20 = vector.load %arg8[%c0_11, %c0_12] : memref<64x64xf32, #tpu.memory_space<vmem>>, vector<64x64xf32>
    tpu.vector_store %arg8[%c0_11, %c0_12], %19 {strides = array<i32>} : memref<64x64xf32, #tpu.memory_space<vmem>>, vector<64x64xf32>,
    %21 = vector.extract_strided_slice %4 {offsets = [0, 64], sizes = [64, 32], strides = [1, 1]} : vector<64x96xf32> to vector<64x32xf32>
    %c0_13 = arith.constant 0 : index
    %c0_14 = arith.constant 0 : index
    %22 = vector.load %arg9[%c0_13, %c0_14] : memref<64x32xf32, #tpu.memory_space<vmem>>, vector<64x32xf32>
    tpu.vector_store %arg9[%c0_13, %c0_14], %21 {strides = array<i32>} : memref<64x32xf32, #tpu.memory_space<vmem>>, vector<64x32xf32>,
    %cst_15 = arith.constant 0.000000e+00 : f32
    %23 = vector.broadcast %cst_15 : f32 to vector<1x1024xf32>
    %c0_i32 = arith.constant 0 : i32
    %c2_i32 = arith.constant 2 : i32
    %24 = arith.addi %c0_i32, %c2_i32 : i32
    %c1_i32 = arith.constant 1 : i32
    %25 = scf.for %arg10 = %c0_i32 to %24 step %c1_i32 iter_args(%arg11 = %23) -> (vector<1x1024xf32>)  : i32 {
      %c32_i32 = arith.constant 32 : i32
      %26 = arith.muli %arg10, %c32_i32 : i32
      %27 = tpu.assume_multiple %26, 32 : i32
      %28 = arith.index_cast %27 : i32 to index
      %c0_17 = arith.constant 0 : index
      %29 = vector.load %arg7[%28, %c0_17] : memref<64x64xf32, #tpu.memory_space<vmem>>, vector<32x64xf32>
      %30 = arith.index_cast %27 : i32 to index
      %c0_18 = arith.constant 0 : index
      %31 = vector.load %arg8[%30, %c0_18] : memref<64x64xf32, #tpu.memory_space<vmem>>, vector<32x64xf32>
      %32 = arith.index_cast %27 : i32 to index
      %c0_19 = arith.constant 0 : index
      %33 = vector.load %arg9[%32, %c0_19] : memref<64x32xf32, #tpu.memory_space<vmem>>, vector<32x32xf32>
      %c0_20 = arith.constant 0 : index
      %34 = arith.index_cast %27 : i32 to index
      %c0_21 = arith.constant 0 : index
      %35 = vector.load %arg1[%c0_20, %34, %c0_21] : memref<1x64x64xf32, #tpu.memory_space<vmem>>, vector<1x32x64xf32>
      %36 = vector.shape_cast %35 : vector<1x32x64xf32> to vector<32x64xf32>
      %37 = tpu.concatenate %29, %29, %29, %29, %29, %29, %29, %29, %29, %29, %29, %29, %29, %29, %29, %29 in 1 : vector<32x64xf32>, vector<32x64xf32>, vector<32x64xf32>, vector<32x64xf32>, vector<32x64xf32>, vector<32x64xf32>, vector<32x64xf32>, vector<32x64xf32>, vector<32x64xf32>, vector<32x64xf32>, vector<32x64xf32>, vector<32x64xf32>, vector<32x64xf32>, vector<32x64xf32>, vector<32x64xf32>, vector<32x64xf32> -> vector<32x1024xf32>
      %c0_22 = arith.constant 0 : index
      %c0_23 = arith.constant 0 : index
      %38 = vector.load %arg3[%c0_22, %c0_23] : memref<1x1024xf32, #tpu.memory_space<vmem>>, vector<1x1024xf32>
      %39 = vector.broadcast %38 : vector<1x1024xf32> to vector<32x1024xf32>
      %40 = arith.mulf %37, %39 : vector<32x1024xf32>
      %41 = math.exp %40 : vector<32x1024xf32>
      %42 = vector.extract_strided_slice %33 {offsets = [0, 0], sizes = [32, 1], strides = [1, 1]} : vector<32x32xf32> to vector<32x1xf32>
      %43 = vector.broadcast %42 : vector<32x1xf32> to vector<32x64xf32>
      %44 = arith.mulf %43, %31 : vector<32x64xf32>
      %45 = vector.extract_strided_slice %33 {offsets = [0, 1], sizes = [32, 1], strides = [1, 1]} : vector<32x32xf32> to vector<32x1xf32>
      %46 = vector.broadcast %45 : vector<32x1xf32> to vector<32x64xf32>
      %47 = arith.mulf %46, %31 : vector<32x64xf32>
      %48 = vector.extract_strided_slice %33 {offsets = [0, 2], sizes = [32, 1], strides = [1, 1]} : vector<32x32xf32> to vector<32x1xf32>
      %49 = vector.broadcast %48 : vector<32x1xf32> to vector<32x64xf32>
      %50 = arith.mulf %49, %31 : vector<32x64xf32>
      %51 = vector.extract_strided_slice %33 {offsets = [0, 3], sizes = [32, 1], strides = [1, 1]} : vector<32x32xf32> to vector<32x1xf32>
      %52 = vector.broadcast %51 : vector<32x1xf32> to vector<32x64xf32>
      %53 = arith.mulf %52, %31 : vector<32x64xf32>
      %54 = vector.extract_strided_slice %33 {offsets = [0, 4], sizes = [32, 1], strides = [1, 1]} : vector<32x32xf32> to vector<32x1xf32>
      %55 = vector.broadcast %54 : vector<32x1xf32> to vector<32x64xf32>
      %56 = arith.mulf %55, %31 : vector<32x64xf32>
      %57 = vector.extract_strided_slice %33 {offsets = [0, 5], sizes = [32, 1], strides = [1, 1]} : vector<32x32xf32> to vector<32x1xf32>
      %58 = vector.broadcast %57 : vector<32x1xf32> to vector<32x64xf32>
      %59 = arith.mulf %58, %31 : vector<32x64xf32>
      %60 = vector.extract_strided_slice %33 {offsets = [0, 6], sizes = [32, 1], strides = [1, 1]} : vector<32x32xf32> to vector<32x1xf32>
      %61 = vector.broadcast %60 : vector<32x1xf32> to vector<32x64xf32>
      %62 = arith.mulf %61, %31 : vector<32x64xf32>
      %63 = vector.extract_strided_slice %33 {offsets = [0, 7], sizes = [32, 1], strides = [1, 1]} : vector<32x32xf32> to vector<32x1xf32>
      %64 = vector.broadcast %63 : vector<32x1xf32> to vector<32x64xf32>
      %65 = arith.mulf %64, %31 : vector<32x64xf32>
      %66 = vector.extract_strided_slice %33 {offsets = [0, 8], sizes = [32, 1], strides = [1, 1]} : vector<32x32xf32> to vector<32x1xf32>
      %67 = vector.broadcast %66 : vector<32x1xf32> to vector<32x64xf32>
      %68 = arith.mulf %67, %31 : vector<32x64xf32>
      %69 = vector.extract_strided_slice %33 {offsets = [0, 9], sizes = [32, 1], strides = [1, 1]} : vector<32x32xf32> to vector<32x1xf32>
      %70 = vector.broadcast %69 : vector<32x1xf32> to vector<32x64xf32>
      %71 = arith.mulf %70, %31 : vector<32x64xf32>
      %72 = vector.extract_strided_slice %33 {offsets = [0, 10], sizes = [32, 1], strides = [1, 1]} : vector<32x32xf32> to vector<32x1xf32>
      %73 = vector.broadcast %72 : vector<32x1xf32> to vector<32x64xf32>
      %74 = arith.mulf %73, %31 : vector<32x64xf32>
      %75 = vector.extract_strided_slice %33 {offsets = [0, 11], sizes = [32, 1], strides = [1, 1]} : vector<32x32xf32> to vector<32x1xf32>
      %76 = vector.broadcast %75 : vector<32x1xf32> to vector<32x64xf32>
      %77 = arith.mulf %76, %31 : vector<32x64xf32>
      %78 = vector.extract_strided_slice %33 {offsets = [0, 12], sizes = [32, 1], strides = [1, 1]} : vector<32x32xf32> to vector<32x1xf32>
      %79 = vector.broadcast %78 : vector<32x1xf32> to vector<32x64xf32>
      %80 = arith.mulf %79, %31 : vector<32x64xf32>
      %81 = vector.extract_strided_slice %33 {offsets = [0, 13], sizes = [32, 1], strides = [1, 1]} : vector<32x32xf32> to vector<32x1xf32>
      %82 = vector.broadcast %81 : vector<32x1xf32> to vector<32x64xf32>
      %83 = arith.mulf %82, %31 : vector<32x64xf32>
      %84 = vector.extract_strided_slice %33 {offsets = [0, 14], sizes = [32, 1], strides = [1, 1]} : vector<32x32xf32> to vector<32x1xf32>
      %85 = vector.broadcast %84 : vector<32x1xf32> to vector<32x64xf32>
      %86 = arith.mulf %85, %31 : vector<32x64xf32>
      %87 = vector.extract_strided_slice %33 {offsets = [0, 15], sizes = [32, 1], strides = [1, 1]} : vector<32x32xf32> to vector<32x1xf32>
      %88 = vector.broadcast %87 : vector<32x1xf32> to vector<32x64xf32>
      %89 = arith.mulf %88, %31 : vector<32x64xf32>
      %90 = tpu.concatenate %44, %47, %50, %53, %56, %59, %62, %65, %68, %71, %74, %77, %80, %83, %86, %89 in 1 : vector<32x64xf32>, vector<32x64xf32>, vector<32x64xf32>, vector<32x64xf32>, vector<32x64xf32>, vector<32x64xf32>, vector<32x64xf32>, vector<32x64xf32>, vector<32x64xf32>, vector<32x64xf32>, vector<32x64xf32>, vector<32x64xf32>, vector<32x64xf32>, vector<32x64xf32>, vector<32x64xf32>, vector<32x64xf32> -> vector<32x1024xf32>
      %cst_24 = arith.constant 1.000000e+00 : f32
      %91 = vector.broadcast %cst_24 : f32 to vector<1x1024xf32>
      %cst_25 = arith.constant 0.000000e+00 : f32
      %92 = vector.broadcast %cst_25 : f32 to vector<1x1024xf32>
      %93 = vector.extract_strided_slice %41 {offsets = [0, 0], sizes = [31, 1024], strides = [1, 1]} : vector<32x1024xf32> to vector<31x1024xf32>
      %94 = tpu.concatenate %91, %93 in 0 : vector<1x1024xf32>, vector<31x1024xf32> -> vector<32x1024xf32>
      %95 = vector.extract_strided_slice %90 {offsets = [0, 0], sizes = [31, 1024], strides = [1, 1]} : vector<32x1024xf32> to vector<31x1024xf32>
      %96 = tpu.concatenate %92, %95 in 0 : vector<1x1024xf32>, vector<31x1024xf32> -> vector<32x1024xf32>
      %97 = arith.mulf %41, %96 : vector<32x1024xf32>
      %98 = arith.addf %97, %90 : vector<32x1024xf32>
      %99 = arith.mulf %41, %94 : vector<32x1024xf32>
      %cst_26 = arith.constant 1.000000e+00 : f32
      %100 = vector.broadcast %cst_26 : f32 to vector<2x1024xf32>
      %cst_27 = arith.constant 0.000000e+00 : f32
      %101 = vector.broadcast %cst_27 : f32 to vector<2x1024xf32>
      %102 = vector.extract_strided_slice %99 {offsets = [0, 0], sizes = [30, 1024], strides = [1, 1]} : vector<32x1024xf32> to vector<30x1024xf32>
      %103 = tpu.concatenate %100, %102 in 0 : vector<2x1024xf32>, vector<30x1024xf32> -> vector<32x1024xf32>
      %104 = vector.extract_strided_slice %98 {offsets = [0, 0], sizes = [30, 1024], strides = [1, 1]} : vector<32x1024xf32> to vector<30x1024xf32>
      %105 = tpu.concatenate %101, %104 in 0 : vector<2x1024xf32>, vector<30x1024xf32> -> vector<32x1024xf32>
      %106 = arith.mulf %99, %105 : vector<32x1024xf32>
      %107 = arith.addf %106, %98 : vector<32x1024xf32>
      %108 = arith.mulf %99, %103 : vector<32x1024xf32>
      %cst_28 = arith.constant 1.000000e+00 : f32
      %109 = vector.broadcast %cst_28 : f32 to vector<4x1024xf32>
      %cst_29 = arith.constant 0.000000e+00 : f32
      %110 = vector.broadcast %cst_29 : f32 to vector<4x1024xf32>
      %111 = vector.extract_strided_slice %108 {offsets = [0, 0], sizes = [28, 1024], strides = [1, 1]} : vector<32x1024xf32> to vector<28x1024xf32>
      %112 = tpu.concatenate %109, %111 in 0 : vector<4x1024xf32>, vector<28x1024xf32> -> vector<32x1024xf32>
      %113 = vector.extract_strided_slice %107 {offsets = [0, 0], sizes = [28, 1024], strides = [1, 1]} : vector<32x1024xf32> to vector<28x1024xf32>
      %114 = tpu.concatenate %110, %113 in 0 : vector<4x1024xf32>, vector<28x1024xf32> -> vector<32x1024xf32>
      %115 = arith.mulf %108, %114 : vector<32x1024xf32>
      %116 = arith.addf %115, %107 : vector<32x1024xf32>
      %117 = arith.mulf %108, %112 : vector<32x1024xf32>
      %cst_30 = arith.constant 1.000000e+00 : f32
      %118 = vector.broadcast %cst_30 : f32 to vector<8x1024xf32>
      %cst_31 = arith.constant 0.000000e+00 : f32
      %119 = vector.broadcast %cst_31 : f32 to vector<8x1024xf32>
      %120 = vector.extract_strided_slice %117 {offsets = [0, 0], sizes = [24, 1024], strides = [1, 1]} : vector<32x1024xf32> to vector<24x1024xf32>
      %121 = tpu.concatenate %118, %120 in 0 : vector<8x1024xf32>, vector<24x1024xf32> -> vector<32x1024xf32>
      %122 = vector.extract_strided_slice %116 {offsets = [0, 0], sizes = [24, 1024], strides = [1, 1]} : vector<32x1024xf32> to vector<24x1024xf32>
      %123 = tpu.concatenate %119, %122 in 0 : vector<8x1024xf32>, vector<24x1024xf32> -> vector<32x1024xf32>
      %124 = arith.mulf %117, %123 : vector<32x1024xf32>
      %125 = arith.addf %124, %116 : vector<32x1024xf32>
      %126 = arith.mulf %117, %121 : vector<32x1024xf32>
      %cst_32 = arith.constant 1.000000e+00 : f32
      %127 = vector.broadcast %cst_32 : f32 to vector<16x1024xf32>
      %cst_33 = arith.constant 0.000000e+00 : f32
      %128 = vector.broadcast %cst_33 : f32 to vector<16x1024xf32>
      %129 = vector.extract_strided_slice %126 {offsets = [0, 0], sizes = [16, 1024], strides = [1, 1]} : vector<32x1024xf32> to vector<16x1024xf32>
      %130 = tpu.concatenate %127, %129 in 0 : vector<16x1024xf32>, vector<16x1024xf32> -> vector<32x1024xf32>
      %131 = vector.extract_strided_slice %125 {offsets = [0, 0], sizes = [16, 1024], strides = [1, 1]} : vector<32x1024xf32> to vector<16x1024xf32>
      %132 = tpu.concatenate %128, %131 in 0 : vector<16x1024xf32>, vector<16x1024xf32> -> vector<32x1024xf32>
      %133 = arith.mulf %126, %132 : vector<32x1024xf32>
      %134 = arith.addf %133, %125 : vector<32x1024xf32>
      %135 = arith.mulf %126, %130 : vector<32x1024xf32>
      %136 = vector.broadcast %arg11 : vector<1x1024xf32> to vector<32x1024xf32>
      %137 = arith.mulf %135, %136 : vector<32x1024xf32>
      %138 = arith.addf %134, %137 : vector<32x1024xf32>
      %c0_34 = arith.constant 0 : index
      %c0_35 = arith.constant 0 : index
      %139 = vector.load %arg4[%c0_34, %c0_35] : memref<1x64xf32, #tpu.memory_space<vmem>>, vector<1x64xf32>
      %140 = vector.broadcast %139 : vector<1x64xf32> to vector<32x64xf32>
      %141 = arith.mulf %140, %36 : vector<32x64xf32>
      %142 = vector.extract_strided_slice %33 {offsets = [0, 16], sizes = [32, 1], strides = [1, 1]} : vector<32x32xf32> to vector<32x1xf32>
      %143 = vector.extract_strided_slice %138 {offsets = [0, 0], sizes = [32, 64], strides = [1, 1]} : vector<32x1024xf32> to vector<32x64xf32>
      %144 = vector.broadcast %142 : vector<32x1xf32> to vector<32x64xf32>
      %145 = arith.mulf %144, %143 : vector<32x64xf32>
      %146 = arith.addf %141, %145 : vector<32x64xf32>
      %147 = vector.extract_strided_slice %33 {offsets = [0, 17], sizes = [32, 1], strides = [1, 1]} : vector<32x32xf32> to vector<32x1xf32>
      %148 = vector.extract_strided_slice %138 {offsets = [0, 64], sizes = [32, 64], strides = [1, 1]} : vector<32x1024xf32> to vector<32x64xf32>
      %149 = vector.broadcast %147 : vector<32x1xf32> to vector<32x64xf32>
      %150 = arith.mulf %149, %148 : vector<32x64xf32>
      %151 = arith.addf %146, %150 : vector<32x64xf32>
      %152 = vector.extract_strided_slice %33 {offsets = [0, 18], sizes = [32, 1], strides = [1, 1]} : vector<32x32xf32> to vector<32x1xf32>
      %153 = vector.extract_strided_slice %138 {offsets = [0, 128], sizes = [32, 64], strides = [1, 1]} : vector<32x1024xf32> to vector<32x64xf32>
      %154 = vector.broadcast %152 : vector<32x1xf32> to vector<32x64xf32>
      %155 = arith.mulf %154, %153 : vector<32x64xf32>
      %156 = arith.addf %151, %155 : vector<32x64xf32>
      %157 = vector.extract_strided_slice %33 {offsets = [0, 19], sizes = [32, 1], strides = [1, 1]} : vector<32x32xf32> to vector<32x1xf32>
      %158 = vector.extract_strided_slice %138 {offsets = [0, 192], sizes = [32, 64], strides = [1, 1]} : vector<32x1024xf32> to vector<32x64xf32>
      %159 = vector.broadcast %157 : vector<32x1xf32> to vector<32x64xf32>
      %160 = arith.mulf %159, %158 : vector<32x64xf32>
      %161 = arith.addf %156, %160 : vector<32x64xf32>
      %162 = vector.extract_strided_slice %33 {offsets = [0, 20], sizes = [32, 1], strides = [1, 1]} : vector<32x32xf32> to vector<32x1xf32>
      %163 = vector.extract_strided_slice %138 {offsets = [0, 256], sizes = [32, 64], strides = [1, 1]} : vector<32x1024xf32> to vector<32x64xf32>
      %164 = vector.broadcast %162 : vector<32x1xf32> to vector<32x64xf32>
      %165 = arith.mulf %164, %163 : vector<32x64xf32>
      %166 = arith.addf %161, %165 : vector<32x64xf32>
      %167 = vector.extract_strided_slice %33 {offsets = [0, 21], sizes = [32, 1], strides = [1, 1]} : vector<32x32xf32> to vector<32x1xf32>
      %168 = vector.extract_strided_slice %138 {offsets = [0, 320], sizes = [32, 64], strides = [1, 1]} : vector<32x1024xf32> to vector<32x64xf32>
      %169 = vector.broadcast %167 : vector<32x1xf32> to vector<32x64xf32>
      %170 = arith.mulf %169, %168 : vector<32x64xf32>
      %171 = arith.addf %166, %170 : vector<32x64xf32>
      %172 = vector.extract_strided_slice %33 {offsets = [0, 22], sizes = [32, 1], strides = [1, 1]} : vector<32x32xf32> to vector<32x1xf32>
      %173 = vector.extract_strided_slice %138 {offsets = [0, 384], sizes = [32, 64], strides = [1, 1]} : vector<32x1024xf32> to vector<32x64xf32>
      %174 = vector.broadcast %172 : vector<32x1xf32> to vector<32x64xf32>
      %175 = arith.mulf %174, %173 : vector<32x64xf32>
      %176 = arith.addf %171, %175 : vector<32x64xf32>
      %177 = vector.extract_strided_slice %33 {offsets = [0, 23], sizes = [32, 1], strides = [1, 1]} : vector<32x32xf32> to vector<32x1xf32>
      %178 = vector.extract_strided_slice %138 {offsets = [0, 448], sizes = [32, 64], strides = [1, 1]} : vector<32x1024xf32> to vector<32x64xf32>
      %179 = vector.broadcast %177 : vector<32x1xf32> to vector<32x64xf32>
      %180 = arith.mulf %179, %178 : vector<32x64xf32>
      %181 = arith.addf %176, %180 : vector<32x64xf32>
      %182 = vector.extract_strided_slice %33 {offsets = [0, 24], sizes = [32, 1], strides = [1, 1]} : vector<32x32xf32> to vector<32x1xf32>
      %183 = vector.extract_strided_slice %138 {offsets = [0, 512], sizes = [32, 64], strides = [1, 1]} : vector<32x1024xf32> to vector<32x64xf32>
      %184 = vector.broadcast %182 : vector<32x1xf32> to vector<32x64xf32>
      %185 = arith.mulf %184, %183 : vector<32x64xf32>
      %186 = arith.addf %181, %185 : vector<32x64xf32>
      %187 = vector.extract_strided_slice %33 {offsets = [0, 25], sizes = [32, 1], strides = [1, 1]} : vector<32x32xf32> to vector<32x1xf32>
      %188 = vector.extract_strided_slice %138 {offsets = [0, 576], sizes = [32, 64], strides = [1, 1]} : vector<32x1024xf32> to vector<32x64xf32>
      %189 = vector.broadcast %187 : vector<32x1xf32> to vector<32x64xf32>
      %190 = arith.mulf %189, %188 : vector<32x64xf32>
      %191 = arith.addf %186, %190 : vector<32x64xf32>
      %192 = vector.extract_strided_slice %33 {offsets = [0, 26], sizes = [32, 1], strides = [1, 1]} : vector<32x32xf32> to vector<32x1xf32>
      %193 = vector.extract_strided_slice %138 {offsets = [0, 640], sizes = [32, 64], strides = [1, 1]} : vector<32x1024xf32> to vector<32x64xf32>
      %194 = vector.broadcast %192 : vector<32x1xf32> to vector<32x64xf32>
      %195 = arith.mulf %194, %193 : vector<32x64xf32>
      %196 = arith.addf %191, %195 : vector<32x64xf32>
      %197 = vector.extract_strided_slice %33 {offsets = [0, 27], sizes = [32, 1], strides = [1, 1]} : vector<32x32xf32> to vector<32x1xf32>
      %198 = vector.extract_strided_slice %138 {offsets = [0, 704], sizes = [32, 64], strides = [1, 1]} : vector<32x1024xf32> to vector<32x64xf32>
      %199 = vector.broadcast %197 : vector<32x1xf32> to vector<32x64xf32>
      %200 = arith.mulf %199, %198 : vector<32x64xf32>
      %201 = arith.addf %196, %200 : vector<32x64xf32>
      %202 = vector.extract_strided_slice %33 {offsets = [0, 28], sizes = [32, 1], strides = [1, 1]} : vector<32x32xf32> to vector<32x1xf32>
      %203 = vector.extract_strided_slice %138 {offsets = [0, 768], sizes = [32, 64], strides = [1, 1]} : vector<32x1024xf32> to vector<32x64xf32>
      %204 = vector.broadcast %202 : vector<32x1xf32> to vector<32x64xf32>
      %205 = arith.mulf %204, %203 : vector<32x64xf32>
      %206 = arith.addf %201, %205 : vector<32x64xf32>
      %207 = vector.extract_strided_slice %33 {offsets = [0, 29], sizes = [32, 1], strides = [1, 1]} : vector<32x32xf32> to vector<32x1xf32>
      %208 = vector.extract_strided_slice %138 {offsets = [0, 832], sizes = [32, 64], strides = [1, 1]} : vector<32x1024xf32> to vector<32x64xf32>
      %209 = vector.broadcast %207 : vector<32x1xf32> to vector<32x64xf32>
      %210 = arith.mulf %209, %208 : vector<32x64xf32>
      %211 = arith.addf %206, %210 : vector<32x64xf32>
      %212 = vector.extract_strided_slice %33 {offsets = [0, 30], sizes = [32, 1], strides = [1, 1]} : vector<32x32xf32> to vector<32x1xf32>
      %213 = vector.extract_strided_slice %138 {offsets = [0, 896], sizes = [32, 64], strides = [1, 1]} : vector<32x1024xf32> to vector<32x64xf32>
      %214 = vector.broadcast %212 : vector<32x1xf32> to vector<32x64xf32>
      %215 = arith.mulf %214, %213 : vector<32x64xf32>
      %216 = arith.addf %211, %215 : vector<32x64xf32>
      %217 = vector.extract_strided_slice %33 {offsets = [0, 31], sizes = [32, 1], strides = [1, 1]} : vector<32x32xf32> to vector<32x1xf32>
      %218 = vector.extract_strided_slice %138 {offsets = [0, 960], sizes = [32, 64], strides = [1, 1]} : vector<32x1024xf32> to vector<32x64xf32>
      %219 = vector.broadcast %217 : vector<32x1xf32> to vector<32x64xf32>
      %220 = arith.mulf %219, %218 : vector<32x64xf32>
      %221 = arith.addf %216, %220 : vector<32x64xf32>
      %c0_36 = arith.constant 0 : index
      %222 = arith.index_cast %27 : i32 to index
      %c0_37 = arith.constant 0 : index
      %223 = vector.load %arg6[%c0_36, %222, %c0_37] : memref<1x64x64xf32, #tpu.memory_space<vmem>>, vector<1x32x64xf32>
      %224 = vector.shape_cast %223 : vector<1x32x64xf32> to vector<32x64xf32>
      %225 = vector.shape_cast %221 : vector<32x64xf32> to vector<1x32x64xf32>
      tpu.vector_store %arg6[%c0_36, %222, %c0_37], %225 {strides = array<i32>} : memref<1x64x64xf32, #tpu.memory_space<vmem>>, vector<1x32x64xf32>,
      %226 = vector.extract_strided_slice %138 {offsets = [31, 0], sizes = [1, 1024], strides = [1, 1]} : vector<32x1024xf32> to vector<1x1024xf32>
      scf.yield %226 : vector<1x1024xf32>
    }
    %c2_i32_16 = arith.constant 2 : i32
    return
  }
  func.func @transform_0(%arg0: i32) -> (i32, i32, i32) {
    %c0_i32 = arith.constant 0 : i32
    %c0_i32_0 = arith.constant 0 : i32
    %c0_i32_1 = arith.constant 0 : i32
    return %arg0, %c0_i32, %c0_i32_0 : i32, i32, i32
  }
  func.func @transform_1(%arg0: i32) -> (i32, i32) {
    %c0_i32 = arith.constant 0 : i32
    %c0_i32_0 = arith.constant 0 : i32
    %c0_i32_1 = arith.constant 0 : i32
    return %c0_i32, %c0_i32_0 : i32, i32
  }
  func.func @transform_2(%arg0: i32) -> (i32, i32) {
    %c0_i32 = arith.constant 0 : i32
    %c0_i32_0 = arith.constant 0 : i32
    %c0_i32_1 = arith.constant 0 : i32
    return %c0_i32, %c0_i32_0 : i32, i32
  }
  func.func @transform_3(%arg0: i32) -> (i32, i32) {
    %c0_i32 = arith.constant 0 : i32
    %c0_i32_0 = arith.constant 0 : i32
    %c0_i32_1 = arith.constant 0 : i32
    return %c0_i32, %c0_i32_0 : i32, i32
  }
  func.func @transform_4(%arg0: i32) -> (i32, i32) {
    %c0_i32 = arith.constant 0 : i32
    %c0_i32_0 = arith.constant 0 : i32
    %c0_i32_1 = arith.constant 0 : i32
    return %c0_i32, %c0_i32_0 : i32, i32
  }
  func.func @transform_5(%arg0: i32) -> (i32, i32, i32) {
    %c0_i32 = arith.constant 0 : i32
    %c0_i32_0 = arith.constant 0 : i32
    %c0_i32_1 = arith.constant 0 : i32
    return %arg0, %c0_i32, %c0_i32_0 : i32, i32, i32
  }
}

module attributes {stable_mosaic.version = 11 : i64} {
  func.func @_tail_kernel(%arg0: i32, %arg1: i32, %arg2: memref<1x64x64xf32, #tpu.memory_space<vmem>>, %arg3: memref<1x64x64xf32, #tpu.memory_space<vmem>>, %arg4: memref<1x64x32xf32, #tpu.memory_space<vmem>>, %arg5: memref<1x64xf32, #tpu.memory_space<vmem>>, %arg6: memref<1x64xf32, #tpu.memory_space<vmem>>, %arg7: memref<64x32xbf16, #tpu.memory_space<vmem>>, %arg8: memref<1x32xf32, #tpu.memory_space<vmem>>, %arg9: memref<1x32xf32, #tpu.memory_space<vmem>>, %arg10: memref<1x32xf32, #tpu.memory_space<vmem>>, %arg11: memref<1x64x32xf32, #tpu.memory_space<vmem>>, %arg12: memref<1x64x32xbf16, #tpu.memory_space<vmem>>) attributes {dimension_semantics = [#tpu.dimension_semantics<parallel>, #tpu.dimension_semantics<parallel>], iteration_bounds = array<i64: 2, 1>, scalar_prefetch = 0 : i64, scratch_operands = 0 : i64, tpu.core_type = #tpu.core_type<tc>, window_params = [{transform_indices = @transform_0, window_bounds = array<i64: 1, 64, 64>}, {transform_indices = @transform_1, window_bounds = array<i64: 1, 64, 64>}, {transform_indices = @transform_2, window_bounds = array<i64: 1, 64, 32>}, {pipeline_mode = #tpu.pipeline_mode<synchronous>, transform_indices = @transform_3, window_bounds = array<i64: 1, 64>}, {pipeline_mode = #tpu.pipeline_mode<synchronous>, transform_indices = @transform_4, window_bounds = array<i64: 1, 64>}, {pipeline_mode = #tpu.pipeline_mode<synchronous>, transform_indices = @transform_5, window_bounds = array<i64: 64, 32>}, {pipeline_mode = #tpu.pipeline_mode<synchronous>, transform_indices = @transform_6, window_bounds = array<i64: 1, 32>}, {pipeline_mode = #tpu.pipeline_mode<synchronous>, transform_indices = @transform_7, window_bounds = array<i64: 1, 32>}, {pipeline_mode = #tpu.pipeline_mode<synchronous>, transform_indices = @transform_8, window_bounds = array<i64: 1, 32>}, {transform_indices = @transform_9, window_bounds = array<i64: 1, 64, 32>}, {transform_indices = @transform_10, window_bounds = array<i64: 1, 64, 32>}]} {
    %c0 = arith.constant 0 : index
    %c0_0 = arith.constant 0 : index
    %c0_1 = arith.constant 0 : index
    %0 = vector.load %arg2[%c0, %c0_0, %c0_1] : memref<1x64x64xf32, #tpu.memory_space<vmem>>, vector<1x64x64xf32>
    %1 = vector.shape_cast %0 : vector<1x64x64xf32> to vector<64x64xf32>
    %cst = arith.constant dense<0.000000e+00> : vector<64xf32>
    %2 = vector.multi_reduction <add>, %1, %cst [1] : vector<64x64xf32> to vector<64xf32>
    %3 = vector.shape_cast %2 : vector<64xf32> to vector<64x1xf32>
    %cst_2 = arith.constant 6.400000e+01 : f32
    %4 = vector.broadcast %cst_2 : f32 to vector<64x1xf32>
    %5 = arith.divf %3, %4 : vector<64x1xf32>
    %6 = vector.broadcast %5 : vector<64x1xf32> to vector<64x64xf32>
    %7 = arith.subf %1, %6 : vector<64x64xf32>
    %8 = arith.mulf %7, %7 : vector<64x64xf32>
    %cst_3 = arith.constant dense<0.000000e+00> : vector<64xf32>
    %9 = vector.multi_reduction <add>, %8, %cst_3 [1] : vector<64x64xf32> to vector<64xf32>
    %10 = vector.shape_cast %9 : vector<64xf32> to vector<64x1xf32>
    %cst_4 = arith.constant 6.400000e+01 : f32
    %11 = vector.broadcast %cst_4 : f32 to vector<64x1xf32>
    %12 = arith.divf %10, %11 : vector<64x1xf32>
    %cst_5 = arith.constant 9.99999974E-6 : f32
    %13 = vector.broadcast %cst_5 : f32 to vector<64x1xf32>
    %14 = arith.addf %12, %13 : vector<64x1xf32>
    %15 = math.rsqrt %14 : vector<64x1xf32>
    %16 = vector.broadcast %15 : vector<64x1xf32> to vector<64x64xf32>
    %17 = arith.mulf %7, %16 : vector<64x64xf32>
    %c0_6 = arith.constant 0 : index
    %c0_7 = arith.constant 0 : index
    %18 = vector.load %arg5[%c0_6, %c0_7] : memref<1x64xf32, #tpu.memory_space<vmem>>, vector<1x64xf32>
    %19 = vector.broadcast %18 : vector<1x64xf32> to vector<64x64xf32>
    %20 = arith.mulf %17, %19 : vector<64x64xf32>
    %c0_8 = arith.constant 0 : index
    %c0_9 = arith.constant 0 : index
    %21 = vector.load %arg6[%c0_8, %c0_9] : memref<1x64xf32, #tpu.memory_space<vmem>>, vector<1x64xf32>
    %22 = vector.broadcast %21 : vector<1x64xf32> to vector<64x64xf32>
    %23 = arith.addf %20, %22 : vector<64x64xf32>
    %c0_10 = arith.constant 0 : index
    %c0_11 = arith.constant 0 : index
    %c0_12 = arith.constant 0 : index
    %24 = vector.load %arg3[%c0_10, %c0_11, %c0_12] : memref<1x64x64xf32, #tpu.memory_space<vmem>>, vector<1x64x64xf32>
    %25 = vector.shape_cast %24 : vector<1x64x64xf32> to vector<64x64xf32>
    %26 = arith.negf %25 : vector<64x64xf32>
    %27 = math.exp %26 : vector<64x64xf32>
    %cst_13 = arith.constant 1.000000e+00 : f32
    %28 = vector.broadcast %cst_13 : f32 to vector<64x64xf32>
    %29 = arith.addf %28, %27 : vector<64x64xf32>
    %30 = arith.divf %28, %29 : vector<64x64xf32>
    %31 = arith.mulf %25, %30 : vector<64x64xf32>
    %32 = arith.mulf %23, %31 : vector<64x64xf32>
    %33 = arith.truncf %32 : vector<64x64xf32> to vector<64x64xbf16>
    %c0_14 = arith.constant 0 : index
    %c0_15 = arith.constant 0 : index
    %34 = vector.load %arg7[%c0_14, %c0_15] : memref<64x32xbf16, #tpu.memory_space<vmem>>, vector<64x32xbf16>
    %cst_16 = arith.constant dense<0.000000e+00> : vector<64x32xf32>
    %35 = tpu.matmul %33, %34, %cst_16 {dimension_numbers = #tpu.dot_dimension_numbers<[1], [0], [0], [1], [0, 0, 1, 1], [], []>} : vector<64x64xbf16>, vector<64x32xbf16>, vector<64x32xf32> -> vector<64x32xf32>
    %c0_17 = arith.constant 0 : index
    %c0_18 = arith.constant 0 : index
    %c0_19 = arith.constant 0 : index
    %36 = vector.load %arg4[%c0_17, %c0_18, %c0_19] : memref<1x64x32xf32, #tpu.memory_space<vmem>>, vector<1x64x32xf32>
    %37 = vector.shape_cast %36 : vector<1x64x32xf32> to vector<64x32xf32>
    %c0_20 = arith.constant 0 : index
    %c0_21 = arith.constant 0 : index
    %38 = vector.load %arg8[%c0_20, %c0_21] : memref<1x32xf32, #tpu.memory_space<vmem>>, vector<1x32xf32>
    %39 = vector.broadcast %38 : vector<1x32xf32> to vector<64x32xf32>
    %40 = arith.mulf %37, %39 : vector<64x32xf32>
    %41 = arith.addf %40, %35 : vector<64x32xf32>
    %c0_22 = arith.constant 0 : index
    %c0_23 = arith.constant 0 : index
    %c0_24 = arith.constant 0 : index
    %42 = vector.load %arg11[%c0_22, %c0_23, %c0_24] : memref<1x64x32xf32, #tpu.memory_space<vmem>>, vector<1x64x32xf32>
    %43 = vector.shape_cast %42 : vector<1x64x32xf32> to vector<64x32xf32>
    %44 = vector.shape_cast %41 : vector<64x32xf32> to vector<1x64x32xf32>
    tpu.vector_store %arg11[%c0_22, %c0_23, %c0_24], %44 {strides = array<i32>} : memref<1x64x32xf32, #tpu.memory_space<vmem>>, vector<1x64x32xf32>,
    %cst_25 = arith.constant dense<0.000000e+00> : vector<64xf32>
    %45 = vector.multi_reduction <add>, %41, %cst_25 [1] : vector<64x32xf32> to vector<64xf32>
    %46 = vector.shape_cast %45 : vector<64xf32> to vector<64x1xf32>
    %cst_26 = arith.constant 3.200000e+01 : f32
    %47 = vector.broadcast %cst_26 : f32 to vector<64x1xf32>
    %48 = arith.divf %46, %47 : vector<64x1xf32>
    %49 = vector.broadcast %48 : vector<64x1xf32> to vector<64x32xf32>
    %50 = arith.subf %41, %49 : vector<64x32xf32>
    %51 = arith.mulf %50, %50 : vector<64x32xf32>
    %cst_27 = arith.constant dense<0.000000e+00> : vector<64xf32>
    %52 = vector.multi_reduction <add>, %51, %cst_27 [1] : vector<64x32xf32> to vector<64xf32>
    %53 = vector.shape_cast %52 : vector<64xf32> to vector<64x1xf32>
    %cst_28 = arith.constant 3.200000e+01 : f32
    %54 = vector.broadcast %cst_28 : f32 to vector<64x1xf32>
    %55 = arith.divf %53, %54 : vector<64x1xf32>
    %cst_29 = arith.constant 9.99999974E-6 : f32
    %56 = vector.broadcast %cst_29 : f32 to vector<64x1xf32>
    %57 = arith.addf %55, %56 : vector<64x1xf32>
    %58 = math.rsqrt %57 : vector<64x1xf32>
    %59 = vector.broadcast %58 : vector<64x1xf32> to vector<64x32xf32>
    %60 = arith.mulf %50, %59 : vector<64x32xf32>
    %c0_30 = arith.constant 0 : index
    %c0_31 = arith.constant 0 : index
    %61 = vector.load %arg9[%c0_30, %c0_31] : memref<1x32xf32, #tpu.memory_space<vmem>>, vector<1x32xf32>
    %62 = vector.broadcast %61 : vector<1x32xf32> to vector<64x32xf32>
    %63 = arith.mulf %60, %62 : vector<64x32xf32>
    %c0_32 = arith.constant 0 : index
    %c0_33 = arith.constant 0 : index
    %64 = vector.load %arg10[%c0_32, %c0_33] : memref<1x32xf32, #tpu.memory_space<vmem>>, vector<1x32xf32>
    %65 = vector.broadcast %64 : vector<1x32xf32> to vector<64x32xf32>
    %66 = arith.addf %63, %65 : vector<64x32xf32>
    %67 = arith.truncf %66 : vector<64x32xf32> to vector<64x32xbf16>
    %c0_34 = arith.constant 0 : index
    %c0_35 = arith.constant 0 : index
    %c0_36 = arith.constant 0 : index
    %68 = vector.load %arg12[%c0_34, %c0_35, %c0_36] : memref<1x64x32xbf16, #tpu.memory_space<vmem>>, vector<1x64x32xbf16>
    %69 = vector.shape_cast %68 : vector<1x64x32xbf16> to vector<64x32xbf16>
    %70 = vector.shape_cast %67 : vector<64x32xbf16> to vector<1x64x32xbf16>
    tpu.vector_store %arg12[%c0_34, %c0_35, %c0_36], %70 {strides = array<i32>} : memref<1x64x32xbf16, #tpu.memory_space<vmem>>, vector<1x64x32xbf16>,
    return
  }
  func.func @transform_0(%arg0: i32, %arg1: i32) -> (i32, i32, i32) {
    %c0_i32 = arith.constant 0 : i32
    %c0_i32_0 = arith.constant 0 : i32
    return %arg0, %arg1, %c0_i32 : i32, i32, i32
  }
  func.func @transform_1(%arg0: i32, %arg1: i32) -> (i32, i32, i32) {
    %c0_i32 = arith.constant 0 : i32
    %c0_i32_0 = arith.constant 0 : i32
    return %arg0, %arg1, %c0_i32 : i32, i32, i32
  }
  func.func @transform_2(%arg0: i32, %arg1: i32) -> (i32, i32, i32) {
    %c0_i32 = arith.constant 0 : i32
    %c0_i32_0 = arith.constant 0 : i32
    return %arg0, %arg1, %c0_i32 : i32, i32, i32
  }
  func.func @transform_3(%arg0: i32, %arg1: i32) -> (i32, i32) {
    %c0_i32 = arith.constant 0 : i32
    %c0_i32_0 = arith.constant 0 : i32
    %c0_i32_1 = arith.constant 0 : i32
    return %c0_i32, %c0_i32_0 : i32, i32
  }
  func.func @transform_4(%arg0: i32, %arg1: i32) -> (i32, i32) {
    %c0_i32 = arith.constant 0 : i32
    %c0_i32_0 = arith.constant 0 : i32
    %c0_i32_1 = arith.constant 0 : i32
    return %c0_i32, %c0_i32_0 : i32, i32
  }
  func.func @transform_5(%arg0: i32, %arg1: i32) -> (i32, i32) {
    %c0_i32 = arith.constant 0 : i32
    %c0_i32_0 = arith.constant 0 : i32
    %c0_i32_1 = arith.constant 0 : i32
    return %c0_i32, %c0_i32_0 : i32, i32
  }
  func.func @transform_6(%arg0: i32, %arg1: i32) -> (i32, i32) {
    %c0_i32 = arith.constant 0 : i32
    %c0_i32_0 = arith.constant 0 : i32
    %c0_i32_1 = arith.constant 0 : i32
    return %c0_i32, %c0_i32_0 : i32, i32
  }
  func.func @transform_7(%arg0: i32, %arg1: i32) -> (i32, i32) {
    %c0_i32 = arith.constant 0 : i32
    %c0_i32_0 = arith.constant 0 : i32
    %c0_i32_1 = arith.constant 0 : i32
    return %c0_i32, %c0_i32_0 : i32, i32
  }
  func.func @transform_8(%arg0: i32, %arg1: i32) -> (i32, i32) {
    %c0_i32 = arith.constant 0 : i32
    %c0_i32_0 = arith.constant 0 : i32
    %c0_i32_1 = arith.constant 0 : i32
    return %c0_i32, %c0_i32_0 : i32, i32
  }
  func.func @transform_9(%arg0: i32, %arg1: i32) -> (i32, i32, i32) {
    %c0_i32 = arith.constant 0 : i32
    %c0_i32_0 = arith.constant 0 : i32
    return %arg0, %arg1, %c0_i32 : i32, i32, i32
  }
  func.func @transform_10(%arg0: i32, %arg1: i32) -> (i32, i32, i32) {
    %c0_i32 = arith.constant 0 : i32
    %c0_i32_0 = arith.constant 0 : i32
    return %arg0, %arg1, %c0_i32 : i32, i32, i32
  }
}

module attributes {stable_mosaic.version = 11 : i64} {
  func.func @_conv3x3_gelu_kernel(%arg0: i32, %arg1: memref<1x108x32xbf16, #tpu.memory_space<vmem>>, %arg2: memref<3x96x10xbf16, #tpu.memory_space<vmem>>, %arg3: memref<1x10xf32, #tpu.memory_space<vmem>>, %arg4: memref<1x64x10xbf16, #tpu.memory_space<vmem>>) attributes {dimension_semantics = [#tpu.dimension_semantics<parallel>], iteration_bounds = array<i64: 2>, scalar_prefetch = 0 : i64, scratch_operands = 0 : i64, tpu.core_type = #tpu.core_type<tc>, window_params = [{transform_indices = @transform_0, window_bounds = array<i64: 1, 108, 32>}, {pipeline_mode = #tpu.pipeline_mode<synchronous>, transform_indices = @transform_1, window_bounds = array<i64: 3, 96, 10>}, {pipeline_mode = #tpu.pipeline_mode<synchronous>, transform_indices = @transform_2, window_bounds = array<i64: 1, 10>}, {transform_indices = @transform_3, window_bounds = array<i64: 1, 64, 10>}]} {
    %cst = arith.constant 0.000000e+00 : f32
    %0 = vector.broadcast %cst : f32 to vector<80x10xf32>
    %c0 = arith.constant 0 : index
    %c0_0 = arith.constant 0 : index
    %c0_1 = arith.constant 0 : index
    %1 = vector.load %arg1[%c0, %c0_0, %c0_1] : memref<1x108x32xbf16, #tpu.memory_space<vmem>>, vector<1x80x32xbf16>
    %2 = vector.shape_cast %1 : vector<1x80x32xbf16> to vector<80x32xbf16>
    %c0_2 = arith.constant 0 : index
    %c1 = arith.constant 1 : index
    %c0_3 = arith.constant 0 : index
    %3 = vector.load %arg1[%c0_2, %c1, %c0_3] : memref<1x108x32xbf16, #tpu.memory_space<vmem>>, vector<1x80x32xbf16>
    %4 = vector.shape_cast %3 : vector<1x80x32xbf16> to vector<80x32xbf16>
    %c0_4 = arith.constant 0 : index
    %c2 = arith.constant 2 : index
    %c0_5 = arith.constant 0 : index
    %5 = vector.load %arg1[%c0_4, %c2, %c0_5] : memref<1x108x32xbf16, #tpu.memory_space<vmem>>, vector<1x80x32xbf16>
    %6 = vector.shape_cast %5 : vector<1x80x32xbf16> to vector<80x32xbf16>
    %7 = tpu.concatenate %2, %4, %6 in 1 : vector<80x32xbf16>, vector<80x32xbf16>, vector<80x32xbf16> -> vector<80x96xbf16>
    %c0_6 = arith.constant 0 : index
    %c0_7 = arith.constant 0 : index
    %c0_8 = arith.constant 0 : index
    %8 = vector.load %arg2[%c0_6, %c0_7, %c0_8] : memref<3x96x10xbf16, #tpu.memory_space<vmem>>, vector<1x96x10xbf16>
    %9 = vector.shape_cast %8 : vector<1x96x10xbf16> to vector<96x10xbf16>
    %cst_9 = arith.constant dense<0.000000e+00> : vector<80x10xf32>
    %10 = tpu.matmul %7, %9, %cst_9 {dimension_numbers = #tpu.dot_dimension_numbers<[1], [0], [0], [1], [0, 0, 1, 1], [], []>} : vector<80x96xbf16>, vector<96x10xbf16>, vector<80x10xf32> -> vector<80x10xf32>
    %11 = arith.addf %0, %10 : vector<80x10xf32>
    %c0_10 = arith.constant 0 : index
    %c10 = arith.constant 10 : index
    %c0_11 = arith.constant 0 : index
    %12 = vector.load %arg1[%c0_10, %c10, %c0_11] : memref<1x108x32xbf16, #tpu.memory_space<vmem>>, vector<1x80x32xbf16>
    %13 = vector.shape_cast %12 : vector<1x80x32xbf16> to vector<80x32xbf16>
    %c0_12 = arith.constant 0 : index
    %c11 = arith.constant 11 : index
    %c0_13 = arith.constant 0 : index
    %14 = vector.load %arg1[%c0_12, %c11, %c0_13] : memref<1x108x32xbf16, #tpu.memory_space<vmem>>, vector<1x80x32xbf16>
    %15 = vector.shape_cast %14 : vector<1x80x32xbf16> to vector<80x32xbf16>
    %c0_14 = arith.constant 0 : index
    %c12 = arith.constant 12 : index
    %c0_15 = arith.constant 0 : index
    %16 = vector.load %arg1[%c0_14, %c12, %c0_15] : memref<1x108x32xbf16, #tpu.memory_space<vmem>>, vector<1x80x32xbf16>
    %17 = vector.shape_cast %16 : vector<1x80x32xbf16> to vector<80x32xbf16>
    %18 = tpu.concatenate %13, %15, %17 in 1 : vector<80x32xbf16>, vector<80x32xbf16>, vector<80x32xbf16> -> vector<80x96xbf16>
    %c1_16 = arith.constant 1 : index
    %c0_17 = arith.constant 0 : index
    %c0_18 = arith.constant 0 : index
    %19 = vector.load %arg2[%c1_16, %c0_17, %c0_18] : memref<3x96x10xbf16, #tpu.memory_space<vmem>>, vector<1x96x10xbf16>
    %20 = vector.shape_cast %19 : vector<1x96x10xbf16> to vector<96x10xbf16>
    %cst_19 = arith.constant dense<0.000000e+00> : vector<80x10xf32>
    %21 = tpu.matmul %18, %20, %cst_19 {dimension_numbers = #tpu.dot_dimension_numbers<[1], [0], [0], [1], [0, 0, 1, 1], [], []>} : vector<80x96xbf16>, vector<96x10xbf16>, vector<80x10xf32> -> vector<80x10xf32>
    %22 = arith.addf %11, %21 : vector<80x10xf32>
    %c0_20 = arith.constant 0 : index
    %c20 = arith.constant 20 : index
    %c0_21 = arith.constant 0 : index
    %23 = vector.load %arg1[%c0_20, %c20, %c0_21] : memref<1x108x32xbf16, #tpu.memory_space<vmem>>, vector<1x80x32xbf16>
    %24 = vector.shape_cast %23 : vector<1x80x32xbf16> to vector<80x32xbf16>
    %c0_22 = arith.constant 0 : index
    %c21 = arith.constant 21 : index
    %c0_23 = arith.constant 0 : index
    %25 = vector.load %arg1[%c0_22, %c21, %c0_23] : memref<1x108x32xbf16, #tpu.memory_space<vmem>>, vector<1x80x32xbf16>
    %26 = vector.shape_cast %25 : vector<1x80x32xbf16> to vector<80x32xbf16>
    %c0_24 = arith.constant 0 : index
    %c22 = arith.constant 22 : index
    %c0_25 = arith.constant 0 : index
    %27 = vector.load %arg1[%c0_24, %c22, %c0_25] : memref<1x108x32xbf16, #tpu.memory_space<vmem>>, vector<1x80x32xbf16>
    %28 = vector.shape_cast %27 : vector<1x80x32xbf16> to vector<80x32xbf16>
    %29 = tpu.concatenate %24, %26, %28 in 1 : vector<80x32xbf16>, vector<80x32xbf16>, vector<80x32xbf16> -> vector<80x96xbf16>
    %c2_26 = arith.constant 2 : index
    %c0_27 = arith.constant 0 : index
    %c0_28 = arith.constant 0 : index
    %30 = vector.load %arg2[%c2_26, %c0_27, %c0_28] : memref<3x96x10xbf16, #tpu.memory_space<vmem>>, vector<1x96x10xbf16>
    %31 = vector.shape_cast %30 : vector<1x96x10xbf16> to vector<96x10xbf16>
    %cst_29 = arith.constant dense<0.000000e+00> : vector<80x10xf32>
    %32 = tpu.matmul %29, %31, %cst_29 {dimension_numbers = #tpu.dot_dimension_numbers<[1], [0], [0], [1], [0, 0, 1, 1], [], []>} : vector<80x96xbf16>, vector<96x10xbf16>, vector<80x10xf32> -> vector<80x10xf32>
    %33 = arith.addf %22, %32 : vector<80x10xf32>
    %c0_30 = arith.constant 0 : index
    %c0_31 = arith.constant 0 : index
    %34 = vector.load %arg3[%c0_30, %c0_31] : memref<1x10xf32, #tpu.memory_space<vmem>>, vector<1x10xf32>
    %35 = vector.broadcast %34 : vector<1x10xf32> to vector<80x10xf32>
    %36 = arith.addf %33, %35 : vector<80x10xf32>
    %37 = vector.extract_strided_slice %36 {offsets = [0, 0], sizes = [8, 10], strides = [1, 1]} : vector<80x10xf32> to vector<8x10xf32>
    %38 = vector.extract_strided_slice %36 {offsets = [10, 0], sizes = [8, 10], strides = [1, 1]} : vector<80x10xf32> to vector<8x10xf32>
    %39 = vector.extract_strided_slice %36 {offsets = [20, 0], sizes = [8, 10], strides = [1, 1]} : vector<80x10xf32> to vector<8x10xf32>
    %40 = vector.extract_strided_slice %36 {offsets = [30, 0], sizes = [8, 10], strides = [1, 1]} : vector<80x10xf32> to vector<8x10xf32>
    %41 = vector.extract_strided_slice %36 {offsets = [40, 0], sizes = [8, 10], strides = [1, 1]} : vector<80x10xf32> to vector<8x10xf32>
    %42 = vector.extract_strided_slice %36 {offsets = [50, 0], sizes = [8, 10], strides = [1, 1]} : vector<80x10xf32> to vector<8x10xf32>
    %43 = vector.extract_strided_slice %36 {offsets = [60, 0], sizes = [8, 10], strides = [1, 1]} : vector<80x10xf32> to vector<8x10xf32>
    %44 = vector.extract_strided_slice %36 {offsets = [70, 0], sizes = [8, 10], strides = [1, 1]} : vector<80x10xf32> to vector<8x10xf32>
    %45 = tpu.concatenate %37, %38, %39, %40, %41, %42, %43, %44 in 0 : vector<8x10xf32>, vector<8x10xf32>, vector<8x10xf32>, vector<8x10xf32>, vector<8x10xf32>, vector<8x10xf32>, vector<8x10xf32>, vector<8x10xf32> -> vector<64x10xf32>
    %cst_32 = arith.constant 5.000000e-01 : f32
    %46 = vector.broadcast %cst_32 : f32 to vector<64x10xf32>
    %47 = arith.mulf %46, %45 : vector<64x10xf32>
    %cst_33 = arith.constant 0.707106769 : f32
    %48 = vector.broadcast %cst_33 : f32 to vector<64x10xf32>
    %49 = arith.mulf %45, %48 : vector<64x10xf32>
    %cst_34 = arith.constant 0.000000e+00 : f32
    %50 = vector.broadcast %cst_34 : f32 to vector<64x10xf32>
    %51 = arith.cmpf oge, %49, %50 : vector<64x10xf32>
    %cst_35 = arith.constant 1.000000e+00 : f32
    %cst_36 = arith.constant -1.000000e+00 : f32
    %52 = vector.broadcast %cst_35 : f32 to vector<64x10xf32>
    %53 = vector.broadcast %cst_36 : f32 to vector<64x10xf32>
    %54 = arith.select %51, %52, %53 : vector<64x10xi1>, vector<64x10xf32>
    %55 = math.absf %49 : vector<64x10xf32>
    %cst_37 = arith.constant 0.327591091 : f32
    %56 = vector.broadcast %cst_37 : f32 to vector<64x10xf32>
    %57 = arith.mulf %56, %55 : vector<64x10xf32>
    %cst_38 = arith.constant 1.000000e+00 : f32
    %58 = vector.broadcast %cst_38 : f32 to vector<64x10xf32>
    %59 = arith.addf %58, %57 : vector<64x10xf32>
    %cst_39 = arith.constant 1.000000e+00 : f32
    %60 = vector.broadcast %cst_39 : f32 to vector<64x10xf32>
    %61 = arith.divf %60, %59 : vector<64x10xf32>
    %cst_40 = arith.constant 1.06140542 : f32
    %62 = vector.broadcast %cst_40 : f32 to vector<64x10xf32>
    %63 = arith.mulf %62, %61 : vector<64x10xf32>
    %cst_41 = arith.constant -1.45315206 : f32
    %64 = vector.broadcast %cst_41 : f32 to vector<64x10xf32>
    %65 = arith.addf %63, %64 : vector<64x10xf32>
    %66 = arith.mulf %65, %61 : vector<64x10xf32>
    %cst_42 = arith.constant 1.42141378 : f32
    %67 = vector.broadcast %cst_42 : f32 to vector<64x10xf32>
    %68 = arith.addf %66, %67 : vector<64x10xf32>
    %69 = arith.mulf %68, %61 : vector<64x10xf32>
    %cst_43 = arith.constant -0.284496725 : f32
    %70 = vector.broadcast %cst_43 : f32 to vector<64x10xf32>
    %71 = arith.addf %69, %70 : vector<64x10xf32>
    %72 = arith.mulf %71, %61 : vector<64x10xf32>
    %cst_44 = arith.constant 0.254829586 : f32
    %73 = vector.broadcast %cst_44 : f32 to vector<64x10xf32>
    %74 = arith.addf %72, %73 : vector<64x10xf32>
    %75 = arith.mulf %74, %61 : vector<64x10xf32>
    %cst_45 = arith.constant 0.000000e+00 : f32
    %76 = vector.broadcast %cst_45 : f32 to vector<64x10xf32>
    %77 = arith.subf %76, %55 : vector<64x10xf32>
    %78 = arith.mulf %77, %55 : vector<64x10xf32>
    %79 = math.exp %78 : vector<64x10xf32>
    %80 = arith.mulf %75, %79 : vector<64x10xf32>
    %cst_46 = arith.constant 1.000000e+00 : f32
    %81 = vector.broadcast %cst_46 : f32 to vector<64x10xf32>
    %82 = arith.subf %81, %80 : vector<64x10xf32>
    %83 = arith.mulf %54, %82 : vector<64x10xf32>
    %cst_47 = arith.constant 1.000000e+00 : f32
    %84 = vector.broadcast %cst_47 : f32 to vector<64x10xf32>
    %85 = arith.addf %84, %83 : vector<64x10xf32>
    %86 = arith.mulf %47, %85 : vector<64x10xf32>
    %87 = arith.truncf %86 : vector<64x10xf32> to vector<64x10xbf16>
    %c0_48 = arith.constant 0 : index
    %c0_49 = arith.constant 0 : index
    %c0_50 = arith.constant 0 : index
    %88 = vector.load %arg4[%c0_48, %c0_49, %c0_50] : memref<1x64x10xbf16, #tpu.memory_space<vmem>>, vector<1x64x10xbf16>
    %89 = vector.shape_cast %88 : vector<1x64x10xbf16> to vector<64x10xbf16>
    %90 = vector.shape_cast %87 : vector<64x10xbf16> to vector<1x64x10xbf16>
    tpu.vector_store %arg4[%c0_48, %c0_49, %c0_50], %90 {strides = array<i32>} : memref<1x64x10xbf16, #tpu.memory_space<vmem>>, vector<1x64x10xbf16>,
    return
  }
  func.func @transform_0(%arg0: i32) -> (i32, i32, i32) {
    %c0_i32 = arith.constant 0 : i32
    %c0_i32_0 = arith.constant 0 : i32
    %c0_i32_1 = arith.constant 0 : i32
    return %arg0, %c0_i32, %c0_i32_0 : i32, i32, i32
  }
  func.func @transform_1(%arg0: i32) -> (i32, i32, i32) {
    %c0_i32 = arith.constant 0 : i32
    %c0_i32_0 = arith.constant 0 : i32
    %c0_i32_1 = arith.constant 0 : i32
    %c0_i32_2 = arith.constant 0 : i32
    return %c0_i32, %c0_i32_0, %c0_i32_1 : i32, i32, i32
  }
  func.func @transform_2(%arg0: i32) -> (i32, i32) {
    %c0_i32 = arith.constant 0 : i32
    %c0_i32_0 = arith.constant 0 : i32
    %c0_i32_1 = arith.constant 0 : i32
    return %c0_i32, %c0_i32_0 : i32, i32
  }
  func.func @transform_3(%arg0: i32) -> (i32, i32, i32) {
    %c0_i32 = arith.constant 0 : i32
    %c0_i32_0 = arith.constant 0 : i32
    %c0_i32_1 = arith.constant 0 : i32
    return %arg0, %c0_i32, %c0_i32_0 : i32, i32, i32
  }
}

module attributes {stable_mosaic.version = 11 : i64} {
  func.func @_conv3x3_ca_res_kernel(%arg0: i32, %arg1: memref<1x108x10xbf16, #tpu.memory_space<vmem>>, %arg2: memref<3x30x32xbf16, #tpu.memory_space<vmem>>, %arg3: memref<1x32xf32, #tpu.memory_space<vmem>>, %arg4: memref<1x32xf32, #tpu.memory_space<vmem>>, %arg5: memref<1x1xf32, #tpu.memory_space<vmem>>, %arg6: memref<1x32xf32, #tpu.memory_space<vmem>>, %arg7: memref<1x32xf32, #tpu.memory_space<vmem>>, %arg8: memref<1x64x32xf32, #tpu.memory_space<vmem>>, %arg9: memref<1x32xf32, #tpu.memory_space<vmem>>, %arg10: memref<1x64x32xf32, #tpu.memory_space<vmem>>) attributes {dimension_semantics = [#tpu.dimension_semantics<parallel>], iteration_bounds = array<i64: 2>, scalar_prefetch = 0 : i64, scratch_operands = 0 : i64, tpu.core_type = #tpu.core_type<tc>, window_params = [{transform_indices = @transform_0, window_bounds = array<i64: 1, 108, 10>}, {pipeline_mode = #tpu.pipeline_mode<synchronous>, transform_indices = @transform_1, window_bounds = array<i64: 3, 30, 32>}, {pipeline_mode = #tpu.pipeline_mode<synchronous>, transform_indices = @transform_2, window_bounds = array<i64: 1, 32>}, {pipeline_mode = #tpu.pipeline_mode<synchronous>, transform_indices = @transform_3, window_bounds = array<i64: 1, 32>}, {pipeline_mode = #tpu.pipeline_mode<synchronous>, transform_indices = @transform_4, window_bounds = array<i64: 1, 1>}, {pipeline_mode = #tpu.pipeline_mode<synchronous>, transform_indices = @transform_5, window_bounds = array<i64: 1, 32>}, {pipeline_mode = #tpu.pipeline_mode<synchronous>, transform_indices = @transform_6, window_bounds = array<i64: 1, 32>}, {transform_indices = @transform_7, window_bounds = array<i64: 1, 64, 32>}, {pipeline_mode = #tpu.pipeline_mode<synchronous>, transform_indices = @transform_8, window_bounds = array<i64: 1, 32>}, {transform_indices = @transform_9, window_bounds = array<i64: 1, 64, 32>}]} {
    %cst = arith.constant 0.000000e+00 : f32
    %0 = vector.broadcast %cst : f32 to vector<80x32xf32>
    %c0 = arith.constant 0 : index
    %c0_0 = arith.constant 0 : index
    %c0_1 = arith.constant 0 : index
    %1 = vector.load %arg1[%c0, %c0_0, %c0_1] : memref<1x108x10xbf16, #tpu.memory_space<vmem>>, vector<1x80x10xbf16>
    %2 = vector.shape_cast %1 : vector<1x80x10xbf16> to vector<80x10xbf16>
    %c0_2 = arith.constant 0 : index
    %c1 = arith.constant 1 : index
    %c0_3 = arith.constant 0 : index
    %3 = vector.load %arg1[%c0_2, %c1, %c0_3] : memref<1x108x10xbf16, #tpu.memory_space<vmem>>, vector<1x80x10xbf16>
    %4 = vector.shape_cast %3 : vector<1x80x10xbf16> to vector<80x10xbf16>
    %c0_4 = arith.constant 0 : index
    %c2 = arith.constant 2 : index
    %c0_5 = arith.constant 0 : index
    %5 = vector.load %arg1[%c0_4, %c2, %c0_5] : memref<1x108x10xbf16, #tpu.memory_space<vmem>>, vector<1x80x10xbf16>
    %6 = vector.shape_cast %5 : vector<1x80x10xbf16> to vector<80x10xbf16>
    %7 = tpu.concatenate %2, %4, %6 in 1 : vector<80x10xbf16>, vector<80x10xbf16>, vector<80x10xbf16> -> vector<80x30xbf16>
    %c0_6 = arith.constant 0 : index
    %c0_7 = arith.constant 0 : index
    %c0_8 = arith.constant 0 : index
    %8 = vector.load %arg2[%c0_6, %c0_7, %c0_8] : memref<3x30x32xbf16, #tpu.memory_space<vmem>>, vector<1x30x32xbf16>
    %9 = vector.shape_cast %8 : vector<1x30x32xbf16> to vector<30x32xbf16>
    %cst_9 = arith.constant dense<0.000000e+00> : vector<80x32xf32>
    %10 = tpu.matmul %7, %9, %cst_9 {dimension_numbers = #tpu.dot_dimension_numbers<[1], [0], [0], [1], [0, 0, 1, 1], [], []>} : vector<80x30xbf16>, vector<30x32xbf16>, vector<80x32xf32> -> vector<80x32xf32>
    %11 = arith.addf %0, %10 : vector<80x32xf32>
    %c0_10 = arith.constant 0 : index
    %c10 = arith.constant 10 : index
    %c0_11 = arith.constant 0 : index
    %12 = vector.load %arg1[%c0_10, %c10, %c0_11] : memref<1x108x10xbf16, #tpu.memory_space<vmem>>, vector<1x80x10xbf16>
    %13 = vector.shape_cast %12 : vector<1x80x10xbf16> to vector<80x10xbf16>
    %c0_12 = arith.constant 0 : index
    %c11 = arith.constant 11 : index
    %c0_13 = arith.constant 0 : index
    %14 = vector.load %arg1[%c0_12, %c11, %c0_13] : memref<1x108x10xbf16, #tpu.memory_space<vmem>>, vector<1x80x10xbf16>
    %15 = vector.shape_cast %14 : vector<1x80x10xbf16> to vector<80x10xbf16>
    %c0_14 = arith.constant 0 : index
    %c12 = arith.constant 12 : index
    %c0_15 = arith.constant 0 : index
    %16 = vector.load %arg1[%c0_14, %c12, %c0_15] : memref<1x108x10xbf16, #tpu.memory_space<vmem>>, vector<1x80x10xbf16>
    %17 = vector.shape_cast %16 : vector<1x80x10xbf16> to vector<80x10xbf16>
    %18 = tpu.concatenate %13, %15, %17 in 1 : vector<80x10xbf16>, vector<80x10xbf16>, vector<80x10xbf16> -> vector<80x30xbf16>
    %c1_16 = arith.constant 1 : index
    %c0_17 = arith.constant 0 : index
    %c0_18 = arith.constant 0 : index
    %19 = vector.load %arg2[%c1_16, %c0_17, %c0_18] : memref<3x30x32xbf16, #tpu.memory_space<vmem>>, vector<1x30x32xbf16>
    %20 = vector.shape_cast %19 : vector<1x30x32xbf16> to vector<30x32xbf16>
    %cst_19 = arith.constant dense<0.000000e+00> : vector<80x32xf32>
    %21 = tpu.matmul %18, %20, %cst_19 {dimension_numbers = #tpu.dot_dimension_numbers<[1], [0], [0], [1], [0, 0, 1, 1], [], []>} : vector<80x30xbf16>, vector<30x32xbf16>, vector<80x32xf32> -> vector<80x32xf32>
    %22 = arith.addf %11, %21 : vector<80x32xf32>
    %c0_20 = arith.constant 0 : index
    %c20 = arith.constant 20 : index
    %c0_21 = arith.constant 0 : index
    %23 = vector.load %arg1[%c0_20, %c20, %c0_21] : memref<1x108x10xbf16, #tpu.memory_space<vmem>>, vector<1x80x10xbf16>
    %24 = vector.shape_cast %23 : vector<1x80x10xbf16> to vector<80x10xbf16>
    %c0_22 = arith.constant 0 : index
    %c21 = arith.constant 21 : index
    %c0_23 = arith.constant 0 : index
    %25 = vector.load %arg1[%c0_22, %c21, %c0_23] : memref<1x108x10xbf16, #tpu.memory_space<vmem>>, vector<1x80x10xbf16>
    %26 = vector.shape_cast %25 : vector<1x80x10xbf16> to vector<80x10xbf16>
    %c0_24 = arith.constant 0 : index
    %c22 = arith.constant 22 : index
    %c0_25 = arith.constant 0 : index
    %27 = vector.load %arg1[%c0_24, %c22, %c0_25] : memref<1x108x10xbf16, #tpu.memory_space<vmem>>, vector<1x80x10xbf16>
    %28 = vector.shape_cast %27 : vector<1x80x10xbf16> to vector<80x10xbf16>
    %29 = tpu.concatenate %24, %26, %28 in 1 : vector<80x10xbf16>, vector<80x10xbf16>, vector<80x10xbf16> -> vector<80x30xbf16>
    %c2_26 = arith.constant 2 : index
    %c0_27 = arith.constant 0 : index
    %c0_28 = arith.constant 0 : index
    %30 = vector.load %arg2[%c2_26, %c0_27, %c0_28] : memref<3x30x32xbf16, #tpu.memory_space<vmem>>, vector<1x30x32xbf16>
    %31 = vector.shape_cast %30 : vector<1x30x32xbf16> to vector<30x32xbf16>
    %cst_29 = arith.constant dense<0.000000e+00> : vector<80x32xf32>
    %32 = tpu.matmul %29, %31, %cst_29 {dimension_numbers = #tpu.dot_dimension_numbers<[1], [0], [0], [1], [0, 0, 1, 1], [], []>} : vector<80x30xbf16>, vector<30x32xbf16>, vector<80x32xf32> -> vector<80x32xf32>
    %33 = arith.addf %22, %32 : vector<80x32xf32>
    %c0_30 = arith.constant 0 : index
    %c0_31 = arith.constant 0 : index
    %34 = vector.load %arg3[%c0_30, %c0_31] : memref<1x32xf32, #tpu.memory_space<vmem>>, vector<1x32xf32>
    %35 = vector.broadcast %34 : vector<1x32xf32> to vector<80x32xf32>
    %36 = arith.addf %33, %35 : vector<80x32xf32>
    %37 = vector.extract_strided_slice %36 {offsets = [0, 0], sizes = [8, 32], strides = [1, 1]} : vector<80x32xf32> to vector<8x32xf32>
    %38 = vector.extract_strided_slice %36 {offsets = [10, 0], sizes = [8, 32], strides = [1, 1]} : vector<80x32xf32> to vector<8x32xf32>
    %39 = vector.extract_strided_slice %36 {offsets = [20, 0], sizes = [8, 32], strides = [1, 1]} : vector<80x32xf32> to vector<8x32xf32>
    %40 = vector.extract_strided_slice %36 {offsets = [30, 0], sizes = [8, 32], strides = [1, 1]} : vector<80x32xf32> to vector<8x32xf32>
    %41 = vector.extract_strided_slice %36 {offsets = [40, 0], sizes = [8, 32], strides = [1, 1]} : vector<80x32xf32> to vector<8x32xf32>
    %42 = vector.extract_strided_slice %36 {offsets = [50, 0], sizes = [8, 32], strides = [1, 1]} : vector<80x32xf32> to vector<8x32xf32>
    %43 = vector.extract_strided_slice %36 {offsets = [60, 0], sizes = [8, 32], strides = [1, 1]} : vector<80x32xf32> to vector<8x32xf32>
    %44 = vector.extract_strided_slice %36 {offsets = [70, 0], sizes = [8, 32], strides = [1, 1]} : vector<80x32xf32> to vector<8x32xf32>
    %45 = tpu.concatenate %37, %38, %39, %40, %41, %42, %43, %44 in 0 : vector<8x32xf32>, vector<8x32xf32>, vector<8x32xf32>, vector<8x32xf32>, vector<8x32xf32>, vector<8x32xf32>, vector<8x32xf32>, vector<8x32xf32> -> vector<64x32xf32>
    %cst_32 = arith.constant dense<0.000000e+00> : vector<32xf32>
    %46 = vector.multi_reduction <add>, %45, %cst_32 [0] : vector<64x32xf32> to vector<32xf32>
    %47 = vector.shape_cast %46 : vector<32xf32> to vector<1x32xf32>
    %cst_33 = arith.constant 6.400000e+01 : f32
    %48 = vector.broadcast %cst_33 : f32 to vector<1x32xf32>
    %49 = arith.divf %47, %48 : vector<1x32xf32>
    %c0_34 = arith.constant 0 : index
    %c0_35 = arith.constant 0 : index
    %50 = vector.load %arg4[%c0_34, %c0_35] : memref<1x32xf32, #tpu.memory_space<vmem>>, vector<1x32xf32>
    %51 = arith.mulf %49, %50 : vector<1x32xf32>
    %cst_36 = arith.constant dense<0.000000e+00> : vector<1xf32>
    %52 = vector.multi_reduction <add>, %51, %cst_36 [1] : vector<1x32xf32> to vector<1xf32>
    %53 = vector.shape_cast %52 : vector<1xf32> to vector<1x1xf32>
    %c0_37 = arith.constant 0 : index
    %c0_38 = arith.constant 0 : index
    %54 = vector.load %arg5[%c0_37, %c0_38] : memref<1x1xf32, #tpu.memory_space<vmem>>, vector<1x1xf32>
    %55 = arith.addf %53, %54 : vector<1x1xf32>
    %cst_39 = arith.constant 0.000000e+00 : f32
    %56 = vector.broadcast %cst_39 : f32 to vector<1x1xf32>
    %57 = arith.maximumf %55, %56 : vector<1x1xf32>
    %c0_40 = arith.constant 0 : index
    %c0_41 = arith.constant 0 : index
    %58 = vector.load %arg6[%c0_40, %c0_41] : memref<1x32xf32, #tpu.memory_space<vmem>>, vector<1x32xf32>
    %59 = vector.broadcast %57 : vector<1x1xf32> to vector<1x32xf32>
    %60 = arith.mulf %59, %58 : vector<1x32xf32>
    %cst_42 = arith.constant dense<0.000000e+00> : vector<32xf32>
    %61 = vector.multi_reduction <add>, %60, %cst_42 [0] : vector<1x32xf32> to vector<32xf32>
    %62 = vector.shape_cast %61 : vector<32xf32> to vector<1x32xf32>
    %c0_43 = arith.constant 0 : index
    %c0_44 = arith.constant 0 : index
    %63 = vector.load %arg7[%c0_43, %c0_44] : memref<1x32xf32, #tpu.memory_space<vmem>>, vector<1x32xf32>
    %64 = arith.addf %62, %63 : vector<1x32xf32>
    %65 = arith.negf %64 : vector<1x32xf32>
    %66 = math.exp %65 : vector<1x32xf32>
    %cst_45 = arith.constant 1.000000e+00 : f32
    %67 = vector.broadcast %cst_45 : f32 to vector<1x32xf32>
    %68 = arith.addf %67, %66 : vector<1x32xf32>
    %69 = arith.divf %67, %68 : vector<1x32xf32>
    %70 = vector.broadcast %69 : vector<1x32xf32> to vector<64x32xf32>
    %71 = arith.mulf %45, %70 : vector<64x32xf32>
    %c0_46 = arith.constant 0 : index
    %c0_47 = arith.constant 0 : index
    %c0_48 = arith.constant 0 : index
    %72 = vector.load %arg8[%c0_46, %c0_47, %c0_48] : memref<1x64x32xf32, #tpu.memory_space<vmem>>, vector<1x64x32xf32>
    %73 = vector.shape_cast %72 : vector<1x64x32xf32> to vector<64x32xf32>
    %c0_49 = arith.constant 0 : index
    %c0_50 = arith.constant 0 : index
    %74 = vector.load %arg9[%c0_49, %c0_50] : memref<1x32xf32, #tpu.memory_space<vmem>>, vector<1x32xf32>
    %75 = vector.broadcast %74 : vector<1x32xf32> to vector<64x32xf32>
    %76 = arith.mulf %73, %75 : vector<64x32xf32>
    %77 = arith.addf %76, %71 : vector<64x32xf32>
    %c0_51 = arith.constant 0 : index
    %c0_52 = arith.constant 0 : index
    %c0_53 = arith.constant 0 : index
    %78 = vector.load %arg10[%c0_51, %c0_52, %c0_53] : memref<1x64x32xf32, #tpu.memory_space<vmem>>, vector<1x64x32xf32>
    %79 = vector.shape_cast %78 : vector<1x64x32xf32> to vector<64x32xf32>
    %80 = vector.shape_cast %77 : vector<64x32xf32> to vector<1x64x32xf32>
    tpu.vector_store %arg10[%c0_51, %c0_52, %c0_53], %80 {strides = array<i32>} : memref<1x64x32xf32, #tpu.memory_space<vmem>>, vector<1x64x32xf32>,
    return
  }
  func.func @transform_0(%arg0: i32) -> (i32, i32, i32) {
    %c0_i32 = arith.constant 0 : i32
    %c0_i32_0 = arith.constant 0 : i32
    %c0_i32_1 = arith.constant 0 : i32
    return %arg0, %c0_i32, %c0_i32_0 : i32, i32, i32
  }
  func.func @transform_1(%arg0: i32) -> (i32, i32, i32) {
    %c0_i32 = arith.constant 0 : i32
    %c0_i32_0 = arith.constant 0 : i32
    %c0_i32_1 = arith.constant 0 : i32
    %c0_i32_2 = arith.constant 0 : i32
    return %c0_i32, %c0_i32_0, %c0_i32_1 : i32, i32, i32
  }
  func.func @transform_2(%arg0: i32) -> (i32, i32) {
    %c0_i32 = arith.constant 0 : i32
    %c0_i32_0 = arith.constant 0 : i32
    %c0_i32_1 = arith.constant 0 : i32
    return %c0_i32, %c0_i32_0 : i32, i32
  }
  func.func @transform_3(%arg0: i32) -> (i32, i32) {
    %c0_i32 = arith.constant 0 : i32
    %c0_i32_0 = arith.constant 0 : i32
    %c0_i32_1 = arith.constant 0 : i32
    return %c0_i32, %c0_i32_0 : i32, i32
  }
  func.func @transform_4(%arg0: i32) -> (i32, i32) {
    %c0_i32 = arith.constant 0 : i32
    %c0_i32_0 = arith.constant 0 : i32
    %c0_i32_1 = arith.constant 0 : i32
    return %c0_i32, %c0_i32_0 : i32, i32
  }
  func.func @transform_5(%arg0: i32) -> (i32, i32) {
    %c0_i32 = arith.constant 0 : i32
    %c0_i32_0 = arith.constant 0 : i32
    %c0_i32_1 = arith.constant 0 : i32
    return %c0_i32, %c0_i32_0 : i32, i32
  }
  func.func @transform_6(%arg0: i32) -> (i32, i32) {
    %c0_i32 = arith.constant 0 : i32
    %c0_i32_0 = arith.constant 0 : i32
    %c0_i32_1 = arith.constant 0 : i32
    return %c0_i32, %c0_i32_0 : i32, i32
  }
  func.func @transform_7(%arg0: i32) -> (i32, i32, i32) {
    %c0_i32 = arith.constant 0 : i32
    %c0_i32_0 = arith.constant 0 : i32
    %c0_i32_1 = arith.constant 0 : i32
    return %arg0, %c0_i32, %c0_i32_0 : i32, i32, i32
  }
  func.func @transform_8(%arg0: i32) -> (i32, i32) {
    %c0_i32 = arith.constant 0 : i32
    %c0_i32_0 = arith.constant 0 : i32
    %c0_i32_1 = arith.constant 0 : i32
    return %c0_i32, %c0_i32_0 : i32, i32
  }
  func.func @transform_9(%arg0: i32) -> (i32, i32, i32) {
    %c0_i32 = arith.constant 0 : i32
    %c0_i32_0 = arith.constant 0 : i32
    %c0_i32_1 = arith.constant 0 : i32
    return %arg0, %c0_i32, %c0_i32_0 : i32, i32, i32
  }
}

</mosaic_0001>

<llo_original>
// kernel: _lambda_.6
$region0: #{_lambda_.6}
  #allocation0 [shape = 'u32[]', space=smem, size = 0x4, offset = 0x4, fixed_abs, tag = 'smem constant byte address 0x4 - core index']
  #allocation1 [shape = 'u32[144,128]{1,0:T(1,128)}', space=vmem, size = 0x12000, scoped, tag = 'internal scratch']
  %s0 = inlined_call_operand.vmem [shape: f32[2,64,32], index: 0, kind: input, shape index: {}]
  %s1 = inlined_call_operand.vmem [shape: f32[1,32], index: 1, kind: input, shape index: {}]
  %s2 = inlined_call_operand.vmem [shape: f32[1,32], index: 2, kind: input, shape index: {}]
  %s3 = inlined_call_operand.vmem [shape: bf16[32,128], index: 3, kind: input, shape index: {}]
  %s4 = inlined_call_operand.vmem [shape: f32[2,64,64], index: 4, kind: output, shape index: {0}]
  %s5 = inlined_call_operand.vmem [shape: f32[2,64,64], index: 5, kind: output, shape index: {1}]
  %6 = xla_tuple %s4, %s5
  %s7 = sld [smem:[#allocation0]]
  $region57: #{_lambda_.6} parent=0
    _
  %s9 = ssub.s32 1, %s7
  %s10 = scalar_select 0, %s9, %s7
  loop: start=0, step=1, limit=4
  $region2: #{_lambda_.6} parent=0 // loop_pre_header
    _
  $region3: #{_lambda_.6} parent=0 // loop_header
    %s12 = sphi 0, %s16
    %p13 = scmp.ge.s32.totalorder %s12, 4
    %s19 = sphi 0, %s31
    %s20 = sphi 0, %s27
    %s21 = sphi 0, %s19
    %s22 = sphi 0, %s20
    %s23 = sphi 0, %s21
    %s24 = sphi 0, %s22
    %s36 = sphi 0, %s38
    %s39 = sphi 0, %s36
    %s40 = sphi 0, %s39
    %s56 = sphi 0, %s40
    %s60 = sphi 0, %s60
    %s62 = sphi 0, %s60
    %s63 = sphi 0, %s62
    %s77 = sphi 0, %s63
    %s81 = sphi 0, %s81
    %s83 = sphi 0, %s81
    %s84 = sphi 0, %s83
    %s98 = sphi 0, %s84
    %s102 = sphi 0, %s102
    %s104 = sphi 0, %s102
    %s105 = sphi 0, %s104
    %s119 = sphi 0, %s105
    %s127 = sphi 0, %s129
    %s130 = sphi 0, %s127
    %s131 = sphi 0, %s130
    %s147 = sphi 0, %s131
    %s155 = sphi 0, %s157
    %s158 = sphi 0, %s155
    %s159 = sphi 0, %s158
    %s175 = sphi 0, %s159
  $region4: #{_lambda_.6} parent=0 // loop_header_branch
    %15 = sbr.rel (%p13) target = $region8
  $region5: #{_lambda_.6} parent=0 // loop_body
    %s17 = ssub.s32 %s12, 1
    %s18 = ssub.s32 %s12, 2
    %s25 = sadd.s32 1, %s20
    %p26 = scmp.ge.s32.totalorder %s25, 1
    %s27 = scalar_select %p26, 0, %s25
    %s28 = sadd.s32 1, %s19
    %s29 = scalar_select %p26, %s28, %s19
    %p30 = scmp.ge.s32.totalorder %s29, 2
    %s31 = scalar_select %p30, 0, %s29
    %s32 = ssub.s32 %s19, %s31
    %s33 = ssub.s32 %s20, %s27
    %s34 = sor.u32 %s32, %s33
    %p35 = scmp.eq.s32.totalorder %s34, 0
    %s37 = sadd.s32 %s36, 1
    %s38 = scalar_select %p35, %s36, %s37
    %p41 = pneg %p35
    %p42 = scmp.eq.s32.totalorder %s12, 1
    %p43 = por %p41, %p42
    %p44 = scmp.ne.s32.totalorder %s36, %s39
    %p45 = scmp.eq.s32.totalorder %s12, 0
    %p46 = por %p44, %p45
    %p47 = scmp.ne.s32.totalorder %s36, %s39
    %p48 = scmp.eq.s32.totalorder %s17, 1
    %p49 = por %p47, %p48
    %p50 = scmp.ne.s32.totalorder %s39, %s40
    %p51 = scmp.eq.s32.totalorder %s17, 0
    %p52 = por %p50, %p51
    %p53 = scmp.ne.s32.totalorder %s39, %s40
    %p54 = scmp.eq.s32.totalorder %s18, 1
    %p55 = por %p53, %p54
    %p57 = scmp.ne.s32.totalorder %s40, %s56
    %p58 = scmp.eq.s32.totalorder %s18, 0
    %p59 = por %p57, %p58
    %s61 = sadd.s32 %s60, 1
    %p64 = scmp.eq.s32.totalorder %s12, 1
    %p65 = scmp.ne.s32.totalorder %s60, %s62
    %p66 = scmp.eq.s32.totalorder %s12, 0
    %p67 = por %p65, %p66
    %p68 = scmp.ne.s32.totalorder %s60, %s62
    %p69 = scmp.eq.s32.totalorder %s17, 1
    %p70 = por %p68, %p69
    %p71 = scmp.ne.s32.totalorder %s62, %s63
    %p72 = scmp.eq.s32.totalorder %s17, 0
    %p73 = por %p71, %p72
    %p74 = scmp.ne.s32.totalorder %s62, %s63
    %p75 = scmp.eq.s32.totalorder %s18, 1
    %p76 = por %p74, %p75
    %p78 = scmp.ne.s32.totalorder %s63, %s77
    %p79 = scmp.eq.s32.totalorder %s18, 0
    %p80 = por %p78, %p79
    %s82 = sadd.s32 %s81, 1
    %p85 = scmp.eq.s32.totalorder %s12, 1
    %p86 = scmp.ne.s32.totalorder %s81, %s83
    %p87 = scmp.eq.s32.totalorder %s12, 0
    %p88 = por %p86, %p87
    %p89 = scmp.ne.s32.totalorder %s81, %s83
    %p90 = scmp.eq.s32.totalorder %s17, 1
    %p91 = por %p89, %p90
    %p92 = scmp.ne.s32.totalorder %s83, %s84
    %p93 = scmp.eq.s32.totalorder %s17, 0
    %p94 = por %p92, %p93
    %p95 = scmp.ne.s32.totalorder %s83, %s84
    %p96 = scmp.eq.s32.totalorder %s18, 1
    %p97 = por %p95, %p96
    %p99 = scmp.ne.s32.totalorder %s84, %s98
    %p100 = scmp.eq.s32.totalorder %s18, 0
    %p101 = por %p99, %p100
    %s103 = sadd.s32 %s102, 1
    %p106 = scmp.eq.s32.totalorder %s12, 1
    %p107 = scmp.ne.s32.totalorder %s102, %s104
    %p108 = scmp.eq.s32.totalorder %s12, 0
    %p109 = por %p107, %p108
    %p110 = scmp.ne.s32.totalorder %s102, %s104
    %p111 = scmp.eq.s32.totalorder %s17, 1
    %p112 = por %p110, %p111
    %p113 = scmp.ne.s32.totalorder %s104, %s105
    %p114 = scmp.eq.s32.totalorder %s17, 0
    %p115 = por %p113, %p114
    %p116 = scmp.ne.s32.totalorder %s104, %s105
    %p117 = scmp.eq.s32.totalorder %s18, 1
    %p118 = por %p116, %p117
    %p120 = scmp.ne.s32.totalorder %s105, %s119
    %p121 = scmp.eq.s32.totalorder %s18, 0
    %p122 = por %p120, %p121
    %s123 = ssub.s32 %s19, %s31
    %s124 = ssub.s32 %s20, %s27
    %s125 = sor.u32 %s123, %s124
    %p126 = scmp.eq.s32.totalorder %s125, 0
    %s128 = sadd.s32 %s127, 1
    %s129 = scalar_select %p126, %s127, %s128
    %p132 = pneg %p126
    %p133 = scmp.eq.s32.totalorder %s12, 1
    %p134 = por %p132, %p133
    %p135 = scmp.ne.s32.totalorder %s127, %s130
    %p136 = scmp.eq.s32.totalorder %s12, 0
    %p137 = por %p135, %p136
    %p138 = scmp.ne.s32.totalorder %s127, %s130
    %p139 = scmp.eq.s32.totalorder %s17, 1
    %p140 = por %p138, %p139
    %p141 = scmp.ne.s32.totalorder %s130, %s131
    %p142 = scmp.eq.s32.totalorder %s17, 0
    %p143 = por %p141, %p142
    %p144 = scmp.ne.s32.totalorder %s130, %s131
    %p145 = scmp.eq.s32.totalorder %s18, 1
    %p146 = por %p144, %p145
    %p148 = scmp.ne.s32.totalorder %s131, %s147
    %p149 = scmp.eq.s32.totalorder %s18, 0
    %p150 = por %p148, %p149
    %s151 = ssub.s32 %s19, %s31
    %s152 = ssub.s32 %s20, %s27
    %s153 = sor.u32 %s151, %s152
    %p154 = scmp.eq.s32.totalorder %s153, 0
    %s156 = sadd.s32 %s155, 1
    %s157 = scalar_select %p154, %s155, %s156
    %p160 = pneg %p154
    %p161 = scmp.eq.s32.totalorder %s12, 1
    %p162 = por %p160, %p161
    %p163 = scmp.ne.s32.totalorder %s155, %s158
    %p164 = scmp.eq.s32.totalorder %s12, 0
    %p165 = por %p163, %p164
    %p166 = scmp.ne.s32.totalorder %s155, %s158
    %p167 = scmp.eq.s32.totalorder %s17, 1
    %p168 = por %p166, %p167
    %p169 = scmp.ne.s32.totalorder %s158, %s159
    %p170 = scmp.eq.s32.totalorder %s17, 0
    %p171 = por %p169, %p170
    %p172 = scmp.ne.s32.totalorder %s158, %s159
    %p173 = scmp.eq.s32.totalorder %s18, 1
    %p174 = por %p172, %p173
    %p176 = scmp.ne.s32.totalorder %s159, %s175
    %p177 = scmp.eq.s32.totalorder %s18, 0
    %p178 = por %p176, %p177
    %p179 = scmp.le.s32.totalorder 1, %s12
    %p180 = scmp.lt.s32.totalorder %s12, 3
    %p181 = pnand %p179, %p180
    %p182 = pneg %p181
    // Predicated region
    $region9: #{_lambda_.6} parent=5 // pred_check
      _
    $region10: #{_lambda_.6} parent=5 // pred_check_branch
      %184 = sbr.rel (%p181) target = $region12
    $region11: #{_lambda_.6} parent=5 // pred_region
      %s185 = ssub.s32 %s12, 1
      // Predicated region
      $region13: #{_lambda_.6} parent=11 // pred_check
        %p186 = pneg %p73
      $region14: #{_lambda_.6} parent=11 // pred_check_branch
        %188 = sbr.rel (%p186) target = $region16
      $region15: #{_lambda_.6} parent=11 // pred_region
        _
      $region16: #{_lambda_.6} parent=11 // pred_fallthru
        _
      // Predicated region
      $region17: #{_lambda_.6} parent=11 // pred_check
        %p189 = pneg %p94
      $region18: #{_lambda_.6} parent=11 // pred_check_branch
        %191 = sbr.rel (%p189) target = $region20
      $region19: #{_lambda_.6} parent=11 // pred_region
        _
      $region20: #{_lambda_.6} parent=11 // pred_fallthru
        _
      // Predicated region
      $region21: #{_lambda_.6} parent=11 // pred_check
        %p192 = pneg %p115
      $region22: #{_lambda_.6} parent=11 // pred_check_branch
        %194 = sbr.rel (%p192) target = $region24
      $region23: #{_lambda_.6} parent=11 // pred_region
        _
      $region24: #{_lambda_.6} parent=11 // pred_fallthru
        _
    $region12: #{_lambda_.6} parent=5 // pred_fallthru
      _
    %p195 = scmp.lt.s32.totalorder %s12, 2
    // Predicated region
    $region25: #{_lambda_.6} parent=5 // pred_check
      %p196 = pneg %p195
    $region26: #{_lambda_.6} parent=5 // pred_check_branch
      %198 = sbr.rel (%p196) target = $region28
    $region27: #{_lambda_.6} parent=5 // pred_region
      // Predicated region
      $region29: #{_lambda_.6} parent=27 // pred_check
        %p199 = pneg %p46
      $region30: #{_lambda_.6} parent=27 // pred_check_branch
        %201 = sbr.rel (%p199) target = $region32
      $region31: #{_lambda_.6} parent=27 // pred_region
        %s202 = smul.u32 8, %s20
        %p203 = scmp.lt.s32.totalorder %s19, 1
        %s204 = scalar_select %p203, %s19, 1
        %p205 = scmp.lt.s32.totalorder %s202, 7
        %s206 = scalar_select %p205, %s202, 7
        %s207 = smul.addr %s204, 8
        %s208 = sadd.s32 %s206, %s207
        %s209 = smul.addr %s208, 8
        %s210 = scalar_lea.vmem %s0, %s209
        %s211 = smul.u32 8, %s20
      $region32: #{_lambda_.6} parent=27 // pred_fallthru
        _
    $region28: #{_lambda_.6} parent=5 // pred_fallthru
      _
    %p212 = scmp.le.s32.totalorder 1, %s12
    %p213 = scmp.lt.s32.totalorder %s12, 3
    %p214 = pnand %p212, %p213
    %p215 = pneg %p214
    // Predicated region
    $region33: #{_lambda_.6} parent=5 // pred_check
      _
    $region34: #{_lambda_.6} parent=5 // pred_check_branch
      %217 = sbr.rel (%p214) target = $region36
    $region35: #{_lambda_.6} parent=5 // pred_region
      %s218 = ssub.s32 %s12, 1
      %s219 = smul.u32 8, %s22
      %p220 = scmp.lt.s32.totalorder %s21, 1
      %s221 = scalar_select %p220, %s21, 1
      %p222 = scmp.lt.s32.totalorder %s219, 7
      %s223 = scalar_select %p222, %s219, 7
      %s224 = smul.addr %s221, 8
      %s225 = sadd.s32 %s223, %s224
      %s226 = smul.addr %s225, 8
      %s227 = scalar_lea.vmem %s0, %s226
      %p228 = pneg %p52
      %p229 = pneg %p49
      %p230 = pneg %p73
      %p231 = pneg %p70
      %p232 = pneg %p94
      %p233 = pneg %p91
      %p234 = pneg %p115
      %p235 = pneg %p112
      %p236 = pneg %p143
      %p237 = pneg %p140
      %s238 = smul.u32 8, %s22
      %p239 = scmp.lt.s32.totalorder %s21, 1
      %s240 = scalar_select %p239, %s21, 1
      %p241 = scmp.lt.s32.totalorder %s238, 7
      %s242 = scalar_select %p241, %s238, 7
      %s243 = smul.addr %s240, 8
      %s244 = sadd.s32 %s242, %s243
      %s245 = smul.addr %s244, 8
      %s246 = scalar_lea.vmem %s4, %s245
      %p247 = pneg %p171
      %p248 = pneg %p168
      %s249 = smul.u32 8, %s22
      %p250 = scmp.lt.s32.totalorder %s21, 1
      %s251 = scalar_select %p250, %s21, 1
      %p252 = scmp.lt.s32.totalorder %s249, 7
      %s253 = scalar_select %p252, %s249, 7
      %s254 = smul.addr %s251, 8
      %s255 = sadd.s32 %s253, %s254
      %s256 = smul.addr %s255, 8
      %s257 = scalar_lea.vmem %s5, %s256
      %s258 = smul.u32 8, %s22
      %p259 = scmp.lt.s32.totalorder %s21, 1
      %s260 = scalar_select %p259, %s21, 1
      %p261 = scmp.lt.s32.totalorder %s258, 7
      %s262 = scalar_select %p261, %s258, 7
      %s263 = smul.addr %s260, 8
      %s264 = sadd.s32 %s262, %s263
      %s265 = smul.addr %s264, 8
      %s266 = scalar_lea.vmem %s0, %s265
      %s267 = smul.u32 8, %s22
      %s268 = smul.u32 8, %s22
      %p269 = scmp.lt.s32.totalorder %s21, 1
      %s270 = scalar_select %p269, %s21, 1
      %p271 = scmp.lt.s32.totalorder %s268, 7
      %s272 = scalar_select %p271, %s268, 7
      %s273 = smul.addr %s270, 8
      %s274 = sadd.s32 %s272, %s273
      %s275 = smul.addr %s274, 8
      %s276 = scalar_lea.vmem %s4, %s275
      %s277 = smul.u32 8, %s22
      %s278 = smul.u32 8, %s22
      %p279 = scmp.lt.s32.totalorder %s21, 1
      %s280 = scalar_select %p279, %s21, 1
      %p281 = scmp.lt.s32.totalorder %s278, 7
      %s282 = scalar_select %p281, %s278, 7
      %s283 = smul.addr %s280, 8
      %s284 = sadd.s32 %s282, %s283
      %s285 = smul.addr %s284, 8
      %s286 = scalar_lea.vmem %s5, %s285
      %s287 = smul.u32 8, %s22
      %v289 = vld [vmem:[%s266] sm:$0xff]
      %v290 = vld [vmem:[%s266 + $0x8] sm:$0xff]
      %v291 = vld [vmem:[%s266 + $0x10] sm:$0xff]
      %v292 = vld [vmem:[%s266 + $0x18] sm:$0xff]
      %v293 = vld [vmem:[%s266 + $0x20] sm:$0xff]
      %v294 = vld [vmem:[%s266 + $0x28] sm:$0xff]
      %v295 = vld [vmem:[%s266 + $0x30] sm:$0xff]
      %v296 = vld [vmem:[%s266 + $0x38] sm:$0xff]
      %vm297 = vcmask 261120
      %v298 = vsel %vm297, %v289, 0.0
      %299 = vadd.xlane.f32.xlu0 %v298
      %v300 = vpop.xlane.xlu0 %299
      %v301 = vsel %vm297, %v290, 0.0
      %302 = vadd.xlane.f32.xlu0 %v301
      %v303 = vpop.xlane.xlu0 %302
      %v304 = vsel %vm297, %v291, 0.0
      %305 = vadd.xlane.f32.xlu0 %v304
      %v306 = vpop.xlane.xlu0 %305
      %v307 = vsel %vm297, %v292, 0.0
      %308 = vadd.xlane.f32.xlu0 %v307
      %v309 = vpop.xlane.xlu0 %308
      %v310 = vsel %vm297, %v293, 0.0
      %311 = vadd.xlane.f32.xlu0 %v310
      %v312 = vpop.xlane.xlu0 %311
      %v313 = vsel %vm297, %v294, 0.0
      %314 = vadd.xlane.f32.xlu0 %v313
      %v315 = vpop.xlane.xlu0 %314
      %v316 = vsel %vm297, %v295, 0.0
      %317 = vadd.xlane.f32.xlu0 %v316
      %v318 = vpop.xlane.xlu0 %317
      %v319 = vsel %vm297, %v296, 0.0
      %320 = vadd.xlane.f32.xlu0 %v319
      %v321 = vpop.xlane.xlu0 %320
      %v322 = vrcp.pop 32.0
      %v323 = vmul.f32 %v300, %v322
      %v324 = vmul.f32 %v303, %v322
      %v325 = vmul.f32 %v306, %v322
      %v326 = vmul.f32 %v309, %v322
      %v327 = vmul.f32 %v312, %v322
      %v328 = vmul.f32 %v315, %v322
      %v329 = vmul.f32 %v318, %v322
      %v330 = vmul.f32 %v321, %v322
      %v331 = vsub.f32 %v289, %v323
      %v332 = vsub.f32 %v290, %v324
      %v333 = vsub.f32 %v291, %v325
      %v334 = vsub.f32 %v292, %v326
      %v335 = vsub.f32 %v293, %v327
      %v336 = vsub.f32 %v294, %v328
      %v337 = vsub.f32 %v295, %v329
      %v338 = vsub.f32 %v296, %v330
      %v339 = vmul.f32 %v331, %v331
      %v340 = vmul.f32 %v332, %v332
      %v341 = vmul.f32 %v333, %v333
      %v342 = vmul.f32 %v334, %v334
      %v343 = vmul.f32 %v335, %v335
      %v344 = vmul.f32 %v336, %v336
      %v345 = vmul.f32 %v337, %v337
      %v346 = vmul.f32 %v338, %v338
      %v347 = vsel %vm297, %v339, 0.0
      %348 = vadd.xlane.f32.xlu0 %v347
      %v349 = vpop.xlane.xlu0 %348
      %v350 = vsel %vm297, %v340, 0.0
      %351 = vadd.xlane.f32.xlu0 %v350
      %v352 = vpop.xlane.xlu0 %351
      %v353 = vsel %vm297, %v341, 0.0
      %354 = vadd.xlane.f32.xlu0 %v353
      %v355 = vpop.xlane.xlu0 %354
      %v356 = vsel %vm297, %v342, 0.0
      %357 = vadd.xlane.f32.xlu0 %v356
      %v358 = vpop.xlane.xlu0 %357
      %v359 = vsel %vm297, %v343, 0.0
      %360 = vadd.xlane.f32.xlu0 %v359
      %v361 = vpop.xlane.xlu0 %360
      %v362 = vsel %vm297, %v344, 0.0
      %363 = vadd.xlane.f32.xlu0 %v362
      %v364 = vpop.xlane.xlu0 %363
      %v365 = vsel %vm297, %v345, 0.0
      %366 = vadd.xlane.f32.xlu0 %v365
      %v367 = vpop.xlane.xlu0 %366
      %v368 = vsel %vm297, %v346, 0.0
      %369 = vadd.xlane.f32.xlu0 %v368
      %v370 = vpop.xlane.xlu0 %369
      %v371 = vmul.f32 %v349, %v322
      %v372 = vmul.f32 %v352, %v322
      %v373 = vmul.f32 %v355, %v322
      %v374 = vmul.f32 %v358, %v322
      %v375 = vmul.f32 %v361, %v322
      %v376 = vmul.f32 %v364, %v322
      %v377 = vmul.f32 %v367, %v322
      %v378 = vmul.f32 %v370, %v322
      %v379 = vadd.f32 %v371, 1e-06
      %v380 = vadd.f32 %v372, 1e-06
      %v381 = vadd.f32 %v373, 1e-06
      %v382 = vadd.f32 %v374, 1e-06
      %v383 = vadd.f32 %v375, 1e-06
      %v384 = vadd.f32 %v376, 1e-06
      %v385 = vadd.f32 %v377, 1e-06
      %v386 = vadd.f32 %v378, 1e-06
      %v387 = vrsqrt.pop %v379
      %v388 = vrsqrt.pop %v380
      %v389 = vrsqrt.pop %v381
      %v390 = vrsqrt.pop %v382
      %v391 = vrsqrt.pop %v383
      %v392 = vrsqrt.pop %v384
      %v393 = vrsqrt.pop %v385
      %v394 = vrsqrt.pop %v386
      %v395 = vmul.f32 %v331, %v387
      %v396 = vmul.f32 %v332, %v388
      %v397 = vmul.f32 %v333, %v389
      %v398 = vmul.f32 %v334, %v390
      %v399 = vmul.f32 %v335, %v391
      %v400 = vmul.f32 %v336, %v392
      %v401 = vmul.f32 %v337, %v393
      %v402 = vmul.f32 %v338, %v394
      %v403 = vld [vmem:[%s1] sm:$0x1]
      %v405 = vlaneseq
      %v406 = vshrl.u32 %v405, 7
      %v407 = vsub.s32 0, %v406
      %v408 = vrot.slane %v403, %v407
      %v410 = vmul.f32 %v395, %v408
      %v411 = vmul.f32 %v396, %v408
      %v412 = vmul.f32 %v397, %v408
      %v413 = vmul.f32 %v398, %v408
      %v414 = vmul.f32 %v399, %v408
      %v415 = vmul.f32 %v400, %v408
      %v416 = vmul.f32 %v401, %v408
      %v417 = vmul.f32 %v402, %v408
      %v418 = vld [vmem:[%s2] sm:$0x1]
      %v420 = vlaneseq
      %v421 = vshrl.u32 %v420, 7
      %v422 = vsub.s32 0, %v421
      %v423 = vrot.slane %v418, %v422
      %v425 = vadd.f32 %v410, %v423
      %v426 = vadd.f32 %v411, %v423
      %v427 = vadd.f32 %v412, %v423
      %v428 = vadd.f32 %v413, %v423
      %v429 = vadd.f32 %v414, %v423
      %v430 = vadd.f32 %v415, %v423
      %v431 = vadd.f32 %v416, %v423
      %v432 = vadd.f32 %v417, %v423
      %v433 = vpack.c.bf16 %v426, %v425
      %v434 = vpack.c.bf16 %v428, %v427
      %v435 = vpack.c.bf16 %v430, %v429
      %v436 = vpack.c.bf16 %v432, %v431
      %v437 = vld [vmem:[%s3] sm:$0xf]
      %v438 = vld [vmem:[%s3 + $0x4] sm:$0xf]
      %v439 = vld [vmem:[%s3 + $0x8] sm:$0xf]
      %v440 = vld [vmem:[%s3 + $0xc] sm:$0xf]
      %v445 = vunpack.c.l.b16 %v437
      %v446 = vunpack.c.l.b16 %v438
      %v447 = vunpack.c.l.b16 %v439
      %v448 = vunpack.c.l.b16 %v440
      %v449 = vpack.c.b16 %v446, %v445
      %v450 = vpack.c.b16 %v448, %v447
      %v454 = vsel %vm297, %v433, 0
      %v457 = vsel %vm297, %v434, 0
      %v460 = vsel %vm297, %v435, 0
      %v463 = vsel %vm297, %v436, 0
      %465 = vmatprep.subr.bf16.mxu0 0
      %466 = vmatpush1.bf16.msra.mxu0 %v449
      %467 = vmatprep.subr.bf16.mxu0 0
      %468 = vmatpush1.bf16.msra.mxu0 %v450
      %469 = vmatprep.subr.bf16.mxu0 0
      %470 = vmatpush1.bf16.msra.mxu0 0
      %471 = vmatprep.subr.bf16.mxu0 0
      %472 = vmatpush1.bf16.msra.mxu0 0
      %473 = vmatprep.subr.bf16.mxu0 0
      %474 = vmatpush1.bf16.msra.mxu0 0
      %475 = vmatprep.subr.bf16.mxu0 0
      %476 = vmatpush1.bf16.msra.mxu0 0
      %477 = vmatprep.subr.bf16.mxu0 0
      %478 = vmatpush1.bf16.msra.mxu0 0
      %479 = vmatprep.subr.bf16.mxu0 0
      %480 = vmatpush1.bf16.msra.mxu0 0
      %481 = vmatprep.subr.bf16.mxu0 0
      %482 = vmatpush1.bf16.msra.mxu0 0
      %483 = vmatprep.subr.bf16.mxu0 0
      %484 = vmatpush1.bf16.msra.mxu0 0
      %485 = vmatprep.subr.bf16.mxu0 0
      %486 = vmatpush1.bf16.msra.mxu0 0
      %487 = vmatprep.subr.bf16.mxu0 0
      %488 = vmatpush1.bf16.msra.mxu0 0
      %489 = vmatprep.subr.bf16.mxu0 0
      %490 = vmatpush1.bf16.msra.mxu0 0
      %491 = vmatprep.subr.bf16.mxu0 0
      %492 = vmatpush1.bf16.msra.mxu0 0
      %493 = vmatprep.subr.bf16.mxu0 0
      %494 = vmatpush1.bf16.msra.mxu0 0
      %495 = vmatprep.subr.bf16.mxu0 0
      %496 = vmatpush1.bf16.msra.mxu0 0
      %497 = vmatprep.mubr.bf16.mxu0 0
      %498 = vmatmul.mubr.bf16.gmra.mrb[0].mxu0 %v454
      %v499 = vpop.f32.mrb[0].mxu0
      %v500 = vadd.f32 0.0, %v499
      %v501 = vpop.f32.mrb[0].mxu0
      %v502 = vpop.f32.mrb[0].mxu0
      %v503 = vadd.f32 0.0, %v502
      %v504 = vpop.f32.mrb[0].mxu0
      %505 = vmatprep.mubr.bf16.mxu0 0
      %506 = vmatmul.mubr.bf16.gmra.mrb[0].mxu0 %v457
      %v507 = vpop.f32.mrb[0].mxu0
      %v508 = vadd.f32 0.0, %v507
      %v509 = vpop.f32.mrb[0].mxu0
      %v510 = vpop.f32.mrb[0].mxu0
      %v511 = vadd.f32 0.0, %v510
      %v512 = vpop.f32.mrb[0].mxu0
      %513 = vmatprep.mubr.bf16.mxu0 0
      %514 = vmatmul.mubr.bf16.gmra.mrb[0].mxu0 %v460
      %v515 = vpop.f32.mrb[0].mxu0
      %v516 = vadd.f32 0.0, %v515
      %v517 = vpop.f32.mrb[0].mxu0
      %v518 = vpop.f32.mrb[0].mxu0
      %v519 = vadd.f32 0.0, %v518
      %v520 = vpop.f32.mrb[0].mxu0
      %521 = vmatprep.mubr.bf16.mxu0 0
      %522 = vmatmul.mubr.bf16.gmra.mrb[0].mxu0 %v463
      %v523 = vpop.f32.mrb[0].mxu0
      %v524 = vadd.f32 0.0, %v523
      %v525 = vpop.f32.mrb[0].mxu0
      %v526 = vpop.f32.mrb[0].mxu0
      %v527 = vadd.f32 0.0, %v526
      %v528 = vpop.f32.mrb[0].mxu0
      %529 = vdwg.mxu0
      %vm530 = vcmask 523264
      %531 = vst.msk [vmem:[%s276] sm:$0xff] %vm530, %v500
      %532 = vst.msk [vmem:[%s276 + $0x8] sm:$0xff] %vm530, %v503
      %533 = vst.msk [vmem:[%s276 + $0x10] sm:$0xff] %vm530, %v508
      %534 = vst.msk [vmem:[%s276 + $0x18] sm:$0xff] %vm530, %v511
      %535 = vst.msk [vmem:[%s276 + $0x20] sm:$0xff] %vm530, %v516
      %536 = vst.msk [vmem:[%s276 + $0x28] sm:$0xff] %vm530, %v519
      %537 = vst.msk [vmem:[%s276 + $0x30] sm:$0xff] %vm530, %v524
      %538 = vst.msk [vmem:[%s276 + $0x38] sm:$0xff] %vm530, %v527
      %547 = vrot.lane.b32.xlu0 %v500, 64
      %v548 = vpop.permute.xlu0 %547
      %549 = vrot.lane.b32.xlu0 %v503, 64
      %v550 = vpop.permute.xlu0 %549
      %551 = vrot.lane.b32.xlu0 %v508, 64
      %v552 = vpop.permute.xlu0 %551
      %553 = vrot.lane.b32.xlu0 %v511, 64
      %v554 = vpop.permute.xlu0 %553
      %555 = vrot.lane.b32.xlu0 %v516, 64
      %v556 = vpop.permute.xlu0 %555
      %557 = vrot.lane.b32.xlu0 %v519, 64
      %v558 = vpop.permute.xlu0 %557
      %559 = vrot.lane.b32.xlu0 %v524, 64
      %v560 = vpop.permute.xlu0 %559
      %561 = vrot.lane.b32.xlu0 %v527, 64
      %v562 = vpop.permute.xlu0 %561
      %571 = vst.msk [vmem:[%s286] sm:$0xff] %vm530, %v548
      %572 = vst.msk [vmem:[%s286 + $0x8] sm:$0xff] %vm530, %v550
      %573 = vst.msk [vmem:[%s286 + $0x10] sm:$0xff] %vm530, %v552
      %574 = vst.msk [vmem:[%s286 + $0x18] sm:$0xff] %vm530, %v554
      %575 = vst.msk [vmem:[%s286 + $0x20] sm:$0xff] %vm530, %v556
      %576 = vst.msk [vmem:[%s286 + $0x28] sm:$0xff] %vm530, %v558
      %577 = vst.msk [vmem:[%s286 + $0x30] sm:$0xff] %vm530, %v560
      %578 = vst.msk [vmem:[%s286 + $0x38] sm:$0xff] %vm530, %v562
      %s579 = smul.u32 8, %s22
      %p580 = scmp.lt.s32.totalorder %s21, 1
      %s581 = scalar_select %p580, %s21, 1
      %p582 = scmp.lt.s32.totalorder %s579, 7
      %s583 = scalar_select %p582, %s579, 7
      %s584 = smul.addr %s581, 8
      %s585 = sadd.s32 %s583, %s584
      %s586 = smul.addr %s585, 8
      %s587 = scalar_lea.vmem %s4, %s586
      %s588 = smul.u32 8, %s22
      %p589 = scmp.lt.s32.totalorder %s21, 1
      %s590 = scalar_select %p589, %s21, 1
      %p591 = scmp.lt.s32.totalorder %s588, 7
      %s592 = scalar_select %p591, %s588, 7
      %s593 = smul.addr %s590, 8
      %s594 = sadd.s32 %s592, %s593
      %s595 = smul.addr %s594, 8
      %s596 = scalar_lea.vmem %s5, %s595
      // Predicated region
      $region37: #{_lambda_.6} parent=35 // pred_check
        %p597 = pneg %p140
      $region38: #{_lambda_.6} parent=35 // pred_check_branch
        %599 = sbr.rel (%p597) target = $region40
      $region39: #{_lambda_.6} parent=35 // pred_region
        %s600 = smul.u32 8, %s22
      $region40: #{_lambda_.6} parent=35 // pred_fallthru
        _
      // Predicated region
      $region41: #{_lambda_.6} parent=35 // pred_check
        %p601 = pneg %p168
      $region42: #{_lambda_.6} parent=35 // pred_check_branch
        %603 = sbr.rel (%p601) target = $region44
      $region43: #{_lambda_.6} parent=35 // pred_region
        %s604 = smul.u32 8, %s22
      $region44: #{_lambda_.6} parent=35 // pred_fallthru
        _
    $region36: #{_lambda_.6} parent=5 // pred_fallthru
      _
    %p605 = scmp.le.s32.totalorder 2, %s12
    // Predicated region
    $region45: #{_lambda_.6} parent=5 // pred_check
      %p606 = pneg %p605
    $region46: #{_lambda_.6} parent=5 // pred_check_branch
      %608 = sbr.rel (%p606) target = $region48
    $region47: #{_lambda_.6} parent=5 // pred_region
      %s609 = ssub.s32 %s12, 2
      // Predicated region
      $region49: #{_lambda_.6} parent=47 // pred_check
        %p610 = pneg %p146
      $region50: #{_lambda_.6} parent=47 // pred_check_branch
        %612 = sbr.rel (%p610) target = $region52
      $region51: #{_lambda_.6} parent=47 // pred_region
        %s613 = smul.u32 8, %s24
        %p614 = scmp.lt.s32.totalorder %s23, 1
        %s615 = scalar_select %p614, %s23, 1
        %p616 = scmp.lt.s32.totalorder %s613, 7
        %s617 = scalar_select %p616, %s613, 7
        %s618 = smul.addr %s615, 8
        %s619 = sadd.s32 %s617, %s618
        %s620 = smul.addr %s619, 8
        %s621 = scalar_lea.vmem %s4, %s620
      $region52: #{_lambda_.6} parent=47 // pred_fallthru
        _
      // Predicated region
      $region53: #{_lambda_.6} parent=47 // pred_check
        %p622 = pneg %p174
      $region54: #{_lambda_.6} parent=47 // pred_check_branch
        %624 = sbr.rel (%p622) target = $region56
      $region55: #{_lambda_.6} parent=47 // pred_region
        %s625 = smul.u32 8, %s24
        %p626 = scmp.lt.s32.totalorder %s23, 1
        %s627 = scalar_select %p626, %s23, 1
        %p628 = scmp.lt.s32.totalorder %s625, 7
        %s629 = scalar_select %p628, %s625, 7
        %s630 = smul.addr %s627, 8
        %s631 = sadd.s32 %s629, %s630
        %s632 = smul.addr %s631, 8
        %s633 = scalar_lea.vmem %s5, %s632
      $region56: #{_lambda_.6} parent=47 // pred_fallthru
        _
    $region48: #{_lambda_.6} parent=5 // pred_fallthru
      _
  $region6: #{_lambda_.6} parent=0 // loop_footer
    %s16 = sadd.s32 1, %s12
  $region7: #{_lambda_.6} parent=0 // loop_footer_branch
    %11 = sbr.rel target = $region3
  $region8: #{_lambda_.6} parent=0 // loop_exit
    _

// kernel: _lambda_.7
$region0: #{_lambda_.7}
  #allocation0 [shape = 'u32[]', space=smem, size = 0x4, offset = 0x4, fixed_abs, tag = 'smem constant byte address 0x4 - core index']
  #allocation1 [shape = 'u32[144,128]{1,0:T(1,128)}', space=vmem, size = 0x12000, scoped, tag = 'internal scratch']
  %s0 = inlined_call_operand.vmem [shape: f32[2,108,64], index: 0, kind: input, shape index: {}]
  %s1 = inlined_call_operand.vmem [shape: f32[9,64], index: 1, kind: input, shape index: {}]
  %s2 = inlined_call_operand.vmem [shape: f32[1,64], index: 2, kind: input, shape index: {}]
  %s3 = inlined_call_operand.vmem [shape: f32[2,64,64], index: 3, kind: output, shape index: {}]
  %s4 = sld [smem:[#allocation0]]
  $region45: #{_lambda_.7} parent=0
    _
  %s6 = ssub.s32 1, %s4
  %s7 = scalar_select 0, %s6, %s4
  loop: start=0, step=1, limit=4
  $region2: #{_lambda_.7} parent=0 // loop_pre_header
    _
  $region3: #{_lambda_.7} parent=0 // loop_header
    %s9 = sphi 0, %s13
    %p10 = scmp.ge.s32.totalorder %s9, 4
    %s19 = sphi 0, %s21
    %s22 = sphi 0, %s19
    %s23 = sphi 0, %s22
    %s39 = sphi 0, %s23
    %s43 = sphi 0, %s43
    %s45 = sphi 0, %s43
    %s46 = sphi 0, %s45
    %s60 = sphi 0, %s46
    %s64 = sphi 0, %s64
    %s66 = sphi 0, %s64
    %s67 = sphi 0, %s66
    %s81 = sphi 0, %s67
    %s87 = sphi 0, %s89
    %s90 = sphi 0, %s87
    %s91 = sphi 0, %s90
    %s107 = sphi 0, %s91
  $region4: #{_lambda_.7} parent=0 // loop_header_branch
    %12 = sbr.rel (%p10) target = $region8
  $region5: #{_lambda_.7} parent=0 // loop_body
    %s14 = ssub.s32 %s9, 1
    %s15 = ssub.s32 %s9, 2
    %s16 = sadd.s32 %s9, 1
    %s17 = ssub.s32 %s9, %s16
    %p18 = scmp.eq.s32.totalorder %s17, 0
    %s20 = sadd.s32 %s19, 1
    %s21 = scalar_select %p18, %s19, %s20
    %p24 = pneg %p18
    %p25 = scmp.eq.s32.totalorder %s9, 1
    %p26 = por %p24, %p25
    %p27 = scmp.ne.s32.totalorder %s19, %s22
    %p28 = scmp.eq.s32.totalorder %s9, 0
    %p29 = por %p27, %p28
    %p30 = scmp.ne.s32.totalorder %s19, %s22
    %p31 = scmp.eq.s32.totalorder %s14, 1
    %p32 = por %p30, %p31
    %p33 = scmp.ne.s32.totalorder %s22, %s23
    %p34 = scmp.eq.s32.totalorder %s14, 0
    %p35 = por %p33, %p34
    %p36 = scmp.ne.s32.totalorder %s22, %s23
    %p37 = scmp.eq.s32.totalorder %s15, 1
    %p38 = por %p36, %p37
    %p40 = scmp.ne.s32.totalorder %s23, %s39
    %p41 = scmp.eq.s32.totalorder %s15, 0
    %p42 = por %p40, %p41
    %s44 = sadd.s32 %s43, 1
    %p47 = scmp.eq.s32.totalorder %s9, 1
    %p48 = scmp.ne.s32.totalorder %s43, %s45
    %p49 = scmp.eq.s32.totalorder %s9, 0
    %p50 = por %p48, %p49
    %p51 = scmp.ne.s32.totalorder %s43, %s45
    %p52 = scmp.eq.s32.totalorder %s14, 1
    %p53 = por %p51, %p52
    %p54 = scmp.ne.s32.totalorder %s45, %s46
    %p55 = scmp.eq.s32.totalorder %s14, 0
    %p56 = por %p54, %p55
    %p57 = scmp.ne.s32.totalorder %s45, %s46
    %p58 = scmp.eq.s32.totalorder %s15, 1
    %p59 = por %p57, %p58
    %p61 = scmp.ne.s32.totalorder %s46, %s60
    %p62 = scmp.eq.s32.totalorder %s15, 0
    %p63 = por %p61, %p62
    %s65 = sadd.s32 %s64, 1
    %p68 = scmp.eq.s32.totalorder %s9, 1
    %p69 = scmp.ne.s32.totalorder %s64, %s66
    %p70 = scmp.eq.s32.totalorder %s9, 0
    %p71 = por %p69, %p70
    %p72 = scmp.ne.s32.totalorder %s64, %s66
    %p73 = scmp.eq.s32.totalorder %s14, 1
    %p74 = por %p72, %p73
    %p75 = scmp.ne.s32.totalorder %s66, %s67
    %p76 = scmp.eq.s32.totalorder %s14, 0
    %p77 = por %p75, %p76
    %p78 = scmp.ne.s32.totalorder %s66, %s67
    %p79 = scmp.eq.s32.totalorder %s15, 1
    %p80 = por %p78, %p79
    %p82 = scmp.ne.s32.totalorder %s67, %s81
    %p83 = scmp.eq.s32.totalorder %s15, 0
    %p84 = por %p82, %p83
    %s85 = ssub.s32 %s9, %s16
    %p86 = scmp.eq.s32.totalorder %s85, 0
    %s88 = sadd.s32 %s87, 1
    %s89 = scalar_select %p86, %s87, %s88
    %p92 = pneg %p86
    %p93 = scmp.eq.s32.totalorder %s9, 1
    %p94 = por %p92, %p93
    %p95 = scmp.ne.s32.totalorder %s87, %s90
    %p96 = scmp.eq.s32.totalorder %s9, 0
    %p97 = por %p95, %p96
    %p98 = scmp.ne.s32.totalorder %s87, %s90
    %p99 = scmp.eq.s32.totalorder %s14, 1
    %p100 = por %p98, %p99
    %p101 = scmp.ne.s32.totalorder %s90, %s91
    %p102 = scmp.eq.s32.totalorder %s14, 0
    %p103 = por %p101, %p102
    %p104 = scmp.ne.s32.totalorder %s90, %s91
    %p105 = scmp.eq.s32.totalorder %s15, 1
    %p106 = por %p104, %p105
    %p108 = scmp.ne.s32.totalorder %s91, %s107
    %p109 = scmp.eq.s32.totalorder %s15, 0
    %p110 = por %p108, %p109
    %p111 = scmp.le.s32.totalorder 1, %s9
    %p112 = scmp.lt.s32.totalorder %s9, 3
    %p113 = pnand %p111, %p112
    %p114 = pneg %p113
    // Predicated region
    $region9: #{_lambda_.7} parent=5 // pred_check
      _
    $region10: #{_lambda_.7} parent=5 // pred_check_branch
      %116 = sbr.rel (%p113) target = $region12
    $region11: #{_lambda_.7} parent=5 // pred_region
      %s117 = ssub.s32 %s9, 1
      // Predicated region
      $region13: #{_lambda_.7} parent=11 // pred_check
        %p118 = pneg %p56
      $region14: #{_lambda_.7} parent=11 // pred_check_branch
        %120 = sbr.rel (%p118) target = $region16
      $region15: #{_lambda_.7} parent=11 // pred_region
        _
      $region16: #{_lambda_.7} parent=11 // pred_fallthru
        _
      // Predicated region
      $region17: #{_lambda_.7} parent=11 // pred_check
        %p121 = pneg %p77
      $region18: #{_lambda_.7} parent=11 // pred_check_branch
        %123 = sbr.rel (%p121) target = $region20
      $region19: #{_lambda_.7} parent=11 // pred_region
        _
      $region20: #{_lambda_.7} parent=11 // pred_fallthru
        _
    $region12: #{_lambda_.7} parent=5 // pred_fallthru
      _
    %p124 = scmp.lt.s32.totalorder %s9, 2
    // Predicated region
    $region21: #{_lambda_.7} parent=5 // pred_check
      %p125 = pneg %p124
    $region22: #{_lambda_.7} parent=5 // pred_check_branch
      %127 = sbr.rel (%p125) target = $region24
    $region23: #{_lambda_.7} parent=5 // pred_region
      // Predicated region
      $region25: #{_lambda_.7} parent=23 // pred_check
        %p128 = pneg %p29
      $region26: #{_lambda_.7} parent=23 // pred_check_branch
        %130 = sbr.rel (%p128) target = $region28
      $region27: #{_lambda_.7} parent=23 // pred_region
        %p131 = scmp.lt.s32.totalorder %s9, 1
        %s132 = scalar_select %p131, %s9, 1
        %s133 = smul.addr %s132, 14
        %s134 = smul.addr %s133, 8
        %s135 = scalar_lea.vmem %s0, %s134
      $region28: #{_lambda_.7} parent=23 // pred_fallthru
        _
    $region24: #{_lambda_.7} parent=5 // pred_fallthru
      _
    %p136 = scmp.le.s32.totalorder 1, %s9
    %p137 = scmp.lt.s32.totalorder %s9, 3
    %p138 = pnand %p136, %p137
    %p139 = pneg %p138
    // Predicated region
    $region29: #{_lambda_.7} parent=5 // pred_check
      _
    $region30: #{_lambda_.7} parent=5 // pred_check_branch
      %141 = sbr.rel (%p138) target = $region32
    $region31: #{_lambda_.7} parent=5 // pred_region
      %s142 = ssub.s32 %s9, 1
      %p143 = scmp.lt.s32.totalorder %s14, 1
      %s144 = scalar_select %p143, %s14, 1
      %s145 = smul.addr %s144, 14
      %s146 = smul.addr %s145, 8
      %s147 = scalar_lea.vmem %s0, %s146
      %p148 = pneg %p35
      %p149 = pneg %p32
      %p150 = pneg %p56
      %p151 = pneg %p53
      %p152 = pneg %p77
      %p153 = pneg %p74
      %p154 = pneg %p103
      %p155 = pneg %p100
      %p156 = scmp.lt.s32.totalorder %s14, 1
      %s157 = scalar_select %p156, %s14, 1
      %s158 = smul.addr %s157, 8
      %s159 = smul.addr %s158, 8
      %s160 = scalar_lea.vmem %s3, %s159
      %p161 = scmp.lt.s32.totalorder %s14, 1
      %s162 = scalar_select %p161, %s14, 1
      %s163 = smul.addr %s162, 14
      %s164 = smul.addr %s163, 8
      %s165 = scalar_lea.vmem %s0, %s164
      %p166 = scmp.lt.s32.totalorder %s14, 1
      %s167 = scalar_select %p166, %s14, 1
      %s168 = smul.addr %s167, 8
      %s169 = smul.addr %s168, 8
      %s170 = scalar_lea.vmem %s3, %s169
      %v171 = vld [vmem:[%s165] sm:$0xff]
      %v172 = vld [vmem:[%s165 + $0x8] sm:$0xff]
      %v173 = vld [vmem:[%s165 + $0x10] sm:$0xff]
      %v174 = vld [vmem:[%s165 + $0x18] sm:$0xff]
      %v175 = vld [vmem:[%s165 + $0x20] sm:$0xff]
      %v176 = vld [vmem:[%s165 + $0x28] sm:$0xff]
      %v177 = vld [vmem:[%s165 + $0x30] sm:$0xff]
      %v178 = vld [vmem:[%s165 + $0x38] sm:$0xff]
      %v179 = vld [vmem:[%s165 + $0x40] sm:$0xff]
      %v180 = vld [vmem:[%s165 + $0x48] sm:$0xff]
      %v181 = vld [vmem:[%s1] sm:$0x1]
      %v182 = vlaneseq
      %v183 = vshrl.u32 %v182, 7
      %v184 = vsub.s32 0, %v183
      %v185 = vrot.slane %v181, %v184
      %v186 = vmul.f32 %v171, %v185
      %v187 = vmul.f32 %v172, %v185
      %v188 = vmul.f32 %v173, %v185
      %v189 = vmul.f32 %v174, %v185
      %v190 = vmul.f32 %v175, %v185
      %v191 = vmul.f32 %v176, %v185
      %v192 = vmul.f32 %v177, %v185
      %v193 = vmul.f32 %v178, %v185
      %v194 = vmul.f32 %v179, %v185
      %v195 = vmul.f32 %v180, %v185
      %v196 = vadd.f32 %v186, 0.0
      %v197 = vadd.f32 %v187, 0.0
      %v198 = vadd.f32 %v188, 0.0
      %v199 = vadd.f32 %v189, 0.0
      %v200 = vadd.f32 %v190, 0.0
      %v201 = vadd.f32 %v191, 0.0
      %v202 = vadd.f32 %v192, 0.0
      %v203 = vadd.f32 %v193, 0.0
      %v204 = vadd.f32 %v194, 0.0
      %v205 = vadd.f32 %v195, 0.0
      %v206 = vld [vmem:[%s165 + $0x1] sm:$0xff]
      %v207 = vld [vmem:[%s165 + $0x9] sm:$0xff]
      %v208 = vld [vmem:[%s165 + $0x11] sm:$0xff]
      %v209 = vld [vmem:[%s165 + $0x19] sm:$0xff]
      %v210 = vld [vmem:[%s165 + $0x21] sm:$0xff]
      %v211 = vld [vmem:[%s165 + $0x29] sm:$0xff]
      %v212 = vld [vmem:[%s165 + $0x31] sm:$0xff]
      %v213 = vld [vmem:[%s165 + $0x39] sm:$0xff]
      %v214 = vld [vmem:[%s165 + $0x41] sm:$0xff]
      %v215 = vld [vmem:[%s165 + $0x49] sm:$0xff]
      %v216 = vld [vmem:[%s1 + $0x1] sm:$0x1]
      %v217 = vlaneseq
      %v218 = vshrl.u32 %v217, 7
      %v219 = vsub.s32 0, %v218
      %v220 = vrot.slane %v216, %v219
      %v221 = vmul.f32 %v206, %v220
      %v222 = vmul.f32 %v207, %v220
      %v223 = vmul.f32 %v208, %v220
      %v224 = vmul.f32 %v209, %v220
      %v225 = vmul.f32 %v210, %v220
      %v226 = vmul.f32 %v211, %v220
      %v227 = vmul.f32 %v212, %v220
      %v228 = vmul.f32 %v213, %v220
      %v229 = vmul.f32 %v214, %v220
      %v230 = vmul.f32 %v215, %v220
      %v231 = vadd.f32 %v196, %v221
      %v232 = vadd.f32 %v197, %v222
      %v233 = vadd.f32 %v198, %v223
      %v234 = vadd.f32 %v199, %v224
      %v235 = vadd.f32 %v200, %v225
      %v236 = vadd.f32 %v201, %v226
      %v237 = vadd.f32 %v202, %v227
      %v238 = vadd.f32 %v203, %v228
      %v239 = vadd.f32 %v204, %v229
      %v240 = vadd.f32 %v205, %v230
      %v241 = vld [vmem:[%s165 + $0x2] sm:$0xff]
      %v242 = vld [vmem:[%s165 + $0xa] sm:$0xff]
      %v243 = vld [vmem:[%s165 + $0x12] sm:$0xff]
      %v244 = vld [vmem:[%s165 + $0x1a] sm:$0xff]
      %v245 = vld [vmem:[%s165 + $0x22] sm:$0xff]
      %v246 = vld [vmem:[%s165 + $0x2a] sm:$0xff]
      %v247 = vld [vmem:[%s165 + $0x32] sm:$0xff]
      %v248 = vld [vmem:[%s165 + $0x3a] sm:$0xff]
      %v249 = vld [vmem:[%s165 + $0x42] sm:$0xff]
      %v250 = vld [vmem:[%s165 + $0x4a] sm:$0xff]
      %v251 = vld [vmem:[%s1 + $0x2] sm:$0x1]
      %v252 = vlaneseq
      %v253 = vshrl.u32 %v252, 7
      %v254 = vsub.s32 0, %v253
      %v255 = vrot.slane %v251, %v254
      %v256 = vmul.f32 %v241, %v255
      %v257 = vmul.f32 %v242, %v255
      %v258 = vmul.f32 %v243, %v255
      %v259 = vmul.f32 %v244, %v255
      %v260 = vmul.f32 %v245, %v255
      %v261 = vmul.f32 %v246, %v255
      %v262 = vmul.f32 %v247, %v255
      %v263 = vmul.f32 %v248, %v255
      %v264 = vmul.f32 %v249, %v255
      %v265 = vmul.f32 %v250, %v255
      %v266 = vadd.f32 %v231, %v256
      %v267 = vadd.f32 %v232, %v257
      %v268 = vadd.f32 %v233, %v258
      %v269 = vadd.f32 %v234, %v259
      %v270 = vadd.f32 %v235, %v260
      %v271 = vadd.f32 %v236, %v261
      %v272 = vadd.f32 %v237, %v262
      %v273 = vadd.f32 %v238, %v263
      %v274 = vadd.f32 %v239, %v264
      %v275 = vadd.f32 %v240, %v265
      %v276 = vld [vmem:[%s165 + $0x52] sm:$0xff]
      %v277 = vld [vmem:[%s1 + $0x3] sm:$0x1]
      %v278 = vlaneseq
      %v279 = vshrl.u32 %v278, 7
      %v280 = vsub.s32 0, %v279
      %v281 = vrot.slane %v277, %v280
      %v282 = vmul.f32 %v242, %v281
      %v283 = vmul.f32 %v243, %v281
      %v284 = vmul.f32 %v244, %v281
      %v285 = vmul.f32 %v245, %v281
      %v286 = vmul.f32 %v246, %v281
      %v287 = vmul.f32 %v247, %v281
      %v288 = vmul.f32 %v248, %v281
      %v289 = vmul.f32 %v249, %v281
      %v290 = vmul.f32 %v250, %v281
      %v291 = vmul.f32 %v276, %v281
      %v292 = vadd.f32 %v266, %v282
      %v293 = vadd.f32 %v267, %v283
      %v294 = vadd.f32 %v268, %v284
      %v295 = vadd.f32 %v269, %v285
      %v296 = vadd.f32 %v270, %v286
      %v297 = vadd.f32 %v271, %v287
      %v298 = vadd.f32 %v272, %v288
      %v299 = vadd.f32 %v273, %v289
      %v300 = vadd.f32 %v274, %v290
      %v301 = vadd.f32 %v275, %v291
      %v302 = vld [vmem:[%s165 + $0xb] sm:$0xff]
      %v303 = vld [vmem:[%s165 + $0x13] sm:$0xff]
      %v304 = vld [vmem:[%s165 + $0x1b] sm:$0xff]
      %v305 = vld [vmem:[%s165 + $0x23] sm:$0xff]
      %v306 = vld [vmem:[%s165 + $0x2b] sm:$0xff]
      %v307 = vld [vmem:[%s165 + $0x33] sm:$0xff]
      %v308 = vld [vmem:[%s165 + $0x3b] sm:$0xff]
      %v309 = vld [vmem:[%s165 + $0x43] sm:$0xff]
      %v310 = vld [vmem:[%s165 + $0x4b] sm:$0xff]
      %v311 = vld [vmem:[%s165 + $0x53] sm:$0xff]
      %v312 = vld [vmem:[%s1 + $0x4] sm:$0x1]
      %v313 = vlaneseq
      %v314 = vshrl.u32 %v313, 7
      %v315 = vsub.s32 0, %v314
      %v316 = vrot.slane %v312, %v315
      %v317 = vmul.f32 %v302, %v316
      %v318 = vmul.f32 %v303, %v316
      %v319 = vmul.f32 %v304, %v316
      %v320 = vmul.f32 %v305, %v316
      %v321 = vmul.f32 %v306, %v316
      %v322 = vmul.f32 %v307, %v316
      %v323 = vmul.f32 %v308, %v316
      %v324 = vmul.f32 %v309, %v316
      %v325 = vmul.f32 %v310, %v316
      %v326 = vmul.f32 %v311, %v316
      %v327 = vadd.f32 %v292, %v317
      %v328 = vadd.f32 %v293, %v318
      %v329 = vadd.f32 %v294, %v319
      %v330 = vadd.f32 %v295, %v320
      %v331 = vadd.f32 %v296, %v321
      %v332 = vadd.f32 %v297, %v322
      %v333 = vadd.f32 %v298, %v323
      %v334 = vadd.f32 %v299, %v324
      %v335 = vadd.f32 %v300, %v325
      %v336 = vadd.f32 %v301, %v326
      %v337 = vld [vmem:[%s165 + $0xc] sm:$0xff]
      %v338 = vld [vmem:[%s165 + $0x14] sm:$0xff]
      %v339 = vld [vmem:[%s165 + $0x1c] sm:$0xff]
      %v340 = vld [vmem:[%s165 + $0x24] sm:$0xff]
      %v341 = vld [vmem:[%s165 + $0x2c] sm:$0xff]
      %v342 = vld [vmem:[%s165 + $0x34] sm:$0xff]
      %v343 = vld [vmem:[%s165 + $0x3c] sm:$0xff]
      %v344 = vld [vmem:[%s165 + $0x44] sm:$0xff]
      %v345 = vld [vmem:[%s165 + $0x4c] sm:$0xff]
      %v346 = vld [vmem:[%s165 + $0x54] sm:$0xff]
      %v347 = vld [vmem:[%s1 + $0x5] sm:$0x1]
      %v348 = vlaneseq
      %v349 = vshrl.u32 %v348, 7
      %v350 = vsub.s32 0, %v349
      %v351 = vrot.slane %v347, %v350
      %v352 = vmul.f32 %v337, %v351
      %v353 = vmul.f32 %v338, %v351
      %v354 = vmul.f32 %v339, %v351
      %v355 = vmul.f32 %v340, %v351
      %v356 = vmul.f32 %v341, %v351
      %v357 = vmul.f32 %v342, %v351
      %v358 = vmul.f32 %v343, %v351
      %v359 = vmul.f32 %v344, %v351
      %v360 = vmul.f32 %v345, %v351
      %v361 = vmul.f32 %v346, %v351
      %v362 = vadd.f32 %v327, %v352
      %v363 = vadd.f32 %v328, %v353
      %v364 = vadd.f32 %v329, %v354
      %v365 = vadd.f32 %v330, %v355
      %v366 = vadd.f32 %v331, %v356
      %v367 = vadd.f32 %v332, %v357
      %v368 = vadd.f32 %v333, %v358
      %v369 = vadd.f32 %v334, %v359
      %v370 = vadd.f32 %v335, %v360
      %v371 = vadd.f32 %v336, %v361
      %v372 = vld [vmem:[%s165 + $0x5c] sm:$0xff]
      %v373 = vld [vmem:[%s1 + $0x6] sm:$0x1]
      %v374 = vlaneseq
      %v375 = vshrl.u32 %v374, 7
      %v376 = vsub.s32 0, %v375
      %v377 = vrot.slane %v373, %v376
      %v378 = vmul.f32 %v338, %v377
      %v379 = vmul.f32 %v339, %v377
      %v380 = vmul.f32 %v340, %v377
      %v381 = vmul.f32 %v341, %v377
      %v382 = vmul.f32 %v342, %v377
      %v383 = vmul.f32 %v343, %v377
      %v384 = vmul.f32 %v344, %v377
      %v385 = vmul.f32 %v345, %v377
      %v386 = vmul.f32 %v346, %v377
      %v387 = vmul.f32 %v372, %v377
      %v388 = vadd.f32 %v362, %v378
      %v389 = vadd.f32 %v363, %v379
      %v390 = vadd.f32 %v364, %v380
      %v391 = vadd.f32 %v365, %v381
      %v392 = vadd.f32 %v366, %v382
      %v393 = vadd.f32 %v367, %v383
      %v394 = vadd.f32 %v368, %v384
      %v395 = vadd.f32 %v369, %v385
      %v396 = vadd.f32 %v370, %v386
      %v397 = vadd.f32 %v371, %v387
      %v398 = vld [vmem:[%s165 + $0x15] sm:$0xff]
      %v399 = vld [vmem:[%s165 + $0x1d] sm:$0xff]
      %v400 = vld [vmem:[%s165 + $0x25] sm:$0xff]
      %v401 = vld [vmem:[%s165 + $0x2d] sm:$0xff]
      %v402 = vld [vmem:[%s165 + $0x35] sm:$0xff]
      %v403 = vld [vmem:[%s165 + $0x3d] sm:$0xff]
      %v404 = vld [vmem:[%s165 + $0x45] sm:$0xff]
      %v405 = vld [vmem:[%s165 + $0x4d] sm:$0xff]
      %v406 = vld [vmem:[%s165 + $0x55] sm:$0xff]
      %v407 = vld [vmem:[%s165 + $0x5d] sm:$0xff]
      %v408 = vld [vmem:[%s1 + $0x7] sm:$0x1]
      %v409 = vlaneseq
      %v410 = vshrl.u32 %v409, 7
      %v411 = vsub.s32 0, %v410
      %v412 = vrot.slane %v408, %v411
      %v413 = vmul.f32 %v398, %v412
      %v414 = vmul.f32 %v399, %v412
      %v415 = vmul.f32 %v400, %v412
      %v416 = vmul.f32 %v401, %v412
      %v417 = vmul.f32 %v402, %v412
      %v418 = vmul.f32 %v403, %v412
      %v419 = vmul.f32 %v404, %v412
      %v420 = vmul.f32 %v405, %v412
      %v421 = vmul.f32 %v406, %v412
      %v422 = vmul.f32 %v407, %v412
      %v423 = vadd.f32 %v388, %v413
      %v424 = vadd.f32 %v389, %v414
      %v425 = vadd.f32 %v390, %v415
      %v426 = vadd.f32 %v391, %v416
      %v427 = vadd.f32 %v392, %v417
      %v428 = vadd.f32 %v393, %v418
      %v429 = vadd.f32 %v394, %v419
      %v430 = vadd.f32 %v395, %v420
      %v431 = vadd.f32 %v396, %v421
      %v432 = vadd.f32 %v397, %v422
      %v433 = vld [vmem:[%s165 + $0x16] sm:$0xff]
      %v434 = vld [vmem:[%s165 + $0x1e] sm:$0xff]
      %v435 = vld [vmem:[%s165 + $0x26] sm:$0xff]
      %v436 = vld [vmem:[%s165 + $0x2e] sm:$0xff]
      %v437 = vld [vmem:[%s165 + $0x36] sm:$0xff]
      %v438 = vld [vmem:[%s165 + $0x3e] sm:$0xff]
      %v439 = vld [vmem:[%s165 + $0x46] sm:$0xff]
      %v440 = vld [vmem:[%s165 + $0x4e] sm:$0xff]
      %v441 = vld [vmem:[%s165 + $0x56] sm:$0xff]
      %v442 = vld [vmem:[%s165 + $0x5e] sm:$0xff]
      %v443 = vld [vmem:[%s1 + $0x8] sm:$0x1]
      %v444 = vlaneseq
      %v445 = vshrl.u32 %v444, 7
      %v446 = vsub.s32 0, %v445
      %v447 = vrot.slane %v443, %v446
      %v448 = vmul.f32 %v433, %v447
      %v449 = vmul.f32 %v434, %v447
      %v450 = vmul.f32 %v435, %v447
      %v451 = vmul.f32 %v436, %v447
      %v452 = vmul.f32 %v437, %v447
      %v453 = vmul.f32 %v438, %v447
      %v454 = vmul.f32 %v439, %v447
      %v455 = vmul.f32 %v440, %v447
      %v456 = vmul.f32 %v441, %v447
      %v457 = vmul.f32 %v442, %v447
      %v458 = vadd.f32 %v423, %v448
      %v459 = vadd.f32 %v424, %v449
      %v460 = vadd.f32 %v425, %v450
      %v461 = vadd.f32 %v426, %v451
      %v462 = vadd.f32 %v427, %v452
      %v463 = vadd.f32 %v428, %v453
      %v464 = vadd.f32 %v429, %v454
      %v465 = vadd.f32 %v430, %v455
      %v466 = vadd.f32 %v431, %v456
      %v467 = vadd.f32 %v432, %v457
      %v468 = vld [vmem:[%s2] sm:$0x1]
      %v470 = vlaneseq
      %v471 = vshrl.u32 %v470, 7
      %v472 = vsub.s32 0, %v471
      %v473 = vrot.slane %v468, %v472
      %v475 = vadd.f32 %v458, %v473
      %v476 = vadd.f32 %v459, %v473
      %v477 = vadd.f32 %v460, %v473
      %v478 = vadd.f32 %v461, %v473
      %v479 = vadd.f32 %v462, %v473
      %v480 = vadd.f32 %v463, %v473
      %v481 = vadd.f32 %v464, %v473
      %v482 = vadd.f32 %v465, %v473
      %v483 = vadd.f32 %v466, %v473
      %v484 = vadd.f32 %v467, %v473
      %vm487 = vcmask 1045504
      %v488 = vrot.slane %v476, 2
      %v489 = vrot.slane %v477, 2
      %v490 = vsel %vm487, %v488, %v489
      %vm493 = vcmask 1043456
      %v494 = vrot.slane %v477, 4
      %v495 = vrot.slane %v478, 4
      %v496 = vsel %vm493, %v494, %v495
      %vm499 = vcmask 1041408
      %v500 = vrot.slane %v478, 6
      %v501 = vrot.slane %v479, 6
      %v502 = vsel %vm499, %v500, %v501
      %v506 = vrot.slane %v481, 2
      %v507 = vrot.slane %v482, 2
      %v508 = vsel %vm487, %v506, %v507
      %v511 = vrot.slane %v482, 4
      %v512 = vrot.slane %v483, 4
      %v513 = vsel %vm493, %v511, %v512
      %v516 = vrot.slane %v483, 6
      %v517 = vrot.slane %v484, 6
      %v518 = vsel %vm499, %v516, %v517
      %v520 = vxor.u32 %v475, 2147483648
      %v521 = vxor.u32 %v490, 2147483648
      %v522 = vxor.u32 %v496, 2147483648
      %v523 = vxor.u32 %v502, 2147483648
      %v524 = vxor.u32 %v480, 2147483648
      %v525 = vxor.u32 %v508, 2147483648
      %v526 = vxor.u32 %v513, 2147483648
      %v527 = vxor.u32 %v518, 2147483648
      %v528 = vmul.f32 %v520, 1.442695
      %v529 = vpow.pop %v528
      %v530 = vmul.f32 %v521, 1.442695
      %v531 = vpow.pop %v530
      %v532 = vmul.f32 %v522, 1.442695
      %v533 = vpow.pop %v532
      %v534 = vmul.f32 %v523, 1.442695
      %v535 = vpow.pop %v534
      %v536 = vmul.f32 %v524, 1.442695
      %v537 = vpow.pop %v536
      %v538 = vmul.f32 %v525, 1.442695
      %v539 = vpow.pop %v538
      %v540 = vmul.f32 %v526, 1.442695
      %v541 = vpow.pop %v540
      %v542 = vmul.f32 %v527, 1.442695
      %v543 = vpow.pop %v542
      %v544 = vadd.f32 %v529, 1.0
      %v545 = vadd.f32 %v531, 1.0
      %v546 = vadd.f32 %v533, 1.0
      %v547 = vadd.f32 %v535, 1.0
      %v548 = vadd.f32 %v537, 1.0
      %v549 = vadd.f32 %v539, 1.0
      %v550 = vadd.f32 %v541, 1.0
      %v551 = vadd.f32 %v543, 1.0
      %v552 = vrcp.pop %v544
      %v553 = vmul.f32 1.0, %v552
      %v554 = vrcp.pop %v545
      %v555 = vmul.f32 1.0, %v554
      %v556 = vrcp.pop %v546
      %v557 = vmul.f32 1.0, %v556
      %v558 = vrcp.pop %v547
      %v559 = vmul.f32 1.0, %v558
      %v560 = vrcp.pop %v548
      %v561 = vmul.f32 1.0, %v560
      %v562 = vrcp.pop %v549
      %v563 = vmul.f32 1.0, %v562
      %v564 = vrcp.pop %v550
      %v565 = vmul.f32 1.0, %v564
      %v566 = vrcp.pop %v551
      %v567 = vmul.f32 1.0, %v566
      %v568 = vmul.f32 %v475, %v553
      %v569 = vmul.f32 %v490, %v555
      %v570 = vmul.f32 %v496, %v557
      %v571 = vmul.f32 %v502, %v559
      %v572 = vmul.f32 %v480, %v561
      %v573 = vmul.f32 %v508, %v563
      %v574 = vmul.f32 %v513, %v565
      %v575 = vmul.f32 %v518, %v567
      %vm576 = vcmask 523264
      %577 = vst.msk [vmem:[%s170] sm:$0xff] %vm576, %v568
      %578 = vst.msk [vmem:[%s170 + $0x8] sm:$0xff] %vm576, %v569
      %579 = vst.msk [vmem:[%s170 + $0x10] sm:$0xff] %vm576, %v570
      %580 = vst.msk [vmem:[%s170 + $0x18] sm:$0xff] %vm576, %v571
      %581 = vst.msk [vmem:[%s170 + $0x20] sm:$0xff] %vm576, %v572
      %582 = vst.msk [vmem:[%s170 + $0x28] sm:$0xff] %vm576, %v573
      %583 = vst.msk [vmem:[%s170 + $0x30] sm:$0xff] %vm576, %v574
      %584 = vst.msk [vmem:[%s170 + $0x38] sm:$0xff] %vm576, %v575
      %p585 = scmp.lt.s32.totalorder %s14, 1
      %s586 = scalar_select %p585, %s14, 1
      %s587 = smul.addr %s586, 8
      %s588 = smul.addr %s587, 8
      %s589 = scalar_lea.vmem %s3, %s588
      // Predicated region
      $region33: #{_lambda_.7} parent=31 // pred_check
        %p590 = pneg %p100
      $region34: #{_lambda_.7} parent=31 // pred_check_branch
        %592 = sbr.rel (%p590) target = $region36
      $region35: #{_lambda_.7} parent=31 // pred_region
        _
      $region36: #{_lambda_.7} parent=31 // pred_fallthru
        _
    $region32: #{_lambda_.7} parent=5 // pred_fallthru
      _
    %p593 = scmp.le.s32.totalorder 2, %s9
    // Predicated region
    $region37: #{_lambda_.7} parent=5 // pred_check
      %p594 = pneg %p593
    $region38: #{_lambda_.7} parent=5 // pred_check_branch
      %596 = sbr.rel (%p594) target = $region40
    $region39: #{_lambda_.7} parent=5 // pred_region
      %s597 = ssub.s32 %s9, 2
      // Predicated region
      $region41: #{_lambda_.7} parent=39 // pred_check
        %p598 = pneg %p106
      $region42: #{_lambda_.7} parent=39 // pred_check_branch
        %600 = sbr.rel (%p598) target = $region44
      $region43: #{_lambda_.7} parent=39 // pred_region
        %p601 = scmp.lt.s32.totalorder %s15, 1
        %s602 = scalar_select %p601, %s15, 1
        %s603 = smul.addr %s602, 8
        %s604 = smul.addr %s603, 8
        %s605 = scalar_lea.vmem %s3, %s604
      $region44: #{_lambda_.7} parent=39 // pred_fallthru
        _
    $region40: #{_lambda_.7} parent=5 // pred_fallthru
      _
  $region6: #{_lambda_.7} parent=0 // loop_footer
    %s13 = sadd.s32 1, %s9
  $region7: #{_lambda_.7} parent=0 // loop_footer_branch
    %8 = sbr.rel target = $region3
  $region8: #{_lambda_.7} parent=0 // loop_exit
    _

// kernel: _lambda_.9
$region0: #{_lambda_.9}
  #allocation0 [shape = 'u32[]', space=smem, size = 0x4, offset = 0x4, fixed_abs, tag = 'smem constant byte address 0x4 - core index']
  #allocation1 [shape = 'u32[144,128]{1,0:T(1,128)}', space=vmem, size = 0x12000, scoped, tag = 'internal scratch']
  %s0 = inlined_call_operand.vmem [shape: f32[2,64,64], index: 0, kind: input, shape index: {}]
  %s1 = inlined_call_operand.vmem [shape: f32[2,64,64], index: 1, kind: input, shape index: {}]
  %s2 = inlined_call_operand.vmem [shape: f32[2,64,32], index: 2, kind: input, shape index: {}]
  %s3 = inlined_call_operand.vmem [shape: f32[1,64], index: 3, kind: input, shape index: {}]
  %s4 = inlined_call_operand.vmem [shape: f32[1,64], index: 4, kind: input, shape index: {}]
  %s5 = inlined_call_operand.vmem [shape: bf16[64,32], index: 5, kind: input, shape index: {}]
  %s6 = inlined_call_operand.vmem [shape: f32[1,32], index: 6, kind: input, shape index: {}, may-alias: {6,7}]
  %s7 = inlined_call_operand.vmem [shape: f32[1,32], index: 7, kind: input, shape index: {}, may-alias: {6,7}]
  %s8 = inlined_call_operand.vmem [shape: f32[1,32], index: 8, kind: input, shape index: {}]
  %s9 = inlined_call_operand.vmem [shape: f32[2,64,32], index: 9, kind: output, shape index: {0}]
  %s10 = inlined_call_operand.vmem [shape: bf16[2,64,32], index: 10, kind: output, shape index: {1}]
  %11 = xla_tuple %s9, %s10
  %s12 = sld [smem:[#allocation0]]
  $region77: #{_lambda_.9} parent=0
    _
  %s14 = ssub.s32 1, %s12
  %s15 = scalar_select 0, %s14, %s12
  loop: start=0, step=1, limit=4
  $region2: #{_lambda_.9} parent=0 // loop_pre_header
    _
  $region3: #{_lambda_.9} parent=0 // loop_header
    %s17 = sphi 0, %s21
    %p18 = scmp.ge.s32.totalorder %s17, 4
    %s24 = sphi 0, %s36
    %s25 = sphi 0, %s32
    %s26 = sphi 0, %s24
    %s27 = sphi 0, %s25
    %s28 = sphi 0, %s26
    %s29 = sphi 0, %s27
    %s41 = sphi 0, %s43
    %s44 = sphi 0, %s41
    %s45 = sphi 0, %s44
    %s61 = sphi 0, %s45
    %s69 = sphi 0, %s71
    %s72 = sphi 0, %s69
    %s73 = sphi 0, %s72
    %s89 = sphi 0, %s73
    %s97 = sphi 0, %s99
    %s100 = sphi 0, %s97
    %s101 = sphi 0, %s100
    %s117 = sphi 0, %s101
    %s121 = sphi 0, %s121
    %s123 = sphi 0, %s121
    %s124 = sphi 0, %s123
    %s138 = sphi 0, %s124
    %s142 = sphi 0, %s142
    %s144 = sphi 0, %s142
    %s145 = sphi 0, %s144
    %s159 = sphi 0, %s145
    %s163 = sphi 0, %s163
    %s165 = sphi 0, %s163
    %s166 = sphi 0, %s165
    %s180 = sphi 0, %s166
    %s184 = sphi 0, %s184
    %s186 = sphi 0, %s184
    %s187 = sphi 0, %s186
    %s201 = sphi 0, %s187
    %s205 = sphi 0, %s205
    %s207 = sphi 0, %s205
    %s208 = sphi 0, %s207
    %s222 = sphi 0, %s208
    %s226 = sphi 0, %s226
    %s228 = sphi 0, %s226
    %s229 = sphi 0, %s228
    %s243 = sphi 0, %s229
    %s251 = sphi 0, %s253
    %s254 = sphi 0, %s251
    %s255 = sphi 0, %s254
    %s271 = sphi 0, %s255
    %s279 = sphi 0, %s281
    %s282 = sphi 0, %s279
    %s283 = sphi 0, %s282
    %s299 = sphi 0, %s283
  $region4: #{_lambda_.9} parent=0 // loop_header_branch
    %20 = sbr.rel (%p18) target = $region8
  $region5: #{_lambda_.9} parent=0 // loop_body
    %s22 = ssub.s32 %s17, 1
    %s23 = ssub.s32 %s17, 2
    %s30 = sadd.s32 1, %s25
    %p31 = scmp.ge.s32.totalorder %s30, 1
    %s32 = scalar_select %p31, 0, %s30
    %s33 = sadd.s32 1, %s24
    %s34 = scalar_select %p31, %s33, %s24
    %p35 = scmp.ge.s32.totalorder %s34, 2
    %s36 = scalar_select %p35, 0, %s34
    %s37 = ssub.s32 %s24, %s36
    %s38 = ssub.s32 %s25, %s32
    %s39 = sor.u32 %s37, %s38
    %p40 = scmp.eq.s32.totalorder %s39, 0
    %s42 = sadd.s32 %s41, 1
    %s43 = scalar_select %p40, %s41, %s42
    %p46 = pneg %p40
    %p47 = scmp.eq.s32.totalorder %s17, 1
    %p48 = por %p46, %p47
    %p49 = scmp.ne.s32.totalorder %s41, %s44
    %p50 = scmp.eq.s32.totalorder %s17, 0
    %p51 = por %p49, %p50
    %p52 = scmp.ne.s32.totalorder %s41, %s44
    %p53 = scmp.eq.s32.totalorder %s22, 1
    %p54 = por %p52, %p53
    %p55 = scmp.ne.s32.totalorder %s44, %s45
    %p56 = scmp.eq.s32.totalorder %s22, 0
    %p57 = por %p55, %p56
    %p58 = scmp.ne.s32.totalorder %s44, %s45
    %p59 = scmp.eq.s32.totalorder %s23, 1
    %p60 = por %p58, %p59
    %p62 = scmp.ne.s32.totalorder %s45, %s61
    %p63 = scmp.eq.s32.totalorder %s23, 0
    %p64 = por %p62, %p63
    %s65 = ssub.s32 %s24, %s36
    %s66 = ssub.s32 %s25, %s32
    %s67 = sor.u32 %s65, %s66
    %p68 = scmp.eq.s32.totalorder %s67, 0
    %s70 = sadd.s32 %s69, 1
    %s71 = scalar_select %p68, %s69, %s70
    %p74 = pneg %p68
    %p75 = scmp.eq.s32.totalorder %s17, 1
    %p76 = por %p74, %p75
    %p77 = scmp.ne.s32.totalorder %s69, %s72
    %p78 = scmp.eq.s32.totalorder %s17, 0
    %p79 = por %p77, %p78
    %p80 = scmp.ne.s32.totalorder %s69, %s72
    %p81 = scmp.eq.s32.totalorder %s22, 1
    %p82 = por %p80, %p81
    %p83 = scmp.ne.s32.totalorder %s72, %s73
    %p84 = scmp.eq.s32.totalorder %s22, 0
    %p85 = por %p83, %p84
    %p86 = scmp.ne.s32.totalorder %s72, %s73
    %p87 = scmp.eq.s32.totalorder %s23, 1
    %p88 = por %p86, %p87
    %p90 = scmp.ne.s32.totalorder %s73, %s89
    %p91 = scmp.eq.s32.totalorder %s23, 0
    %p92 = por %p90, %p91
    %s93 = ssub.s32 %s24, %s36
    %s94 = ssub.s32 %s25, %s32
    %s95 = sor.u32 %s93, %s94
    %p96 = scmp.eq.s32.totalorder %s95, 0
    %s98 = sadd.s32 %s97, 1
    %s99 = scalar_select %p96, %s97, %s98
    %p102 = pneg %p96
    %p103 = scmp.eq.s32.totalorder %s17, 1
    %p104 = por %p102, %p103
    %p105 = scmp.ne.s32.totalorder %s97, %s100
    %p106 = scmp.eq.s32.totalorder %s17, 0
    %p107 = por %p105, %p106
    %p108 = scmp.ne.s32.totalorder %s97, %s100
    %p109 = scmp.eq.s32.totalorder %s22, 1
    %p110 = por %p108, %p109
    %p111 = scmp.ne.s32.totalorder %s100, %s101
    %p112 = scmp.eq.s32.totalorder %s22, 0
    %p113 = por %p111, %p112
    %p114 = scmp.ne.s32.totalorder %s100, %s101
    %p115 = scmp.eq.s32.totalorder %s23, 1
    %p116 = por %p114, %p115
    %p118 = scmp.ne.s32.totalorder %s101, %s117
    %p119 = scmp.eq.s32.totalorder %s23, 0
    %p120 = por %p118, %p119
    %s122 = sadd.s32 %s121, 1
    %p125 = scmp.eq.s32.totalorder %s17, 1
    %p126 = scmp.ne.s32.totalorder %s121, %s123
    %p127 = scmp.eq.s32.totalorder %s17, 0
    %p128 = por %p126, %p127
    %p129 = scmp.ne.s32.totalorder %s121, %s123
    %p130 = scmp.eq.s32.totalorder %s22, 1
    %p131 = por %p129, %p130
    %p132 = scmp.ne.s32.totalorder %s123, %s124
    %p133 = scmp.eq.s32.totalorder %s22, 0
    %p134 = por %p132, %p133
    %p135 = scmp.ne.s32.totalorder %s123, %s124
    %p136 = scmp.eq.s32.totalorder %s23, 1
    %p137 = por %p135, %p136
    %p139 = scmp.ne.s32.totalorder %s124, %s138
    %p140 = scmp.eq.s32.totalorder %s23, 0
    %p141 = por %p139, %p140
    %s143 = sadd.s32 %s142, 1
    %p146 = scmp.eq.s32.totalorder %s17, 1
    %p147 = scmp.ne.s32.totalorder %s142, %s144
    %p148 = scmp.eq.s32.totalorder %s17, 0
    %p149 = por %p147, %p148
    %p150 = scmp.ne.s32.totalorder %s142, %s144
    %p151 = scmp.eq.s32.totalorder %s22, 1
    %p152 = por %p150, %p151
    %p153 = scmp.ne.s32.totalorder %s144, %s145
    %p154 = scmp.eq.s32.totalorder %s22, 0
    %p155 = por %p153, %p154
    %p156 = scmp.ne.s32.totalorder %s144, %s145
    %p157 = scmp.eq.s32.totalorder %s23, 1
    %p158 = por %p156, %p157
    %p160 = scmp.ne.s32.totalorder %s145, %s159
    %p161 = scmp.eq.s32.totalorder %s23, 0
    %p162 = por %p160, %p161
    %s164 = sadd.s32 %s163, 1
    %p167 = scmp.eq.s32.totalorder %s17, 1
    %p168 = scmp.ne.s32.totalorder %s163, %s165
    %p169 = scmp.eq.s32.totalorder %s17, 0
    %p170 = por %p168, %p169
    %p171 = scmp.ne.s32.totalorder %s163, %s165
    %p172 = scmp.eq.s32.totalorder %s22, 1
    %p173 = por %p171, %p172
    %p174 = scmp.ne.s32.totalorder %s165, %s166
    %p175 = scmp.eq.s32.totalorder %s22, 0
    %p176 = por %p174, %p175
    %p177 = scmp.ne.s32.totalorder %s165, %s166
    %p178 = scmp.eq.s32.totalorder %s23, 1
    %p179 = por %p177, %p178
    %p181 = scmp.ne.s32.totalorder %s166, %s180
    %p182 = scmp.eq.s32.totalorder %s23, 0
    %p183 = por %p181, %p182
    %s185 = sadd.s32 %s184, 1
    %p188 = scmp.eq.s32.totalorder %s17, 1
    %p189 = scmp.ne.s32.totalorder %s184, %s186
    %p190 = scmp.eq.s32.totalorder %s17, 0
    %p191 = por %p189, %p190
    %p192 = scmp.ne.s32.totalorder %s184, %s186
    %p193 = scmp.eq.s32.totalorder %s22, 1
    %p194 = por %p192, %p193
    %p195 = scmp.ne.s32.totalorder %s186, %s187
    %p196 = scmp.eq.s32.totalorder %s22, 0
    %p197 = por %p195, %p196
    %p198 = scmp.ne.s32.totalorder %s186, %s187
    %p199 = scmp.eq.s32.totalorder %s23, 1
    %p200 = por %p198, %p199
    %p202 = scmp.ne.s32.totalorder %s187, %s201
    %p203 = scmp.eq.s32.totalorder %s23, 0
    %p204 = por %p202, %p203
    %s206 = sadd.s32 %s205, 1
    %p209 = scmp.eq.s32.totalorder %s17, 1
    %p210 = scmp.ne.s32.totalorder %s205, %s207
    %p211 = scmp.eq.s32.totalorder %s17, 0
    %p212 = por %p210, %p211
    %p213 = scmp.ne.s32.totalorder %s205, %s207
    %p214 = scmp.eq.s32.totalorder %s22, 1
    %p215 = por %p213, %p214
    %p216 = scmp.ne.s32.totalorder %s207, %s208
    %p217 = scmp.eq.s32.totalorder %s22, 0
    %p218 = por %p216, %p217
    %p219 = scmp.ne.s32.totalorder %s207, %s208
    %p220 = scmp.eq.s32.totalorder %s23, 1
    %p221 = por %p219, %p220
    %p223 = scmp.ne.s32.totalorder %s208, %s222
    %p224 = scmp.eq.s32.totalorder %s23, 0
    %p225 = por %p223, %p224
    %s227 = sadd.s32 %s226, 1
    %p230 = scmp.eq.s32.totalorder %s17, 1
    %p231 = scmp.ne.s32.totalorder %s226, %s228
    %p232 = scmp.eq.s32.totalorder %s17, 0
    %p233 = por %p231, %p232
    %p234 = scmp.ne.s32.totalorder %s226, %s228
    %p235 = scmp.eq.s32.totalorder %s22, 1
    %p236 = por %p234, %p235
    %p237 = scmp.ne.s32.totalorder %s228, %s229
    %p238 = scmp.eq.s32.totalorder %s22, 0
    %p239 = por %p237, %p238
    %p240 = scmp.ne.s32.totalorder %s228, %s229
    %p241 = scmp.eq.s32.totalorder %s23, 1
    %p242 = por %p240, %p241
    %p244 = scmp.ne.s32.totalorder %s229, %s243
    %p245 = scmp.eq.s32.totalorder %s23, 0
    %p246 = por %p244, %p245
    %s247 = ssub.s32 %s24, %s36
    %s248 = ssub.s32 %s25, %s32
    %s249 = sor.u32 %s247, %s248
    %p250 = scmp.eq.s32.totalorder %s249, 0
    %s252 = sadd.s32 %s251, 1
    %s253 = scalar_select %p250, %s251, %s252
    %p256 = pneg %p250
    %p257 = scmp.eq.s32.totalorder %s17, 1
    %p258 = por %p256, %p257
    %p259 = scmp.ne.s32.totalorder %s251, %s254
    %p260 = scmp.eq.s32.totalorder %s17, 0
    %p261 = por %p259, %p260
    %p262 = scmp.ne.s32.totalorder %s251, %s254
    %p263 = scmp.eq.s32.totalorder %s22, 1
    %p264 = por %p262, %p263
    %p265 = scmp.ne.s32.totalorder %s254, %s255
    %p266 = scmp.eq.s32.totalorder %s22, 0
    %p267 = por %p265, %p266
    %p268 = scmp.ne.s32.totalorder %s254, %s255
    %p269 = scmp.eq.s32.totalorder %s23, 1
    %p270 = por %p268, %p269
    %p272 = scmp.ne.s32.totalorder %s255, %s271
    %p273 = scmp.eq.s32.totalorder %s23, 0
    %p274 = por %p272, %p273
    %s275 = ssub.s32 %s24, %s36
    %s276 = ssub.s32 %s25, %s32
    %s277 = sor.u32 %s275, %s276
    %p278 = scmp.eq.s32.totalorder %s277, 0
    %s280 = sadd.s32 %s279, 1
    %s281 = scalar_select %p278, %s279, %s280
    %p284 = pneg %p278
    %p285 = scmp.eq.s32.totalorder %s17, 1
    %p286 = por %p284, %p285
    %p287 = scmp.ne.s32.totalorder %s279, %s282
    %p288 = scmp.eq.s32.totalorder %s17, 0
    %p289 = por %p287, %p288
    %p290 = scmp.ne.s32.totalorder %s279, %s282
    %p291 = scmp.eq.s32.totalorder %s22, 1
    %p292 = por %p290, %p291
    %p293 = scmp.ne.s32.totalorder %s282, %s283
    %p294 = scmp.eq.s32.totalorder %s22, 0
    %p295 = por %p293, %p294
    %p296 = scmp.ne.s32.totalorder %s282, %s283
    %p297 = scmp.eq.s32.totalorder %s23, 1
    %p298 = por %p296, %p297
    %p300 = scmp.ne.s32.totalorder %s283, %s299
    %p301 = scmp.eq.s32.totalorder %s23, 0
    %p302 = por %p300, %p301
    %p303 = scmp.le.s32.totalorder 1, %s17
    %p304 = scmp.lt.s32.totalorder %s17, 3
    %p305 = pnand %p303, %p304
    %p306 = pneg %p305
    // Predicated region
    $region9: #{_lambda_.9} parent=5 // pred_check
      _
    $region10: #{_lambda_.9} parent=5 // pred_check_branch
      %308 = sbr.rel (%p305) target = $region12
    $region11: #{_lambda_.9} parent=5 // pred_region
      %s309 = ssub.s32 %s17, 1
      // Predicated region
      $region13: #{_lambda_.9} parent=11 // pred_check
        %p310 = pneg %p134
      $region14: #{_lambda_.9} parent=11 // pred_check_branch
        %312 = sbr.rel (%p310) target = $region16
      $region15: #{_lambda_.9} parent=11 // pred_region
        _
      $region16: #{_lambda_.9} parent=11 // pred_fallthru
        _
      // Predicated region
      $region17: #{_lambda_.9} parent=11 // pred_check
        %p313 = pneg %p155
      $region18: #{_lambda_.9} parent=11 // pred_check_branch
        %315 = sbr.rel (%p313) target = $region20
      $region19: #{_lambda_.9} parent=11 // pred_region
        _
      $region20: #{_lambda_.9} parent=11 // pred_fallthru
        _
      // Predicated region
      $region21: #{_lambda_.9} parent=11 // pred_check
        %p316 = pneg %p176
      $region22: #{_lambda_.9} parent=11 // pred_check_branch
        %318 = sbr.rel (%p316) target = $region24
      $region23: #{_lambda_.9} parent=11 // pred_region
        _
      $region24: #{_lambda_.9} parent=11 // pred_fallthru
        _
      // Predicated region
      $region25: #{_lambda_.9} parent=11 // pred_check
        %p319 = pneg %p197
      $region26: #{_lambda_.9} parent=11 // pred_check_branch
        %321 = sbr.rel (%p319) target = $region28
      $region27: #{_lambda_.9} parent=11 // pred_region
        _
      $region28: #{_lambda_.9} parent=11 // pred_fallthru
        _
      // Predicated region
      $region29: #{_lambda_.9} parent=11 // pred_check
        %p322 = pneg %p218
      $region30: #{_lambda_.9} parent=11 // pred_check_branch
        %324 = sbr.rel (%p322) target = $region32
      $region31: #{_lambda_.9} parent=11 // pred_region
        _
      $region32: #{_lambda_.9} parent=11 // pred_fallthru
        _
      // Predicated region
      $region33: #{_lambda_.9} parent=11 // pred_check
        %p325 = pneg %p239
      $region34: #{_lambda_.9} parent=11 // pred_check_branch
        %327 = sbr.rel (%p325) target = $region36
      $region35: #{_lambda_.9} parent=11 // pred_region
        _
      $region36: #{_lambda_.9} parent=11 // pred_fallthru
        _
    $region12: #{_lambda_.9} parent=5 // pred_fallthru
      _
    %p328 = scmp.lt.s32.totalorder %s17, 2
    // Predicated region
    $region37: #{_lambda_.9} parent=5 // pred_check
      %p329 = pneg %p328
    $region38: #{_lambda_.9} parent=5 // pred_check_branch
      %331 = sbr.rel (%p329) target = $region40
    $region39: #{_lambda_.9} parent=5 // pred_region
      // Predicated region
      $region41: #{_lambda_.9} parent=39 // pred_check
        %p332 = pneg %p51
      $region42: #{_lambda_.9} parent=39 // pred_check_branch
        %334 = sbr.rel (%p332) target = $region44
      $region43: #{_lambda_.9} parent=39 // pred_region
        %s335 = smul.u32 8, %s25
        %p336 = scmp.lt.s32.totalorder %s24, 1
        %s337 = scalar_select %p336, %s24, 1
        %p338 = scmp.lt.s32.totalorder %s335, 7
        %s339 = scalar_select %p338, %s335, 7
        %s340 = smul.addr %s337, 8
        %s341 = sadd.s32 %s339, %s340
        %s342 = smul.addr %s341, 8
        %s343 = scalar_lea.vmem %s0, %s342
        %s344 = smul.u32 8, %s25
      $region44: #{_lambda_.9} parent=39 // pred_fallthru
        _
      // Predicated region
      $region45: #{_lambda_.9} parent=39 // pred_check
        %p345 = pneg %p79
      $region46: #{_lambda_.9} parent=39 // pred_check_branch
        %347 = sbr.rel (%p345) target = $region48
      $region47: #{_lambda_.9} parent=39 // pred_region
        %s348 = smul.u32 8, %s25
        %p349 = scmp.lt.s32.totalorder %s24, 1
        %s350 = scalar_select %p349, %s24, 1
        %p351 = scmp.lt.s32.totalorder %s348, 7
        %s352 = scalar_select %p351, %s348, 7
        %s353 = smul.addr %s350, 8
        %s354 = sadd.s32 %s352, %s353
        %s355 = smul.addr %s354, 8
        %s356 = scalar_lea.vmem %s1, %s355
        %s357 = smul.u32 8, %s25
      $region48: #{_lambda_.9} parent=39 // pred_fallthru
        _
      // Predicated region
      $region49: #{_lambda_.9} parent=39 // pred_check
        %p358 = pneg %p107
      $region50: #{_lambda_.9} parent=39 // pred_check_branch
        %360 = sbr.rel (%p358) target = $region52
      $region51: #{_lambda_.9} parent=39 // pred_region
        %s361 = smul.u32 8, %s25
        %p362 = scmp.lt.s32.totalorder %s24, 1
        %s363 = scalar_select %p362, %s24, 1
        %p364 = scmp.lt.s32.totalorder %s361, 7
        %s365 = scalar_select %p364, %s361, 7
        %s366 = smul.addr %s363, 8
        %s367 = sadd.s32 %s365, %s366
        %s368 = smul.addr %s367, 8
        %s369 = scalar_lea.vmem %s2, %s368
        %s370 = smul.u32 8, %s25
      $region52: #{_lambda_.9} parent=39 // pred_fallthru
        _
    $region40: #{_lambda_.9} parent=5 // pred_fallthru
      _
    %p371 = scmp.le.s32.totalorder 1, %s17
    %p372 = scmp.lt.s32.totalorder %s17, 3
    %p373 = pnand %p371, %p372
    %p374 = pneg %p373
    // Predicated region
    $region53: #{_lambda_.9} parent=5 // pred_check
      _
    $region54: #{_lambda_.9} parent=5 // pred_check_branch
      %376 = sbr.rel (%p373) target = $region56
    $region55: #{_lambda_.9} parent=5 // pred_region
      %s377 = ssub.s32 %s17, 1
      %s378 = smul.u32 8, %s27
      %p379 = scmp.lt.s32.totalorder %s26, 1
      %s380 = scalar_select %p379, %s26, 1
      %p381 = scmp.lt.s32.totalorder %s378, 7
      %s382 = scalar_select %p381, %s378, 7
      %s383 = smul.addr %s380, 8
      %s384 = sadd.s32 %s382, %s383
      %s385 = smul.addr %s384, 8
      %s386 = scalar_lea.vmem %s0, %s385
      %p387 = pneg %p57
      %p388 = pneg %p54
      %s389 = smul.u32 8, %s27
      %p390 = scmp.lt.s32.totalorder %s26, 1
      %s391 = scalar_select %p390, %s26, 1
      %p392 = scmp.lt.s32.totalorder %s389, 7
      %s393 = scalar_select %p392, %s389, 7
      %s394 = smul.addr %s391, 8
      %s395 = sadd.s32 %s393, %s394
      %s396 = smul.addr %s395, 8
      %s397 = scalar_lea.vmem %s1, %s396
      %p398 = pneg %p85
      %p399 = pneg %p82
      %s400 = smul.u32 8, %s27
      %p401 = scmp.lt.s32.totalorder %s26, 1
      %s402 = scalar_select %p401, %s26, 1
      %p403 = scmp.lt.s32.totalorder %s400, 7
      %s404 = scalar_select %p403, %s400, 7
      %s405 = smul.addr %s402, 8
      %s406 = sadd.s32 %s404, %s405
      %s407 = smul.addr %s406, 8
      %s408 = scalar_lea.vmem %s2, %s407
      %p409 = pneg %p113
      %p410 = pneg %p110
      %p411 = pneg %p134
      %p412 = pneg %p131
      %p413 = pneg %p155
      %p414 = pneg %p152
      %p415 = pneg %p176
      %p416 = pneg %p173
      %p417 = pneg %p197
      %p418 = pneg %p194
      %p419 = pneg %p218
      %p420 = pneg %p215
      %p421 = pneg %p239
      %p422 = pneg %p236
      %p423 = pneg %p267
      %p424 = pneg %p264
      %s425 = smul.u32 8, %s27
      %p426 = scmp.lt.s32.totalorder %s26, 1
      %s427 = scalar_select %p426, %s26, 1
      %p428 = scmp.lt.s32.totalorder %s425, 7
      %s429 = scalar_select %p428, %s425, 7
      %s430 = smul.addr %s427, 8
      %s431 = sadd.s32 %s429, %s430
      %s432 = smul.addr %s431, 8
      %s433 = scalar_lea.vmem %s9, %s432
      %p434 = pneg %p295
      %p435 = pneg %p292
      %s436 = smul.u32 8, %s27
      %p437 = scmp.lt.s32.totalorder %s26, 1
      %s438 = scalar_select %p437, %s26, 1
      %p439 = scmp.lt.s32.totalorder %s436, 7
      %s440 = scalar_select %p439, %s436, 7
      %s441 = smul.addr %s438, 8
      %s442 = sadd.s32 %s440, %s441
      %s443 = smul.addr %s442, 4
      %s444 = scalar_lea.vmem %s10, %s443
      %s445 = smul.u32 8, %s27
      %p446 = scmp.lt.s32.totalorder %s26, 1
      %s447 = scalar_select %p446, %s26, 1
      %p448 = scmp.lt.s32.totalorder %s445, 7
      %s449 = scalar_select %p448, %s445, 7
      %s450 = smul.addr %s447, 8
      %s451 = sadd.s32 %s449, %s450
      %s452 = smul.addr %s451, 8
      %s453 = scalar_lea.vmem %s0, %s452
      %s454 = smul.u32 8, %s27
      %s455 = smul.u32 8, %s27
      %p456 = scmp.lt.s32.totalorder %s26, 1
      %s457 = scalar_select %p456, %s26, 1
      %p458 = scmp.lt.s32.totalorder %s455, 7
      %s459 = scalar_select %p458, %s455, 7
      %s460 = smul.addr %s457, 8
      %s461 = sadd.s32 %s459, %s460
      %s462 = smul.addr %s461, 8
      %s463 = scalar_lea.vmem %s1, %s462
      %s464 = smul.u32 8, %s27
      %s465 = smul.u32 8, %s27
      %p466 = scmp.lt.s32.totalorder %s26, 1
      %s467 = scalar_select %p466, %s26, 1
      %p468 = scmp.lt.s32.totalorder %s465, 7
      %s469 = scalar_select %p468, %s465, 7
      %s470 = smul.addr %s467, 8
      %s471 = sadd.s32 %s469, %s470
      %s472 = smul.addr %s471, 8
      %s473 = scalar_lea.vmem %s2, %s472
      %s474 = smul.u32 8, %s27
      %s475 = smul.u32 8, %s27
      %p476 = scmp.lt.s32.totalorder %s26, 1
      %s477 = scalar_select %p476, %s26, 1
      %p478 = scmp.lt.s32.totalorder %s475, 7
      %s479 = scalar_select %p478, %s475, 7
      %s480 = smul.addr %s477, 8
      %s481 = sadd.s32 %s479, %s480
      %s482 = smul.addr %s481, 8
      %s483 = scalar_lea.vmem %s9, %s482
      %s484 = smul.u32 8, %s27
      %s485 = smul.u32 8, %s27
      %p486 = scmp.lt.s32.totalorder %s26, 1
      %s487 = scalar_select %p486, %s26, 1
      %p488 = scmp.lt.s32.totalorder %s485, 7
      %s489 = scalar_select %p488, %s485, 7
      %s490 = smul.addr %s487, 8
      %s491 = sadd.s32 %s489, %s490
      %s492 = smul.addr %s491, 4
      %s493 = scalar_lea.vmem %s10, %s492
      %s494 = smul.u32 8, %s27
      %v496 = vld [vmem:[%s453] sm:$0xff]
      %v497 = vld [vmem:[%s453 + $0x8] sm:$0xff]
      %v498 = vld [vmem:[%s453 + $0x10] sm:$0xff]
      %v499 = vld [vmem:[%s453 + $0x18] sm:$0xff]
      %v500 = vld [vmem:[%s453 + $0x20] sm:$0xff]
      %v501 = vld [vmem:[%s453 + $0x28] sm:$0xff]
      %v502 = vld [vmem:[%s453 + $0x30] sm:$0xff]
      %v503 = vld [vmem:[%s453 + $0x38] sm:$0xff]
      %vm504 = vcmask 523264
      %v505 = vsel %vm504, %v496, 0.0
      %506 = vadd.xlane.f32.xlu0 %v505
      %v507 = vpop.xlane.xlu0 %506
      %v508 = vsel %vm504, %v497, 0.0
      %509 = vadd.xlane.f32.xlu0 %v508
      %v510 = vpop.xlane.xlu0 %509
      %v511 = vsel %vm504, %v498, 0.0
      %512 = vadd.xlane.f32.xlu0 %v511
      %v513 = vpop.xlane.xlu0 %512
      %v514 = vsel %vm504, %v499, 0.0
      %515 = vadd.xlane.f32.xlu0 %v514
      %v516 = vpop.xlane.xlu0 %515
      %v517 = vsel %vm504, %v500, 0.0
      %518 = vadd.xlane.f32.xlu0 %v517
      %v519 = vpop.xlane.xlu0 %518
      %v520 = vsel %vm504, %v501, 0.0
      %521 = vadd.xlane.f32.xlu0 %v520
      %v522 = vpop.xlane.xlu0 %521
      %v523 = vsel %vm504, %v502, 0.0
      %524 = vadd.xlane.f32.xlu0 %v523
      %v525 = vpop.xlane.xlu0 %524
      %v526 = vsel %vm504, %v503, 0.0
      %527 = vadd.xlane.f32.xlu0 %v526
      %v528 = vpop.xlane.xlu0 %527
      %v529 = vrcp.pop 64.0
      %v530 = vmul.f32 %v507, %v529
      %v531 = vmul.f32 %v510, %v529
      %v532 = vmul.f32 %v513, %v529
      %v533 = vmul.f32 %v516, %v529
      %v534 = vmul.f32 %v519, %v529
      %v535 = vmul.f32 %v522, %v529
      %v536 = vmul.f32 %v525, %v529
      %v537 = vmul.f32 %v528, %v529
      %v538 = vsub.f32 %v496, %v530
      %v539 = vsub.f32 %v497, %v531
      %v540 = vsub.f32 %v498, %v532
      %v541 = vsub.f32 %v499, %v533
      %v542 = vsub.f32 %v500, %v534
      %v543 = vsub.f32 %v501, %v535
      %v544 = vsub.f32 %v502, %v536
      %v545 = vsub.f32 %v503, %v537
      %v546 = vmul.f32 %v538, %v538
      %v547 = vmul.f32 %v539, %v539
      %v548 = vmul.f32 %v540, %v540
      %v549 = vmul.f32 %v541, %v541
      %v550 = vmul.f32 %v542, %v542
      %v551 = vmul.f32 %v543, %v543
      %v552 = vmul.f32 %v544, %v544
      %v553 = vmul.f32 %v545, %v545
      %v554 = vsel %vm504, %v546, 0.0
      %555 = vadd.xlane.f32.xlu0 %v554
      %v556 = vpop.xlane.xlu0 %555
      %v557 = vsel %vm504, %v547, 0.0
      %558 = vadd.xlane.f32.xlu0 %v557
      %v559 = vpop.xlane.xlu0 %558
      %v560 = vsel %vm504, %v548, 0.0
      %561 = vadd.xlane.f32.xlu0 %v560
      %v562 = vpop.xlane.xlu0 %561
      %v563 = vsel %vm504, %v549, 0.0
      %564 = vadd.xlane.f32.xlu0 %v563
      %v565 = vpop.xlane.xlu0 %564
      %v566 = vsel %vm504, %v550, 0.0
      %567 = vadd.xlane.f32.xlu0 %v566
      %v568 = vpop.xlane.xlu0 %567
      %v569 = vsel %vm504, %v551, 0.0
      %570 = vadd.xlane.f32.xlu0 %v569
      %v571 = vpop.xlane.xlu0 %570
      %v572 = vsel %vm504, %v552, 0.0
      %573 = vadd.xlane.f32.xlu0 %v572
      %v574 = vpop.xlane.xlu0 %573
      %v575 = vsel %vm504, %v553, 0.0
      %576 = vadd.xlane.f32.xlu0 %v575
      %v577 = vpop.xlane.xlu0 %576
      %v578 = vmul.f32 %v556, %v529
      %v579 = vmul.f32 %v559, %v529
      %v580 = vmul.f32 %v562, %v529
      %v581 = vmul.f32 %v565, %v529
      %v582 = vmul.f32 %v568, %v529
      %v583 = vmul.f32 %v571, %v529
      %v584 = vmul.f32 %v574, %v529
      %v585 = vmul.f32 %v577, %v529
      %v586 = vadd.f32 %v578, 1e-05
      %v587 = vadd.f32 %v579, 1e-05
      %v588 = vadd.f32 %v580, 1e-05
      %v589 = vadd.f32 %v581, 1e-05
      %v590 = vadd.f32 %v582, 1e-05
      %v591 = vadd.f32 %v583, 1e-05
      %v592 = vadd.f32 %v584, 1e-05
      %v593 = vadd.f32 %v585, 1e-05
      %v594 = vrsqrt.pop %v586
      %v595 = vrsqrt.pop %v587
      %v596 = vrsqrt.pop %v588
      %v597 = vrsqrt.pop %v589
      %v598 = vrsqrt.pop %v590
      %v599 = vrsqrt.pop %v591
      %v600 = vrsqrt.pop %v592
      %v601 = vrsqrt.pop %v593
      %v602 = vmul.f32 %v538, %v594
      %v603 = vmul.f32 %v539, %v595
      %v604 = vmul.f32 %v540, %v596
      %v605 = vmul.f32 %v541, %v597
      %v606 = vmul.f32 %v542, %v598
      %v607 = vmul.f32 %v543, %v599
      %v608 = vmul.f32 %v544, %v600
      %v609 = vmul.f32 %v545, %v601
      %v610 = vld [vmem:[%s3] sm:$0x1]
      %v612 = vlaneseq
      %v613 = vshrl.u32 %v612, 7
      %v614 = vsub.s32 0, %v613
      %v615 = vrot.slane %v610, %v614
      %v617 = vmul.f32 %v602, %v615
      %v618 = vmul.f32 %v603, %v615
      %v619 = vmul.f32 %v604, %v615
      %v620 = vmul.f32 %v605, %v615
      %v621 = vmul.f32 %v606, %v615
      %v622 = vmul.f32 %v607, %v615
      %v623 = vmul.f32 %v608, %v615
      %v624 = vmul.f32 %v609, %v615
      %v625 = vld [vmem:[%s4] sm:$0x1]
      %v627 = vlaneseq
      %v628 = vshrl.u32 %v627, 7
      %v629 = vsub.s32 0, %v628
      %v630 = vrot.slane %v625, %v629
      %v632 = vadd.f32 %v617, %v630
      %v633 = vadd.f32 %v618, %v630
      %v634 = vadd.f32 %v619, %v630
      %v635 = vadd.f32 %v620, %v630
      %v636 = vadd.f32 %v621, %v630
      %v637 = vadd.f32 %v622, %v630
      %v638 = vadd.f32 %v623, %v630
      %v639 = vadd.f32 %v624, %v630
      %v640 = vld [vmem:[%s463] sm:$0xff]
      %v641 = vld [vmem:[%s463 + $0x8] sm:$0xff]
      %v642 = vld [vmem:[%s463 + $0x10] sm:$0xff]
      %v643 = vld [vmem:[%s463 + $0x18] sm:$0xff]
      %v644 = vld [vmem:[%s463 + $0x20] sm:$0xff]
      %v645 = vld [vmem:[%s463 + $0x28] sm:$0xff]
      %v646 = vld [vmem:[%s463 + $0x30] sm:$0xff]
      %v647 = vld [vmem:[%s463 + $0x38] sm:$0xff]
      %v648 = vxor.u32 %v640, 2147483648
      %v649 = vxor.u32 %v641, 2147483648
      %v650 = vxor.u32 %v642, 2147483648
      %v651 = vxor.u32 %v643, 2147483648
      %v652 = vxor.u32 %v644, 2147483648
      %v653 = vxor.u32 %v645, 2147483648
      %v654 = vxor.u32 %v646, 2147483648
      %v655 = vxor.u32 %v647, 2147483648
      %v656 = vmul.f32 %v648, 1.442695
      %v657 = vpow.pop %v656
      %v658 = vmul.f32 %v649, 1.442695
      %v659 = vpow.pop %v658
      %v660 = vmul.f32 %v650, 1.442695
      %v661 = vpow.pop %v660
      %v662 = vmul.f32 %v651, 1.442695
      %v663 = vpow.pop %v662
      %v664 = vmul.f32 %v652, 1.442695
      %v665 = vpow.pop %v664
      %v666 = vmul.f32 %v653, 1.442695
      %v667 = vpow.pop %v666
      %v668 = vmul.f32 %v654, 1.442695
      %v669 = vpow.pop %v668
      %v670 = vmul.f32 %v655, 1.442695
      %v671 = vpow.pop %v670
      %v672 = vadd.f32 %v657, 1.0
      %v673 = vadd.f32 %v659, 1.0
      %v674 = vadd.f32 %v661, 1.0
      %v675 = vadd.f32 %v663, 1.0
      %v676 = vadd.f32 %v665, 1.0
      %v677 = vadd.f32 %v667, 1.0
      %v678 = vadd.f32 %v669, 1.0
      %v679 = vadd.f32 %v671, 1.0
      %v680 = vrcp.pop %v672
      %v681 = vmul.f32 1.0, %v680
      %v682 = vrcp.pop %v673
      %v683 = vmul.f32 1.0, %v682
      %v684 = vrcp.pop %v674
      %v685 = vmul.f32 1.0, %v684
      %v686 = vrcp.pop %v675
      %v687 = vmul.f32 1.0, %v686
      %v688 = vrcp.pop %v676
      %v689 = vmul.f32 1.0, %v688
      %v690 = vrcp.pop %v677
      %v691 = vmul.f32 1.0, %v690
      %v692 = vrcp.pop %v678
      %v693 = vmul.f32 1.0, %v692
      %v694 = vrcp.pop %v679
      %v695 = vmul.f32 1.0, %v694
      %v696 = vmul.f32 %v640, %v681
      %v697 = vmul.f32 %v641, %v683
      %v698 = vmul.f32 %v642, %v685
      %v699 = vmul.f32 %v643, %v687
      %v700 = vmul.f32 %v644, %v689
      %v701 = vmul.f32 %v645, %v691
      %v702 = vmul.f32 %v646, %v693
      %v703 = vmul.f32 %v647, %v695
      %v704 = vmul.f32 %v632, %v696
      %v705 = vmul.f32 %v633, %v697
      %v706 = vmul.f32 %v634, %v698
      %v707 = vmul.f32 %v635, %v699
      %v708 = vmul.f32 %v636, %v700
      %v709 = vmul.f32 %v637, %v701
      %v710 = vmul.f32 %v638, %v702
      %v711 = vmul.f32 %v639, %v703
      %v712 = vpack.c.bf16 %v705, %v704
      %v713 = vpack.c.bf16 %v707, %v706
      %v714 = vpack.c.bf16 %v709, %v708
      %v715 = vpack.c.bf16 %v711, %v710
      %v716 = vld [vmem:[%s5] sm:$0xf]
      %v717 = vld [vmem:[%s5 + $0x4] sm:$0xf]
      %v718 = vld [vmem:[%s5 + $0x8] sm:$0xf]
      %v719 = vld [vmem:[%s5 + $0xc] sm:$0xf]
      %v720 = vld [vmem:[%s5 + $0x10] sm:$0xf]
      %v721 = vld [vmem:[%s5 + $0x14] sm:$0xf]
      %v722 = vld [vmem:[%s5 + $0x18] sm:$0xf]
      %v723 = vld [vmem:[%s5 + $0x1c] sm:$0xf]
      %v732 = vunpack.c.l.b16 %v716
      %v733 = vunpack.c.l.b16 %v717
      %v734 = vunpack.c.l.b16 %v718
      %v735 = vunpack.c.l.b16 %v719
      %v736 = vunpack.c.l.b16 %v720
      %v737 = vunpack.c.l.b16 %v721
      %v738 = vunpack.c.l.b16 %v722
      %v739 = vunpack.c.l.b16 %v723
      %v740 = vpack.c.b16 %v733, %v732
      %v741 = vpack.c.b16 %v735, %v734
      %v742 = vpack.c.b16 %v737, %v736
      %v743 = vpack.c.b16 %v739, %v738
      %v749 = vsel %vm504, %v712, 0
      %v752 = vsel %vm504, %v713, 0
      %v755 = vsel %vm504, %v714, 0
      %v758 = vsel %vm504, %v715, 0
      %760 = vmatprep.subr.bf16.mxu0 0
      %761 = vmatpush1.bf16.msra.mxu0 %v740
      %762 = vmatprep.subr.bf16.mxu0 0
      %763 = vmatpush1.bf16.msra.mxu0 %v741
      %764 = vmatprep.subr.bf16.mxu0 0
      %765 = vmatpush1.bf16.msra.mxu0 %v742
      %766 = vmatprep.subr.bf16.mxu0 0
      %767 = vmatpush1.bf16.msra.mxu0 %v743
      %768 = vmatprep.subr.bf16.mxu0 0
      %769 = vmatpush1.bf16.msra.mxu0 0
      %770 = vmatprep.subr.bf16.mxu0 0
      %771 = vmatpush1.bf16.msra.mxu0 0
      %772 = vmatprep.subr.bf16.mxu0 0
      %773 = vmatpush1.bf16.msra.mxu0 0
      %774 = vmatprep.subr.bf16.mxu0 0
      %775 = vmatpush1.bf16.msra.mxu0 0
      %776 = vmatprep.subr.bf16.mxu0 0
      %777 = vmatpush1.bf16.msra.mxu0 0
      %778 = vmatprep.subr.bf16.mxu0 0
      %779 = vmatpush1.bf16.msra.mxu0 0
      %780 = vmatprep.subr.bf16.mxu0 0
      %781 = vmatpush1.bf16.msra.mxu0 0
      %782 = vmatprep.subr.bf16.mxu0 0
      %783 = vmatpush1.bf16.msra.mxu0 0
      %784 = vmatprep.subr.bf16.mxu0 0
      %785 = vmatpush1.bf16.msra.mxu0 0
      %786 = vmatprep.subr.bf16.mxu0 0
      %787 = vmatpush1.bf16.msra.mxu0 0
      %788 = vmatprep.subr.bf16.mxu0 0
      %789 = vmatpush1.bf16.msra.mxu0 0
      %790 = vmatprep.subr.bf16.mxu0 0
      %791 = vmatpush1.bf16.msra.mxu0 0
      %792 = vmatprep.mubr.bf16.mxu0 0
      %793 = vmatmul.mubr.bf16.gmra.mrb[0].mxu0 %v749
      %v794 = vpop.f32.mrb[0].mxu0
      %v795 = vadd.f32 0.0, %v794
      %v796 = vpop.f32.mrb[0].mxu0
      %v797 = vpop.f32.mrb[0].mxu0
      %v798 = vadd.f32 0.0, %v797
      %v799 = vpop.f32.mrb[0].mxu0
      %800 = vmatprep.mubr.bf16.mxu0 0
      %801 = vmatmul.mubr.bf16.gmra.mrb[0].mxu0 %v752
      %v802 = vpop.f32.mrb[0].mxu0
      %v803 = vadd.f32 0.0, %v802
      %v804 = vpop.f32.mrb[0].mxu0
      %v805 = vpop.f32.mrb[0].mxu0
      %v806 = vadd.f32 0.0, %v805
      %v807 = vpop.f32.mrb[0].mxu0
      %808 = vmatprep.mubr.bf16.mxu0 0
      %809 = vmatmul.mubr.bf16.gmra.mrb[0].mxu0 %v755
      %v810 = vpop.f32.mrb[0].mxu0
      %v811 = vadd.f32 0.0, %v810
      %v812 = vpop.f32.mrb[0].mxu0
      %v813 = vpop.f32.mrb[0].mxu0
      %v814 = vadd.f32 0.0, %v813
      %v815 = vpop.f32.mrb[0].mxu0
      %816 = vmatprep.mubr.bf16.mxu0 0
      %817 = vmatmul.mubr.bf16.gmra.mrb[0].mxu0 %v758
      %v818 = vpop.f32.mrb[0].mxu0
      %v819 = vadd.f32 0.0, %v818
      %v820 = vpop.f32.mrb[0].mxu0
      %v821 = vpop.f32.mrb[0].mxu0
      %v822 = vadd.f32 0.0, %v821
      %v823 = vpop.f32.mrb[0].mxu0
      %824 = vdwg.mxu0
      %v825 = vld [vmem:[%s473] sm:$0xff]
      %v826 = vld [vmem:[%s473 + $0x8] sm:$0xff]
      %v827 = vld [vmem:[%s473 + $0x10] sm:$0xff]
      %v828 = vld [vmem:[%s473 + $0x18] sm:$0xff]
      %v829 = vld [vmem:[%s473 + $0x20] sm:$0xff]
      %v830 = vld [vmem:[%s473 + $0x28] sm:$0xff]
      %v831 = vld [vmem:[%s473 + $0x30] sm:$0xff]
      %v832 = vld [vmem:[%s473 + $0x38] sm:$0xff]
      %v833 = vld [vmem:[%s6] sm:$0x1]
      %v835 = vlaneseq
      %v836 = vshrl.u32 %v835, 7
      %v837 = vsub.s32 0, %v836
      %v838 = vrot.slane %v833, %v837
      %v840 = vmul.f32 %v825, %v838
      %v841 = vmul.f32 %v826, %v838
      %v842 = vmul.f32 %v827, %v838
      %v843 = vmul.f32 %v828, %v838
      %v844 = vmul.f32 %v829, %v838
      %v845 = vmul.f32 %v830, %v838
      %v846 = vmul.f32 %v831, %v838
      %v847 = vmul.f32 %v832, %v838
      %v848 = vadd.f32 %v840, %v795
      %v849 = vadd.f32 %v841, %v798
      %v850 = vadd.f32 %v842, %v803
      %v851 = vadd.f32 %v843, %v806
      %v852 = vadd.f32 %v844, %v811
      %v853 = vadd.f32 %v845, %v814
      %v854 = vadd.f32 %v846, %v819
      %v855 = vadd.f32 %v847, %v822
      %vm856 = vcmask 261120
      %857 = vst.msk [vmem:[%s483] sm:$0xff] %vm856, %v848
      %858 = vst.msk [vmem:[%s483 + $0x8] sm:$0xff] %vm856, %v849
      %859 = vst.msk [vmem:[%s483 + $0x10] sm:$0xff] %vm856, %v850
      %860 = vst.msk [vmem:[%s483 + $0x18] sm:$0xff] %vm856, %v851
      %861 = vst.msk [vmem:[%s483 + $0x20] sm:$0xff] %vm856, %v852
      %862 = vst.msk [vmem:[%s483 + $0x28] sm:$0xff] %vm856, %v853
      %863 = vst.msk [vmem:[%s483 + $0x30] sm:$0xff] %vm856, %v854
      %864 = vst.msk [vmem:[%s483 + $0x38] sm:$0xff] %vm856, %v855
      %v865 = vsel %vm856, %v848, 0.0
      %866 = vadd.xlane.f32.xlu0 %v865
      %v867 = vpop.xlane.xlu0 %866
      %v868 = vsel %vm856, %v849, 0.0
      %869 = vadd.xlane.f32.xlu0 %v868
      %v870 = vpop.xlane.xlu0 %869
      %v871 = vsel %vm856, %v850, 0.0
      %872 = vadd.xlane.f32.xlu0 %v871
      %v873 = vpop.xlane.xlu0 %872
      %v874 = vsel %vm856, %v851, 0.0
      %875 = vadd.xlane.f32.xlu0 %v874
      %v876 = vpop.xlane.xlu0 %875
      %v877 = vsel %vm856, %v852, 0.0
      %878 = vadd.xlane.f32.xlu0 %v877
      %v879 = vpop.xlane.xlu0 %878
      %v880 = vsel %vm856, %v853, 0.0
      %881 = vadd.xlane.f32.xlu0 %v880
      %v882 = vpop.xlane.xlu0 %881
      %v883 = vsel %vm856, %v854, 0.0
      %884 = vadd.xlane.f32.xlu0 %v883
      %v885 = vpop.xlane.xlu0 %884
      %v886 = vsel %vm856, %v855, 0.0
      %887 = vadd.xlane.f32.xlu0 %v886
      %v888 = vpop.xlane.xlu0 %887
      %v889 = vrcp.pop 32.0
      %v890 = vmul.f32 %v867, %v889
      %v891 = vmul.f32 %v870, %v889
      %v892 = vmul.f32 %v873, %v889
      %v893 = vmul.f32 %v876, %v889
      %v894 = vmul.f32 %v879, %v889
      %v895 = vmul.f32 %v882, %v889
      %v896 = vmul.f32 %v885, %v889
      %v897 = vmul.f32 %v888, %v889
      %v898 = vsub.f32 %v848, %v890
      %v899 = vsub.f32 %v849, %v891
      %v900 = vsub.f32 %v850, %v892
      %v901 = vsub.f32 %v851, %v893
      %v902 = vsub.f32 %v852, %v894
      %v903 = vsub.f32 %v853, %v895
      %v904 = vsub.f32 %v854, %v896
      %v905 = vsub.f32 %v855, %v897
      %v906 = vmul.f32 %v898, %v898
      %v907 = vmul.f32 %v899, %v899
      %v908 = vmul.f32 %v900, %v900
      %v909 = vmul.f32 %v901, %v901
      %v910 = vmul.f32 %v902, %v902
      %v911 = vmul.f32 %v903, %v903
      %v912 = vmul.f32 %v904, %v904
      %v913 = vmul.f32 %v905, %v905
      %v914 = vsel %vm856, %v906, 0.0
      %915 = vadd.xlane.f32.xlu0 %v914
      %v916 = vpop.xlane.xlu0 %915
      %v917 = vsel %vm856, %v907, 0.0
      %918 = vadd.xlane.f32.xlu0 %v917
      %v919 = vpop.xlane.xlu0 %918
      %v920 = vsel %vm856, %v908, 0.0
      %921 = vadd.xlane.f32.xlu0 %v920
      %v922 = vpop.xlane.xlu0 %921
      %v923 = vsel %vm856, %v909, 0.0
      %924 = vadd.xlane.f32.xlu0 %v923
      %v925 = vpop.xlane.xlu0 %924
      %v926 = vsel %vm856, %v910, 0.0
      %927 = vadd.xlane.f32.xlu0 %v926
      %v928 = vpop.xlane.xlu0 %927
      %v929 = vsel %vm856, %v911, 0.0
      %930 = vadd.xlane.f32.xlu0 %v929
      %v931 = vpop.xlane.xlu0 %930
      %v932 = vsel %vm856, %v912, 0.0
      %933 = vadd.xlane.f32.xlu0 %v932
      %v934 = vpop.xlane.xlu0 %933
      %v935 = vsel %vm856, %v913, 0.0
      %936 = vadd.xlane.f32.xlu0 %v935
      %v937 = vpop.xlane.xlu0 %936
      %v938 = vmul.f32 %v916, %v889
      %v939 = vmul.f32 %v919, %v889
      %v940 = vmul.f32 %v922, %v889
      %v941 = vmul.f32 %v925, %v889
      %v942 = vmul.f32 %v928, %v889
      %v943 = vmul.f32 %v931, %v889
      %v944 = vmul.f32 %v934, %v889
      %v945 = vmul.f32 %v937, %v889
      %v946 = vadd.f32 %v938, 1e-05
      %v947 = vadd.f32 %v939, 1e-05
      %v948 = vadd.f32 %v940, 1e-05
      %v949 = vadd.f32 %v941, 1e-05
      %v950 = vadd.f32 %v942, 1e-05
      %v951 = vadd.f32 %v943, 1e-05
      %v952 = vadd.f32 %v944, 1e-05
      %v953 = vadd.f32 %v945, 1e-05
      %v954 = vrsqrt.pop %v946
      %v955 = vrsqrt.pop %v947
      %v956 = vrsqrt.pop %v948
      %v957 = vrsqrt.pop %v949
      %v958 = vrsqrt.pop %v950
      %v959 = vrsqrt.pop %v951
      %v960 = vrsqrt.pop %v952
      %v961 = vrsqrt.pop %v953
      %v962 = vmul.f32 %v898, %v954
      %v963 = vmul.f32 %v899, %v955
      %v964 = vmul.f32 %v900, %v956
      %v965 = vmul.f32 %v901, %v957
      %v966 = vmul.f32 %v902, %v958
      %v967 = vmul.f32 %v903, %v959
      %v968 = vmul.f32 %v904, %v960
      %v969 = vmul.f32 %v905, %v961
      %v970 = vld [vmem:[%s7] sm:$0x1]
      %v972 = vlaneseq
      %v973 = vshrl.u32 %v972, 7
      %v974 = vsub.s32 0, %v973
      %v975 = vrot.slane %v970, %v974
      %v977 = vmul.f32 %v962, %v975
      %v978 = vmul.f32 %v963, %v975
      %v979 = vmul.f32 %v964, %v975
      %v980 = vmul.f32 %v965, %v975
      %v981 = vmul.f32 %v966, %v975
      %v982 = vmul.f32 %v967, %v975
      %v983 = vmul.f32 %v968, %v975
      %v984 = vmul.f32 %v969, %v975
      %v985 = vld [vmem:[%s8] sm:$0x1]
      %v987 = vlaneseq
      %v988 = vshrl.u32 %v987, 7
      %v989 = vsub.s32 0, %v988
      %v990 = vrot.slane %v985, %v989
      %v992 = vadd.f32 %v977, %v990
      %v993 = vadd.f32 %v978, %v990
      %v994 = vadd.f32 %v979, %v990
      %v995 = vadd.f32 %v980, %v990
      %v996 = vadd.f32 %v981, %v990
      %v997 = vadd.f32 %v982, %v990
      %v998 = vadd.f32 %v983, %v990
      %v999 = vadd.f32 %v984, %v990
      %v1000 = vpack.c.bf16 %v993, %v992
      %v1001 = vpack.c.bf16 %v995, %v994
      %v1002 = vpack.c.bf16 %v997, %v996
      %v1003 = vpack.c.bf16 %v999, %v998
      %v1008 = vunpack.c.l.b16 %v1000
      %v1009 = vunpack.c.h.b16 %v1000
      %v1010 = vunpack.c.l.b16 %v1001
      %v1011 = vunpack.c.h.b16 %v1001
      %v1012 = vunpack.c.l.b16 %v1002
      %v1013 = vunpack.c.h.b16 %v1002
      %v1014 = vunpack.c.l.b16 %v1003
      %v1015 = vunpack.c.h.b16 %v1003
      %v1016 = vpack.c.b16 %v1008, %v1008
      %v1017 = vpack.c.b16 %v1009, %v1009
      %v1018 = vpack.c.b16 %v1010, %v1010
      %v1019 = vpack.c.b16 %v1011, %v1011
      %v1020 = vpack.c.b16 %v1012, %v1012
      %v1021 = vpack.c.b16 %v1013, %v1013
      %v1022 = vpack.c.b16 %v1014, %v1014
      %v1023 = vpack.c.b16 %v1015, %v1015
      %vm1032 = vcmask 257024
      %1033 = vst.msk [vmem:[%s493] sm:$0xf] %vm1032, %v1016
      %1034 = vst.msk [vmem:[%s493 + $0x4] sm:$0xf] %vm1032, %v1017
      %1035 = vst.msk [vmem:[%s493 + $0x8] sm:$0xf] %vm1032, %v1018
      %1036 = vst.msk [vmem:[%s493 + $0xc] sm:$0xf] %vm1032, %v1019
      %1037 = vst.msk [vmem:[%s493 + $0x10] sm:$0xf] %vm1032, %v1020
      %1038 = vst.msk [vmem:[%s493 + $0x14] sm:$0xf] %vm1032, %v1021
      %1039 = vst.msk [vmem:[%s493 + $0x18] sm:$0xf] %vm1032, %v1022
      %1040 = vst.msk [vmem:[%s493 + $0x1c] sm:$0xf] %vm1032, %v1023
      %s1041 = smul.u32 8, %s27
      %p1042 = scmp.lt.s32.totalorder %s26, 1
      %s1043 = scalar_select %p1042, %s26, 1
      %p1044 = scmp.lt.s32.totalorder %s1041, 7
      %s1045 = scalar_select %p1044, %s1041, 7
      %s1046 = smul.addr %s1043, 8
      %s1047 = sadd.s32 %s1045, %s1046
      %s1048 = smul.addr %s1047, 8
      %s1049 = scalar_lea.vmem %s9, %s1048
      %s1050 = smul.u32 8, %s27
      %p1051 = scmp.lt.s32.totalorder %s26, 1
      %s1052 = scalar_select %p1051, %s26, 1
      %p1053 = scmp.lt.s32.totalorder %s1050, 7
      %s1054 = scalar_select %p1053, %s1050, 7
      %s1055 = smul.addr %s1052, 8
      %s1056 = sadd.s32 %s1054, %s1055
      %s1057 = smul.addr %s1056, 4
      %s1058 = scalar_lea.vmem %s10, %s1057
      // Predicated region
      $region57: #{_lambda_.9} parent=55 // pred_check
        %p1059 = pneg %p264
      $region58: #{_lambda_.9} parent=55 // pred_check_branch
        %1061 = sbr.rel (%p1059) target = $region60
      $region59: #{_lambda_.9} parent=55 // pred_region
        %s1062 = smul.u32 8, %s27
      $region60: #{_lambda_.9} parent=55 // pred_fallthru
        _
      // Predicated region
      $region61: #{_lambda_.9} parent=55 // pred_check
        %p1063 = pneg %p292
      $region62: #{_lambda_.9} parent=55 // pred_check_branch
        %1065 = sbr.rel (%p1063) target = $region64
      $region63: #{_lambda_.9} parent=55 // pred_region
        %s1066 = smul.u32 8, %s27
      $region64: #{_lambda_.9} parent=55 // pred_fallthru
        _
    $region56: #{_lambda_.9} parent=5 // pred_fallthru
      _
    %p1067 = scmp.le.s32.totalorder 2, %s17
    // Predicated region
    $region65: #{_lambda_.9} parent=5 // pred_check
      %p1068 = pneg %p1067
    $region66: #{_lambda_.9} parent=5 // pred_check_branch
      %1070 = sbr.rel (%p1068) target = $region68
    $region67: #{_lambda_.9} parent=5 // pred_region
      %s1071 = ssub.s32 %s17, 2
      // Predicated region
      $region69: #{_lambda_.9} parent=67 // pred_check
        %p1072 = pneg %p270
      $region70: #{_lambda_.9} parent=67 // pred_check_branch
        %1074 = sbr.rel (%p1072) target = $region72
      $region71: #{_lambda_.9} parent=67 // pred_region
        %s1075 = smul.u32 8, %s29
        %p1076 = scmp.lt.s32.totalorder %s28, 1
        %s1077 = scalar_select %p1076, %s28, 1
        %p1078 = scmp.lt.s32.totalorder %s1075, 7
        %s1079 = scalar_select %p1078, %s1075, 7
        %s1080 = smul.addr %s1077, 8
        %s1081 = sadd.s32 %s1079, %s1080
        %s1082 = smul.addr %s1081, 8
        %s1083 = scalar_lea.vmem %s9, %s1082
      $region72: #{_lambda_.9} parent=67 // pred_fallthru
        _
      // Predicated region
      $region73: #{_lambda_.9} parent=67 // pred_check
        %p1084 = pneg %p298
      $region74: #{_lambda_.9} parent=67 // pred_check_branch
        %1086 = sbr.rel (%p1084) target = $region76
      $region75: #{_lambda_.9} parent=67 // pred_region
        %s1087 = smul.u32 8, %s29
        %p1088 = scmp.lt.s32.totalorder %s28, 1
        %s1089 = scalar_select %p1088, %s28, 1
        %p1090 = scmp.lt.s32.totalorder %s1087, 7
        %s1091 = scalar_select %p1090, %s1087, 7
        %s1092 = smul.addr %s1089, 8
        %s1093 = sadd.s32 %s1091, %s1092
        %s1094 = smul.addr %s1093, 4
        %s1095 = scalar_lea.vmem %s10, %s1094
      $region76: #{_lambda_.9} parent=67 // pred_fallthru
        _
    $region68: #{_lambda_.9} parent=5 // pred_fallthru
      _
  $region6: #{_lambda_.9} parent=0 // loop_footer
    %s21 = sadd.s32 1, %s17
  $region7: #{_lambda_.9} parent=0 // loop_footer_branch
    %16 = sbr.rel target = $region3
  $region8: #{_lambda_.9} parent=0 // loop_exit
    _

// kernel: _lambda_.8
$region0: #{_lambda_.8}
  #allocation0 [shape = 'u32[]', space=smem, size = 0x4, offset = 0x4, fixed_abs, tag = 'smem constant byte address 0x4 - core index']
  #allocation1 [shape = 'u32[144,128]{1,0:T(1,128)}', space=vmem, size = 0x12000, scoped, tag = 'internal scratch']
  #allocation2 [shape = 'f32[64,64]{1,0:T(8,128)}', space=vmem, size = 0x8000, scoped, tag = 'scratch operand']
  #allocation3 [shape = 'f32[64,64]{1,0:T(8,128)}', space=vmem, size = 0x8000, scoped, tag = 'scratch operand']
  #allocation4 [shape = 'f32[64,32]{1,0:T(8,128)}', space=vmem, size = 0x8000, scoped, tag = 'scratch operand']
  %s0 = inlined_call_operand.vmem [shape: f32[2,64,64], index: 0, kind: input, shape index: {}]
  %s1 = inlined_call_operand.vmem [shape: bf16[64,96], index: 1, kind: input, shape index: {}]
  %s2 = inlined_call_operand.vmem [shape: f32[1,1024], index: 2, kind: input, shape index: {}]
  %s3 = inlined_call_operand.vmem [shape: f32[1,64], index: 3, kind: input, shape index: {}]
  %s4 = inlined_call_operand.vmem [shape: f32[1,64], index: 4, kind: input, shape index: {}]
  %s5 = inlined_call_operand.vmem [shape: f32[2,64,64], index: 5, kind: output, shape index: {}]
  %s6 = sld [smem:[#allocation0]]
  $region60: #{_lambda_.8} parent=0
    _
  %s8 = ssub.s32 1, %s6
  %s9 = scalar_select 0, %s8, %s6
  loop: start=0, step=1, limit=4
  $region2: #{_lambda_.8} parent=0 // loop_pre_header
    _
  $region3: #{_lambda_.8} parent=0 // loop_header
    %s11 = sphi 0, %s15
    %p12 = scmp.ge.s32.totalorder %s11, 4
    %s21 = sphi 0, %s23
    %s24 = sphi 0, %s21
    %s25 = sphi 0, %s24
    %s41 = sphi 0, %s25
    %s45 = sphi 0, %s45
    %s47 = sphi 0, %s45
    %s48 = sphi 0, %s47
    %s62 = sphi 0, %s48
    %s66 = sphi 0, %s66
    %s68 = sphi 0, %s66
    %s69 = sphi 0, %s68
    %s83 = sphi 0, %s69
    %s87 = sphi 0, %s87
    %s89 = sphi 0, %s87
    %s90 = sphi 0, %s89
    %s104 = sphi 0, %s90
    %s108 = sphi 0, %s108
    %s110 = sphi 0, %s108
    %s111 = sphi 0, %s110
    %s125 = sphi 0, %s111
    %s131 = sphi 0, %s133
    %s134 = sphi 0, %s131
    %s135 = sphi 0, %s134
    %s151 = sphi 0, %s135
  $region4: #{_lambda_.8} parent=0 // loop_header_branch
    %14 = sbr.rel (%p12) target = $region8
  $region5: #{_lambda_.8} parent=0 // loop_body
    %s16 = ssub.s32 %s11, 1
    %s17 = ssub.s32 %s11, 2
    %s18 = sadd.s32 %s11, 1
    %s19 = ssub.s32 %s11, %s18
    %p20 = scmp.eq.s32.totalorder %s19, 0
    %s22 = sadd.s32 %s21, 1
    %s23 = scalar_select %p20, %s21, %s22
    %p26 = pneg %p20
    %p27 = scmp.eq.s32.totalorder %s11, 1
    %p28 = por %p26, %p27
    %p29 = scmp.ne.s32.totalorder %s21, %s24
    %p30 = scmp.eq.s32.totalorder %s11, 0
    %p31 = por %p29, %p30
    %p32 = scmp.ne.s32.totalorder %s21, %s24
    %p33 = scmp.eq.s32.totalorder %s16, 1
    %p34 = por %p32, %p33
    %p35 = scmp.ne.s32.totalorder %s24, %s25
    %p36 = scmp.eq.s32.totalorder %s16, 0
    %p37 = por %p35, %p36
    %p38 = scmp.ne.s32.totalorder %s24, %s25
    %p39 = scmp.eq.s32.totalorder %s17, 1
    %p40 = por %p38, %p39
    %p42 = scmp.ne.s32.totalorder %s25, %s41
    %p43 = scmp.eq.s32.totalorder %s17, 0
    %p44 = por %p42, %p43
    %s46 = sadd.s32 %s45, 1
    %p49 = scmp.eq.s32.totalorder %s11, 1
    %p50 = scmp.ne.s32.totalorder %s45, %s47
    %p51 = scmp.eq.s32.totalorder %s11, 0
    %p52 = por %p50, %p51
    %p53 = scmp.ne.s32.totalorder %s45, %s47
    %p54 = scmp.eq.s32.totalorder %s16, 1
    %p55 = por %p53, %p54
    %p56 = scmp.ne.s32.totalorder %s47, %s48
    %p57 = scmp.eq.s32.totalorder %s16, 0
    %p58 = por %p56, %p57
    %p59 = scmp.ne.s32.totalorder %s47, %s48
    %p60 = scmp.eq.s32.totalorder %s17, 1
    %p61 = por %p59, %p60
    %p63 = scmp.ne.s32.totalorder %s48, %s62
    %p64 = scmp.eq.s32.totalorder %s17, 0
    %p65 = por %p63, %p64
    %s67 = sadd.s32 %s66, 1
    %p70 = scmp.eq.s32.totalorder %s11, 1
    %p71 = scmp.ne.s32.totalorder %s66, %s68
    %p72 = scmp.eq.s32.totalorder %s11, 0
    %p73 = por %p71, %p72
    %p74 = scmp.ne.s32.totalorder %s66, %s68
    %p75 = scmp.eq.s32.totalorder %s16, 1
    %p76 = por %p74, %p75
    %p77 = scmp.ne.s32.totalorder %s68, %s69
    %p78 = scmp.eq.s32.totalorder %s16, 0
    %p79 = por %p77, %p78
    %p80 = scmp.ne.s32.totalorder %s68, %s69
    %p81 = scmp.eq.s32.totalorder %s17, 1
    %p82 = por %p80, %p81
    %p84 = scmp.ne.s32.totalorder %s69, %s83
    %p85 = scmp.eq.s32.totalorder %s17, 0
    %p86 = por %p84, %p85
    %s88 = sadd.s32 %s87, 1
    %p91 = scmp.eq.s32.totalorder %s11, 1
    %p92 = scmp.ne.s32.totalorder %s87, %s89
    %p93 = scmp.eq.s32.totalorder %s11, 0
    %p94 = por %p92, %p93
    %p95 = scmp.ne.s32.totalorder %s87, %s89
    %p96 = scmp.eq.s32.totalorder %s16, 1
    %p97 = por %p95, %p96
    %p98 = scmp.ne.s32.totalorder %s89, %s90
    %p99 = scmp.eq.s32.totalorder %s16, 0
    %p100 = por %p98, %p99
    %p101 = scmp.ne.s32.totalorder %s89, %s90
    %p102 = scmp.eq.s32.totalorder %s17, 1
    %p103 = por %p101, %p102
    %p105 = scmp.ne.s32.totalorder %s90, %s104
    %p106 = scmp.eq.s32.totalorder %s17, 0
    %p107 = por %p105, %p106
    %s109 = sadd.s32 %s108, 1
    %p112 = scmp.eq.s32.totalorder %s11, 1
    %p113 = scmp.ne.s32.totalorder %s108, %s110
    %p114 = scmp.eq.s32.totalorder %s11, 0
    %p115 = por %p113, %p114
    %p116 = scmp.ne.s32.totalorder %s108, %s110
    %p117 = scmp.eq.s32.totalorder %s16, 1
    %p118 = por %p116, %p117
    %p119 = scmp.ne.s32.totalorder %s110, %s111
    %p120 = scmp.eq.s32.totalorder %s16, 0
    %p121 = por %p119, %p120
    %p122 = scmp.ne.s32.totalorder %s110, %s111
    %p123 = scmp.eq.s32.totalorder %s17, 1
    %p124 = por %p122, %p123
    %p126 = scmp.ne.s32.totalorder %s111, %s125
    %p127 = scmp.eq.s32.totalorder %s17, 0
    %p128 = por %p126, %p127
    %s129 = ssub.s32 %s11, %s18
    %p130 = scmp.eq.s32.totalorder %s129, 0
    %s132 = sadd.s32 %s131, 1
    %s133 = scalar_select %p130, %s131, %s132
    %p136 = pneg %p130
    %p137 = scmp.eq.s32.totalorder %s11, 1
    %p138 = por %p136, %p137
    %p139 = scmp.ne.s32.totalorder %s131, %s134
    %p140 = scmp.eq.s32.totalorder %s11, 0
    %p141 = por %p139, %p140
    %p142 = scmp.ne.s32.totalorder %s131, %s134
    %p143 = scmp.eq.s32.totalorder %s16, 1
    %p144 = por %p142, %p143
    %p145 = scmp.ne.s32.totalorder %s134, %s135
    %p146 = scmp.eq.s32.totalorder %s16, 0
    %p147 = por %p145, %p146
    %p148 = scmp.ne.s32.totalorder %s134, %s135
    %p149 = scmp.eq.s32.totalorder %s17, 1
    %p150 = por %p148, %p149
    %p152 = scmp.ne.s32.totalorder %s135, %s151
    %p153 = scmp.eq.s32.totalorder %s17, 0
    %p154 = por %p152, %p153
    %p155 = scmp.le.s32.totalorder 1, %s11
    %p156 = scmp.lt.s32.totalorder %s11, 3
    %p157 = pnand %p155, %p156
    %p158 = pneg %p157
    // Predicated region
    $region9: #{_lambda_.8} parent=5 // pred_check
      _
    $region10: #{_lambda_.8} parent=5 // pred_check_branch
      %160 = sbr.rel (%p157) target = $region12
    $region11: #{_lambda_.8} parent=5 // pred_region
      %s161 = ssub.s32 %s11, 1
      // Predicated region
      $region13: #{_lambda_.8} parent=11 // pred_check
        %p162 = pneg %p58
      $region14: #{_lambda_.8} parent=11 // pred_check_branch
        %164 = sbr.rel (%p162) target = $region16
      $region15: #{_lambda_.8} parent=11 // pred_region
        _
      $region16: #{_lambda_.8} parent=11 // pred_fallthru
        _
      // Predicated region
      $region17: #{_lambda_.8} parent=11 // pred_check
        %p165 = pneg %p79
      $region18: #{_lambda_.8} parent=11 // pred_check_branch
        %167 = sbr.rel (%p165) target = $region20
      $region19: #{_lambda_.8} parent=11 // pred_region
        _
      $region20: #{_lambda_.8} parent=11 // pred_fallthru
        _
      // Predicated region
      $region21: #{_lambda_.8} parent=11 // pred_check
        %p168 = pneg %p100
      $region22: #{_lambda_.8} parent=11 // pred_check_branch
        %170 = sbr.rel (%p168) target = $region24
      $region23: #{_lambda_.8} parent=11 // pred_region
        _
      $region24: #{_lambda_.8} parent=11 // pred_fallthru
        _
      // Predicated region
      $region25: #{_lambda_.8} parent=11 // pred_check
        %p171 = pneg %p121
      $region26: #{_lambda_.8} parent=11 // pred_check_branch
        %173 = sbr.rel (%p171) target = $region28
      $region27: #{_lambda_.8} parent=11 // pred_region
        _
      $region28: #{_lambda_.8} parent=11 // pred_fallthru
        _
    $region12: #{_lambda_.8} parent=5 // pred_fallthru
      _
    %p174 = scmp.lt.s32.totalorder %s11, 2
    // Predicated region
    $region29: #{_lambda_.8} parent=5 // pred_check
      %p175 = pneg %p174
    $region30: #{_lambda_.8} parent=5 // pred_check_branch
      %177 = sbr.rel (%p175) target = $region32
    $region31: #{_lambda_.8} parent=5 // pred_region
      // Predicated region
      $region33: #{_lambda_.8} parent=31 // pred_check
        %p178 = pneg %p31
      $region34: #{_lambda_.8} parent=31 // pred_check_branch
        %180 = sbr.rel (%p178) target = $region36
      $region35: #{_lambda_.8} parent=31 // pred_region
        %p181 = scmp.lt.s32.totalorder %s11, 1
        %s182 = scalar_select %p181, %s11, 1
        %s183 = smul.addr %s182, 8
        %s184 = smul.addr %s183, 8
        %s185 = scalar_lea.vmem %s0, %s184
      $region36: #{_lambda_.8} parent=31 // pred_fallthru
        _
    $region32: #{_lambda_.8} parent=5 // pred_fallthru
      _
    %p186 = scmp.le.s32.totalorder 1, %s11
    %p187 = scmp.lt.s32.totalorder %s11, 3
    %p188 = pnand %p186, %p187
    %p189 = pneg %p188
    // Predicated region
    $region37: #{_lambda_.8} parent=5 // pred_check
      _
    $region38: #{_lambda_.8} parent=5 // pred_check_branch
      %191 = sbr.rel (%p188) target = $region40
    $region39: #{_lambda_.8} parent=5 // pred_region
      %s192 = ssub.s32 %s11, 1
      %p193 = scmp.lt.s32.totalorder %s16, 1
      %s194 = scalar_select %p193, %s16, 1
      %s195 = smul.addr %s194, 8
      %s196 = smul.addr %s195, 8
      %s197 = scalar_lea.vmem %s0, %s196
      %p198 = pneg %p37
      %p199 = pneg %p34
      %p200 = pneg %p58
      %p201 = pneg %p55
      %p202 = pneg %p79
      %p203 = pneg %p76
      %p204 = pneg %p100
      %p205 = pneg %p97
      %p206 = pneg %p121
      %p207 = pneg %p118
      %p208 = pneg %p147
      %p209 = pneg %p144
      %p210 = scmp.lt.s32.totalorder %s16, 1
      %s211 = scalar_select %p210, %s16, 1
      %s212 = smul.addr %s211, 8
      %s213 = smul.addr %s212, 8
      %s214 = scalar_lea.vmem %s5, %s213
      %p215 = scmp.lt.s32.totalorder %s16, 1
      %s216 = scalar_select %p215, %s16, 1
      %s217 = smul.addr %s216, 8
      %s218 = smul.addr %s217, 8
      %s219 = scalar_lea.vmem %s0, %s218
      %p220 = scmp.lt.s32.totalorder %s16, 1
      %s221 = scalar_select %p220, %s16, 1
      %s222 = smul.addr %s221, 8
      %s223 = smul.addr %s222, 8
      %s224 = scalar_lea.vmem %s5, %s223
      %v226 = vld [vmem:[%s219] sm:$0xff]
      %v227 = vld [vmem:[%s219 + $0x8] sm:$0xff]
      %v228 = vld [vmem:[%s219 + $0x10] sm:$0xff]
      %v229 = vld [vmem:[%s219 + $0x18] sm:$0xff]
      %v230 = vld [vmem:[%s219 + $0x20] sm:$0xff]
      %v231 = vld [vmem:[%s219 + $0x28] sm:$0xff]
      %v232 = vld [vmem:[%s219 + $0x30] sm:$0xff]
      %v233 = vld [vmem:[%s219 + $0x38] sm:$0xff]
      %v234 = vpack.c.bf16 %v227, %v226
      %v235 = vpack.c.bf16 %v229, %v228
      %v236 = vpack.c.bf16 %v231, %v230
      %v237 = vpack.c.bf16 %v233, %v232
      %v238 = vld [vmem:[%s1] sm:$0xf]
      %v239 = vld [vmem:[%s1 + $0x4] sm:$0xf]
      %v240 = vld [vmem:[%s1 + $0x8] sm:$0xf]
      %v241 = vld [vmem:[%s1 + $0xc] sm:$0xf]
      %v242 = vld [vmem:[%s1 + $0x10] sm:$0xf]
      %v243 = vld [vmem:[%s1 + $0x14] sm:$0xf]
      %v244 = vld [vmem:[%s1 + $0x18] sm:$0xf]
      %v245 = vld [vmem:[%s1 + $0x1c] sm:$0xf]
      %v254 = vunpack.c.l.b16 %v238
      %v255 = vunpack.c.l.b16 %v239
      %v256 = vunpack.c.l.b16 %v240
      %v257 = vunpack.c.l.b16 %v241
      %v258 = vunpack.c.l.b16 %v242
      %v259 = vunpack.c.l.b16 %v243
      %v260 = vunpack.c.l.b16 %v244
      %v261 = vunpack.c.l.b16 %v245
      %v262 = vpack.c.b16 %v255, %v254
      %v263 = vpack.c.b16 %v257, %v256
      %v264 = vpack.c.b16 %v259, %v258
      %v265 = vpack.c.b16 %v261, %v260
      %vm270 = vcmask 523264
      %v272 = vsel %vm270, %v234, 0
      %v275 = vsel %vm270, %v235, 0
      %v278 = vsel %vm270, %v236, 0
      %v281 = vsel %vm270, %v237, 0
      %283 = vmatprep.subr.bf16.mxu0 0
      %284 = vmatpush1.bf16.msra.mxu0 %v262
      %285 = vmatprep.subr.bf16.mxu0 0
      %286 = vmatpush1.bf16.msra.mxu0 %v263
      %287 = vmatprep.subr.bf16.mxu0 0
      %288 = vmatpush1.bf16.msra.mxu0 %v264
      %289 = vmatprep.subr.bf16.mxu0 0
      %290 = vmatpush1.bf16.msra.mxu0 %v265
      %291 = vmatprep.subr.bf16.mxu0 0
      %292 = vmatpush1.bf16.msra.mxu0 0
      %293 = vmatprep.subr.bf16.mxu0 0
      %294 = vmatpush1.bf16.msra.mxu0 0
      %295 = vmatprep.subr.bf16.mxu0 0
      %296 = vmatpush1.bf16.msra.mxu0 0
      %297 = vmatprep.subr.bf16.mxu0 0
      %298 = vmatpush1.bf16.msra.mxu0 0
      %299 = vmatprep.subr.bf16.mxu0 0
      %300 = vmatpush1.bf16.msra.mxu0 0
      %301 = vmatprep.subr.bf16.mxu0 0
      %302 = vmatpush1.bf16.msra.mxu0 0
      %303 = vmatprep.subr.bf16.mxu0 0
      %304 = vmatpush1.bf16.msra.mxu0 0
      %305 = vmatprep.subr.bf16.mxu0 0
      %306 = vmatpush1.bf16.msra.mxu0 0
      %307 = vmatprep.subr.bf16.mxu0 0
      %308 = vmatpush1.bf16.msra.mxu0 0
      %309 = vmatprep.subr.bf16.mxu0 0
      %310 = vmatpush1.bf16.msra.mxu0 0
      %311 = vmatprep.subr.bf16.mxu0 0
      %312 = vmatpush1.bf16.msra.mxu0 0
      %313 = vmatprep.subr.bf16.mxu0 0
      %314 = vmatpush1.bf16.msra.mxu0 0
      %315 = vmatprep.mubr.bf16.mxu0 0
      %316 = vmatmul.mubr.bf16.gmra.mrb[0].mxu0 %v272
      %v317 = vpop.f32.mrb[0].mxu0
      %v318 = vadd.f32 0.0, %v317
      %v319 = vpop.f32.mrb[0].mxu0
      %v320 = vpop.f32.mrb[0].mxu0
      %v321 = vadd.f32 0.0, %v320
      %v322 = vpop.f32.mrb[0].mxu0
      %323 = vmatprep.mubr.bf16.mxu0 0
      %324 = vmatmul.mubr.bf16.gmra.mrb[0].mxu0 %v275
      %v325 = vpop.f32.mrb[0].mxu0
      %v326 = vadd.f32 0.0, %v325
      %v327 = vpop.f32.mrb[0].mxu0
      %v328 = vpop.f32.mrb[0].mxu0
      %v329 = vadd.f32 0.0, %v328
      %v330 = vpop.f32.mrb[0].mxu0
      %331 = vmatprep.mubr.bf16.mxu0 0
      %332 = vmatmul.mubr.bf16.gmra.mrb[0].mxu0 %v278
      %v333 = vpop.f32.mrb[0].mxu0
      %v334 = vadd.f32 0.0, %v333
      %v335 = vpop.f32.mrb[0].mxu0
      %v336 = vpop.f32.mrb[0].mxu0
      %v337 = vadd.f32 0.0, %v336
      %v338 = vpop.f32.mrb[0].mxu0
      %339 = vmatprep.mubr.bf16.mxu0 0
      %340 = vmatmul.mubr.bf16.gmra.mrb[0].mxu0 %v281
      %v341 = vpop.f32.mrb[0].mxu0
      %v342 = vadd.f32 0.0, %v341
      %v343 = vpop.f32.mrb[0].mxu0
      %v344 = vpop.f32.mrb[0].mxu0
      %v345 = vadd.f32 0.0, %v344
      %v346 = vpop.f32.mrb[0].mxu0
      %347 = vdwg.mxu0
      %v348 = vld [vmem:[%s4] sm:$0x1]
      %v350 = vlaneseq
      %v351 = vshrl.u32 %v350, 7
      %v352 = vsub.s32 0, %v351
      %v353 = vrot.slane %v348, %v352
      %v355 = vadd.f32 %v318, %v353
      %v356 = vadd.f32 %v321, %v353
      %v357 = vadd.f32 %v326, %v353
      %v358 = vadd.f32 %v329, %v353
      %v359 = vadd.f32 %v334, %v353
      %v360 = vadd.f32 %v337, %v353
      %v361 = vadd.f32 %v342, %v353
      %v362 = vadd.f32 %v345, %v353
      %vm363 = vcmp.gt.f32.partialorder %v355, 20.0
      %vm364 = vcmp.gt.f32.partialorder %v356, 20.0
      %vm365 = vcmp.gt.f32.partialorder %v357, 20.0
      %vm366 = vcmp.gt.f32.partialorder %v358, 20.0
      %vm367 = vcmp.gt.f32.partialorder %v359, 20.0
      %vm368 = vcmp.gt.f32.partialorder %v360, 20.0
      %vm369 = vcmp.gt.f32.partialorder %v361, 20.0
      %vm370 = vcmp.gt.f32.partialorder %v362, 20.0
      %v371 = vmin.f32 %v355, 20.0
      %v372 = vmin.f32 %v356, 20.0
      %v373 = vmin.f32 %v357, 20.0
      %v374 = vmin.f32 %v358, 20.0
      %v375 = vmin.f32 %v359, 20.0
      %v376 = vmin.f32 %v360, 20.0
      %v377 = vmin.f32 %v361, 20.0
      %v378 = vmin.f32 %v362, 20.0
      %v379 = vmul.f32 %v371, 1.442695
      %v380 = vpow.pop %v379
      %v381 = vmul.f32 %v372, 1.442695
      %v382 = vpow.pop %v381
      %v383 = vmul.f32 %v373, 1.442695
      %v384 = vpow.pop %v383
      %v385 = vmul.f32 %v374, 1.442695
      %v386 = vpow.pop %v385
      %v387 = vmul.f32 %v375, 1.442695
      %v388 = vpow.pop %v387
      %v389 = vmul.f32 %v376, 1.442695
      %v390 = vpow.pop %v389
      %v391 = vmul.f32 %v377, 1.442695
      %v392 = vpow.pop %v391
      %v393 = vmul.f32 %v378, 1.442695
      %v394 = vpow.pop %v393
      %v395 = vadd.f32 %v380, 1.0
      %v396 = vadd.f32 %v382, 1.0
      %v397 = vadd.f32 %v384, 1.0
      %v398 = vadd.f32 %v386, 1.0
      %v399 = vadd.f32 %v388, 1.0
      %v400 = vadd.f32 %v390, 1.0
      %v401 = vadd.f32 %v392, 1.0
      %v402 = vadd.f32 %v394, 1.0
      %v403 = vlog2.pop %v395
      %v404 = vmul.f32 %v403, 0.6931472
      %v405 = vlog2.pop %v396
      %v406 = vmul.f32 %v405, 0.6931472
      %v407 = vlog2.pop %v397
      %v408 = vmul.f32 %v407, 0.6931472
      %v409 = vlog2.pop %v398
      %v410 = vmul.f32 %v409, 0.6931472
      %v411 = vlog2.pop %v399
      %v412 = vmul.f32 %v411, 0.6931472
      %v413 = vlog2.pop %v400
      %v414 = vmul.f32 %v413, 0.6931472
      %v415 = vlog2.pop %v401
      %v416 = vmul.f32 %v415, 0.6931472
      %v417 = vlog2.pop %v402
      %v418 = vmul.f32 %v417, 0.6931472
      %v419 = vsel %vm363, %v355, %v404
      %v420 = vsel %vm364, %v356, %v406
      %v421 = vsel %vm365, %v357, %v408
      %v422 = vsel %vm366, %v358, %v410
      %v423 = vsel %vm367, %v359, %v412
      %v424 = vsel %vm368, %v360, %v414
      %v425 = vsel %vm369, %v361, %v416
      %v426 = vsel %vm370, %v362, %v418
      %427 = vst.msk [vmem:[#allocation2] sm:$0xff] %vm270, %v419
      %428 = vst.msk [vmem:[#allocation2 + $0x8] sm:$0xff] %vm270, %v420
      %429 = vst.msk [vmem:[#allocation2 + $0x10] sm:$0xff] %vm270, %v421
      %430 = vst.msk [vmem:[#allocation2 + $0x18] sm:$0xff] %vm270, %v422
      %431 = vst.msk [vmem:[#allocation2 + $0x20] sm:$0xff] %vm270, %v423
      %432 = vst.msk [vmem:[#allocation2 + $0x28] sm:$0xff] %vm270, %v424
      %433 = vst.msk [vmem:[#allocation2 + $0x30] sm:$0xff] %vm270, %v425
      %434 = vst.msk [vmem:[#allocation2 + $0x38] sm:$0xff] %vm270, %v426
      %v435 = vmul.f32 %v419, %v226
      %v436 = vmul.f32 %v420, %v227
      %v437 = vmul.f32 %v421, %v228
      %v438 = vmul.f32 %v422, %v229
      %v439 = vmul.f32 %v423, %v230
      %v440 = vmul.f32 %v424, %v231
      %v441 = vmul.f32 %v425, %v232
      %v442 = vmul.f32 %v426, %v233
      %443 = vst.msk [vmem:[#allocation3] sm:$0xff] %vm270, %v435
      %444 = vst.msk [vmem:[#allocation3 + $0x8] sm:$0xff] %vm270, %v436
      %445 = vst.msk [vmem:[#allocation3 + $0x10] sm:$0xff] %vm270, %v437
      %446 = vst.msk [vmem:[#allocation3 + $0x18] sm:$0xff] %vm270, %v438
      %447 = vst.msk [vmem:[#allocation3 + $0x20] sm:$0xff] %vm270, %v439
      %448 = vst.msk [vmem:[#allocation3 + $0x28] sm:$0xff] %vm270, %v440
      %449 = vst.msk [vmem:[#allocation3 + $0x30] sm:$0xff] %vm270, %v441
      %450 = vst.msk [vmem:[#allocation3 + $0x38] sm:$0xff] %vm270, %v442
      %459 = vrot.lane.b32.xlu0 %v318, 64
      %v460 = vpop.permute.xlu0 %459
      %461 = vrot.lane.b32.xlu0 %v321, 64
      %v462 = vpop.permute.xlu0 %461
      %463 = vrot.lane.b32.xlu0 %v326, 64
      %v464 = vpop.permute.xlu0 %463
      %465 = vrot.lane.b32.xlu0 %v329, 64
      %v466 = vpop.permute.xlu0 %465
      %467 = vrot.lane.b32.xlu0 %v334, 64
      %v468 = vpop.permute.xlu0 %467
      %469 = vrot.lane.b32.xlu0 %v337, 64
      %v470 = vpop.permute.xlu0 %469
      %471 = vrot.lane.b32.xlu0 %v342, 64
      %v472 = vpop.permute.xlu0 %471
      %473 = vrot.lane.b32.xlu0 %v345, 64
      %v474 = vpop.permute.xlu0 %473
      %vm483 = vcmask 261120
      %484 = vst.msk [vmem:[#allocation4] sm:$0xff] %vm483, %v460
      %485 = vst.msk [vmem:[#allocation4 + $0x8] sm:$0xff] %vm483, %v462
      %486 = vst.msk [vmem:[#allocation4 + $0x10] sm:$0xff] %vm483, %v464
      %487 = vst.msk [vmem:[#allocation4 + $0x18] sm:$0xff] %vm483, %v466
      %488 = vst.msk [vmem:[#allocation4 + $0x20] sm:$0xff] %vm483, %v468
      %489 = vst.msk [vmem:[#allocation4 + $0x28] sm:$0xff] %vm483, %v470
      %490 = vst.msk [vmem:[#allocation4 + $0x30] sm:$0xff] %vm483, %v472
      %491 = vst.msk [vmem:[#allocation4 + $0x38] sm:$0xff] %vm483, %v474
      loop: start=0, step=1, limit=2
      $region41: #{_lambda_.8} parent=39 // loop_pre_header
        _
      $region42: #{_lambda_.8} parent=39 // loop_header
        %s493 = sphi 0, %s497
        %p494 = scmp.ge.s32.totalorder %s493, 2
        %v498 = vphi 0.0, %v2476
        %v499 = vphi 0.0, %v2477
        %v500 = vphi 0.0, %v2478
        %v501 = vphi 0.0, %v2479
        %v502 = vphi 0.0, %v2480
        %v503 = vphi 0.0, %v2481
        %v504 = vphi 0.0, %v2482
        %v505 = vphi 0.0, %v2483
      $region43: #{_lambda_.8} parent=39 // loop_header_branch
        %496 = sbr.rel (%p494) target = $region47
      $region44: #{_lambda_.8} parent=39 // loop_body
        %s506 = smul.u32 %s493, 32
        %s507 = scalar_lea.vmem [#allocation2], %s506
        %v508 = vld [vmem:[%s507] sm:$0xff]
        %v509 = vld [vmem:[%s507 + $0x8] sm:$0xff]
        %v510 = vld [vmem:[%s507 + $0x10] sm:$0xff]
        %v511 = vld [vmem:[%s507 + $0x18] sm:$0xff]
        %s512 = scalar_lea.vmem [#allocation3], %s506
        %v513 = vld [vmem:[%s512] sm:$0xff]
        %v514 = vld [vmem:[%s512 + $0x8] sm:$0xff]
        %v515 = vld [vmem:[%s512 + $0x10] sm:$0xff]
        %v516 = vld [vmem:[%s512 + $0x18] sm:$0xff]
        %s517 = scalar_lea.vmem [#allocation4], %s506
        %v518 = vld [vmem:[%s517] sm:$0xff]
        %v519 = vld [vmem:[%s517 + $0x8] sm:$0xff]
        %v520 = vld [vmem:[%s517 + $0x10] sm:$0xff]
        %v521 = vld [vmem:[%s517 + $0x18] sm:$0xff]
        %s522 = scalar_lea.vmem %s219, %s506
        %v523 = vld [vmem:[%s522] sm:$0xff]
        %v524 = vld [vmem:[%s522 + $0x8] sm:$0xff]
        %v525 = vld [vmem:[%s522 + $0x10] sm:$0xff]
        %v526 = vld [vmem:[%s522 + $0x18] sm:$0xff]
        %531 = vrot.lane.b32.xlu0 %v508, 64
        %v532 = vpop.permute.xlu0 %531
        %533 = vrot.lane.b32.xlu0 %v509, 64
        %v534 = vpop.permute.xlu0 %533
        %535 = vrot.lane.b32.xlu0 %v510, 64
        %v536 = vpop.permute.xlu0 %535
        %537 = vrot.lane.b32.xlu0 %v511, 64
        %v538 = vpop.permute.xlu0 %537
        %v543 = vsel %vm270, %v508, %v532
        %v544 = vsel %vm270, %v509, %v534
        %v545 = vsel %vm270, %v510, %v536
        %v546 = vsel %vm270, %v511, %v538
        %v547 = vld [vmem:[%s2] sm:$0xff]
        %v549 = vlaneseq
        %v550 = vshrl.u32 %v549, 7
        %v551 = vsub.s32 0, %v550
        %v552 = vrot.slane %v547, %v551
        %v553 = vlaneseq
        %v554 = vshrl.u32 %v553, 7
        %v555 = vsub.s32 1, %v554
        %v556 = vrot.slane %v547, %v555
        %v557 = vlaneseq
        %v558 = vshrl.u32 %v557, 7
        %v559 = vsub.s32 2, %v558
        %v560 = vrot.slane %v547, %v559
        %v561 = vlaneseq
        %v562 = vshrl.u32 %v561, 7
        %v563 = vsub.s32 3, %v562
        %v564 = vrot.slane %v547, %v563
        %v565 = vlaneseq
        %v566 = vshrl.u32 %v565, 7
        %v567 = vsub.s32 4, %v566
        %v568 = vrot.slane %v547, %v567
        %v569 = vlaneseq
        %v570 = vshrl.u32 %v569, 7
        %v571 = vsub.s32 5, %v570
        %v572 = vrot.slane %v547, %v571
        %v573 = vlaneseq
        %v574 = vshrl.u32 %v573, 7
        %v575 = vsub.s32 6, %v574
        %v576 = vrot.slane %v547, %v575
        %v577 = vlaneseq
        %v578 = vshrl.u32 %v577, 7
        %v579 = vsub.s32 7, %v578
        %v580 = vrot.slane %v547, %v579
        %v589 = vmul.f32 %v543, %v552
        %v590 = vmul.f32 %v543, %v556
        %v591 = vmul.f32 %v543, %v560
        %v592 = vmul.f32 %v543, %v564
        %v593 = vmul.f32 %v543, %v568
        %v594 = vmul.f32 %v543, %v572
        %v595 = vmul.f32 %v543, %v576
        %v596 = vmul.f32 %v543, %v580
        %v597 = vmul.f32 %v544, %v552
        %v598 = vmul.f32 %v544, %v556
        %v599 = vmul.f32 %v544, %v560
        %v600 = vmul.f32 %v544, %v564
        %v601 = vmul.f32 %v544, %v568
        %v602 = vmul.f32 %v544, %v572
        %v603 = vmul.f32 %v544, %v576
        %v604 = vmul.f32 %v544, %v580
        %v605 = vmul.f32 %v545, %v552
        %v606 = vmul.f32 %v545, %v556
        %v607 = vmul.f32 %v545, %v560
        %v608 = vmul.f32 %v545, %v564
        %v609 = vmul.f32 %v545, %v568
        %v610 = vmul.f32 %v545, %v572
        %v611 = vmul.f32 %v545, %v576
        %v612 = vmul.f32 %v545, %v580
        %v613 = vmul.f32 %v546, %v552
        %v614 = vmul.f32 %v546, %v556
        %v615 = vmul.f32 %v546, %v560
        %v616 = vmul.f32 %v546, %v564
        %v617 = vmul.f32 %v546, %v568
        %v618 = vmul.f32 %v546, %v572
        %v619 = vmul.f32 %v546, %v576
        %v620 = vmul.f32 %v546, %v580
        %v621 = vmul.f32 %v589, 1.442695
        %v622 = vpow.pop %v621
        %v623 = vmul.f32 %v590, 1.442695
        %v624 = vpow.pop %v623
        %v625 = vmul.f32 %v591, 1.442695
        %v626 = vpow.pop %v625
        %v627 = vmul.f32 %v592, 1.442695
        %v628 = vpow.pop %v627
        %v629 = vmul.f32 %v593, 1.442695
        %v630 = vpow.pop %v629
        %v631 = vmul.f32 %v594, 1.442695
        %v632 = vpow.pop %v631
        %v633 = vmul.f32 %v595, 1.442695
        %v634 = vpow.pop %v633
        %v635 = vmul.f32 %v596, 1.442695
        %v636 = vpow.pop %v635
        %v637 = vmul.f32 %v597, 1.442695
        %v638 = vpow.pop %v637
        %v639 = vmul.f32 %v598, 1.442695
        %v640 = vpow.pop %v639
        %v641 = vmul.f32 %v599, 1.442695
        %v642 = vpow.pop %v641
        %v643 = vmul.f32 %v600, 1.442695
        %v644 = vpow.pop %v643
        %v645 = vmul.f32 %v601, 1.442695
        %v646 = vpow.pop %v645
        %v647 = vmul.f32 %v602, 1.442695
        %v648 = vpow.pop %v647
        %v649 = vmul.f32 %v603, 1.442695
        %v650 = vpow.pop %v649
        %v651 = vmul.f32 %v604, 1.442695
        %v652 = vpow.pop %v651
        %v653 = vmul.f32 %v605, 1.442695
        %v654 = vpow.pop %v653
        %v655 = vmul.f32 %v606, 1.442695
        %v656 = vpow.pop %v655
        %v657 = vmul.f32 %v607, 1.442695
        %v658 = vpow.pop %v657
        %v659 = vmul.f32 %v608, 1.442695
        %v660 = vpow.pop %v659
        %v661 = vmul.f32 %v609, 1.442695
        %v662 = vpow.pop %v661
        %v663 = vmul.f32 %v610, 1.442695
        %v664 = vpow.pop %v663
        %v665 = vmul.f32 %v611, 1.442695
        %v666 = vpow.pop %v665
        %v667 = vmul.f32 %v612, 1.442695
        %v668 = vpow.pop %v667
        %v669 = vmul.f32 %v613, 1.442695
        %v670 = vpow.pop %v669
        %v671 = vmul.f32 %v614, 1.442695
        %v672 = vpow.pop %v671
        %v673 = vmul.f32 %v615, 1.442695
        %v674 = vpow.pop %v673
        %v675 = vmul.f32 %v616, 1.442695
        %v676 = vpow.pop %v675
        %v677 = vmul.f32 %v617, 1.442695
        %v678 = vpow.pop %v677
        %v679 = vmul.f32 %v618, 1.442695
        %v680 = vpow.pop %v679
        %v681 = vmul.f32 %v619, 1.442695
        %v682 = vpow.pop %v681
        %v683 = vmul.f32 %v620, 1.442695
        %v684 = vpow.pop %v683
        %686 = vset.pattern.permute.xlu0 0
        %687 = vperm.xlu0 %686, %v518
        %v688 = vpop.permute.xlu0 %687
        %691 = vset.pattern.permute.xlu0 0
        %692 = vperm.xlu0 %691, %v519
        %v693 = vpop.permute.xlu0 %692
        %696 = vset.pattern.permute.xlu0 0
        %697 = vperm.xlu0 %696, %v520
        %v698 = vpop.permute.xlu0 %697
        %701 = vset.pattern.permute.xlu0 0
        %702 = vperm.xlu0 %701, %v521
        %v703 = vpop.permute.xlu0 %702
        %v705 = vmul.f32 %v688, %v513
        %v706 = vmul.f32 %v693, %v514
        %v707 = vmul.f32 %v698, %v515
        %v708 = vmul.f32 %v703, %v516
        %709 = vset.pattern.permute.xlu0 1
        %710 = vperm.xlu0 %709, %v518
        %v711 = vpop.permute.xlu0 %710
        %713 = vset.pattern.permute.xlu0 1
        %714 = vperm.xlu0 %713, %v519
        %v715 = vpop.permute.xlu0 %714
        %717 = vset.pattern.permute.xlu0 1
        %718 = vperm.xlu0 %717, %v520
        %v719 = vpop.permute.xlu0 %718
        %721 = vset.pattern.permute.xlu0 1
        %722 = vperm.xlu0 %721, %v521
        %v723 = vpop.permute.xlu0 %722
        %v725 = vmul.f32 %v711, %v513
        %v726 = vmul.f32 %v715, %v514
        %v727 = vmul.f32 %v719, %v515
        %v728 = vmul.f32 %v723, %v516
        %729 = vset.pattern.permute.xlu0 2
        %730 = vperm.xlu0 %729, %v518
        %v731 = vpop.permute.xlu0 %730
        %733 = vset.pattern.permute.xlu0 2
        %734 = vperm.xlu0 %733, %v519
        %v735 = vpop.permute.xlu0 %734
        %737 = vset.pattern.permute.xlu0 2
        %738 = vperm.xlu0 %737, %v520
        %v739 = vpop.permute.xlu0 %738
        %741 = vset.pattern.permute.xlu0 2
        %742 = vperm.xlu0 %741, %v521
        %v743 = vpop.permute.xlu0 %742
        %v745 = vmul.f32 %v731, %v513
        %v746 = vmul.f32 %v735, %v514
        %v747 = vmul.f32 %v739, %v515
        %v748 = vmul.f32 %v743, %v516
        %749 = vset.pattern.permute.xlu0 3
        %750 = vperm.xlu0 %749, %v518
        %v751 = vpop.permute.xlu0 %750
        %753 = vset.pattern.permute.xlu0 3
        %754 = vperm.xlu0 %753, %v519
        %v755 = vpop.permute.xlu0 %754
        %757 = vset.pattern.permute.xlu0 3
        %758 = vperm.xlu0 %757, %v520
        %v759 = vpop.permute.xlu0 %758
        %761 = vset.pattern.permute.xlu0 3
        %762 = vperm.xlu0 %761, %v521
        %v763 = vpop.permute.xlu0 %762
        %v765 = vmul.f32 %v751, %v513
        %v766 = vmul.f32 %v755, %v514
        %v767 = vmul.f32 %v759, %v515
        %v768 = vmul.f32 %v763, %v516
        %769 = vset.pattern.permute.xlu0 4
        %770 = vperm.xlu0 %769, %v518
        %v771 = vpop.permute.xlu0 %770
        %773 = vset.pattern.permute.xlu0 4
        %774 = vperm.xlu0 %773, %v519
        %v775 = vpop.permute.xlu0 %774
        %777 = vset.pattern.permute.xlu0 4
        %778 = vperm.xlu0 %777, %v520
        %v779 = vpop.permute.xlu0 %778
        %781 = vset.pattern.permute.xlu0 4
        %782 = vperm.xlu0 %781, %v521
        %v783 = vpop.permute.xlu0 %782
        %v785 = vmul.f32 %v771, %v513
        %v786 = vmul.f32 %v775, %v514
        %v787 = vmul.f32 %v779, %v515
        %v788 = vmul.f32 %v783, %v516
        %789 = vset.pattern.permute.xlu0 5
        %790 = vperm.xlu0 %789, %v518
        %v791 = vpop.permute.xlu0 %790
        %793 = vset.pattern.permute.xlu0 5
        %794 = vperm.xlu0 %793, %v519
        %v795 = vpop.permute.xlu0 %794
        %797 = vset.pattern.permute.xlu0 5
        %798 = vperm.xlu0 %797, %v520
        %v799 = vpop.permute.xlu0 %798
        %801 = vset.pattern.permute.xlu0 5
        %802 = vperm.xlu0 %801, %v521
        %v803 = vpop.permute.xlu0 %802
        %v805 = vmul.f32 %v791, %v513
        %v806 = vmul.f32 %v795, %v514
        %v807 = vmul.f32 %v799, %v515
        %v808 = vmul.f32 %v803, %v516
        %809 = vset.pattern.permute.xlu0 6
        %810 = vperm.xlu0 %809, %v518
        %v811 = vpop.permute.xlu0 %810
        %813 = vset.pattern.permute.xlu0 6
        %814 = vperm.xlu0 %813, %v519
        %v815 = vpop.permute.xlu0 %814
        %817 = vset.pattern.permute.xlu0 6
        %818 = vperm.xlu0 %817, %v520
        %v819 = vpop.permute.xlu0 %818
        %821 = vset.pattern.permute.xlu0 6
        %822 = vperm.xlu0 %821, %v521
        %v823 = vpop.permute.xlu0 %822
        %v825 = vmul.f32 %v811, %v513
        %v826 = vmul.f32 %v815, %v514
        %v827 = vmul.f32 %v819, %v515
        %v828 = vmul.f32 %v823, %v516
        %829 = vset.pattern.permute.xlu0 7
        %830 = vperm.xlu0 %829, %v518
        %v831 = vpop.permute.xlu0 %830
        %833 = vset.pattern.permute.xlu0 7
        %834 = vperm.xlu0 %833, %v519
        %v835 = vpop.permute.xlu0 %834
        %837 = vset.pattern.permute.xlu0 7
        %838 = vperm.xlu0 %837, %v520
        %v839 = vpop.permute.xlu0 %838
        %841 = vset.pattern.permute.xlu0 7
        %842 = vperm.xlu0 %841, %v521
        %v843 = vpop.permute.xlu0 %842
        %v845 = vmul.f32 %v831, %v513
        %v846 = vmul.f32 %v835, %v514
        %v847 = vmul.f32 %v839, %v515
        %v848 = vmul.f32 %v843, %v516
        %849 = vset.pattern.permute.xlu0 8
        %850 = vperm.xlu0 %849, %v518
        %v851 = vpop.permute.xlu0 %850
        %853 = vset.pattern.permute.xlu0 8
        %854 = vperm.xlu0 %853, %v519
        %v855 = vpop.permute.xlu0 %854
        %857 = vset.pattern.permute.xlu0 8
        %858 = vperm.xlu0 %857, %v520
        %v859 = vpop.permute.xlu0 %858
        %861 = vset.pattern.permute.xlu0 8
        %862 = vperm.xlu0 %861, %v521
        %v863 = vpop.permute.xlu0 %862
        %v865 = vmul.f32 %v851, %v513
        %v866 = vmul.f32 %v855, %v514
        %v867 = vmul.f32 %v859, %v515
        %v868 = vmul.f32 %v863, %v516
        %869 = vset.pattern.permute.xlu0 9
        %870 = vperm.xlu0 %869, %v518
        %v871 = vpop.permute.xlu0 %870
        %873 = vset.pattern.permute.xlu0 9
        %874 = vperm.xlu0 %873, %v519
        %v875 = vpop.permute.xlu0 %874
        %877 = vset.pattern.permute.xlu0 9
        %878 = vperm.xlu0 %877, %v520
        %v879 = vpop.permute.xlu0 %878
        %881 = vset.pattern.permute.xlu0 9
        %882 = vperm.xlu0 %881, %v521
        %v883 = vpop.permute.xlu0 %882
        %v885 = vmul.f32 %v871, %v513
        %v886 = vmul.f32 %v875, %v514
        %v887 = vmul.f32 %v879, %v515
        %v888 = vmul.f32 %v883, %v516
        %889 = vset.pattern.permute.xlu0 10
        %890 = vperm.xlu0 %889, %v518
        %v891 = vpop.permute.xlu0 %890
        %893 = vset.pattern.permute.xlu0 10
        %894 = vperm.xlu0 %893, %v519
        %v895 = vpop.permute.xlu0 %894
        %897 = vset.pattern.permute.xlu0 10
        %898 = vperm.xlu0 %897, %v520
        %v899 = vpop.permute.xlu0 %898
        %901 = vset.pattern.permute.xlu0 10
        %902 = vperm.xlu0 %901, %v521
        %v903 = vpop.permute.xlu0 %902
        %v905 = vmul.f32 %v891, %v513
        %v906 = vmul.f32 %v895, %v514
        %v907 = vmul.f32 %v899, %v515
        %v908 = vmul.f32 %v903, %v516
        %909 = vset.pattern.permute.xlu0 11
        %910 = vperm.xlu0 %909, %v518
        %v911 = vpop.permute.xlu0 %910
        %913 = vset.pattern.permute.xlu0 11
        %914 = vperm.xlu0 %913, %v519
        %v915 = vpop.permute.xlu0 %914
        %917 = vset.pattern.permute.xlu0 11
        %918 = vperm.xlu0 %917, %v520
        %v919 = vpop.permute.xlu0 %918
        %921 = vset.pattern.permute.xlu0 11
        %922 = vperm.xlu0 %921, %v521
        %v923 = vpop.permute.xlu0 %922
        %v925 = vmul.f32 %v911, %v513
        %v926 = vmul.f32 %v915, %v514
        %v927 = vmul.f32 %v919, %v515
        %v928 = vmul.f32 %v923, %v516
        %929 = vset.pattern.permute.xlu0 12
        %930 = vperm.xlu0 %929, %v518
        %v931 = vpop.permute.xlu0 %930
        %933 = vset.pattern.permute.xlu0 12
        %934 = vperm.xlu0 %933, %v519
        %v935 = vpop.permute.xlu0 %934
        %937 = vset.pattern.permute.xlu0 12
        %938 = vperm.xlu0 %937, %v520
        %v939 = vpop.permute.xlu0 %938
        %941 = vset.pattern.permute.xlu0 12
        %942 = vperm.xlu0 %941, %v521
        %v943 = vpop.permute.xlu0 %942
        %v945 = vmul.f32 %v931, %v513
        %v946 = vmul.f32 %v935, %v514
        %v947 = vmul.f32 %v939, %v515
        %v948 = vmul.f32 %v943, %v516
        %949 = vset.pattern.permute.xlu0 13
        %950 = vperm.xlu0 %949, %v518
        %v951 = vpop.permute.xlu0 %950
        %953 = vset.pattern.permute.xlu0 13
        %954 = vperm.xlu0 %953, %v519
        %v955 = vpop.permute.xlu0 %954
        %957 = vset.pattern.permute.xlu0 13
        %958 = vperm.xlu0 %957, %v520
        %v959 = vpop.permute.xlu0 %958
        %961 = vset.pattern.permute.xlu0 13
        %962 = vperm.xlu0 %961, %v521
        %v963 = vpop.permute.xlu0 %962
        %v965 = vmul.f32 %v951, %v513
        %v966 = vmul.f32 %v955, %v514
        %v967 = vmul.f32 %v959, %v515
        %v968 = vmul.f32 %v963, %v516
        %969 = vset.pattern.permute.xlu0 14
        %970 = vperm.xlu0 %969, %v518
        %v971 = vpop.permute.xlu0 %970
        %973 = vset.pattern.permute.xlu0 14
        %974 = vperm.xlu0 %973, %v519
        %v975 = vpop.permute.xlu0 %974
        %977 = vset.pattern.permute.xlu0 14
        %978 = vperm.xlu0 %977, %v520
        %v979 = vpop.permute.xlu0 %978
        %981 = vset.pattern.permute.xlu0 14
        %982 = vperm.xlu0 %981, %v521
        %v983 = vpop.permute.xlu0 %982
        %v985 = vmul.f32 %v971, %v513
        %v986 = vmul.f32 %v975, %v514
        %v987 = vmul.f32 %v979, %v515
        %v988 = vmul.f32 %v983, %v516
        %989 = vset.pattern.permute.xlu0 15
        %990 = vperm.xlu0 %989, %v518
        %v991 = vpop.permute.xlu0 %990
        %993 = vset.pattern.permute.xlu0 15
        %994 = vperm.xlu0 %993, %v519
        %v995 = vpop.permute.xlu0 %994
        %997 = vset.pattern.permute.xlu0 15
        %998 = vperm.xlu0 %997, %v520
        %v999 = vpop.permute.xlu0 %998
        %1001 = vset.pattern.permute.xlu0 15
        %1002 = vperm.xlu0 %1001, %v521
        %v1003 = vpop.permute.xlu0 %1002
        %v1005 = vmul.f32 %v991, %v513
        %v1006 = vmul.f32 %v995, %v514
        %v1007 = vmul.f32 %v999, %v515
        %v1008 = vmul.f32 %v1003, %v516
        %1013 = vrot.lane.b32.xlu0 %v725, 64
        %v1014 = vpop.permute.xlu0 %1013
        %1015 = vrot.lane.b32.xlu0 %v726, 64
        %v1016 = vpop.permute.xlu0 %1015
        %1017 = vrot.lane.b32.xlu0 %v727, 64
        %v1018 = vpop.permute.xlu0 %1017
        %1019 = vrot.lane.b32.xlu0 %v728, 64
        %v1020 = vpop.permute.xlu0 %1019
        %1029 = vrot.lane.b32.xlu0 %v765, 64
        %v1030 = vpop.permute.xlu0 %1029
        %1031 = vrot.lane.b32.xlu0 %v766, 64
        %v1032 = vpop.permute.xlu0 %1031
        %1033 = vrot.lane.b32.xlu0 %v767, 64
        %v1034 = vpop.permute.xlu0 %1033
        %1035 = vrot.lane.b32.xlu0 %v768, 64
        %v1036 = vpop.permute.xlu0 %1035
        %1045 = vrot.lane.b32.xlu0 %v805, 64
        %v1046 = vpop.permute.xlu0 %1045
        %1047 = vrot.lane.b32.xlu0 %v806, 64
        %v1048 = vpop.permute.xlu0 %1047
        %1049 = vrot.lane.b32.xlu0 %v807, 64
        %v1050 = vpop.permute.xlu0 %1049
        %1051 = vrot.lane.b32.xlu0 %v808, 64
        %v1052 = vpop.permute.xlu0 %1051
        %1061 = vrot.lane.b32.xlu0 %v845, 64
        %v1062 = vpop.permute.xlu0 %1061
        %1063 = vrot.lane.b32.xlu0 %v846, 64
        %v1064 = vpop.permute.xlu0 %1063
        %1065 = vrot.lane.b32.xlu0 %v847, 64
        %v1066 = vpop.permute.xlu0 %1065
        %1067 = vrot.lane.b32.xlu0 %v848, 64
        %v1068 = vpop.permute.xlu0 %1067
        %1077 = vrot.lane.b32.xlu0 %v885, 64
        %v1078 = vpop.permute.xlu0 %1077
        %1079 = vrot.lane.b32.xlu0 %v886, 64
        %v1080 = vpop.permute.xlu0 %1079
        %1081 = vrot.lane.b32.xlu0 %v887, 64
        %v1082 = vpop.permute.xlu0 %1081
        %1083 = vrot.lane.b32.xlu0 %v888, 64
        %v1084 = vpop.permute.xlu0 %1083
        %1093 = vrot.lane.b32.xlu0 %v925, 64
        %v1094 = vpop.permute.xlu0 %1093
        %1095 = vrot.lane.b32.xlu0 %v926, 64
        %v1096 = vpop.permute.xlu0 %1095
        %1097 = vrot.lane.b32.xlu0 %v927, 64
        %v1098 = vpop.permute.xlu0 %1097
        %1099 = vrot.lane.b32.xlu0 %v928, 64
        %v1100 = vpop.permute.xlu0 %1099
        %1109 = vrot.lane.b32.xlu0 %v965, 64
        %v1110 = vpop.permute.xlu0 %1109
        %1111 = vrot.lane.b32.xlu0 %v966, 64
        %v1112 = vpop.permute.xlu0 %1111
        %1113 = vrot.lane.b32.xlu0 %v967, 64
        %v1114 = vpop.permute.xlu0 %1113
        %1115 = vrot.lane.b32.xlu0 %v968, 64
        %v1116 = vpop.permute.xlu0 %1115
        %1125 = vrot.lane.b32.xlu0 %v1005, 64
        %v1126 = vpop.permute.xlu0 %1125
        %1127 = vrot.lane.b32.xlu0 %v1006, 64
        %v1128 = vpop.permute.xlu0 %1127
        %1129 = vrot.lane.b32.xlu0 %v1007, 64
        %v1130 = vpop.permute.xlu0 %1129
        %1131 = vrot.lane.b32.xlu0 %v1008, 64
        %v1132 = vpop.permute.xlu0 %1131
        %v1137 = vsel %vm270, %v705, %v1014
        %v1138 = vsel %vm270, %v706, %v1016
        %v1139 = vsel %vm270, %v707, %v1018
        %v1140 = vsel %vm270, %v708, %v1020
        %v1141 = vsel %vm270, %v745, %v1030
        %v1142 = vsel %vm270, %v746, %v1032
        %v1143 = vsel %vm270, %v747, %v1034
        %v1144 = vsel %vm270, %v748, %v1036
        %v1145 = vsel %vm270, %v785, %v1046
        %v1146 = vsel %vm270, %v786, %v1048
        %v1147 = vsel %vm270, %v787, %v1050
        %v1148 = vsel %vm270, %v788, %v1052
        %v1149 = vsel %vm270, %v825, %v1062
        %v1150 = vsel %vm270, %v826, %v1064
        %v1151 = vsel %vm270, %v827, %v1066
        %v1152 = vsel %vm270, %v828, %v1068
        %v1153 = vsel %vm270, %v865, %v1078
        %v1154 = vsel %vm270, %v866, %v1080
        %v1155 = vsel %vm270, %v867, %v1082
        %v1156 = vsel %vm270, %v868, %v1084
        %v1157 = vsel %vm270, %v905, %v1094
        %v1158 = vsel %vm270, %v906, %v1096
        %v1159 = vsel %vm270, %v907, %v1098
        %v1160 = vsel %vm270, %v908, %v1100
        %v1161 = vsel %vm270, %v945, %v1110
        %v1162 = vsel %vm270, %v946, %v1112
        %v1163 = vsel %vm270, %v947, %v1114
        %v1164 = vsel %vm270, %v948, %v1116
        %v1165 = vsel %vm270, %v985, %v1126
        %v1166 = vsel %vm270, %v986, %v1128
        %v1167 = vsel %vm270, %v987, %v1130
        %v1168 = vsel %vm270, %v988, %v1132
        %vm1201 = vcmask 1040384
        %v1202 = vrot.slane %v622, 7
        %v1203 = vrot.slane %v624, 7
        %v1204 = vrot.slane %v626, 7
        %v1205 = vrot.slane %v628, 7
        %v1206 = vrot.slane %v630, 7
        %v1207 = vrot.slane %v632, 7
        %v1208 = vrot.slane %v634, 7
        %v1209 = vrot.slane %v636, 7
        %v1210 = vrot.slane %v638, 7
        %v1211 = vsel %vm1201, %v1202, %v1210
        %v1212 = vrot.slane %v640, 7
        %v1213 = vsel %vm1201, %v1203, %v1212
        %v1214 = vrot.slane %v642, 7
        %v1215 = vsel %vm1201, %v1204, %v1214
        %v1216 = vrot.slane %v644, 7
        %v1217 = vsel %vm1201, %v1205, %v1216
        %v1218 = vrot.slane %v646, 7
        %v1219 = vsel %vm1201, %v1206, %v1218
        %v1220 = vrot.slane %v648, 7
        %v1221 = vsel %vm1201, %v1207, %v1220
        %v1222 = vrot.slane %v650, 7
        %v1223 = vsel %vm1201, %v1208, %v1222
        %v1224 = vrot.slane %v652, 7
        %v1225 = vsel %vm1201, %v1209, %v1224
        %v1226 = vrot.slane %v654, 7
        %v1227 = vsel %vm1201, %v1210, %v1226
        %v1228 = vrot.slane %v656, 7
        %v1229 = vsel %vm1201, %v1212, %v1228
        %v1230 = vrot.slane %v658, 7
        %v1231 = vsel %vm1201, %v1214, %v1230
        %v1232 = vrot.slane %v660, 7
        %v1233 = vsel %vm1201, %v1216, %v1232
        %v1234 = vrot.slane %v662, 7
        %v1235 = vsel %vm1201, %v1218, %v1234
        %v1236 = vrot.slane %v664, 7
        %v1237 = vsel %vm1201, %v1220, %v1236
        %v1238 = vrot.slane %v666, 7
        %v1239 = vsel %vm1201, %v1222, %v1238
        %v1240 = vrot.slane %v668, 7
        %v1241 = vsel %vm1201, %v1224, %v1240
        %v1242 = vrot.slane %v670, 7
        %v1243 = vsel %vm1201, %v1226, %v1242
        %v1244 = vrot.slane %v672, 7
        %v1245 = vsel %vm1201, %v1228, %v1244
        %v1246 = vrot.slane %v674, 7
        %v1247 = vsel %vm1201, %v1230, %v1246
        %v1248 = vrot.slane %v676, 7
        %v1249 = vsel %vm1201, %v1232, %v1248
        %v1250 = vrot.slane %v678, 7
        %v1251 = vsel %vm1201, %v1234, %v1250
        %v1252 = vrot.slane %v680, 7
        %v1253 = vsel %vm1201, %v1236, %v1252
        %v1254 = vrot.slane %v682, 7
        %v1255 = vsel %vm1201, %v1238, %v1254
        %v1256 = vrot.slane %v684, 7
        %v1257 = vsel %vm1201, %v1240, %v1256
        %v1290 = vsel %vm1201, 1.0, %v1202
        %v1291 = vsel %vm1201, 1.0, %v1203
        %v1292 = vsel %vm1201, 1.0, %v1204
        %v1293 = vsel %vm1201, 1.0, %v1205
        %v1294 = vsel %vm1201, 1.0, %v1206
        %v1295 = vsel %vm1201, 1.0, %v1207
        %v1296 = vsel %vm1201, 1.0, %v1208
        %v1297 = vsel %vm1201, 1.0, %v1209
        %v1330 = vrot.slane %v1137, 7
        %v1331 = vrot.slane %v1141, 7
        %v1332 = vrot.slane %v1145, 7
        %v1333 = vrot.slane %v1149, 7
        %v1334 = vrot.slane %v1153, 7
        %v1335 = vrot.slane %v1157, 7
        %v1336 = vrot.slane %v1161, 7
        %v1337 = vrot.slane %v1165, 7
        %v1338 = vrot.slane %v1138, 7
        %v1339 = vsel %vm1201, %v1330, %v1338
        %v1340 = vrot.slane %v1142, 7
        %v1341 = vsel %vm1201, %v1331, %v1340
        %v1342 = vrot.slane %v1146, 7
        %v1343 = vsel %vm1201, %v1332, %v1342
        %v1344 = vrot.slane %v1150, 7
        %v1345 = vsel %vm1201, %v1333, %v1344
        %v1346 = vrot.slane %v1154, 7
        %v1347 = vsel %vm1201, %v1334, %v1346
        %v1348 = vrot.slane %v1158, 7
        %v1349 = vsel %vm1201, %v1335, %v1348
        %v1350 = vrot.slane %v1162, 7
        %v1351 = vsel %vm1201, %v1336, %v1350
        %v1352 = vrot.slane %v1166, 7
        %v1353 = vsel %vm1201, %v1337, %v1352
        %v1354 = vrot.slane %v1139, 7
        %v1355 = vsel %vm1201, %v1338, %v1354
        %v1356 = vrot.slane %v1143, 7
        %v1357 = vsel %vm1201, %v1340, %v1356
        %v1358 = vrot.slane %v1147, 7
        %v1359 = vsel %vm1201, %v1342, %v1358
        %v1360 = vrot.slane %v1151, 7
        %v1361 = vsel %vm1201, %v1344, %v1360
        %v1362 = vrot.slane %v1155, 7
        %v1363 = vsel %vm1201, %v1346, %v1362
        %v1364 = vrot.slane %v1159, 7
        %v1365 = vsel %vm1201, %v1348, %v1364
        %v1366 = vrot.slane %v1163, 7
        %v1367 = vsel %vm1201, %v1350, %v1366
        %v1368 = vrot.slane %v1167, 7
        %v1369 = vsel %vm1201, %v1352, %v1368
        %v1370 = vrot.slane %v1140, 7
        %v1371 = vsel %vm1201, %v1354, %v1370
        %v1372 = vrot.slane %v1144, 7
        %v1373 = vsel %vm1201, %v1356, %v1372
        %v1374 = vrot.slane %v1148, 7
        %v1375 = vsel %vm1201, %v1358, %v1374
        %v1376 = vrot.slane %v1152, 7
        %v1377 = vsel %vm1201, %v1360, %v1376
        %v1378 = vrot.slane %v1156, 7
        %v1379 = vsel %vm1201, %v1362, %v1378
        %v1380 = vrot.slane %v1160, 7
        %v1381 = vsel %vm1201, %v1364, %v1380
        %v1382 = vrot.slane %v1164, 7
        %v1383 = vsel %vm1201, %v1366, %v1382
        %v1384 = vrot.slane %v1168, 7
        %v1385 = vsel %vm1201, %v1368, %v1384
        %v1418 = vsel %vm1201, 0.0, %v1330
        %v1419 = vsel %vm1201, 0.0, %v1331
        %v1420 = vsel %vm1201, 0.0, %v1332
        %v1421 = vsel %vm1201, 0.0, %v1333
        %v1422 = vsel %vm1201, 0.0, %v1334
        %v1423 = vsel %vm1201, 0.0, %v1335
        %v1424 = vsel %vm1201, 0.0, %v1336
        %v1425 = vsel %vm1201, 0.0, %v1337
        %v1426 = vmul.f32 %v622, %v1418
        %v1427 = vmul.f32 %v624, %v1419
        %v1428 = vmul.f32 %v626, %v1420
        %v1429 = vmul.f32 %v628, %v1421
        %v1430 = vmul.f32 %v630, %v1422
        %v1431 = vmul.f32 %v632, %v1423
        %v1432 = vmul.f32 %v634, %v1424
        %v1433 = vmul.f32 %v636, %v1425
        %v1434 = vmul.f32 %v638, %v1339
        %v1435 = vmul.f32 %v640, %v1341
        %v1436 = vmul.f32 %v642, %v1343
        %v1437 = vmul.f32 %v644, %v1345
        %v1438 = vmul.f32 %v646, %v1347
        %v1439 = vmul.f32 %v648, %v1349
        %v1440 = vmul.f32 %v650, %v1351
        %v1441 = vmul.f32 %v652, %v1353
        %v1442 = vmul.f32 %v654, %v1355
        %v1443 = vmul.f32 %v656, %v1357
        %v1444 = vmul.f32 %v658, %v1359
        %v1445 = vmul.f32 %v660, %v1361
        %v1446 = vmul.f32 %v662, %v1363
        %v1447 = vmul.f32 %v664, %v1365
        %v1448 = vmul.f32 %v666, %v1367
        %v1449 = vmul.f32 %v668, %v1369
        %v1450 = vmul.f32 %v670, %v1371
        %v1451 = vmul.f32 %v672, %v1373
        %v1452 = vmul.f32 %v674, %v1375
        %v1453 = vmul.f32 %v676, %v1377
        %v1454 = vmul.f32 %v678, %v1379
        %v1455 = vmul.f32 %v680, %v1381
        %v1456 = vmul.f32 %v682, %v1383
        %v1457 = vmul.f32 %v684, %v1385
        %v1458 = vadd.f32 %v1426, %v1137
        %v1459 = vadd.f32 %v1427, %v1141
        %v1460 = vadd.f32 %v1428, %v1145
        %v1461 = vadd.f32 %v1429, %v1149
        %v1462 = vadd.f32 %v1430, %v1153
        %v1463 = vadd.f32 %v1431, %v1157
        %v1464 = vadd.f32 %v1432, %v1161
        %v1465 = vadd.f32 %v1433, %v1165
        %v1466 = vadd.f32 %v1434, %v1138
        %v1467 = vadd.f32 %v1435, %v1142
        %v1468 = vadd.f32 %v1436, %v1146
        %v1469 = vadd.f32 %v1437, %v1150
        %v1470 = vadd.f32 %v1438, %v1154
        %v1471 = vadd.f32 %v1439, %v1158
        %v1472 = vadd.f32 %v1440, %v1162
        %v1473 = vadd.f32 %v1441, %v1166
        %v1474 = vadd.f32 %v1442, %v1139
        %v1475 = vadd.f32 %v1443, %v1143
        %v1476 = vadd.f32 %v1444, %v1147
        %v1477 = vadd.f32 %v1445, %v1151
        %v1478 = vadd.f32 %v1446, %v1155
        %v1479 = vadd.f32 %v1447, %v1159
        %v1480 = vadd.f32 %v1448, %v1163
        %v1481 = vadd.f32 %v1449, %v1167
        %v1482 = vadd.f32 %v1450, %v1140
        %v1483 = vadd.f32 %v1451, %v1144
        %v1484 = vadd.f32 %v1452, %v1148
        %v1485 = vadd.f32 %v1453, %v1152
        %v1486 = vadd.f32 %v1454, %v1156
        %v1487 = vadd.f32 %v1455, %v1160
        %v1488 = vadd.f32 %v1456, %v1164
        %v1489 = vadd.f32 %v1457, %v1168
        %v1490 = vmul.f32 %v622, %v1290
        %v1491 = vmul.f32 %v624, %v1291
        %v1492 = vmul.f32 %v626, %v1292
        %v1493 = vmul.f32 %v628, %v1293
        %v1494 = vmul.f32 %v630, %v1294
        %v1495 = vmul.f32 %v632, %v1295
        %v1496 = vmul.f32 %v634, %v1296
        %v1497 = vmul.f32 %v636, %v1297
        %v1498 = vmul.f32 %v638, %v1211
        %v1499 = vmul.f32 %v640, %v1213
        %v1500 = vmul.f32 %v642, %v1215
        %v1501 = vmul.f32 %v644, %v1217
        %v1502 = vmul.f32 %v646, %v1219
        %v1503 = vmul.f32 %v648, %v1221
        %v1504 = vmul.f32 %v650, %v1223
        %v1505 = vmul.f32 %v652, %v1225
        %v1506 = vmul.f32 %v654, %v1227
        %v1507 = vmul.f32 %v656, %v1229
        %v1508 = vmul.f32 %v658, %v1231
        %v1509 = vmul.f32 %v660, %v1233
        %v1510 = vmul.f32 %v662, %v1235
        %v1511 = vmul.f32 %v664, %v1237
        %v1512 = vmul.f32 %v666, %v1239
        %v1513 = vmul.f32 %v668, %v1241
        %v1514 = vmul.f32 %v670, %v1243
        %v1515 = vmul.f32 %v672, %v1245
        %v1516 = vmul.f32 %v674, %v1247
        %v1517 = vmul.f32 %v676, %v1249
        %v1518 = vmul.f32 %v678, %v1251
        %v1519 = vmul.f32 %v680, %v1253
        %v1520 = vmul.f32 %v682, %v1255
        %v1521 = vmul.f32 %v684, %v1257
        %vm1554 = vcmask 1041408
        %v1555 = vrot.slane %v1490, 6
        %v1556 = vrot.slane %v1491, 6
        %v1557 = vrot.slane %v1492, 6
        %v1558 = vrot.slane %v1493, 6
        %v1559 = vrot.slane %v1494, 6
        %v1560 = vrot.slane %v1495, 6
        %v1561 = vrot.slane %v1496, 6
        %v1562 = vrot.slane %v1497, 6
        %v1563 = vrot.slane %v1498, 6
        %v1564 = vsel %vm1554, %v1555, %v1563
        %v1565 = vrot.slane %v1499, 6
        %v1566 = vsel %vm1554, %v1556, %v1565
        %v1567 = vrot.slane %v1500, 6
        %v1568 = vsel %vm1554, %v1557, %v1567
        %v1569 = vrot.slane %v1501, 6
        %v1570 = vsel %vm1554, %v1558, %v1569
        %v1571 = vrot.slane %v1502, 6
        %v1572 = vsel %vm1554, %v1559, %v1571
        %v1573 = vrot.slane %v1503, 6
        %v1574 = vsel %vm1554, %v1560, %v1573
        %v1575 = vrot.slane %v1504, 6
        %v1576 = vsel %vm1554, %v1561, %v1575
        %v1577 = vrot.slane %v1505, 6
        %v1578 = vsel %vm1554, %v1562, %v1577
        %v1579 = vrot.slane %v1506, 6
        %v1580 = vsel %vm1554, %v1563, %v1579
        %v1581 = vrot.slane %v1507, 6
        %v1582 = vsel %vm1554, %v1565, %v1581
        %v1583 = vrot.slane %v1508, 6
        %v1584 = vsel %vm1554, %v1567, %v1583
        %v1585 = vrot.slane %v1509, 6
        %v1586 = vsel %vm1554, %v1569, %v1585
        %v1587 = vrot.slane %v1510, 6
        %v1588 = vsel %vm1554, %v1571, %v1587
        %v1589 = vrot.slane %v1511, 6
        %v1590 = vsel %vm1554, %v1573, %v1589
        %v1591 = vrot.slane %v1512, 6
        %v1592 = vsel %vm1554, %v1575, %v1591
        %v1593 = vrot.slane %v1513, 6
        %v1594 = vsel %vm1554, %v1577, %v1593
        %v1595 = vrot.slane %v1514, 6
        %v1596 = vsel %vm1554, %v1579, %v1595
        %v1597 = vrot.slane %v1515, 6
        %v1598 = vsel %vm1554, %v1581, %v1597
        %v1599 = vrot.slane %v1516, 6
        %v1600 = vsel %vm1554, %v1583, %v1599
        %v1601 = vrot.slane %v1517, 6
        %v1602 = vsel %vm1554, %v1585, %v1601
        %v1603 = vrot.slane %v1518, 6
        %v1604 = vsel %vm1554, %v1587, %v1603
        %v1605 = vrot.slane %v1519, 6
        %v1606 = vsel %vm1554, %v1589, %v1605
        %v1607 = vrot.slane %v1520, 6
        %v1608 = vsel %vm1554, %v1591, %v1607
        %v1609 = vrot.slane %v1521, 6
        %v1610 = vsel %vm1554, %v1593, %v1609
        %v1643 = vsel %vm1554, 1.0, %v1555
        %v1644 = vsel %vm1554, 1.0, %v1556
        %v1645 = vsel %vm1554, 1.0, %v1557
        %v1646 = vsel %vm1554, 1.0, %v1558
        %v1647 = vsel %vm1554, 1.0, %v1559
        %v1648 = vsel %vm1554, 1.0, %v1560
        %v1649 = vsel %vm1554, 1.0, %v1561
        %v1650 = vsel %vm1554, 1.0, %v1562
        %v1683 = vrot.slane %v1458, 6
        %v1684 = vrot.slane %v1459, 6
        %v1685 = vrot.slane %v1460, 6
        %v1686 = vrot.slane %v1461, 6
        %v1687 = vrot.slane %v1462, 6
        %v1688 = vrot.slane %v1463, 6
        %v1689 = vrot.slane %v1464, 6
        %v1690 = vrot.slane %v1465, 6
        %v1691 = vrot.slane %v1466, 6
        %v1692 = vsel %vm1554, %v1683, %v1691
        %v1693 = vrot.slane %v1467, 6
        %v1694 = vsel %vm1554, %v1684, %v1693
        %v1695 = vrot.slane %v1468, 6
        %v1696 = vsel %vm1554, %v1685, %v1695
        %v1697 = vrot.slane %v1469, 6
        %v1698 = vsel %vm1554, %v1686, %v1697
        %v1699 = vrot.slane %v1470, 6
        %v1700 = vsel %vm1554, %v1687, %v1699
        %v1701 = vrot.slane %v1471, 6
        %v1702 = vsel %vm1554, %v1688, %v1701
        %v1703 = vrot.slane %v1472, 6
        %v1704 = vsel %vm1554, %v1689, %v1703
        %v1705 = vrot.slane %v1473, 6
        %v1706 = vsel %vm1554, %v1690, %v1705
        %v1707 = vrot.slane %v1474, 6
        %v1708 = vsel %vm1554, %v1691, %v1707
        %v1709 = vrot.slane %v1475, 6
        %v1710 = vsel %vm1554, %v1693, %v1709
        %v1711 = vrot.slane %v1476, 6
        %v1712 = vsel %vm1554, %v1695, %v1711
        %v1713 = vrot.slane %v1477, 6
        %v1714 = vsel %vm1554, %v1697, %v1713
        %v1715 = vrot.slane %v1478, 6
        %v1716 = vsel %vm1554, %v1699, %v1715
        %v1717 = vrot.slane %v1479, 6
        %v1718 = vsel %vm1554, %v1701, %v1717
        %v1719 = vrot.slane %v1480, 6
        %v1720 = vsel %vm1554, %v1703, %v1719
        %v1721 = vrot.slane %v1481, 6
        %v1722 = vsel %vm1554, %v1705, %v1721
        %v1723 = vrot.slane %v1482, 6
        %v1724 = vsel %vm1554, %v1707, %v1723
        %v1725 = vrot.slane %v1483, 6
        %v1726 = vsel %vm1554, %v1709, %v1725
        %v1727 = vrot.slane %v1484, 6
        %v1728 = vsel %vm1554, %v1711, %v1727
        %v1729 = vrot.slane %v1485, 6
        %v1730 = vsel %vm1554, %v1713, %v1729
        %v1731 = vrot.slane %v1486, 6
        %v1732 = vsel %vm1554, %v1715, %v1731
        %v1733 = vrot.slane %v1487, 6
        %v1734 = vsel %vm1554, %v1717, %v1733
        %v1735 = vrot.slane %v1488, 6
        %v1736 = vsel %vm1554, %v1719, %v1735
        %v1737 = vrot.slane %v1489, 6
        %v1738 = vsel %vm1554, %v1721, %v1737
        %v1771 = vsel %vm1554, 0.0, %v1683
        %v1772 = vsel %vm1554, 0.0, %v1684
        %v1773 = vsel %vm1554, 0.0, %v1685
        %v1774 = vsel %vm1554, 0.0, %v1686
        %v1775 = vsel %vm1554, 0.0, %v1687
        %v1776 = vsel %vm1554, 0.0, %v1688
        %v1777 = vsel %vm1554, 0.0, %v1689
        %v1778 = vsel %vm1554, 0.0, %v1690
        %v1779 = vmul.f32 %v1490, %v1771
        %v1780 = vmul.f32 %v1491, %v1772
        %v1781 = vmul.f32 %v1492, %v1773
        %v1782 = vmul.f32 %v1493, %v1774
        %v1783 = vmul.f32 %v1494, %v1775
        %v1784 = vmul.f32 %v1495, %v1776
        %v1785 = vmul.f32 %v1496, %v1777
        %v1786 = vmul.f32 %v1497, %v1778
        %v1787 = vmul.f32 %v1498, %v1692
        %v1788 = vmul.f32 %v1499, %v1694
        %v1789 = vmul.f32 %v1500, %v1696
        %v1790 = vmul.f32 %v1501, %v1698
        %v1791 = vmul.f32 %v1502, %v1700
        %v1792 = vmul.f32 %v1503, %v1702
        %v1793 = vmul.f32 %v1504, %v1704
        %v1794 = vmul.f32 %v1505, %v1706
        %v1795 = vmul.f32 %v1506, %v1708
        %v1796 = vmul.f32 %v1507, %v1710
        %v1797 = vmul.f32 %v1508, %v1712
        %v1798 = vmul.f32 %v1509, %v1714
        %v1799 = vmul.f32 %v1510, %v1716
        %v1800 = vmul.f32 %v1511, %v1718
        %v1801 = vmul.f32 %v1512, %v1720
        %v1802 = vmul.f32 %v1513, %v1722
        %v1803 = vmul.f32 %v1514, %v1724
        %v1804 = vmul.f32 %v1515, %v1726
        %v1805 = vmul.f32 %v1516, %v1728
        %v1806 = vmul.f32 %v1517, %v1730
        %v1807 = vmul.f32 %v1518, %v1732
        %v1808 = vmul.f32 %v1519, %v1734
        %v1809 = vmul.f32 %v1520, %v1736
        %v1810 = vmul.f32 %v1521, %v1738
        %v1811 = vadd.f32 %v1779, %v1458
        %v1812 = vadd.f32 %v1780, %v1459
        %v1813 = vadd.f32 %v1781, %v1460
        %v1814 = vadd.f32 %v1782, %v1461
        %v1815 = vadd.f32 %v1783, %v1462
        %v1816 = vadd.f32 %v1784, %v1463
        %v1817 = vadd.f32 %v1785, %v1464
        %v1818 = vadd.f32 %v1786, %v1465
        %v1819 = vadd.f32 %v1787, %v1466
        %v1820 = vadd.f32 %v1788, %v1467
        %v1821 = vadd.f32 %v1789, %v1468
        %v1822 = vadd.f32 %v1790, %v1469
        %v1823 = vadd.f32 %v1791, %v1470
        %v1824 = vadd.f32 %v1792, %v1471
        %v1825 = vadd.f32 %v1793, %v1472
        %v1826 = vadd.f32 %v1794, %v1473
        %v1827 = vadd.f32 %v1795, %v1474
        %v1828 = vadd.f32 %v1796, %v1475
        %v1829 = vadd.f32 %v1797, %v1476
        %v1830 = vadd.f32 %v1798, %v1477
        %v1831 = vadd.f32 %v1799, %v1478
        %v1832 = vadd.f32 %v1800, %v1479
        %v1833 = vadd.f32 %v1801, %v1480
        %v1834 = vadd.f32 %v1802, %v1481
        %v1835 = vadd.f32 %v1803, %v1482
        %v1836 = vadd.f32 %v1804, %v1483
        %v1837 = vadd.f32 %v1805, %v1484
        %v1838 = vadd.f32 %v1806, %v1485
        %v1839 = vadd.f32 %v1807, %v1486
        %v1840 = vadd.f32 %v1808, %v1487
        %v1841 = vadd.f32 %v1809, %v1488
        %v1842 = vadd.f32 %v1810, %v1489
        %v1843 = vmul.f32 %v1490, %v1643
        %v1844 = vmul.f32 %v1491, %v1644
        %v1845 = vmul.f32 %v1492, %v1645
        %v1846 = vmul.f32 %v1493, %v1646
        %v1847 = vmul.f32 %v1494, %v1647
        %v1848 = vmul.f32 %v1495, %v1648
        %v1849 = vmul.f32 %v1496, %v1649
        %v1850 = vmul.f32 %v1497, %v1650
        %v1851 = vmul.f32 %v1498, %v1564
        %v1852 = vmul.f32 %v1499, %v1566
        %v1853 = vmul.f32 %v1500, %v1568
        %v1854 = vmul.f32 %v1501, %v1570
        %v1855 = vmul.f32 %v1502, %v1572
        %v1856 = vmul.f32 %v1503, %v1574
        %v1857 = vmul.f32 %v1504, %v1576
        %v1858 = vmul.f32 %v1505, %v1578
        %v1859 = vmul.f32 %v1506, %v1580
        %v1860 = vmul.f32 %v1507, %v1582
        %v1861 = vmul.f32 %v1508, %v1584
        %v1862 = vmul.f32 %v1509, %v1586
        %v1863 = vmul.f32 %v1510, %v1588
        %v1864 = vmul.f32 %v1511, %v1590
        %v1865 = vmul.f32 %v1512, %v1592
        %v1866 = vmul.f32 %v1513, %v1594
        %v1867 = vmul.f32 %v1514, %v1596
        %v1868 = vmul.f32 %v1515, %v1598
        %v1869 = vmul.f32 %v1516, %v1600
        %v1870 = vmul.f32 %v1517, %v1602
        %v1871 = vmul.f32 %v1518, %v1604
        %v1872 = vmul.f32 %v1519, %v1606
        %v1873 = vmul.f32 %v1520, %v1608
        %v1874 = vmul.f32 %v1521, %v1610
        %vm1907 = vcmask 1043456
        %v1908 = vrot.slane %v1843, 4
        %v1909 = vrot.slane %v1844, 4
        %v1910 = vrot.slane %v1845, 4
        %v1911 = vrot.slane %v1846, 4
        %v1912 = vrot.slane %v1847, 4
        %v1913 = vrot.slane %v1848, 4
        %v1914 = vrot.slane %v1849, 4
        %v1915 = vrot.slane %v1850, 4
        %v1916 = vrot.slane %v1851, 4
        %v1917 = vsel %vm1907, %v1908, %v1916
        %v1918 = vrot.slane %v1852, 4
        %v1919 = vsel %vm1907, %v1909, %v1918
        %v1920 = vrot.slane %v1853, 4
        %v1921 = vsel %vm1907, %v1910, %v1920
        %v1922 = vrot.slane %v1854, 4
        %v1923 = vsel %vm1907, %v1911, %v1922
        %v1924 = vrot.slane %v1855, 4
        %v1925 = vsel %vm1907, %v1912, %v1924
        %v1926 = vrot.slane %v1856, 4
        %v1927 = vsel %vm1907, %v1913, %v1926
        %v1928 = vrot.slane %v1857, 4
        %v1929 = vsel %vm1907, %v1914, %v1928
        %v1930 = vrot.slane %v1858, 4
        %v1931 = vsel %vm1907, %v1915, %v1930
        %v1932 = vrot.slane %v1859, 4
        %v1933 = vsel %vm1907, %v1916, %v1932
        %v1934 = vrot.slane %v1860, 4
        %v1935 = vsel %vm1907, %v1918, %v1934
        %v1936 = vrot.slane %v1861, 4
        %v1937 = vsel %vm1907, %v1920, %v1936
        %v1938 = vrot.slane %v1862, 4
        %v1939 = vsel %vm1907, %v1922, %v1938
        %v1940 = vrot.slane %v1863, 4
        %v1941 = vsel %vm1907, %v1924, %v1940
        %v1942 = vrot.slane %v1864, 4
        %v1943 = vsel %vm1907, %v1926, %v1942
        %v1944 = vrot.slane %v1865, 4
        %v1945 = vsel %vm1907, %v1928, %v1944
        %v1946 = vrot.slane %v1866, 4
        %v1947 = vsel %vm1907, %v1930, %v1946
        %v1948 = vrot.slane %v1867, 4
        %v1949 = vsel %vm1907, %v1932, %v1948
        %v1950 = vrot.slane %v1868, 4
        %v1951 = vsel %vm1907, %v1934, %v1950
        %v1952 = vrot.slane %v1869, 4
        %v1953 = vsel %vm1907, %v1936, %v1952
        %v1954 = vrot.slane %v1870, 4
        %v1955 = vsel %vm1907, %v1938, %v1954
        %v1956 = vrot.slane %v1871, 4
        %v1957 = vsel %vm1907, %v1940, %v1956
        %v1958 = vrot.slane %v1872, 4
        %v1959 = vsel %vm1907, %v1942, %v1958
        %v1960 = vrot.slane %v1873, 4
        %v1961 = vsel %vm1907, %v1944, %v1960
        %v1962 = vrot.slane %v1874, 4
        %v1963 = vsel %vm1907, %v1946, %v1962
        %v1996 = vsel %vm1907, 1.0, %v1908
        %v1997 = vsel %vm1907, 1.0, %v1909
        %v1998 = vsel %vm1907, 1.0, %v1910
        %v1999 = vsel %vm1907, 1.0, %v1911
        %v2000 = vsel %vm1907, 1.0, %v1912
        %v2001 = vsel %vm1907, 1.0, %v1913
        %v2002 = vsel %vm1907, 1.0, %v1914
        %v2003 = vsel %vm1907, 1.0, %v1915
        %v2036 = vrot.slane %v1811, 4
        %v2037 = vrot.slane %v1812, 4
        %v2038 = vrot.slane %v1813, 4
        %v2039 = vrot.slane %v1814, 4
        %v2040 = vrot.slane %v1815, 4
        %v2041 = vrot.slane %v1816, 4
        %v2042 = vrot.slane %v1817, 4
        %v2043 = vrot.slane %v1818, 4
        %v2044 = vrot.slane %v1819, 4
        %v2045 = vsel %vm1907, %v2036, %v2044
        %v2046 = vrot.slane %v1820, 4
        %v2047 = vsel %vm1907, %v2037, %v2046
        %v2048 = vrot.slane %v1821, 4
        %v2049 = vsel %vm1907, %v2038, %v2048
        %v2050 = vrot.slane %v1822, 4
        %v2051 = vsel %vm1907, %v2039, %v2050
        %v2052 = vrot.slane %v1823, 4
        %v2053 = vsel %vm1907, %v2040, %v2052
        %v2054 = vrot.slane %v1824, 4
        %v2055 = vsel %vm1907, %v2041, %v2054
        %v2056 = vrot.slane %v1825, 4
        %v2057 = vsel %vm1907, %v2042, %v2056
        %v2058 = vrot.slane %v1826, 4
        %v2059 = vsel %vm1907, %v2043, %v2058
        %v2060 = vrot.slane %v1827, 4
        %v2061 = vsel %vm1907, %v2044, %v2060
        %v2062 = vrot.slane %v1828, 4
        %v2063 = vsel %vm1907, %v2046, %v2062
        %v2064 = vrot.slane %v1829, 4
        %v2065 = vsel %vm1907, %v2048, %v2064
        %v2066 = vrot.slane %v1830, 4
        %v2067 = vsel %vm1907, %v2050, %v2066
        %v2068 = vrot.slane %v1831, 4
        %v2069 = vsel %vm1907, %v2052, %v2068
        %v2070 = vrot.slane %v1832, 4
        %v2071 = vsel %vm1907, %v2054, %v2070
        %v2072 = vrot.slane %v1833, 4
        %v2073 = vsel %vm1907, %v2056, %v2072
        %v2074 = vrot.slane %v1834, 4
        %v2075 = vsel %vm1907, %v2058, %v2074
        %v2076 = vrot.slane %v1835, 4
        %v2077 = vsel %vm1907, %v2060, %v2076
        %v2078 = vrot.slane %v1836, 4
        %v2079 = vsel %vm1907, %v2062, %v2078
        %v2080 = vrot.slane %v1837, 4
        %v2081 = vsel %vm1907, %v2064, %v2080
        %v2082 = vrot.slane %v1838, 4
        %v2083 = vsel %vm1907, %v2066, %v2082
        %v2084 = vrot.slane %v1839, 4
        %v2085 = vsel %vm1907, %v2068, %v2084
        %v2086 = vrot.slane %v1840, 4
        %v2087 = vsel %vm1907, %v2070, %v2086
        %v2088 = vrot.slane %v1841, 4
        %v2089 = vsel %vm1907, %v2072, %v2088
        %v2090 = vrot.slane %v1842, 4
        %v2091 = vsel %vm1907, %v2074, %v2090
        %v2124 = vsel %vm1907, 0.0, %v2036
        %v2125 = vsel %vm1907, 0.0, %v2037
        %v2126 = vsel %vm1907, 0.0, %v2038
        %v2127 = vsel %vm1907, 0.0, %v2039
        %v2128 = vsel %vm1907, 0.0, %v2040
        %v2129 = vsel %vm1907, 0.0, %v2041
        %v2130 = vsel %vm1907, 0.0, %v2042
        %v2131 = vsel %vm1907, 0.0, %v2043
        %v2132 = vmul.f32 %v1843, %v2124
        %v2133 = vmul.f32 %v1844, %v2125
        %v2134 = vmul.f32 %v1845, %v2126
        %v2135 = vmul.f32 %v1846, %v2127
        %v2136 = vmul.f32 %v1847, %v2128
        %v2137 = vmul.f32 %v1848, %v2129
        %v2138 = vmul.f32 %v1849, %v2130
        %v2139 = vmul.f32 %v1850, %v2131
        %v2140 = vmul.f32 %v1851, %v2045
        %v2141 = vmul.f32 %v1852, %v2047
        %v2142 = vmul.f32 %v1853, %v2049
        %v2143 = vmul.f32 %v1854, %v2051
        %v2144 = vmul.f32 %v1855, %v2053
        %v2145 = vmul.f32 %v1856, %v2055
        %v2146 = vmul.f32 %v1857, %v2057
        %v2147 = vmul.f32 %v1858, %v2059
        %v2148 = vmul.f32 %v1859, %v2061
        %v2149 = vmul.f32 %v1860, %v2063
        %v2150 = vmul.f32 %v1861, %v2065
        %v2151 = vmul.f32 %v1862, %v2067
        %v2152 = vmul.f32 %v1863, %v2069
        %v2153 = vmul.f32 %v1864, %v2071
        %v2154 = vmul.f32 %v1865, %v2073
        %v2155 = vmul.f32 %v1866, %v2075
        %v2156 = vmul.f32 %v1867, %v2077
        %v2157 = vmul.f32 %v1868, %v2079
        %v2158 = vmul.f32 %v1869, %v2081
        %v2159 = vmul.f32 %v1870, %v2083
        %v2160 = vmul.f32 %v1871, %v2085
        %v2161 = vmul.f32 %v1872, %v2087
        %v2162 = vmul.f32 %v1873, %v2089
        %v2163 = vmul.f32 %v1874, %v2091
        %v2164 = vadd.f32 %v2132, %v1811
        %v2165 = vadd.f32 %v2133, %v1812
        %v2166 = vadd.f32 %v2134, %v1813
        %v2167 = vadd.f32 %v2135, %v1814
        %v2168 = vadd.f32 %v2136, %v1815
        %v2169 = vadd.f32 %v2137, %v1816
        %v2170 = vadd.f32 %v2138, %v1817
        %v2171 = vadd.f32 %v2139, %v1818
        %v2172 = vadd.f32 %v2140, %v1819
        %v2173 = vadd.f32 %v2141, %v1820
        %v2174 = vadd.f32 %v2142, %v1821
        %v2175 = vadd.f32 %v2143, %v1822
        %v2176 = vadd.f32 %v2144, %v1823
        %v2177 = vadd.f32 %v2145, %v1824
        %v2178 = vadd.f32 %v2146, %v1825
        %v2179 = vadd.f32 %v2147, %v1826
        %v2180 = vadd.f32 %v2148, %v1827
        %v2181 = vadd.f32 %v2149, %v1828
        %v2182 = vadd.f32 %v2150, %v1829
        %v2183 = vadd.f32 %v2151, %v1830
        %v2184 = vadd.f32 %v2152, %v1831
        %v2185 = vadd.f32 %v2153, %v1832
        %v2186 = vadd.f32 %v2154, %v1833
        %v2187 = vadd.f32 %v2155, %v1834
        %v2188 = vadd.f32 %v2156, %v1835
        %v2189 = vadd.f32 %v2157, %v1836
        %v2190 = vadd.f32 %v2158, %v1837
        %v2191 = vadd.f32 %v2159, %v1838
        %v2192 = vadd.f32 %v2160, %v1839
        %v2193 = vadd.f32 %v2161, %v1840
        %v2194 = vadd.f32 %v2162, %v1841
        %v2195 = vadd.f32 %v2163, %v1842
        %v2196 = vmul.f32 %v1843, %v1996
        %v2197 = vmul.f32 %v1844, %v1997
        %v2198 = vmul.f32 %v1845, %v1998
        %v2199 = vmul.f32 %v1846, %v1999
        %v2200 = vmul.f32 %v1847, %v2000
        %v2201 = vmul.f32 %v1848, %v2001
        %v2202 = vmul.f32 %v1849, %v2002
        %v2203 = vmul.f32 %v1850, %v2003
        %v2204 = vmul.f32 %v1851, %v1917
        %v2205 = vmul.f32 %v1852, %v1919
        %v2206 = vmul.f32 %v1853, %v1921
        %v2207 = vmul.f32 %v1854, %v1923
        %v2208 = vmul.f32 %v1855, %v1925
        %v2209 = vmul.f32 %v1856, %v1927
        %v2210 = vmul.f32 %v1857, %v1929
        %v2211 = vmul.f32 %v1858, %v1931
        %v2212 = vmul.f32 %v1859, %v1933
        %v2213 = vmul.f32 %v1860, %v1935
        %v2214 = vmul.f32 %v1861, %v1937
        %v2215 = vmul.f32 %v1862, %v1939
        %v2216 = vmul.f32 %v1863, %v1941
        %v2217 = vmul.f32 %v1864, %v1943
        %v2218 = vmul.f32 %v1865, %v1945
        %v2219 = vmul.f32 %v1866, %v1947
        %v2220 = vmul.f32 %v1867, %v1949
        %v2221 = vmul.f32 %v1868, %v1951
        %v2222 = vmul.f32 %v1869, %v1953
        %v2223 = vmul.f32 %v1870, %v1955
        %v2224 = vmul.f32 %v1871, %v1957
        %v2225 = vmul.f32 %v1872, %v1959
        %v2226 = vmul.f32 %v1873, %v1961
        %v2227 = vmul.f32 %v1874, %v1963
        %v2228 = vmul.f32 %v2196, 0.0
        %v2229 = vmul.f32 %v2197, 0.0
        %v2230 = vmul.f32 %v2198, 0.0
        %v2231 = vmul.f32 %v2199, 0.0
        %v2232 = vmul.f32 %v2200, 0.0
        %v2233 = vmul.f32 %v2201, 0.0
        %v2234 = vmul.f32 %v2202, 0.0
        %v2235 = vmul.f32 %v2203, 0.0
        %v2236 = vmul.f32 %v2204, %v2164
        %v2237 = vmul.f32 %v2205, %v2165
        %v2238 = vmul.f32 %v2206, %v2166
        %v2239 = vmul.f32 %v2207, %v2167
        %v2240 = vmul.f32 %v2208, %v2168
        %v2241 = vmul.f32 %v2209, %v2169
        %v2242 = vmul.f32 %v2210, %v2170
        %v2243 = vmul.f32 %v2211, %v2171
        %v2244 = vmul.f32 %v2212, %v2172
        %v2245 = vmul.f32 %v2213, %v2173
        %v2246 = vmul.f32 %v2214, %v2174
        %v2247 = vmul.f32 %v2215, %v2175
        %v2248 = vmul.f32 %v2216, %v2176
        %v2249 = vmul.f32 %v2217, %v2177
        %v2250 = vmul.f32 %v2218, %v2178
        %v2251 = vmul.f32 %v2219, %v2179
        %v2252 = vmul.f32 %v2220, %v2180
        %v2253 = vmul.f32 %v2221, %v2181
        %v2254 = vmul.f32 %v2222, %v2182
        %v2255 = vmul.f32 %v2223, %v2183
        %v2256 = vmul.f32 %v2224, %v2184
        %v2257 = vmul.f32 %v2225, %v2185
        %v2258 = vmul.f32 %v2226, %v2186
        %v2259 = vmul.f32 %v2227, %v2187
        %v2260 = vadd.f32 %v2228, %v2164
        %v2261 = vadd.f32 %v2229, %v2165
        %v2262 = vadd.f32 %v2230, %v2166
        %v2263 = vadd.f32 %v2231, %v2167
        %v2264 = vadd.f32 %v2232, %v2168
        %v2265 = vadd.f32 %v2233, %v2169
        %v2266 = vadd.f32 %v2234, %v2170
        %v2267 = vadd.f32 %v2235, %v2171
        %v2268 = vadd.f32 %v2236, %v2172
        %v2269 = vadd.f32 %v2237, %v2173
        %v2270 = vadd.f32 %v2238, %v2174
        %v2271 = vadd.f32 %v2239, %v2175
        %v2272 = vadd.f32 %v2240, %v2176
        %v2273 = vadd.f32 %v2241, %v2177
        %v2274 = vadd.f32 %v2242, %v2178
        %v2275 = vadd.f32 %v2243, %v2179
        %v2276 = vadd.f32 %v2244, %v2180
        %v2277 = vadd.f32 %v2245, %v2181
        %v2278 = vadd.f32 %v2246, %v2182
        %v2279 = vadd.f32 %v2247, %v2183
        %v2280 = vadd.f32 %v2248, %v2184
        %v2281 = vadd.f32 %v2249, %v2185
        %v2282 = vadd.f32 %v2250, %v2186
        %v2283 = vadd.f32 %v2251, %v2187
        %v2284 = vadd.f32 %v2252, %v2188
        %v2285 = vadd.f32 %v2253, %v2189
        %v2286 = vadd.f32 %v2254, %v2190
        %v2287 = vadd.f32 %v2255, %v2191
        %v2288 = vadd.f32 %v2256, %v2192
        %v2289 = vadd.f32 %v2257, %v2193
        %v2290 = vadd.f32 %v2258, %v2194
        %v2291 = vadd.f32 %v2259, %v2195
        %v2292 = vmul.f32 %v2204, %v2196
        %v2293 = vmul.f32 %v2205, %v2197
        %v2294 = vmul.f32 %v2206, %v2198
        %v2295 = vmul.f32 %v2207, %v2199
        %v2296 = vmul.f32 %v2208, %v2200
        %v2297 = vmul.f32 %v2209, %v2201
        %v2298 = vmul.f32 %v2210, %v2202
        %v2299 = vmul.f32 %v2211, %v2203
        %v2300 = vmul.f32 %v2212, %v2204
        %v2301 = vmul.f32 %v2213, %v2205
        %v2302 = vmul.f32 %v2214, %v2206
        %v2303 = vmul.f32 %v2215, %v2207
        %v2304 = vmul.f32 %v2216, %v2208
        %v2305 = vmul.f32 %v2217, %v2209
        %v2306 = vmul.f32 %v2218, %v2210
        %v2307 = vmul.f32 %v2219, %v2211
        %v2308 = vmul.f32 %v2220, %v2212
        %v2309 = vmul.f32 %v2221, %v2213
        %v2310 = vmul.f32 %v2222, %v2214
        %v2311 = vmul.f32 %v2223, %v2215
        %v2312 = vmul.f32 %v2224, %v2216
        %v2313 = vmul.f32 %v2225, %v2217
        %v2314 = vmul.f32 %v2226, %v2218
        %v2315 = vmul.f32 %v2227, %v2219
        %v2316 = vmul.f32 %v2292, 0.0
        %v2317 = vmul.f32 %v2293, 0.0
        %v2318 = vmul.f32 %v2294, 0.0
        %v2319 = vmul.f32 %v2295, 0.0
        %v2320 = vmul.f32 %v2296, 0.0
        %v2321 = vmul.f32 %v2297, 0.0
        %v2322 = vmul.f32 %v2298, 0.0
        %v2323 = vmul.f32 %v2299, 0.0
        %v2324 = vmul.f32 %v2300, %v2260
        %v2325 = vmul.f32 %v2301, %v2261
        %v2326 = vmul.f32 %v2302, %v2262
        %v2327 = vmul.f32 %v2303, %v2263
        %v2328 = vmul.f32 %v2304, %v2264
        %v2329 = vmul.f32 %v2305, %v2265
        %v2330 = vmul.f32 %v2306, %v2266
        %v2331 = vmul.f32 %v2307, %v2267
        %v2332 = vmul.f32 %v2308, %v2268
        %v2333 = vmul.f32 %v2309, %v2269
        %v2334 = vmul.f32 %v2310, %v2270
        %v2335 = vmul.f32 %v2311, %v2271
        %v2336 = vmul.f32 %v2312, %v2272
        %v2337 = vmul.f32 %v2313, %v2273
        %v2338 = vmul.f32 %v2314, %v2274
        %v2339 = vmul.f32 %v2315, %v2275
        %v2340 = vadd.f32 %v2228, %v2260
        %v2341 = vadd.f32 %v2229, %v2261
        %v2342 = vadd.f32 %v2230, %v2262
        %v2343 = vadd.f32 %v2231, %v2263
        %v2344 = vadd.f32 %v2232, %v2264
        %v2345 = vadd.f32 %v2233, %v2265
        %v2346 = vadd.f32 %v2234, %v2266
        %v2347 = vadd.f32 %v2235, %v2267
        %v2348 = vadd.f32 %v2316, %v2268
        %v2349 = vadd.f32 %v2317, %v2269
        %v2350 = vadd.f32 %v2318, %v2270
        %v2351 = vadd.f32 %v2319, %v2271
        %v2352 = vadd.f32 %v2320, %v2272
        %v2353 = vadd.f32 %v2321, %v2273
        %v2354 = vadd.f32 %v2322, %v2274
        %v2355 = vadd.f32 %v2323, %v2275
        %v2356 = vadd.f32 %v2324, %v2276
        %v2357 = vadd.f32 %v2325, %v2277
        %v2358 = vadd.f32 %v2326, %v2278
        %v2359 = vadd.f32 %v2327, %v2279
        %v2360 = vadd.f32 %v2328, %v2280
        %v2361 = vadd.f32 %v2329, %v2281
        %v2362 = vadd.f32 %v2330, %v2282
        %v2363 = vadd.f32 %v2331, %v2283
        %v2364 = vadd.f32 %v2332, %v2284
        %v2365 = vadd.f32 %v2333, %v2285
        %v2366 = vadd.f32 %v2334, %v2286
        %v2367 = vadd.f32 %v2335, %v2287
        %v2368 = vadd.f32 %v2336, %v2288
        %v2369 = vadd.f32 %v2337, %v2289
        %v2370 = vadd.f32 %v2338, %v2290
        %v2371 = vadd.f32 %v2339, %v2291
        %v2372 = vmul.f32 %v2300, %v2196
        %v2373 = vmul.f32 %v2301, %v2197
        %v2374 = vmul.f32 %v2302, %v2198
        %v2375 = vmul.f32 %v2303, %v2199
        %v2376 = vmul.f32 %v2304, %v2200
        %v2377 = vmul.f32 %v2305, %v2201
        %v2378 = vmul.f32 %v2306, %v2202
        %v2379 = vmul.f32 %v2307, %v2203
        %v2380 = vmul.f32 %v2308, %v2292
        %v2381 = vmul.f32 %v2309, %v2293
        %v2382 = vmul.f32 %v2310, %v2294
        %v2383 = vmul.f32 %v2311, %v2295
        %v2384 = vmul.f32 %v2312, %v2296
        %v2385 = vmul.f32 %v2313, %v2297
        %v2386 = vmul.f32 %v2314, %v2298
        %v2387 = vmul.f32 %v2315, %v2299
        %v2388 = vlaneseq
        %v2389 = vshrl.u32 %v2388, 7
        %v2390 = vsub.s32 7, %v2389
        %v2391 = vrot.slane %v498, %v2390
        %v2392 = vlaneseq
        %v2393 = vshrl.u32 %v2392, 7
        %v2394 = vsub.s32 7, %v2393
        %v2395 = vrot.slane %v499, %v2394
        %v2396 = vlaneseq
        %v2397 = vshrl.u32 %v2396, 7
        %v2398 = vsub.s32 7, %v2397
        %v2399 = vrot.slane %v500, %v2398
        %v2400 = vlaneseq
        %v2401 = vshrl.u32 %v2400, 7
        %v2402 = vsub.s32 7, %v2401
        %v2403 = vrot.slane %v501, %v2402
        %v2404 = vlaneseq
        %v2405 = vshrl.u32 %v2404, 7
        %v2406 = vsub.s32 7, %v2405
        %v2407 = vrot.slane %v502, %v2406
        %v2408 = vlaneseq
        %v2409 = vshrl.u32 %v2408, 7
        %v2410 = vsub.s32 7, %v2409
        %v2411 = vrot.slane %v503, %v2410
        %v2412 = vlaneseq
        %v2413 = vshrl.u32 %v2412, 7
        %v2414 = vsub.s32 7, %v2413
        %v2415 = vrot.slane %v504, %v2414
        %v2416 = vlaneseq
        %v2417 = vshrl.u32 %v2416, 7
        %v2418 = vsub.s32 7, %v2417
        %v2419 = vrot.slane %v505, %v2418
        %v2420 = vmul.f32 %v2196, %v2391
        %v2421 = vmul.f32 %v2197, %v2395
        %v2422 = vmul.f32 %v2198, %v2399
        %v2423 = vmul.f32 %v2199, %v2403
        %v2424 = vmul.f32 %v2200, %v2407
        %v2425 = vmul.f32 %v2201, %v2411
        %v2426 = vmul.f32 %v2202, %v2415
        %v2427 = vmul.f32 %v2203, %v2419
        %v2428 = vmul.f32 %v2292, %v2391
        %v2429 = vmul.f32 %v2293, %v2395
        %v2430 = vmul.f32 %v2294, %v2399
        %v2431 = vmul.f32 %v2295, %v2403
        %v2432 = vmul.f32 %v2296, %v2407
        %v2433 = vmul.f32 %v2297, %v2411
        %v2434 = vmul.f32 %v2298, %v2415
        %v2435 = vmul.f32 %v2299, %v2419
        %v2436 = vmul.f32 %v2372, %v2391
        %v2437 = vmul.f32 %v2373, %v2395
        %v2438 = vmul.f32 %v2374, %v2399
        %v2439 = vmul.f32 %v2375, %v2403
        %v2440 = vmul.f32 %v2376, %v2407
        %v2441 = vmul.f32 %v2377, %v2411
        %v2442 = vmul.f32 %v2378, %v2415
        %v2443 = vmul.f32 %v2379, %v2419
        %v2444 = vmul.f32 %v2380, %v2391
        %v2445 = vmul.f32 %v2381, %v2395
        %v2446 = vmul.f32 %v2382, %v2399
        %v2447 = vmul.f32 %v2383, %v2403
        %v2448 = vmul.f32 %v2384, %v2407
        %v2449 = vmul.f32 %v2385, %v2411
        %v2450 = vmul.f32 %v2386, %v2415
        %v2451 = vmul.f32 %v2387, %v2419
        %v2452 = vadd.f32 %v2340, %v2420
        %v2453 = vadd.f32 %v2341, %v2421
        %v2454 = vadd.f32 %v2342, %v2422
        %v2455 = vadd.f32 %v2343, %v2423
        %v2456 = vadd.f32 %v2344, %v2424
        %v2457 = vadd.f32 %v2345, %v2425
        %v2458 = vadd.f32 %v2346, %v2426
        %v2459 = vadd.f32 %v2347, %v2427
        %v2460 = vadd.f32 %v2348, %v2428
        %v2461 = vadd.f32 %v2349, %v2429
        %v2462 = vadd.f32 %v2350, %v2430
        %v2463 = vadd.f32 %v2351, %v2431
        %v2464 = vadd.f32 %v2352, %v2432
        %v2465 = vadd.f32 %v2353, %v2433
        %v2466 = vadd.f32 %v2354, %v2434
        %v2467 = vadd.f32 %v2355, %v2435
        %v2468 = vadd.f32 %v2356, %v2436
        %v2469 = vadd.f32 %v2357, %v2437
        %v2470 = vadd.f32 %v2358, %v2438
        %v2471 = vadd.f32 %v2359, %v2439
        %v2472 = vadd.f32 %v2360, %v2440
        %v2473 = vadd.f32 %v2361, %v2441
        %v2474 = vadd.f32 %v2362, %v2442
        %v2475 = vadd.f32 %v2363, %v2443
        %v2476 = vadd.f32 %v2364, %v2444
        %v2477 = vadd.f32 %v2365, %v2445
        %v2478 = vadd.f32 %v2366, %v2446
        %v2479 = vadd.f32 %v2367, %v2447
        %v2480 = vadd.f32 %v2368, %v2448
        %v2481 = vadd.f32 %v2369, %v2449
        %v2482 = vadd.f32 %v2370, %v2450
        %v2483 = vadd.f32 %v2371, %v2451
        %v2484 = vld [vmem:[%s3] sm:$0x1]
        %v2486 = vlaneseq
        %v2487 = vshrl.u32 %v2486, 7
        %v2488 = vsub.s32 0, %v2487
        %v2489 = vrot.slane %v2484, %v2488
        %v2491 = vmul.f32 %v2489, %v523
        %v2492 = vmul.f32 %v2489, %v524
        %v2493 = vmul.f32 %v2489, %v525
        %v2494 = vmul.f32 %v2489, %v526
        %2495 = vset.pattern.permute.xlu0 16
        %2496 = vperm.xlu0 %2495, %v518
        %v2497 = vpop.permute.xlu0 %2496
        %2499 = vset.pattern.permute.xlu0 16
        %2500 = vperm.xlu0 %2499, %v519
        %v2501 = vpop.permute.xlu0 %2500
        %2503 = vset.pattern.permute.xlu0 16
        %2504 = vperm.xlu0 %2503, %v520
        %v2505 = vpop.permute.xlu0 %2504
        %2507 = vset.pattern.permute.xlu0 16
        %2508 = vperm.xlu0 %2507, %v521
        %v2509 = vpop.permute.xlu0 %2508
        %v2511 = vmul.f32 %v2497, %v2452
        %v2512 = vmul.f32 %v2501, %v2460
        %v2513 = vmul.f32 %v2505, %v2468
        %v2514 = vmul.f32 %v2509, %v2476
        %v2515 = vadd.f32 %v2491, %v2511
        %v2516 = vadd.f32 %v2492, %v2512
        %v2517 = vadd.f32 %v2493, %v2513
        %v2518 = vadd.f32 %v2494, %v2514
        %2519 = vset.pattern.permute.xlu0 17
        %2520 = vperm.xlu0 %2519, %v518
        %v2521 = vpop.permute.xlu0 %2520
        %2523 = vset.pattern.permute.xlu0 17
        %2524 = vperm.xlu0 %2523, %v519
        %v2525 = vpop.permute.xlu0 %2524
        %2527 = vset.pattern.permute.xlu0 17
        %2528 = vperm.xlu0 %2527, %v520
        %v2529 = vpop.permute.xlu0 %2528
        %2531 = vset.pattern.permute.xlu0 17
        %2532 = vperm.xlu0 %2531, %v521
        %v2533 = vpop.permute.xlu0 %2532
        %v2535 = vmul.f32 %v2521, %v2452
        %v2536 = vmul.f32 %v2525, %v2460
        %v2537 = vmul.f32 %v2529, %v2468
        %v2538 = vmul.f32 %v2533, %v2476
        %2543 = vrot.lane.b32.xlu0 %v2535, 64
        %v2544 = vpop.permute.xlu0 %2543
        %2545 = vrot.lane.b32.xlu0 %v2536, 64
        %v2546 = vpop.permute.xlu0 %2545
        %2547 = vrot.lane.b32.xlu0 %v2537, 64
        %v2548 = vpop.permute.xlu0 %2547
        %2549 = vrot.lane.b32.xlu0 %v2538, 64
        %v2550 = vpop.permute.xlu0 %2549
        %v2555 = vadd.f32 %v2515, %v2544
        %v2556 = vadd.f32 %v2516, %v2546
        %v2557 = vadd.f32 %v2517, %v2548
        %v2558 = vadd.f32 %v2518, %v2550
        %2559 = vset.pattern.permute.xlu0 18
        %2560 = vperm.xlu0 %2559, %v518
        %v2561 = vpop.permute.xlu0 %2560
        %2563 = vset.pattern.permute.xlu0 18
        %2564 = vperm.xlu0 %2563, %v519
        %v2565 = vpop.permute.xlu0 %2564
        %2567 = vset.pattern.permute.xlu0 18
        %2568 = vperm.xlu0 %2567, %v520
        %v2569 = vpop.permute.xlu0 %2568
        %2571 = vset.pattern.permute.xlu0 18
        %2572 = vperm.xlu0 %2571, %v521
        %v2573 = vpop.permute.xlu0 %2572
        %v2575 = vmul.f32 %v2561, %v2453
        %v2576 = vmul.f32 %v2565, %v2461
        %v2577 = vmul.f32 %v2569, %v2469
        %v2578 = vmul.f32 %v2573, %v2477
        %v2579 = vadd.f32 %v2555, %v2575
        %v2580 = vadd.f32 %v2556, %v2576
        %v2581 = vadd.f32 %v2557, %v2577
        %v2582 = vadd.f32 %v2558, %v2578
        %2583 = vset.pattern.permute.xlu0 19
        %2584 = vperm.xlu0 %2583, %v518
        %v2585 = vpop.permute.xlu0 %2584
        %2587 = vset.pattern.permute.xlu0 19
        %2588 = vperm.xlu0 %2587, %v519
        %v2589 = vpop.permute.xlu0 %2588
        %2591 = vset.pattern.permute.xlu0 19
        %2592 = vperm.xlu0 %2591, %v520
        %v2593 = vpop.permute.xlu0 %2592
        %2595 = vset.pattern.permute.xlu0 19
        %2596 = vperm.xlu0 %2595, %v521
        %v2597 = vpop.permute.xlu0 %2596
        %v2599 = vmul.f32 %v2585, %v2453
        %v2600 = vmul.f32 %v2589, %v2461
        %v2601 = vmul.f32 %v2593, %v2469
        %v2602 = vmul.f32 %v2597, %v2477
        %2607 = vrot.lane.b32.xlu0 %v2599, 64
        %v2608 = vpop.permute.xlu0 %2607
        %2609 = vrot.lane.b32.xlu0 %v2600, 64
        %v2610 = vpop.permute.xlu0 %2609
        %2611 = vrot.lane.b32.xlu0 %v2601, 64
        %v2612 = vpop.permute.xlu0 %2611
        %2613 = vrot.lane.b32.xlu0 %v2602, 64
        %v2614 = vpop.permute.xlu0 %2613
        %v2619 = vadd.f32 %v2579, %v2608
        %v2620 = vadd.f32 %v2580, %v2610
        %v2621 = vadd.f32 %v2581, %v2612
        %v2622 = vadd.f32 %v2582, %v2614
        %2623 = vset.pattern.permute.xlu0 20
        %2624 = vperm.xlu0 %2623, %v518
        %v2625 = vpop.permute.xlu0 %2624
        %2627 = vset.pattern.permute.xlu0 20
        %2628 = vperm.xlu0 %2627, %v519
        %v2629 = vpop.permute.xlu0 %2628
        %2631 = vset.pattern.permute.xlu0 20
        %2632 = vperm.xlu0 %2631, %v520
        %v2633 = vpop.permute.xlu0 %2632
        %2635 = vset.pattern.permute.xlu0 20
        %2636 = vperm.xlu0 %2635, %v521
        %v2637 = vpop.permute.xlu0 %2636
        %v2639 = vmul.f32 %v2625, %v2454
        %v2640 = vmul.f32 %v2629, %v2462
        %v2641 = vmul.f32 %v2633, %v2470
        %v2642 = vmul.f32 %v2637, %v2478
        %v2643 = vadd.f32 %v2619, %v2639
        %v2644 = vadd.f32 %v2620, %v2640
        %v2645 = vadd.f32 %v2621, %v2641
        %v2646 = vadd.f32 %v2622, %v2642
        %2647 = vset.pattern.permute.xlu0 21
        %2648 = vperm.xlu0 %2647, %v518
        %v2649 = vpop.permute.xlu0 %2648
        %2651 = vset.pattern.permute.xlu0 21
        %2652 = vperm.xlu0 %2651, %v519
        %v2653 = vpop.permute.xlu0 %2652
        %2655 = vset.pattern.permute.xlu0 21
        %2656 = vperm.xlu0 %2655, %v520
        %v2657 = vpop.permute.xlu0 %2656
        %2659 = vset.pattern.permute.xlu0 21
        %2660 = vperm.xlu0 %2659, %v521
        %v2661 = vpop.permute.xlu0 %2660
        %v2663 = vmul.f32 %v2649, %v2454
        %v2664 = vmul.f32 %v2653, %v2462
        %v2665 = vmul.f32 %v2657, %v2470
        %v2666 = vmul.f32 %v2661, %v2478
        %2671 = vrot.lane.b32.xlu0 %v2663, 64
        %v2672 = vpop.permute.xlu0 %2671
        %2673 = vrot.lane.b32.xlu0 %v2664, 64
        %v2674 = vpop.permute.xlu0 %2673
        %2675 = vrot.lane.b32.xlu0 %v2665, 64
        %v2676 = vpop.permute.xlu0 %2675
        %2677 = vrot.lane.b32.xlu0 %v2666, 64
        %v2678 = vpop.permute.xlu0 %2677
        %v2683 = vadd.f32 %v2643, %v2672
        %v2684 = vadd.f32 %v2644, %v2674
        %v2685 = vadd.f32 %v2645, %v2676
        %v2686 = vadd.f32 %v2646, %v2678
        %2687 = vset.pattern.permute.xlu0 22
        %2688 = vperm.xlu0 %2687, %v518
        %v2689 = vpop.permute.xlu0 %2688
        %2691 = vset.pattern.permute.xlu0 22
        %2692 = vperm.xlu0 %2691, %v519
        %v2693 = vpop.permute.xlu0 %2692
        %2695 = vset.pattern.permute.xlu0 22
        %2696 = vperm.xlu0 %2695, %v520
        %v2697 = vpop.permute.xlu0 %2696
        %2699 = vset.pattern.permute.xlu0 22
        %2700 = vperm.xlu0 %2699, %v521
        %v2701 = vpop.permute.xlu0 %2700
        %v2703 = vmul.f32 %v2689, %v2455
        %v2704 = vmul.f32 %v2693, %v2463
        %v2705 = vmul.f32 %v2697, %v2471
        %v2706 = vmul.f32 %v2701, %v2479
        %v2707 = vadd.f32 %v2683, %v2703
        %v2708 = vadd.f32 %v2684, %v2704
        %v2709 = vadd.f32 %v2685, %v2705
        %v2710 = vadd.f32 %v2686, %v2706
        %2711 = vset.pattern.permute.xlu0 23
        %2712 = vperm.xlu0 %2711, %v518
        %v2713 = vpop.permute.xlu0 %2712
        %2715 = vset.pattern.permute.xlu0 23
        %2716 = vperm.xlu0 %2715, %v519
        %v2717 = vpop.permute.xlu0 %2716
        %2719 = vset.pattern.permute.xlu0 23
        %2720 = vperm.xlu0 %2719, %v520
        %v2721 = vpop.permute.xlu0 %2720
        %2723 = vset.pattern.permute.xlu0 23
        %2724 = vperm.xlu0 %2723, %v521
        %v2725 = vpop.permute.xlu0 %2724
        %v2727 = vmul.f32 %v2713, %v2455
        %v2728 = vmul.f32 %v2717, %v2463
        %v2729 = vmul.f32 %v2721, %v2471
        %v2730 = vmul.f32 %v2725, %v2479
        %2735 = vrot.lane.b32.xlu0 %v2727, 64
        %v2736 = vpop.permute.xlu0 %2735
        %2737 = vrot.lane.b32.xlu0 %v2728, 64
        %v2738 = vpop.permute.xlu0 %2737
        %2739 = vrot.lane.b32.xlu0 %v2729, 64
        %v2740 = vpop.permute.xlu0 %2739
        %2741 = vrot.lane.b32.xlu0 %v2730, 64
        %v2742 = vpop.permute.xlu0 %2741
        %v2747 = vadd.f32 %v2707, %v2736
        %v2748 = vadd.f32 %v2708, %v2738
        %v2749 = vadd.f32 %v2709, %v2740
        %v2750 = vadd.f32 %v2710, %v2742
        %2751 = vset.pattern.permute.xlu0 24
        %2752 = vperm.xlu0 %2751, %v518
        %v2753 = vpop.permute.xlu0 %2752
        %2755 = vset.pattern.permute.xlu0 24
        %2756 = vperm.xlu0 %2755, %v519
        %v2757 = vpop.permute.xlu0 %2756
        %2759 = vset.pattern.permute.xlu0 24
        %2760 = vperm.xlu0 %2759, %v520
        %v2761 = vpop.permute.xlu0 %2760
        %2763 = vset.pattern.permute.xlu0 24
        %2764 = vperm.xlu0 %2763, %v521
        %v2765 = vpop.permute.xlu0 %2764
        %v2767 = vmul.f32 %v2753, %v2456
        %v2768 = vmul.f32 %v2757, %v2464
        %v2769 = vmul.f32 %v2761, %v2472
        %v2770 = vmul.f32 %v2765, %v2480
        %v2771 = vadd.f32 %v2747, %v2767
        %v2772 = vadd.f32 %v2748, %v2768
        %v2773 = vadd.f32 %v2749, %v2769
        %v2774 = vadd.f32 %v2750, %v2770
        %2775 = vset.pattern.permute.xlu0 25
        %2776 = vperm.xlu0 %2775, %v518
        %v2777 = vpop.permute.xlu0 %2776
        %2779 = vset.pattern.permute.xlu0 25
        %2780 = vperm.xlu0 %2779, %v519
        %v2781 = vpop.permute.xlu0 %2780
        %2783 = vset.pattern.permute.xlu0 25
        %2784 = vperm.xlu0 %2783, %v520
        %v2785 = vpop.permute.xlu0 %2784
        %2787 = vset.pattern.permute.xlu0 25
        %2788 = vperm.xlu0 %2787, %v521
        %v2789 = vpop.permute.xlu0 %2788
        %v2791 = vmul.f32 %v2777, %v2456
        %v2792 = vmul.f32 %v2781, %v2464
        %v2793 = vmul.f32 %v2785, %v2472
        %v2794 = vmul.f32 %v2789, %v2480
        %2799 = vrot.lane.b32.xlu0 %v2791, 64
        %v2800 = vpop.permute.xlu0 %2799
        %2801 = vrot.lane.b32.xlu0 %v2792, 64
        %v2802 = vpop.permute.xlu0 %2801
        %2803 = vrot.lane.b32.xlu0 %v2793, 64
        %v2804 = vpop.permute.xlu0 %2803
        %2805 = vrot.lane.b32.xlu0 %v2794, 64
        %v2806 = vpop.permute.xlu0 %2805
        %v2811 = vadd.f32 %v2771, %v2800
        %v2812 = vadd.f32 %v2772, %v2802
        %v2813 = vadd.f32 %v2773, %v2804
        %v2814 = vadd.f32 %v2774, %v2806
        %2815 = vset.pattern.permute.xlu0 26
        %2816 = vperm.xlu0 %2815, %v518
        %v2817 = vpop.permute.xlu0 %2816
        %2819 = vset.pattern.permute.xlu0 26
        %2820 = vperm.xlu0 %2819, %v519
        %v2821 = vpop.permute.xlu0 %2820
        %2823 = vset.pattern.permute.xlu0 26
        %2824 = vperm.xlu0 %2823, %v520
        %v2825 = vpop.permute.xlu0 %2824
        %2827 = vset.pattern.permute.xlu0 26
        %2828 = vperm.xlu0 %2827, %v521
        %v2829 = vpop.permute.xlu0 %2828
        %v2831 = vmul.f32 %v2817, %v2457
        %v2832 = vmul.f32 %v2821, %v2465
        %v2833 = vmul.f32 %v2825, %v2473
        %v2834 = vmul.f32 %v2829, %v2481
        %v2835 = vadd.f32 %v2811, %v2831
        %v2836 = vadd.f32 %v2812, %v2832
        %v2837 = vadd.f32 %v2813, %v2833
        %v2838 = vadd.f32 %v2814, %v2834
        %2839 = vset.pattern.permute.xlu0 27
        %2840 = vperm.xlu0 %2839, %v518
        %v2841 = vpop.permute.xlu0 %2840
        %2843 = vset.pattern.permute.xlu0 27
        %2844 = vperm.xlu0 %2843, %v519
        %v2845 = vpop.permute.xlu0 %2844
        %2847 = vset.pattern.permute.xlu0 27
        %2848 = vperm.xlu0 %2847, %v520
        %v2849 = vpop.permute.xlu0 %2848
        %2851 = vset.pattern.permute.xlu0 27
        %2852 = vperm.xlu0 %2851, %v521
        %v2853 = vpop.permute.xlu0 %2852
        %v2855 = vmul.f32 %v2841, %v2457
        %v2856 = vmul.f32 %v2845, %v2465
        %v2857 = vmul.f32 %v2849, %v2473
        %v2858 = vmul.f32 %v2853, %v2481
        %2863 = vrot.lane.b32.xlu0 %v2855, 64
        %v2864 = vpop.permute.xlu0 %2863
        %2865 = vrot.lane.b32.xlu0 %v2856, 64
        %v2866 = vpop.permute.xlu0 %2865
        %2867 = vrot.lane.b32.xlu0 %v2857, 64
        %v2868 = vpop.permute.xlu0 %2867
        %2869 = vrot.lane.b32.xlu0 %v2858, 64
        %v2870 = vpop.permute.xlu0 %2869
        %v2875 = vadd.f32 %v2835, %v2864
        %v2876 = vadd.f32 %v2836, %v2866
        %v2877 = vadd.f32 %v2837, %v2868
        %v2878 = vadd.f32 %v2838, %v2870
        %2879 = vset.pattern.permute.xlu0 28
        %2880 = vperm.xlu0 %2879, %v518
        %v2881 = vpop.permute.xlu0 %2880
        %2883 = vset.pattern.permute.xlu0 28
        %2884 = vperm.xlu0 %2883, %v519
        %v2885 = vpop.permute.xlu0 %2884
        %2887 = vset.pattern.permute.xlu0 28
        %2888 = vperm.xlu0 %2887, %v520
        %v2889 = vpop.permute.xlu0 %2888
        %2891 = vset.pattern.permute.xlu0 28
        %2892 = vperm.xlu0 %2891, %v521
        %v2893 = vpop.permute.xlu0 %2892
        %v2895 = vmul.f32 %v2881, %v2458
        %v2896 = vmul.f32 %v2885, %v2466
        %v2897 = vmul.f32 %v2889, %v2474
        %v2898 = vmul.f32 %v2893, %v2482
        %v2899 = vadd.f32 %v2875, %v2895
        %v2900 = vadd.f32 %v2876, %v2896
        %v2901 = vadd.f32 %v2877, %v2897
        %v2902 = vadd.f32 %v2878, %v2898
        %2903 = vset.pattern.permute.xlu0 29
        %2904 = vperm.xlu0 %2903, %v518
        %v2905 = vpop.permute.xlu0 %2904
        %2907 = vset.pattern.permute.xlu0 29
        %2908 = vperm.xlu0 %2907, %v519
        %v2909 = vpop.permute.xlu0 %2908
        %2911 = vset.pattern.permute.xlu0 29
        %2912 = vperm.xlu0 %2911, %v520
        %v2913 = vpop.permute.xlu0 %2912
        %2915 = vset.pattern.permute.xlu0 29
        %2916 = vperm.xlu0 %2915, %v521
        %v2917 = vpop.permute.xlu0 %2916
        %v2919 = vmul.f32 %v2905, %v2458
        %v2920 = vmul.f32 %v2909, %v2466
        %v2921 = vmul.f32 %v2913, %v2474
        %v2922 = vmul.f32 %v2917, %v2482
        %2927 = vrot.lane.b32.xlu0 %v2919, 64
        %v2928 = vpop.permute.xlu0 %2927
        %2929 = vrot.lane.b32.xlu0 %v2920, 64
        %v2930 = vpop.permute.xlu0 %2929
        %2931 = vrot.lane.b32.xlu0 %v2921, 64
        %v2932 = vpop.permute.xlu0 %2931
        %2933 = vrot.lane.b32.xlu0 %v2922, 64
        %v2934 = vpop.permute.xlu0 %2933
        %v2939 = vadd.f32 %v2899, %v2928
        %v2940 = vadd.f32 %v2900, %v2930
        %v2941 = vadd.f32 %v2901, %v2932
        %v2942 = vadd.f32 %v2902, %v2934
        %2943 = vset.pattern.permute.xlu0 30
        %2944 = vperm.xlu0 %2943, %v518
        %v2945 = vpop.permute.xlu0 %2944
        %2947 = vset.pattern.permute.xlu0 30
        %2948 = vperm.xlu0 %2947, %v519
        %v2949 = vpop.permute.xlu0 %2948
        %2951 = vset.pattern.permute.xlu0 30
        %2952 = vperm.xlu0 %2951, %v520
        %v2953 = vpop.permute.xlu0 %2952
        %2955 = vset.pattern.permute.xlu0 30
        %2956 = vperm.xlu0 %2955, %v521
        %v2957 = vpop.permute.xlu0 %2956
        %v2959 = vmul.f32 %v2945, %v2459
        %v2960 = vmul.f32 %v2949, %v2467
        %v2961 = vmul.f32 %v2953, %v2475
        %v2962 = vmul.f32 %v2957, %v2483
        %v2963 = vadd.f32 %v2939, %v2959
        %v2964 = vadd.f32 %v2940, %v2960
        %v2965 = vadd.f32 %v2941, %v2961
        %v2966 = vadd.f32 %v2942, %v2962
        %2967 = vset.pattern.permute.xlu0 31
        %2968 = vperm.xlu0 %2967, %v518
        %v2969 = vpop.permute.xlu0 %2968
        %2971 = vset.pattern.permute.xlu0 31
        %2972 = vperm.xlu0 %2971, %v519
        %v2973 = vpop.permute.xlu0 %2972
        %2975 = vset.pattern.permute.xlu0 31
        %2976 = vperm.xlu0 %2975, %v520
        %v2977 = vpop.permute.xlu0 %2976
        %2979 = vset.pattern.permute.xlu0 31
        %2980 = vperm.xlu0 %2979, %v521
        %v2981 = vpop.permute.xlu0 %2980
        %v2983 = vmul.f32 %v2969, %v2459
        %v2984 = vmul.f32 %v2973, %v2467
        %v2985 = vmul.f32 %v2977, %v2475
        %v2986 = vmul.f32 %v2981, %v2483
        %2991 = vrot.lane.b32.xlu0 %v2983, 64
        %v2992 = vpop.permute.xlu0 %2991
        %2993 = vrot.lane.b32.xlu0 %v2984, 64
        %v2994 = vpop.permute.xlu0 %2993
        %2995 = vrot.lane.b32.xlu0 %v2985, 64
        %v2996 = vpop.permute.xlu0 %2995
        %2997 = vrot.lane.b32.xlu0 %v2986, 64
        %v2998 = vpop.permute.xlu0 %2997
        %v3003 = vadd.f32 %v2963, %v2992
        %v3004 = vadd.f32 %v2964, %v2994
        %v3005 = vadd.f32 %v2965, %v2996
        %v3006 = vadd.f32 %v2966, %v2998
        %s3007 = scalar_lea.vmem %s224, %s506
        %3008 = vst.msk [vmem:[%s3007] sm:$0xff] %vm270, %v3003
        %3009 = vst.msk [vmem:[%s3007 + $0x8] sm:$0xff] %vm270, %v3004
        %3010 = vst.msk [vmem:[%s3007 + $0x10] sm:$0xff] %vm270, %v3005
        %3011 = vst.msk [vmem:[%s3007 + $0x18] sm:$0xff] %vm270, %v3006
      $region45: #{_lambda_.8} parent=39 // loop_footer
        %s497 = sadd.s32 1, %s493
      $region46: #{_lambda_.8} parent=39 // loop_footer_branch
        %492 = sbr.rel target = $region42
      $region47: #{_lambda_.8} parent=39 // loop_exit
        _
      %p3012 = scmp.lt.s32.totalorder %s16, 1
      %s3013 = scalar_select %p3012, %s16, 1
      %s3014 = smul.addr %s3013, 8
      %s3015 = smul.addr %s3014, 8
      %s3016 = scalar_lea.vmem %s5, %s3015
      // Predicated region
      $region48: #{_lambda_.8} parent=39 // pred_check
        %p3017 = pneg %p144
      $region49: #{_lambda_.8} parent=39 // pred_check_branch
        %3019 = sbr.rel (%p3017) target = $region51
      $region50: #{_lambda_.8} parent=39 // pred_region
        _
      $region51: #{_lambda_.8} parent=39 // pred_fallthru
        _
    $region40: #{_lambda_.8} parent=5 // pred_fallthru
      _
    %p3020 = scmp.le.s32.totalorder 2, %s11
    // Predicated region
    $region52: #{_lambda_.8} parent=5 // pred_check
      %p3021 = pneg %p3020
    $region53: #{_lambda_.8} parent=5 // pred_check_branch
      %3023 = sbr.rel (%p3021) target = $region55
    $region54: #{_lambda_.8} parent=5 // pred_region
      %s3024 = ssub.s32 %s11, 2
      // Predicated region
      $region56: #{_lambda_.8} parent=54 // pred_check
        %p3025 = pneg %p150
      $region57: #{_lambda_.8} parent=54 // pred_check_branch
        %3027 = sbr.rel (%p3025) target = $region59
      $region58: #{_lambda_.8} parent=54 // pred_region
        %p3028 = scmp.lt.s32.totalorder %s17, 1
        %s3029 = scalar_select %p3028, %s17, 1
        %s3030 = smul.addr %s3029, 8
        %s3031 = smul.addr %s3030, 8
        %s3032 = scalar_lea.vmem %s5, %s3031
      $region59: #{_lambda_.8} parent=54 // pred_fallthru
        _
    $region55: #{_lambda_.8} parent=5 // pred_fallthru
      _
  $region6: #{_lambda_.8} parent=0 // loop_footer
    %s15 = sadd.s32 1, %s11
  $region7: #{_lambda_.8} parent=0 // loop_footer_branch
    %10 = sbr.rel target = $region3
  $region8: #{_lambda_.8} parent=0 // loop_exit
    _

// kernel: _lambda_.10
$region0: #{_lambda_.10}
  #allocation0 [shape = 'u32[]', space=smem, size = 0x4, offset = 0x4, fixed_abs, tag = 'smem constant byte address 0x4 - core index']
  #allocation1 [shape = 'u32[144,128]{1,0:T(1,128)}', space=vmem, size = 0x12000, scoped, tag = 'internal scratch']
  %s0 = inlined_call_operand.vmem [shape: bf16[2,108,32], index: 0, kind: input, shape index: {}]
  %s1 = inlined_call_operand.vmem [shape: bf16[3,96,10], index: 1, kind: input, shape index: {}]
  %s2 = inlined_call_operand.vmem [shape: f32[1,10], index: 2, kind: input, shape index: {}]
  %s3 = inlined_call_operand.vmem [shape: bf16[2,64,10], index: 3, kind: output, shape index: {}]
  %s4 = sld [smem:[#allocation0]]
  $region45: #{_lambda_.10} parent=0
    _
  %s6 = ssub.s32 1, %s4
  %s7 = scalar_select 0, %s6, %s4
  loop: start=0, step=1, limit=4
  $region2: #{_lambda_.10} parent=0 // loop_pre_header
    _
  $region3: #{_lambda_.10} parent=0 // loop_header
    %s9 = sphi 0, %s13
    %p10 = scmp.ge.s32.totalorder %s9, 4
    %s19 = sphi 0, %s21
    %s22 = sphi 0, %s19
    %s23 = sphi 0, %s22
    %s39 = sphi 0, %s23
    %s43 = sphi 0, %s43
    %s45 = sphi 0, %s43
    %s46 = sphi 0, %s45
    %s60 = sphi 0, %s46
    %s64 = sphi 0, %s64
    %s66 = sphi 0, %s64
    %s67 = sphi 0, %s66
    %s81 = sphi 0, %s67
    %s87 = sphi 0, %s89
    %s90 = sphi 0, %s87
    %s91 = sphi 0, %s90
    %s107 = sphi 0, %s91
  $region4: #{_lambda_.10} parent=0 // loop_header_branch
    %12 = sbr.rel (%p10) target = $region8
  $region5: #{_lambda_.10} parent=0 // loop_body
    %s14 = ssub.s32 %s9, 1
    %s15 = ssub.s32 %s9, 2
    %s16 = sadd.s32 %s9, 1
    %s17 = ssub.s32 %s9, %s16
    %p18 = scmp.eq.s32.totalorder %s17, 0
    %s20 = sadd.s32 %s19, 1
    %s21 = scalar_select %p18, %s19, %s20
    %p24 = pneg %p18
    %p25 = scmp.eq.s32.totalorder %s9, 1
    %p26 = por %p24, %p25
    %p27 = scmp.ne.s32.totalorder %s19, %s22
    %p28 = scmp.eq.s32.totalorder %s9, 0
    %p29 = por %p27, %p28
    %p30 = scmp.ne.s32.totalorder %s19, %s22
    %p31 = scmp.eq.s32.totalorder %s14, 1
    %p32 = por %p30, %p31
    %p33 = scmp.ne.s32.totalorder %s22, %s23
    %p34 = scmp.eq.s32.totalorder %s14, 0
    %p35 = por %p33, %p34
    %p36 = scmp.ne.s32.totalorder %s22, %s23
    %p37 = scmp.eq.s32.totalorder %s15, 1
    %p38 = por %p36, %p37
    %p40 = scmp.ne.s32.totalorder %s23, %s39
    %p41 = scmp.eq.s32.totalorder %s15, 0
    %p42 = por %p40, %p41
    %s44 = sadd.s32 %s43, 1
    %p47 = scmp.eq.s32.totalorder %s9, 1
    %p48 = scmp.ne.s32.totalorder %s43, %s45
    %p49 = scmp.eq.s32.totalorder %s9, 0
    %p50 = por %p48, %p49
    %p51 = scmp.ne.s32.totalorder %s43, %s45
    %p52 = scmp.eq.s32.totalorder %s14, 1
    %p53 = por %p51, %p52
    %p54 = scmp.ne.s32.totalorder %s45, %s46
    %p55 = scmp.eq.s32.totalorder %s14, 0
    %p56 = por %p54, %p55
    %p57 = scmp.ne.s32.totalorder %s45, %s46
    %p58 = scmp.eq.s32.totalorder %s15, 1
    %p59 = por %p57, %p58
    %p61 = scmp.ne.s32.totalorder %s46, %s60
    %p62 = scmp.eq.s32.totalorder %s15, 0
    %p63 = por %p61, %p62
    %s65 = sadd.s32 %s64, 1
    %p68 = scmp.eq.s32.totalorder %s9, 1
    %p69 = scmp.ne.s32.totalorder %s64, %s66
    %p70 = scmp.eq.s32.totalorder %s9, 0
    %p71 = por %p69, %p70
    %p72 = scmp.ne.s32.totalorder %s64, %s66
    %p73 = scmp.eq.s32.totalorder %s14, 1
    %p74 = por %p72, %p73
    %p75 = scmp.ne.s32.totalorder %s66, %s67
    %p76 = scmp.eq.s32.totalorder %s14, 0
    %p77 = por %p75, %p76
    %p78 = scmp.ne.s32.totalorder %s66, %s67
    %p79 = scmp.eq.s32.totalorder %s15, 1
    %p80 = por %p78, %p79
    %p82 = scmp.ne.s32.totalorder %s67, %s81
    %p83 = scmp.eq.s32.totalorder %s15, 0
    %p84 = por %p82, %p83
    %s85 = ssub.s32 %s9, %s16
    %p86 = scmp.eq.s32.totalorder %s85, 0
    %s88 = sadd.s32 %s87, 1
    %s89 = scalar_select %p86, %s87, %s88
    %p92 = pneg %p86
    %p93 = scmp.eq.s32.totalorder %s9, 1
    %p94 = por %p92, %p93
    %p95 = scmp.ne.s32.totalorder %s87, %s90
    %p96 = scmp.eq.s32.totalorder %s9, 0
    %p97 = por %p95, %p96
    %p98 = scmp.ne.s32.totalorder %s87, %s90
    %p99 = scmp.eq.s32.totalorder %s14, 1
    %p100 = por %p98, %p99
    %p101 = scmp.ne.s32.totalorder %s90, %s91
    %p102 = scmp.eq.s32.totalorder %s14, 0
    %p103 = por %p101, %p102
    %p104 = scmp.ne.s32.totalorder %s90, %s91
    %p105 = scmp.eq.s32.totalorder %s15, 1
    %p106 = por %p104, %p105
    %p108 = scmp.ne.s32.totalorder %s91, %s107
    %p109 = scmp.eq.s32.totalorder %s15, 0
    %p110 = por %p108, %p109
    %p111 = scmp.le.s32.totalorder 1, %s9
    %p112 = scmp.lt.s32.totalorder %s9, 3
    %p113 = pnand %p111, %p112
    %p114 = pneg %p113
    // Predicated region
    $region9: #{_lambda_.10} parent=5 // pred_check
      _
    $region10: #{_lambda_.10} parent=5 // pred_check_branch
      %116 = sbr.rel (%p113) target = $region12
    $region11: #{_lambda_.10} parent=5 // pred_region
      %s117 = ssub.s32 %s9, 1
      // Predicated region
      $region13: #{_lambda_.10} parent=11 // pred_check
        %p118 = pneg %p56
      $region14: #{_lambda_.10} parent=11 // pred_check_branch
        %120 = sbr.rel (%p118) target = $region16
      $region15: #{_lambda_.10} parent=11 // pred_region
        _
      $region16: #{_lambda_.10} parent=11 // pred_fallthru
        _
      // Predicated region
      $region17: #{_lambda_.10} parent=11 // pred_check
        %p121 = pneg %p77
      $region18: #{_lambda_.10} parent=11 // pred_check_branch
        %123 = sbr.rel (%p121) target = $region20
      $region19: #{_lambda_.10} parent=11 // pred_region
        _
      $region20: #{_lambda_.10} parent=11 // pred_fallthru
        _
    $region12: #{_lambda_.10} parent=5 // pred_fallthru
      _
    %p124 = scmp.lt.s32.totalorder %s9, 2
    // Predicated region
    $region21: #{_lambda_.10} parent=5 // pred_check
      %p125 = pneg %p124
    $region22: #{_lambda_.10} parent=5 // pred_check_branch
      %127 = sbr.rel (%p125) target = $region24
    $region23: #{_lambda_.10} parent=5 // pred_region
      // Predicated region
      $region25: #{_lambda_.10} parent=23 // pred_check
        %p128 = pneg %p29
      $region26: #{_lambda_.10} parent=23 // pred_check_branch
        %130 = sbr.rel (%p128) target = $region28
      $region27: #{_lambda_.10} parent=23 // pred_region
        %p131 = scmp.lt.s32.totalorder %s9, 1
        %s132 = scalar_select %p131, %s9, 1
        %s133 = smul.addr %s132, 14
        %s134 = smul.addr %s133, 4
        %s135 = scalar_lea.vmem %s0, %s134
      $region28: #{_lambda_.10} parent=23 // pred_fallthru
        _
    $region24: #{_lambda_.10} parent=5 // pred_fallthru
      _
    %p136 = scmp.le.s32.totalorder 1, %s9
    %p137 = scmp.lt.s32.totalorder %s9, 3
    %p138 = pnand %p136, %p137
    %p139 = pneg %p138
    // Predicated region
    $region29: #{_lambda_.10} parent=5 // pred_check
      _
    $region30: #{_lambda_.10} parent=5 // pred_check_branch
      %141 = sbr.rel (%p138) target = $region32
    $region31: #{_lambda_.10} parent=5 // pred_region
      %s142 = ssub.s32 %s9, 1
      %p143 = scmp.lt.s32.totalorder %s14, 1
      %s144 = scalar_select %p143, %s14, 1
      %s145 = smul.addr %s144, 14
      %s146 = smul.addr %s145, 4
      %s147 = scalar_lea.vmem %s0, %s146
      %p148 = pneg %p35
      %p149 = pneg %p32
      %p150 = pneg %p56
      %p151 = pneg %p53
      %p152 = pneg %p77
      %p153 = pneg %p74
      %p154 = pneg %p103
      %p155 = pneg %p100
      %p156 = scmp.lt.s32.totalorder %s14, 1
      %s157 = scalar_select %p156, %s14, 1
      %s158 = smul.addr %s157, 8
      %s159 = smul.addr %s158, 4
      %s160 = scalar_lea.vmem %s3, %s159
      %p161 = scmp.lt.s32.totalorder %s14, 1
      %s162 = scalar_select %p161, %s14, 1
      %s163 = smul.addr %s162, 14
      %s164 = smul.addr %s163, 4
      %s165 = scalar_lea.vmem %s0, %s164
      %p166 = scmp.lt.s32.totalorder %s14, 1
      %s167 = scalar_select %p166, %s14, 1
      %s168 = smul.addr %s167, 8
      %s169 = smul.addr %s168, 4
      %s170 = scalar_lea.vmem %s3, %s169
      %v172 = vld [vmem:[%s165] sm:$0xf]
      %v173 = vld [vmem:[%s165 + $0x4] sm:$0xf]
      %v174 = vld [vmem:[%s165 + $0x8] sm:$0xf]
      %v175 = vld [vmem:[%s165 + $0xc] sm:$0xf]
      %v176 = vld [vmem:[%s165 + $0x10] sm:$0xf]
      %v177 = vld [vmem:[%s165 + $0x14] sm:$0xf]
      %v178 = vld [vmem:[%s165 + $0x18] sm:$0xf]
      %v179 = vld [vmem:[%s165 + $0x1c] sm:$0xf]
      %v180 = vld [vmem:[%s165 + $0x20] sm:$0xf]
      %v181 = vld [vmem:[%s165 + $0x24] sm:$0xf]
      %v182 = vld [vmem:[%s165 + $0x28] sm:$0x1]
      %v183 = vld [vmem:[%s165] sm:$0xe]
      %v194 = vunpack.c.l.b16 %v172
      %v195 = vunpack.c.l.b16 %v173
      %v196 = vunpack.c.l.b16 %v174
      %v197 = vunpack.c.l.b16 %v175
      %v198 = vunpack.c.l.b16 %v176
      %v199 = vunpack.c.l.b16 %v177
      %v200 = vunpack.c.l.b16 %v178
      %v201 = vunpack.c.l.b16 %v179
      %v202 = vunpack.c.l.b16 %v180
      %v203 = vunpack.c.l.b16 %v181
      %v204 = vpack.c.b16 %v195, %v194
      %v205 = vpack.c.b16 %v197, %v196
      %v206 = vpack.c.b16 %v199, %v198
      %v207 = vpack.c.b16 %v201, %v200
      %v208 = vpack.c.b16 %v203, %v202
      %v210 = vunpack.c.l.b16 %v182
      %v211 = vpack.c.b16 %v210, %v210
      %vm212 = vsmask.f32 7424
      %v214 = vshrl.u32 %v204, 16
      %v216 = vshll.u32 %v204, 16
      %v218 = vrot.slane %v216, 1
      %v219 = vor.u32 %v214, %v218
      %v221 = vshll.u32 %v205, 16
      %v223 = vrot.slane %v221, 1
      %v224 = vsel %vm212, %v219, %v223
      %v225 = vshrl.u32 %v205, 16
      %v227 = vor.u32 %v225, %v223
      %v229 = vshll.u32 %v206, 16
      %v231 = vrot.slane %v229, 1
      %v232 = vsel %vm212, %v227, %v231
      %v233 = vshrl.u32 %v206, 16
      %v235 = vor.u32 %v233, %v231
      %v237 = vshll.u32 %v207, 16
      %v239 = vrot.slane %v237, 1
      %v240 = vsel %vm212, %v235, %v239
      %v241 = vshrl.u32 %v207, 16
      %v243 = vor.u32 %v241, %v239
      %v245 = vshll.u32 %v208, 16
      %v247 = vrot.slane %v245, 1
      %v248 = vsel %vm212, %v243, %v247
      %v249 = vshrl.u32 %v208, 16
      %v251 = vor.u32 %v249, %v247
      %v253 = vshll.u32 %v211, 16
      %v255 = vrot.slane %v253, 1
      %v256 = vsel %vm212, %v251, %v255
      %257 = vrot.lane.b32.xlu0 %v224, 32
      %v258 = vpop.permute.xlu0 %257
      %259 = vrot.lane.b32.xlu0 %v232, 32
      %v260 = vpop.permute.xlu0 %259
      %261 = vrot.lane.b32.xlu0 %v240, 32
      %v262 = vpop.permute.xlu0 %261
      %263 = vrot.lane.b32.xlu0 %v248, 32
      %v264 = vpop.permute.xlu0 %263
      %265 = vrot.lane.b32.xlu0 %v256, 32
      %v266 = vpop.permute.xlu0 %265
      %v268 = vunpack.c.l.b16 %v183
      %v269 = vpack.c.b16 %v195, %v268
      %vm270 = vcmask 1046528
      %v271 = vrot.slane %v269, 1
      %v272 = vrot.slane %v205, 1
      %v273 = vsel %vm270, %v271, %v272
      %v274 = vrot.slane %v206, 1
      %v275 = vsel %vm270, %v272, %v274
      %v276 = vrot.slane %v207, 1
      %v277 = vsel %vm270, %v274, %v276
      %v278 = vrot.slane %v208, 1
      %v279 = vsel %vm270, %v276, %v278
      %v280 = vrot.slane %v211, 1
      %v281 = vsel %vm270, %v278, %v280
      %282 = vrot.lane.b32.xlu0 %v273, 64
      %v283 = vpop.permute.xlu0 %282
      %284 = vrot.lane.b32.xlu0 %v275, 64
      %v285 = vpop.permute.xlu0 %284
      %286 = vrot.lane.b32.xlu0 %v277, 64
      %v287 = vpop.permute.xlu0 %286
      %288 = vrot.lane.b32.xlu0 %v279, 64
      %v289 = vpop.permute.xlu0 %288
      %290 = vrot.lane.b32.xlu0 %v281, 64
      %v291 = vpop.permute.xlu0 %290
      %vm292 = vcmask 261120
      %v294 = vsel %vm292, %v204, %v258
      %v296 = vsel %vm292, %v205, %v260
      %v298 = vsel %vm292, %v206, %v262
      %v300 = vsel %vm292, %v207, %v264
      %v302 = vsel %vm292, %v208, %v266
      %vm303 = vcmask 523264
      %v305 = vsel %vm303, %v294, %v283
      %v307 = vsel %vm303, %v296, %v285
      %v309 = vsel %vm303, %v298, %v287
      %v311 = vsel %vm303, %v300, %v289
      %v313 = vsel %vm303, %v302, %v291
      %v314 = vld [vmem:[%s1] sm:$0xf]
      %v315 = vld [vmem:[%s1 + $0x4] sm:$0xf]
      %v316 = vld [vmem:[%s1 + $0x8] sm:$0xf]
      %v317 = vld [vmem:[%s1 + $0xc] sm:$0xf]
      %v318 = vld [vmem:[%s1 + $0x10] sm:$0xf]
      %v319 = vld [vmem:[%s1 + $0x14] sm:$0xf]
      %v320 = vld [vmem:[%s1 + $0x18] sm:$0xf]
      %v321 = vld [vmem:[%s1 + $0x1c] sm:$0xf]
      %v322 = vld [vmem:[%s1 + $0x20] sm:$0xf]
      %v323 = vld [vmem:[%s1 + $0x24] sm:$0xf]
      %v324 = vld [vmem:[%s1 + $0x28] sm:$0xf]
      %v325 = vld [vmem:[%s1 + $0x2c] sm:$0xf]
      %v326 = vld [vmem:[%s165 + $0x4] sm:$0xe]
      %v327 = vld [vmem:[%s165 + $0x28] sm:$0xf]
      %v328 = vld [vmem:[%s165 + $0x2c] sm:$0x1]
      %v329 = vld [vmem:[%s165 + $0x2c] sm:$0x3]
      %v330 = vld [vmem:[%s165 + $0x4] sm:$0xc]
      %v334 = vunpack.c.l.b16 %v326
      %v335 = vunpack.c.l.b16 %v327
      %v336 = vunpack.c.l.b16 %v328
      %v337 = vpack.c.b16 %v196, %v334
      %v338 = vpack.c.b16 %v198, %v197
      %v339 = vpack.c.b16 %v200, %v199
      %v340 = vpack.c.b16 %v202, %v201
      %v341 = vpack.c.b16 %v335, %v203
      %v342 = vpack.c.b16 %v336, %v336
      %v344 = vunpack.c.l.b16 %v329
      %v345 = vpack.c.b16 %v344, %v344
      %v347 = vshrl.u32 %v337, 16
      %v349 = vshll.u32 %v337, 16
      %v351 = vrot.slane %v349, 1
      %v352 = vor.u32 %v347, %v351
      %v354 = vshll.u32 %v338, 16
      %v356 = vrot.slane %v354, 1
      %v357 = vsel %vm212, %v352, %v356
      %v358 = vshrl.u32 %v338, 16
      %v360 = vor.u32 %v358, %v356
      %v362 = vshll.u32 %v339, 16
      %v364 = vrot.slane %v362, 1
      %v365 = vsel %vm212, %v360, %v364
      %v366 = vshrl.u32 %v339, 16
      %v368 = vor.u32 %v366, %v364
      %v370 = vshll.u32 %v340, 16
      %v372 = vrot.slane %v370, 1
      %v373 = vsel %vm212, %v368, %v372
      %v374 = vshrl.u32 %v340, 16
      %v376 = vor.u32 %v374, %v372
      %v378 = vshll.u32 %v341, 16
      %v380 = vrot.slane %v378, 1
      %v381 = vsel %vm212, %v376, %v380
      %v382 = vshrl.u32 %v341, 16
      %v384 = vor.u32 %v382, %v380
      %v386 = vshll.u32 %v345, 16
      %v388 = vrot.slane %v386, 1
      %v389 = vsel %vm212, %v384, %v388
      %v390 = vshrl.u32 %v345, 16
      %v392 = vor.u32 %v390, %v388
      %393 = vrot.lane.b32.xlu0 %v357, 32
      %v394 = vpop.permute.xlu0 %393
      %395 = vrot.lane.b32.xlu0 %v365, 32
      %v396 = vpop.permute.xlu0 %395
      %397 = vrot.lane.b32.xlu0 %v373, 32
      %v398 = vpop.permute.xlu0 %397
      %399 = vrot.lane.b32.xlu0 %v381, 32
      %v400 = vpop.permute.xlu0 %399
      %401 = vrot.lane.b32.xlu0 %v389, 32
      %v402 = vpop.permute.xlu0 %401
      %403 = vrot.lane.b32.xlu0 %v392, 32
      %v404 = vpop.permute.xlu0 %403
      %v406 = vunpack.c.l.b16 %v330
      %v407 = vpack.c.b16 %v196, %v406
      %v408 = vrot.slane %v407, 1
      %v409 = vrot.slane %v338, 1
      %v410 = vsel %vm270, %v408, %v409
      %v411 = vrot.slane %v339, 1
      %v412 = vsel %vm270, %v409, %v411
      %v413 = vrot.slane %v340, 1
      %v414 = vsel %vm270, %v411, %v413
      %v415 = vrot.slane %v341, 1
      %v416 = vsel %vm270, %v413, %v415
      %v417 = vrot.slane %v345, 1
      %v418 = vsel %vm270, %v415, %v417
      %419 = vrot.lane.b32.xlu0 %v410, 64
      %v420 = vpop.permute.xlu0 %419
      %421 = vrot.lane.b32.xlu0 %v412, 64
      %v422 = vpop.permute.xlu0 %421
      %423 = vrot.lane.b32.xlu0 %v414, 64
      %v424 = vpop.permute.xlu0 %423
      %425 = vrot.lane.b32.xlu0 %v416, 64
      %v426 = vpop.permute.xlu0 %425
      %427 = vrot.lane.b32.xlu0 %v418, 64
      %v428 = vpop.permute.xlu0 %427
      %429 = vrot.lane.b32.xlu0 %v417, 64
      %v430 = vpop.permute.xlu0 %429
      %v432 = vsel %vm292, %v337, %v394
      %v434 = vsel %vm292, %v338, %v396
      %v436 = vsel %vm292, %v339, %v398
      %v438 = vsel %vm292, %v340, %v400
      %v440 = vsel %vm292, %v341, %v402
      %v443 = vsel %vm292, %v342, %v404
      %v445 = vsel %vm303, %v432, %v420
      %v447 = vsel %vm303, %v434, %v422
      %v449 = vsel %vm303, %v436, %v424
      %v451 = vsel %vm303, %v438, %v426
      %v453 = vsel %vm303, %v440, %v428
      %v455 = vsel %vm303, %v443, %v430
      %s456 = scalar_lea.vmem %s1, 48
      %v457 = vld [vmem:[%s456] sm:$0xf]
      %v458 = vld [vmem:[%s456 + $0x4] sm:$0xf]
      %v459 = vld [vmem:[%s456 + $0x8] sm:$0xf]
      %v460 = vld [vmem:[%s456 + $0xc] sm:$0xf]
      %v461 = vld [vmem:[%s456 + $0x10] sm:$0xf]
      %v462 = vld [vmem:[%s456 + $0x14] sm:$0xf]
      %v463 = vld [vmem:[%s456 + $0x18] sm:$0xf]
      %v464 = vld [vmem:[%s456 + $0x1c] sm:$0xf]
      %v465 = vld [vmem:[%s456 + $0x20] sm:$0xf]
      %v466 = vld [vmem:[%s456 + $0x24] sm:$0xf]
      %v467 = vld [vmem:[%s456 + $0x28] sm:$0xf]
      %v468 = vld [vmem:[%s456 + $0x2c] sm:$0xf]
      %v475 = vrot.slane %v445, 1
      %v476 = vrot.slane %v447, 1
      %v477 = vsel %vm270, %v475, %v476
      %v478 = vrot.slane %v449, 1
      %v479 = vsel %vm270, %v476, %v478
      %v480 = vrot.slane %v451, 1
      %v481 = vsel %vm270, %v478, %v480
      %v482 = vrot.slane %v453, 1
      %v483 = vsel %vm270, %v480, %v482
      %v484 = vrot.slane %v455, 1
      %v485 = vsel %vm270, %v482, %v484
      %v498 = vunpack.c.l.b16 %v457
      %v499 = vunpack.c.l.b16 %v458
      %v500 = vunpack.c.l.b16 %v459
      %v501 = vunpack.c.l.b16 %v460
      %v502 = vunpack.c.l.b16 %v461
      %v503 = vunpack.c.l.b16 %v462
      %v504 = vunpack.c.l.b16 %v463
      %v505 = vunpack.c.l.b16 %v464
      %v506 = vunpack.c.l.b16 %v465
      %v507 = vunpack.c.l.b16 %v466
      %v508 = vunpack.c.l.b16 %v467
      %v509 = vunpack.c.l.b16 %v468
      %v510 = vpack.c.b16 %v499, %v498
      %v511 = vpack.c.b16 %v501, %v500
      %v512 = vpack.c.b16 %v503, %v502
      %v513 = vpack.c.b16 %v505, %v504
      %v514 = vpack.c.b16 %v507, %v506
      %v515 = vpack.c.b16 %v509, %v508
      %vm522 = vcmask 785408
      %v524 = vsel %vm522, %v477, 0
      %v527 = vsel %vm522, %v479, 0
      %v530 = vsel %vm522, %v481, 0
      %v533 = vsel %vm522, %v483, 0
      %v536 = vsel %vm522, %v485, 0
      %538 = vmatprep.subr.bf16.mxu0 0
      %539 = vmatpush1.bf16.msra.mxu0 %v510
      %540 = vmatprep.subr.bf16.mxu0 0
      %541 = vmatpush1.bf16.msra.mxu0 %v511
      %542 = vmatprep.subr.bf16.mxu0 0
      %543 = vmatpush1.bf16.msra.mxu0 %v512
      %544 = vmatprep.subr.bf16.mxu0 0
      %545 = vmatpush1.bf16.msra.mxu0 %v513
      %546 = vmatprep.subr.bf16.mxu0 0
      %547 = vmatpush1.bf16.msra.mxu0 %v514
      %548 = vmatprep.subr.bf16.mxu0 0
      %549 = vmatpush1.bf16.msra.mxu0 %v515
      %550 = vmatprep.subr.bf16.mxu0 0
      %551 = vmatpush1.bf16.msra.mxu0 0
      %552 = vmatprep.subr.bf16.mxu0 0
      %553 = vmatpush1.bf16.msra.mxu0 0
      %554 = vmatprep.subr.bf16.mxu0 0
      %555 = vmatpush1.bf16.msra.mxu0 0
      %556 = vmatprep.subr.bf16.mxu0 0
      %557 = vmatpush1.bf16.msra.mxu0 0
      %558 = vmatprep.subr.bf16.mxu0 0
      %559 = vmatpush1.bf16.msra.mxu0 0
      %560 = vmatprep.subr.bf16.mxu0 0
      %561 = vmatpush1.bf16.msra.mxu0 0
      %562 = vmatprep.subr.bf16.mxu0 0
      %563 = vmatpush1.bf16.msra.mxu0 0
      %564 = vmatprep.subr.bf16.mxu0 0
      %565 = vmatpush1.bf16.msra.mxu0 0
      %566 = vmatprep.subr.bf16.mxu0 0
      %567 = vmatpush1.bf16.msra.mxu0 0
      %568 = vmatprep.subr.bf16.mxu0 0
      %569 = vmatpush1.bf16.msra.mxu0 0
      %570 = vmatprep.mubr.bf16.mxu0 0
      %571 = vmatmul.mubr.bf16.gmra.mrb[0].mxu0 %v524
      %v572 = vpop.f32.mrb[0].mxu0
      %v573 = vadd.f32 0.0, %v572
      %v574 = vpop.f32.mrb[0].mxu0
      %v575 = vpop.f32.mrb[0].mxu0
      %v576 = vadd.f32 0.0, %v575
      %v577 = vpop.f32.mrb[0].mxu0
      %578 = vmatprep.mubr.bf16.mxu0 0
      %579 = vmatmul.mubr.bf16.gmra.mrb[0].mxu0 %v527
      %v580 = vpop.f32.mrb[0].mxu0
      %v581 = vadd.f32 0.0, %v580
      %v582 = vpop.f32.mrb[0].mxu0
      %v583 = vpop.f32.mrb[0].mxu0
      %v584 = vadd.f32 0.0, %v583
      %v585 = vpop.f32.mrb[0].mxu0
      %586 = vmatprep.mubr.bf16.mxu0 0
      %587 = vmatmul.mubr.bf16.gmra.mrb[0].mxu0 %v530
      %v588 = vpop.f32.mrb[0].mxu0
      %v589 = vadd.f32 0.0, %v588
      %v590 = vpop.f32.mrb[0].mxu0
      %v591 = vpop.f32.mrb[0].mxu0
      %v592 = vadd.f32 0.0, %v591
      %v593 = vpop.f32.mrb[0].mxu0
      %594 = vmatprep.mubr.bf16.mxu0 0
      %595 = vmatmul.mubr.bf16.gmra.mrb[0].mxu0 %v533
      %v596 = vpop.f32.mrb[0].mxu0
      %v597 = vadd.f32 0.0, %v596
      %v598 = vpop.f32.mrb[0].mxu0
      %v599 = vpop.f32.mrb[0].mxu0
      %v600 = vadd.f32 0.0, %v599
      %v601 = vpop.f32.mrb[0].mxu0
      %602 = vmatprep.mubr.bf16.mxu0 0
      %603 = vmatmul.mubr.bf16.gmra.mrb[0].mxu0 %v536
      %v604 = vpop.f32.mrb[0].mxu0
      %v605 = vadd.f32 0.0, %v604
      %v606 = vpop.f32.mrb[0].mxu0
      %v607 = vpop.f32.mrb[0].mxu0
      %v608 = vadd.f32 0.0, %v607
      %v609 = vpop.f32.mrb[0].mxu0
      %610 = vdwg.mxu0
      %v623 = vunpack.c.l.b16 %v314
      %v624 = vunpack.c.l.b16 %v315
      %v625 = vunpack.c.l.b16 %v316
      %v626 = vunpack.c.l.b16 %v317
      %v627 = vunpack.c.l.b16 %v318
      %v628 = vunpack.c.l.b16 %v319
      %v629 = vunpack.c.l.b16 %v320
      %v630 = vunpack.c.l.b16 %v321
      %v631 = vunpack.c.l.b16 %v322
      %v632 = vunpack.c.l.b16 %v323
      %v633 = vunpack.c.l.b16 %v324
      %v634 = vunpack.c.l.b16 %v325
      %v635 = vpack.c.b16 %v624, %v623
      %v636 = vpack.c.b16 %v626, %v625
      %v637 = vpack.c.b16 %v628, %v627
      %v638 = vpack.c.b16 %v630, %v629
      %v639 = vpack.c.b16 %v632, %v631
      %v640 = vpack.c.b16 %v634, %v633
      %v647 = vsel %vm522, %v305, 0
      %v649 = vsel %vm522, %v307, 0
      %v651 = vsel %vm522, %v309, 0
      %v653 = vsel %vm522, %v311, 0
      %v655 = vsel %vm522, %v313, 0
      %657 = vmatprep.subr.bf16.mxu0 0
      %658 = vmatpush1.bf16.msra.mxu0 %v635
      %659 = vmatprep.subr.bf16.mxu0 0
      %660 = vmatpush1.bf16.msra.mxu0 %v636
      %661 = vmatprep.subr.bf16.mxu0 0
      %662 = vmatpush1.bf16.msra.mxu0 %v637
      %663 = vmatprep.subr.bf16.mxu0 0
      %664 = vmatpush1.bf16.msra.mxu0 %v638
      %665 = vmatprep.subr.bf16.mxu0 0
      %666 = vmatpush1.bf16.msra.mxu0 %v639
      %667 = vmatprep.subr.bf16.mxu0 0
      %668 = vmatpush1.bf16.msra.mxu0 %v640
      %669 = vmatprep.subr.bf16.mxu0 0
      %670 = vmatpush1.bf16.msra.mxu0 0
      %671 = vmatprep.subr.bf16.mxu0 0
      %672 = vmatpush1.bf16.msra.mxu0 0
      %673 = vmatprep.subr.bf16.mxu0 0
      %674 = vmatpush1.bf16.msra.mxu0 0
      %675 = vmatprep.subr.bf16.mxu0 0
      %676 = vmatpush1.bf16.msra.mxu0 0
      %677 = vmatprep.subr.bf16.mxu0 0
      %678 = vmatpush1.bf16.msra.mxu0 0
      %679 = vmatprep.subr.bf16.mxu0 0
      %680 = vmatpush1.bf16.msra.mxu0 0
      %681 = vmatprep.subr.bf16.mxu0 0
      %682 = vmatpush1.bf16.msra.mxu0 0
      %683 = vmatprep.subr.bf16.mxu0 0
      %684 = vmatpush1.bf16.msra.mxu0 0
      %685 = vmatprep.subr.bf16.mxu0 0
      %686 = vmatpush1.bf16.msra.mxu0 0
      %687 = vmatprep.subr.bf16.mxu0 0
      %688 = vmatpush1.bf16.msra.mxu0 0
      %689 = vmatprep.mubr.bf16.mxu0 0
      %690 = vmatmul.mubr.bf16.gmra.mrb[0].mxu0 %v647
      %v691 = vpop.f32.mrb[0].mxu0
      %v692 = vadd.f32 %v573, %v691
      %v693 = vpop.f32.mrb[0].mxu0
      %v694 = vpop.f32.mrb[0].mxu0
      %v695 = vadd.f32 %v576, %v694
      %v696 = vpop.f32.mrb[0].mxu0
      %697 = vmatprep.mubr.bf16.mxu0 0
      %698 = vmatmul.mubr.bf16.gmra.mrb[0].mxu0 %v649
      %v699 = vpop.f32.mrb[0].mxu0
      %v700 = vadd.f32 %v581, %v699
      %v701 = vpop.f32.mrb[0].mxu0
      %v702 = vpop.f32.mrb[0].mxu0
      %v703 = vadd.f32 %v584, %v702
      %v704 = vpop.f32.mrb[0].mxu0
      %705 = vmatprep.mubr.bf16.mxu0 0
      %706 = vmatmul.mubr.bf16.gmra.mrb[0].mxu0 %v651
      %v707 = vpop.f32.mrb[0].mxu0
      %v708 = vadd.f32 %v589, %v707
      %v709 = vpop.f32.mrb[0].mxu0
      %v710 = vpop.f32.mrb[0].mxu0
      %v711 = vadd.f32 %v592, %v710
      %v712 = vpop.f32.mrb[0].mxu0
      %713 = vmatprep.mubr.bf16.mxu0 0
      %714 = vmatmul.mubr.bf16.gmra.mrb[0].mxu0 %v653
      %v715 = vpop.f32.mrb[0].mxu0
      %v716 = vadd.f32 %v597, %v715
      %v717 = vpop.f32.mrb[0].mxu0
      %v718 = vpop.f32.mrb[0].mxu0
      %v719 = vadd.f32 %v600, %v718
      %v720 = vpop.f32.mrb[0].mxu0
      %721 = vmatprep.mubr.bf16.mxu0 0
      %722 = vmatmul.mubr.bf16.gmra.mrb[0].mxu0 %v655
      %v723 = vpop.f32.mrb[0].mxu0
      %v724 = vadd.f32 %v605, %v723
      %v725 = vpop.f32.mrb[0].mxu0
      %v726 = vpop.f32.mrb[0].mxu0
      %v727 = vadd.f32 %v608, %v726
      %v728 = vpop.f32.mrb[0].mxu0
      %729 = vdwg.mxu0
      %v730 = vld [vmem:[%s165 + $0x8] sm:$0xc]
      %v731 = vld [vmem:[%s165 + $0xc] sm:$0xf]
      %v732 = vld [vmem:[%s165 + $0x10] sm:$0xf]
      %v733 = vld [vmem:[%s165 + $0x14] sm:$0xf]
      %v734 = vld [vmem:[%s165 + $0x18] sm:$0xf]
      %v735 = vld [vmem:[%s165 + $0x1c] sm:$0xf]
      %v736 = vld [vmem:[%s165 + $0x20] sm:$0xf]
      %v737 = vld [vmem:[%s165 + $0x24] sm:$0xf]
      %v738 = vld [vmem:[%s165 + $0x28] sm:$0xf]
      %v739 = vld [vmem:[%s165 + $0x2c] sm:$0xf]
      %v740 = vld [vmem:[%s165 + $0x30] sm:$0x3]
      %v741 = vld [vmem:[%s165 + $0x30] sm:$0x7]
      %v742 = vld [vmem:[%s165 + $0x8] sm:$0x8]
      %v754 = vunpack.c.l.b16 %v730
      %v755 = vunpack.c.l.b16 %v731
      %v756 = vunpack.c.l.b16 %v732
      %v757 = vunpack.c.l.b16 %v733
      %v758 = vunpack.c.l.b16 %v734
      %v759 = vunpack.c.l.b16 %v735
      %v760 = vunpack.c.l.b16 %v736
      %v761 = vunpack.c.l.b16 %v737
      %v762 = vunpack.c.l.b16 %v738
      %v763 = vunpack.c.l.b16 %v739
      %v764 = vunpack.c.l.b16 %v740
      %v765 = vpack.c.b16 %v755, %v754
      %v766 = vpack.c.b16 %v757, %v756
      %v767 = vpack.c.b16 %v759, %v758
      %v768 = vpack.c.b16 %v761, %v760
      %v769 = vpack.c.b16 %v763, %v762
      %v770 = vpack.c.b16 %v764, %v764
      %v772 = vunpack.c.l.b16 %v741
      %v773 = vpack.c.b16 %v772, %v772
      %v775 = vshrl.u32 %v765, 16
      %v777 = vshll.u32 %v765, 16
      %v779 = vrot.slane %v777, 1
      %v780 = vor.u32 %v775, %v779
      %v782 = vshll.u32 %v766, 16
      %v784 = vrot.slane %v782, 1
      %v785 = vsel %vm212, %v780, %v784
      %v786 = vshrl.u32 %v766, 16
      %v788 = vor.u32 %v786, %v784
      %v790 = vshll.u32 %v767, 16
      %v792 = vrot.slane %v790, 1
      %v793 = vsel %vm212, %v788, %v792
      %v794 = vshrl.u32 %v767, 16
      %v796 = vor.u32 %v794, %v792
      %v798 = vshll.u32 %v768, 16
      %v800 = vrot.slane %v798, 1
      %v801 = vsel %vm212, %v796, %v800
      %v802 = vshrl.u32 %v768, 16
      %v804 = vor.u32 %v802, %v800
      %v806 = vshll.u32 %v769, 16
      %v808 = vrot.slane %v806, 1
      %v809 = vsel %vm212, %v804, %v808
      %v810 = vshrl.u32 %v769, 16
      %v812 = vor.u32 %v810, %v808
      %v814 = vshll.u32 %v773, 16
      %v816 = vrot.slane %v814, 1
      %v817 = vsel %vm212, %v812, %v816
      %v818 = vshrl.u32 %v773, 16
      %v820 = vor.u32 %v818, %v816
      %821 = vrot.lane.b32.xlu0 %v785, 32
      %v822 = vpop.permute.xlu0 %821
      %823 = vrot.lane.b32.xlu0 %v793, 32
      %v824 = vpop.permute.xlu0 %823
      %825 = vrot.lane.b32.xlu0 %v801, 32
      %v826 = vpop.permute.xlu0 %825
      %827 = vrot.lane.b32.xlu0 %v809, 32
      %v828 = vpop.permute.xlu0 %827
      %829 = vrot.lane.b32.xlu0 %v817, 32
      %v830 = vpop.permute.xlu0 %829
      %831 = vrot.lane.b32.xlu0 %v820, 32
      %v832 = vpop.permute.xlu0 %831
      %v834 = vunpack.c.l.b16 %v742
      %v835 = vpack.c.b16 %v755, %v834
      %v836 = vrot.slane %v835, 1
      %v837 = vrot.slane %v766, 1
      %v838 = vsel %vm270, %v836, %v837
      %v839 = vrot.slane %v767, 1
      %v840 = vsel %vm270, %v837, %v839
      %v841 = vrot.slane %v768, 1
      %v842 = vsel %vm270, %v839, %v841
      %v843 = vrot.slane %v769, 1
      %v844 = vsel %vm270, %v841, %v843
      %v845 = vrot.slane %v773, 1
      %v846 = vsel %vm270, %v843, %v845
      %847 = vrot.lane.b32.xlu0 %v838, 64
      %v848 = vpop.permute.xlu0 %847
      %849 = vrot.lane.b32.xlu0 %v840, 64
      %v850 = vpop.permute.xlu0 %849
      %851 = vrot.lane.b32.xlu0 %v842, 64
      %v852 = vpop.permute.xlu0 %851
      %853 = vrot.lane.b32.xlu0 %v844, 64
      %v854 = vpop.permute.xlu0 %853
      %855 = vrot.lane.b32.xlu0 %v846, 64
      %v856 = vpop.permute.xlu0 %855
      %857 = vrot.lane.b32.xlu0 %v845, 64
      %v858 = vpop.permute.xlu0 %857
      %v860 = vsel %vm292, %v765, %v822
      %v862 = vsel %vm292, %v766, %v824
      %v864 = vsel %vm292, %v767, %v826
      %v866 = vsel %vm292, %v768, %v828
      %v868 = vsel %vm292, %v769, %v830
      %v871 = vsel %vm292, %v770, %v832
      %v873 = vsel %vm303, %v860, %v848
      %v875 = vsel %vm303, %v862, %v850
      %v877 = vsel %vm303, %v864, %v852
      %v879 = vsel %vm303, %v866, %v854
      %v881 = vsel %vm303, %v868, %v856
      %v883 = vsel %vm303, %v871, %v858
      %s884 = scalar_lea.vmem %s1, 96
      %v885 = vld [vmem:[%s884] sm:$0xf]
      %v886 = vld [vmem:[%s884 + $0x4] sm:$0xf]
      %v887 = vld [vmem:[%s884 + $0x8] sm:$0xf]
      %v888 = vld [vmem:[%s884 + $0xc] sm:$0xf]
      %v889 = vld [vmem:[%s884 + $0x10] sm:$0xf]
      %v890 = vld [vmem:[%s884 + $0x14] sm:$0xf]
      %v891 = vld [vmem:[%s884 + $0x18] sm:$0xf]
      %v892 = vld [vmem:[%s884 + $0x1c] sm:$0xf]
      %v893 = vld [vmem:[%s884 + $0x20] sm:$0xf]
      %v894 = vld [vmem:[%s884 + $0x24] sm:$0xf]
      %v895 = vld [vmem:[%s884 + $0x28] sm:$0xf]
      %v896 = vld [vmem:[%s884 + $0x2c] sm:$0xf]
      %vm903 = vcmask 1045504
      %v904 = vrot.slane %v873, 2
      %v905 = vrot.slane %v875, 2
      %v906 = vsel %vm903, %v904, %v905
      %v907 = vrot.slane %v877, 2
      %v908 = vsel %vm903, %v905, %v907
      %v909 = vrot.slane %v879, 2
      %v910 = vsel %vm903, %v907, %v909
      %v911 = vrot.slane %v881, 2
      %v912 = vsel %vm903, %v909, %v911
      %v913 = vrot.slane %v883, 2
      %v914 = vsel %vm903, %v911, %v913
      %v927 = vunpack.c.l.b16 %v885
      %v928 = vunpack.c.l.b16 %v886
      %v929 = vunpack.c.l.b16 %v887
      %v930 = vunpack.c.l.b16 %v888
      %v931 = vunpack.c.l.b16 %v889
      %v932 = vunpack.c.l.b16 %v890
      %v933 = vunpack.c.l.b16 %v891
      %v934 = vunpack.c.l.b16 %v892
      %v935 = vunpack.c.l.b16 %v893
      %v936 = vunpack.c.l.b16 %v894
      %v937 = vunpack.c.l.b16 %v895
      %v938 = vunpack.c.l.b16 %v896
      %v939 = vpack.c.b16 %v928, %v927
      %v940 = vpack.c.b16 %v930, %v929
      %v941 = vpack.c.b16 %v932, %v931
      %v942 = vpack.c.b16 %v934, %v933
      %v943 = vpack.c.b16 %v936, %v935
      %v944 = vpack.c.b16 %v938, %v937
      %v952 = vsel %vm522, %v906, 0
      %v955 = vsel %vm522, %v908, 0
      %v958 = vsel %vm522, %v910, 0
      %v961 = vsel %vm522, %v912, 0
      %v964 = vsel %vm522, %v914, 0
      %966 = vmatprep.subr.bf16.mxu0 0
      %967 = vmatpush1.bf16.msra.mxu0 %v939
      %968 = vmatprep.subr.bf16.mxu0 0
      %969 = vmatpush1.bf16.msra.mxu0 %v940
      %970 = vmatprep.subr.bf16.mxu0 0
      %971 = vmatpush1.bf16.msra.mxu0 %v941
      %972 = vmatprep.subr.bf16.mxu0 0
      %973 = vmatpush1.bf16.msra.mxu0 %v942
      %974 = vmatprep.subr.bf16.mxu0 0
      %975 = vmatpush1.bf16.msra.mxu0 %v943
      %976 = vmatprep.subr.bf16.mxu0 0
      %977 = vmatpush1.bf16.msra.mxu0 %v944
      %978 = vmatprep.subr.bf16.mxu0 0
      %979 = vmatpush1.bf16.msra.mxu0 0
      %980 = vmatprep.subr.bf16.mxu0 0
      %981 = vmatpush1.bf16.msra.mxu0 0
      %982 = vmatprep.subr.bf16.mxu0 0
      %983 = vmatpush1.bf16.msra.mxu0 0
      %984 = vmatprep.subr.bf16.mxu0 0
      %985 = vmatpush1.bf16.msra.mxu0 0
      %986 = vmatprep.subr.bf16.mxu0 0
      %987 = vmatpush1.bf16.msra.mxu0 0
      %988 = vmatprep.subr.bf16.mxu0 0
      %989 = vmatpush1.bf16.msra.mxu0 0
      %990 = vmatprep.subr.bf16.mxu0 0
      %991 = vmatpush1.bf16.msra.mxu0 0
      %992 = vmatprep.subr.bf16.mxu0 0
      %993 = vmatpush1.bf16.msra.mxu0 0
      %994 = vmatprep.subr.bf16.mxu0 0
      %995 = vmatpush1.bf16.msra.mxu0 0
      %996 = vmatprep.subr.bf16.mxu0 0
      %997 = vmatpush1.bf16.msra.mxu0 0
      %998 = vmatprep.mubr.bf16.mxu0 0
      %999 = vmatmul.mubr.bf16.gmra.mrb[0].mxu0 %v952
      %v1000 = vpop.f32.mrb[0].mxu0
      %v1001 = vadd.f32 0.0, %v1000
      %v1002 = vpop.f32.mrb[0].mxu0
      %v1003 = vpop.f32.mrb[0].mxu0
      %v1004 = vadd.f32 0.0, %v1003
      %v1005 = vpop.f32.mrb[0].mxu0
      %1006 = vmatprep.mubr.bf16.mxu0 0
      %1007 = vmatmul.mubr.bf16.gmra.mrb[0].mxu0 %v955
      %v1008 = vpop.f32.mrb[0].mxu0
      %v1009 = vadd.f32 0.0, %v1008
      %v1010 = vpop.f32.mrb[0].mxu0
      %v1011 = vpop.f32.mrb[0].mxu0
      %v1012 = vadd.f32 0.0, %v1011
      %v1013 = vpop.f32.mrb[0].mxu0
      %1014 = vmatprep.mubr.bf16.mxu0 0
      %1015 = vmatmul.mubr.bf16.gmra.mrb[0].mxu0 %v958
      %v1016 = vpop.f32.mrb[0].mxu0
      %v1017 = vadd.f32 0.0, %v1016
      %v1018 = vpop.f32.mrb[0].mxu0
      %v1019 = vpop.f32.mrb[0].mxu0
      %v1020 = vadd.f32 0.0, %v1019
      %v1021 = vpop.f32.mrb[0].mxu0
      %1022 = vmatprep.mubr.bf16.mxu0 0
      %1023 = vmatmul.mubr.bf16.gmra.mrb[0].mxu0 %v961
      %v1024 = vpop.f32.mrb[0].mxu0
      %v1025 = vadd.f32 0.0, %v1024
      %v1026 = vpop.f32.mrb[0].mxu0
      %v1027 = vpop.f32.mrb[0].mxu0
      %v1028 = vadd.f32 0.0, %v1027
      %v1029 = vpop.f32.mrb[0].mxu0
      %1030 = vmatprep.mubr.bf16.mxu0 0
      %1031 = vmatmul.mubr.bf16.gmra.mrb[0].mxu0 %v964
      %v1032 = vpop.f32.mrb[0].mxu0
      %v1033 = vadd.f32 0.0, %v1032
      %v1034 = vpop.f32.mrb[0].mxu0
      %v1035 = vpop.f32.mrb[0].mxu0
      %v1036 = vadd.f32 0.0, %v1035
      %v1037 = vpop.f32.mrb[0].mxu0
      %1038 = vdwg.mxu0
      %v1039 = vadd.f32 %v692, %v1001
      %v1040 = vadd.f32 %v695, %v1004
      %v1041 = vadd.f32 %v700, %v1009
      %v1042 = vadd.f32 %v703, %v1012
      %v1043 = vadd.f32 %v708, %v1017
      %v1044 = vadd.f32 %v711, %v1020
      %v1045 = vadd.f32 %v716, %v1025
      %v1046 = vadd.f32 %v719, %v1028
      %v1047 = vadd.f32 %v724, %v1033
      %v1048 = vadd.f32 %v727, %v1036
      %v1049 = vld [vmem:[%s2] sm:$0x1]
      %v1051 = vlaneseq
      %v1052 = vshrl.u32 %v1051, 7
      %v1053 = vsub.s32 0, %v1052
      %v1054 = vrot.slane %v1049, %v1053
      %v1056 = vadd.f32 %v1039, %v1054
      %v1057 = vadd.f32 %v1040, %v1054
      %v1058 = vadd.f32 %v1041, %v1054
      %v1059 = vadd.f32 %v1042, %v1054
      %v1060 = vadd.f32 %v1043, %v1054
      %v1061 = vadd.f32 %v1044, %v1054
      %v1062 = vadd.f32 %v1045, %v1054
      %v1063 = vadd.f32 %v1046, %v1054
      %v1064 = vadd.f32 %v1047, %v1054
      %v1065 = vadd.f32 %v1048, %v1054
      %vm1068 = vcmask 1045504
      %v1069 = vrot.slane %v1057, 2
      %v1070 = vrot.slane %v1058, 2
      %v1071 = vsel %vm1068, %v1069, %v1070
      %vm1074 = vcmask 1043456
      %v1075 = vrot.slane %v1058, 4
      %v1076 = vrot.slane %v1059, 4
      %v1077 = vsel %vm1074, %v1075, %v1076
      %vm1080 = vcmask 1041408
      %v1081 = vrot.slane %v1059, 6
      %v1082 = vrot.slane %v1060, 6
      %v1083 = vsel %vm1080, %v1081, %v1082
      %v1087 = vrot.slane %v1062, 2
      %v1088 = vrot.slane %v1063, 2
      %v1089 = vsel %vm1068, %v1087, %v1088
      %v1092 = vrot.slane %v1063, 4
      %v1093 = vrot.slane %v1064, 4
      %v1094 = vsel %vm1074, %v1092, %v1093
      %v1097 = vrot.slane %v1064, 6
      %v1098 = vrot.slane %v1065, 6
      %v1099 = vsel %vm1080, %v1097, %v1098
      %v1101 = vmul.f32 %v1056, 0.5
      %v1102 = vmul.f32 %v1071, 0.5
      %v1103 = vmul.f32 %v1077, 0.5
      %v1104 = vmul.f32 %v1083, 0.5
      %v1105 = vmul.f32 %v1061, 0.5
      %v1106 = vmul.f32 %v1089, 0.5
      %v1107 = vmul.f32 %v1094, 0.5
      %v1108 = vmul.f32 %v1099, 0.5
      %v1109 = vmul.f32 %v1056, 0.70710677
      %v1110 = vmul.f32 %v1071, 0.70710677
      %v1111 = vmul.f32 %v1077, 0.70710677
      %v1112 = vmul.f32 %v1083, 0.70710677
      %v1113 = vmul.f32 %v1061, 0.70710677
      %v1114 = vmul.f32 %v1089, 0.70710677
      %v1115 = vmul.f32 %v1094, 0.70710677
      %v1116 = vmul.f32 %v1099, 0.70710677
      %vm1117 = vcmp.ge.f32.partialorder %v1109, 0.0
      %vm1118 = vcmp.ge.f32.partialorder %v1110, 0.0
      %vm1119 = vcmp.ge.f32.partialorder %v1111, 0.0
      %vm1120 = vcmp.ge.f32.partialorder %v1112, 0.0
      %vm1121 = vcmp.ge.f32.partialorder %v1113, 0.0
      %vm1122 = vcmp.ge.f32.partialorder %v1114, 0.0
      %vm1123 = vcmp.ge.f32.partialorder %v1115, 0.0
      %vm1124 = vcmp.ge.f32.partialorder %v1116, 0.0
      %v1125 = vsel %vm1117, 1.0, -1.0
      %v1126 = vsel %vm1118, 1.0, -1.0
      %v1127 = vsel %vm1119, 1.0, -1.0
      %v1128 = vsel %vm1120, 1.0, -1.0
      %v1129 = vsel %vm1121, 1.0, -1.0
      %v1130 = vsel %vm1122, 1.0, -1.0
      %v1131 = vsel %vm1123, 1.0, -1.0
      %v1132 = vsel %vm1124, 1.0, -1.0
      %v1133 = vand.u32 2147483647, %v1109
      %v1134 = vand.u32 2147483647, %v1110
      %v1135 = vand.u32 2147483647, %v1111
      %v1136 = vand.u32 2147483647, %v1112
      %v1137 = vand.u32 2147483647, %v1113
      %v1138 = vand.u32 2147483647, %v1114
      %v1139 = vand.u32 2147483647, %v1115
      %v1140 = vand.u32 2147483647, %v1116
      %v1141 = vmul.f32 %v1133, 0.3275911
      %v1142 = vmul.f32 %v1134, 0.3275911
      %v1143 = vmul.f32 %v1135, 0.3275911
      %v1144 = vmul.f32 %v1136, 0.3275911
      %v1145 = vmul.f32 %v1137, 0.3275911
      %v1146 = vmul.f32 %v1138, 0.3275911
      %v1147 = vmul.f32 %v1139, 0.3275911
      %v1148 = vmul.f32 %v1140, 0.3275911
      %v1149 = vadd.f32 %v1141, 1.0
      %v1150 = vadd.f32 %v1142, 1.0
      %v1151 = vadd.f32 %v1143, 1.0
      %v1152 = vadd.f32 %v1144, 1.0
      %v1153 = vadd.f32 %v1145, 1.0
      %v1154 = vadd.f32 %v1146, 1.0
      %v1155 = vadd.f32 %v1147, 1.0
      %v1156 = vadd.f32 %v1148, 1.0
      %v1157 = vrcp.pop %v1149
      %v1158 = vmul.f32 1.0, %v1157
      %v1159 = vrcp.pop %v1150
      %v1160 = vmul.f32 1.0, %v1159
      %v1161 = vrcp.pop %v1151
      %v1162 = vmul.f32 1.0, %v1161
      %v1163 = vrcp.pop %v1152
      %v1164 = vmul.f32 1.0, %v1163
      %v1165 = vrcp.pop %v1153
      %v1166 = vmul.f32 1.0, %v1165
      %v1167 = vrcp.pop %v1154
      %v1168 = vmul.f32 1.0, %v1167
      %v1169 = vrcp.pop %v1155
      %v1170 = vmul.f32 1.0, %v1169
      %v1171 = vrcp.pop %v1156
      %v1172 = vmul.f32 1.0, %v1171
      %v1173 = vmul.f32 %v1158, 1.0614054
      %v1174 = vmul.f32 %v1160, 1.0614054
      %v1175 = vmul.f32 %v1162, 1.0614054
      %v1176 = vmul.f32 %v1164, 1.0614054
      %v1177 = vmul.f32 %v1166, 1.0614054
      %v1178 = vmul.f32 %v1168, 1.0614054
      %v1179 = vmul.f32 %v1170, 1.0614054
      %v1180 = vmul.f32 %v1172, 1.0614054
      %v1181 = vadd.f32 %v1173, -1.4531521
      %v1182 = vadd.f32 %v1174, -1.4531521
      %v1183 = vadd.f32 %v1175, -1.4531521
      %v1184 = vadd.f32 %v1176, -1.4531521
      %v1185 = vadd.f32 %v1177, -1.4531521
      %v1186 = vadd.f32 %v1178, -1.4531521
      %v1187 = vadd.f32 %v1179, -1.4531521
      %v1188 = vadd.f32 %v1180, -1.4531521
      %v1189 = vmul.f32 %v1181, %v1158
      %v1190 = vmul.f32 %v1182, %v1160
      %v1191 = vmul.f32 %v1183, %v1162
      %v1192 = vmul.f32 %v1184, %v1164
      %v1193 = vmul.f32 %v1185, %v1166
      %v1194 = vmul.f32 %v1186, %v1168
      %v1195 = vmul.f32 %v1187, %v1170
      %v1196 = vmul.f32 %v1188, %v1172
      %v1197 = vadd.f32 %v1189, 1.4214138
      %v1198 = vadd.f32 %v1190, 1.4214138
      %v1199 = vadd.f32 %v1191, 1.4214138
      %v1200 = vadd.f32 %v1192, 1.4214138
      %v1201 = vadd.f32 %v1193, 1.4214138
      %v1202 = vadd.f32 %v1194, 1.4214138
      %v1203 = vadd.f32 %v1195, 1.4214138
      %v1204 = vadd.f32 %v1196, 1.4214138
      %v1205 = vmul.f32 %v1197, %v1158
      %v1206 = vmul.f32 %v1198, %v1160
      %v1207 = vmul.f32 %v1199, %v1162
      %v1208 = vmul.f32 %v1200, %v1164
      %v1209 = vmul.f32 %v1201, %v1166
      %v1210 = vmul.f32 %v1202, %v1168
      %v1211 = vmul.f32 %v1203, %v1170
      %v1212 = vmul.f32 %v1204, %v1172
      %v1213 = vadd.f32 %v1205, -0.28449672
      %v1214 = vadd.f32 %v1206, -0.28449672
      %v1215 = vadd.f32 %v1207, -0.28449672
      %v1216 = vadd.f32 %v1208, -0.28449672
      %v1217 = vadd.f32 %v1209, -0.28449672
      %v1218 = vadd.f32 %v1210, -0.28449672
      %v1219 = vadd.f32 %v1211, -0.28449672
      %v1220 = vadd.f32 %v1212, -0.28449672
      %v1221 = vmul.f32 %v1213, %v1158
      %v1222 = vmul.f32 %v1214, %v1160
      %v1223 = vmul.f32 %v1215, %v1162
      %v1224 = vmul.f32 %v1216, %v1164
      %v1225 = vmul.f32 %v1217, %v1166
      %v1226 = vmul.f32 %v1218, %v1168
      %v1227 = vmul.f32 %v1219, %v1170
      %v1228 = vmul.f32 %v1220, %v1172
      %v1229 = vadd.f32 %v1221, 0.2548296
      %v1230 = vadd.f32 %v1222, 0.2548296
      %v1231 = vadd.f32 %v1223, 0.2548296
      %v1232 = vadd.f32 %v1224, 0.2548296
      %v1233 = vadd.f32 %v1225, 0.2548296
      %v1234 = vadd.f32 %v1226, 0.2548296
      %v1235 = vadd.f32 %v1227, 0.2548296
      %v1236 = vadd.f32 %v1228, 0.2548296
      %v1237 = vmul.f32 %v1229, %v1158
      %v1238 = vmul.f32 %v1230, %v1160
      %v1239 = vmul.f32 %v1231, %v1162
      %v1240 = vmul.f32 %v1232, %v1164
      %v1241 = vmul.f32 %v1233, %v1166
      %v1242 = vmul.f32 %v1234, %v1168
      %v1243 = vmul.f32 %v1235, %v1170
      %v1244 = vmul.f32 %v1236, %v1172
      %v1245 = vsub.f32 0.0, %v1133
      %v1246 = vsub.f32 0.0, %v1134
      %v1247 = vsub.f32 0.0, %v1135
      %v1248 = vsub.f32 0.0, %v1136
      %v1249 = vsub.f32 0.0, %v1137
      %v1250 = vsub.f32 0.0, %v1138
      %v1251 = vsub.f32 0.0, %v1139
      %v1252 = vsub.f32 0.0, %v1140
      %v1253 = vmul.f32 %v1245, %v1133
      %v1254 = vmul.f32 %v1246, %v1134
      %v1255 = vmul.f32 %v1247, %v1135
      %v1256 = vmul.f32 %v1248, %v1136
      %v1257 = vmul.f32 %v1249, %v1137
      %v1258 = vmul.f32 %v1250, %v1138
      %v1259 = vmul.f32 %v1251, %v1139
      %v1260 = vmul.f32 %v1252, %v1140
      %v1261 = vmul.f32 %v1253, 1.442695
      %v1262 = vpow.pop %v1261
      %v1263 = vmul.f32 %v1254, 1.442695
      %v1264 = vpow.pop %v1263
      %v1265 = vmul.f32 %v1255, 1.442695
      %v1266 = vpow.pop %v1265
      %v1267 = vmul.f32 %v1256, 1.442695
      %v1268 = vpow.pop %v1267
      %v1269 = vmul.f32 %v1257, 1.442695
      %v1270 = vpow.pop %v1269
      %v1271 = vmul.f32 %v1258, 1.442695
      %v1272 = vpow.pop %v1271
      %v1273 = vmul.f32 %v1259, 1.442695
      %v1274 = vpow.pop %v1273
      %v1275 = vmul.f32 %v1260, 1.442695
      %v1276 = vpow.pop %v1275
      %v1277 = vmul.f32 %v1237, %v1262
      %v1278 = vmul.f32 %v1238, %v1264
      %v1279 = vmul.f32 %v1239, %v1266
      %v1280 = vmul.f32 %v1240, %v1268
      %v1281 = vmul.f32 %v1241, %v1270
      %v1282 = vmul.f32 %v1242, %v1272
      %v1283 = vmul.f32 %v1243, %v1274
      %v1284 = vmul.f32 %v1244, %v1276
      %v1285 = vsub.f32 1.0, %v1277
      %v1286 = vsub.f32 1.0, %v1278
      %v1287 = vsub.f32 1.0, %v1279
      %v1288 = vsub.f32 1.0, %v1280
      %v1289 = vsub.f32 1.0, %v1281
      %v1290 = vsub.f32 1.0, %v1282
      %v1291 = vsub.f32 1.0, %v1283
      %v1292 = vsub.f32 1.0, %v1284
      %v1293 = vmul.f32 %v1125, %v1285
      %v1294 = vmul.f32 %v1126, %v1286
      %v1295 = vmul.f32 %v1127, %v1287
      %v1296 = vmul.f32 %v1128, %v1288
      %v1297 = vmul.f32 %v1129, %v1289
      %v1298 = vmul.f32 %v1130, %v1290
      %v1299 = vmul.f32 %v1131, %v1291
      %v1300 = vmul.f32 %v1132, %v1292
      %v1301 = vadd.f32 %v1293, 1.0
      %v1302 = vadd.f32 %v1294, 1.0
      %v1303 = vadd.f32 %v1295, 1.0
      %v1304 = vadd.f32 %v1296, 1.0
      %v1305 = vadd.f32 %v1297, 1.0
      %v1306 = vadd.f32 %v1298, 1.0
      %v1307 = vadd.f32 %v1299, 1.0
      %v1308 = vadd.f32 %v1300, 1.0
      %v1309 = vmul.f32 %v1101, %v1301
      %v1310 = vmul.f32 %v1102, %v1302
      %v1311 = vmul.f32 %v1103, %v1303
      %v1312 = vmul.f32 %v1104, %v1304
      %v1313 = vmul.f32 %v1105, %v1305
      %v1314 = vmul.f32 %v1106, %v1306
      %v1315 = vmul.f32 %v1107, %v1307
      %v1316 = vmul.f32 %v1108, %v1308
      %v1317 = vpack.c.bf16 %v1310, %v1309
      %v1318 = vpack.c.bf16 %v1312, %v1311
      %v1319 = vpack.c.bf16 %v1314, %v1313
      %v1320 = vpack.c.bf16 %v1316, %v1315
      %v1325 = vunpack.c.l.b16 %v1317
      %v1326 = vunpack.c.h.b16 %v1317
      %v1327 = vunpack.c.l.b16 %v1318
      %v1328 = vunpack.c.h.b16 %v1318
      %v1329 = vunpack.c.l.b16 %v1319
      %v1330 = vunpack.c.h.b16 %v1319
      %v1331 = vunpack.c.l.b16 %v1320
      %v1332 = vunpack.c.h.b16 %v1320
      %v1333 = vpack.c.b16 %v1325, %v1325
      %v1334 = vpack.c.b16 %v1326, %v1326
      %v1335 = vpack.c.b16 %v1327, %v1327
      %v1336 = vpack.c.b16 %v1328, %v1328
      %v1337 = vpack.c.b16 %v1329, %v1329
      %v1338 = vpack.c.b16 %v1330, %v1330
      %v1339 = vpack.c.b16 %v1331, %v1331
      %v1340 = vpack.c.b16 %v1332, %v1332
      %vm1349 = vcmask 76800
      %1350 = vst.msk [vmem:[%s170] sm:$0xf] %vm1349, %v1333
      %1351 = vst.msk [vmem:[%s170 + $0x4] sm:$0xf] %vm1349, %v1334
      %1352 = vst.msk [vmem:[%s170 + $0x8] sm:$0xf] %vm1349, %v1335
      %1353 = vst.msk [vmem:[%s170 + $0xc] sm:$0xf] %vm1349, %v1336
      %1354 = vst.msk [vmem:[%s170 + $0x10] sm:$0xf] %vm1349, %v1337
      %1355 = vst.msk [vmem:[%s170 + $0x14] sm:$0xf] %vm1349, %v1338
      %1356 = vst.msk [vmem:[%s170 + $0x18] sm:$0xf] %vm1349, %v1339
      %1357 = vst.msk [vmem:[%s170 + $0x1c] sm:$0xf] %vm1349, %v1340
      %p1358 = scmp.lt.s32.totalorder %s14, 1
      %s1359 = scalar_select %p1358, %s14, 1
      %s1360 = smul.addr %s1359, 8
      %s1361 = smul.addr %s1360, 4
      %s1362 = scalar_lea.vmem %s3, %s1361
      // Predicated region
      $region33: #{_lambda_.10} parent=31 // pred_check
        %p1363 = pneg %p100
      $region34: #{_lambda_.10} parent=31 // pred_check_branch
        %1365 = sbr.rel (%p1363) target = $region36
      $region35: #{_lambda_.10} parent=31 // pred_region
        _
      $region36: #{_lambda_.10} parent=31 // pred_fallthru
        _
    $region32: #{_lambda_.10} parent=5 // pred_fallthru
      _
    %p1366 = scmp.le.s32.totalorder 2, %s9
    // Predicated region
    $region37: #{_lambda_.10} parent=5 // pred_check
      %p1367 = pneg %p1366
    $region38: #{_lambda_.10} parent=5 // pred_check_branch
      %1369 = sbr.rel (%p1367) target = $region40
    $region39: #{_lambda_.10} parent=5 // pred_region
      %s1370 = ssub.s32 %s9, 2
      // Predicated region
      $region41: #{_lambda_.10} parent=39 // pred_check
        %p1371 = pneg %p106
      $region42: #{_lambda_.10} parent=39 // pred_check_branch
        %1373 = sbr.rel (%p1371) target = $region44
      $region43: #{_lambda_.10} parent=39 // pred_region
        %p1374 = scmp.lt.s32.totalorder %s15, 1
        %s1375 = scalar_select %p1374, %s15, 1
        %s1376 = smul.addr %s1375, 8
        %s1377 = smul.addr %s1376, 4
        %s1378 = scalar_lea.vmem %s3, %s1377
      $region44: #{_lambda_.10} parent=39 // pred_fallthru
        _
    $region40: #{_lambda_.10} parent=5 // pred_fallthru
      _
  $region6: #{_lambda_.10} parent=0 // loop_footer
    %s13 = sadd.s32 1, %s9
  $region7: #{_lambda_.10} parent=0 // loop_footer_branch
    %8 = sbr.rel target = $region3
  $region8: #{_lambda_.10} parent=0 // loop_exit
    _

// kernel: _lambda_.11
$region0: #{_lambda_.11}
  #allocation0 [shape = 'u32[]', space=smem, size = 0x4, offset = 0x4, fixed_abs, tag = 'smem constant byte address 0x4 - core index']
  #allocation1 [shape = 'u32[144,128]{1,0:T(1,128)}', space=vmem, size = 0x12000, scoped, tag = 'internal scratch']
  #allocation2 [shape = 'f32[1,1]{1,0:T(1,128)S(1)}', space=vmem, size = 0x200, scoped, tag = 'scoped memory for _lambda_.11']
  %s0 = inlined_call_operand.vmem [shape: bf16[2,108,10], index: 0, kind: input, shape index: {}]
  %s1 = inlined_call_operand.vmem [shape: bf16[3,30,32], index: 1, kind: input, shape index: {}]
  %s2 = inlined_call_operand.vmem [shape: f32[1,32], index: 2, kind: input, shape index: {}]
  %s3 = inlined_call_operand.vmem [shape: f32[1,32], index: 3, kind: input, shape index: {}]
  %s4 = inlined_call_operand.<no memory space> [shape: f32[1,1], index: 4, kind: input, shape index: {}]
  %s5 = inlined_call_operand.vmem [shape: f32[1,32], index: 5, kind: input, shape index: {}]
  %s6 = inlined_call_operand.vmem [shape: f32[1,32], index: 6, kind: input, shape index: {}]
  %s7 = inlined_call_operand.vmem [shape: f32[2,64,32], index: 7, kind: input, shape index: {}]
  %s8 = inlined_call_operand.vmem [shape: f32[1,32], index: 8, kind: input, shape index: {}]
  %s9 = inlined_call_operand.vmem [shape: f32[2,64,32], index: 9, kind: output, shape index: {}]
  %s10 = sld [smem:[#allocation0]]
  $region69: #{_lambda_.11} parent=0
    _
  %s12 = ssub.s32 1, %s10
  %s13 = scalar_select 0, %s12, %s10
  %v14 = vstv %s4
  %15 = vst [vmem:[#allocation2] sm:$0x1] %v14
  loop: start=0, step=1, limit=4
  $region2: #{_lambda_.11} parent=0 // loop_pre_header
    _
  $region3: #{_lambda_.11} parent=0 // loop_header
    %s17 = sphi 0, %s21
    %p18 = scmp.ge.s32.totalorder %s17, 4
    %s27 = sphi 0, %s29
    %s30 = sphi 0, %s27
    %s31 = sphi 0, %s30
    %s47 = sphi 0, %s31
    %s51 = sphi 0, %s51
    %s53 = sphi 0, %s51
    %s54 = sphi 0, %s53
    %s68 = sphi 0, %s54
    %s72 = sphi 0, %s72
    %s74 = sphi 0, %s72
    %s75 = sphi 0, %s74
    %s89 = sphi 0, %s75
    %s93 = sphi 0, %s93
    %s95 = sphi 0, %s93
    %s96 = sphi 0, %s95
    %s110 = sphi 0, %s96
    %s114 = sphi 0, %s114
    %s116 = sphi 0, %s114
    %s117 = sphi 0, %s116
    %s131 = sphi 0, %s117
    %s135 = sphi 0, %s135
    %s137 = sphi 0, %s135
    %s138 = sphi 0, %s137
    %s152 = sphi 0, %s138
    %s156 = sphi 0, %s156
    %s158 = sphi 0, %s156
    %s159 = sphi 0, %s158
    %s173 = sphi 0, %s159
    %s179 = sphi 0, %s181
    %s182 = sphi 0, %s179
    %s183 = sphi 0, %s182
    %s199 = sphi 0, %s183
    %s203 = sphi 0, %s203
    %s205 = sphi 0, %s203
    %s206 = sphi 0, %s205
    %s220 = sphi 0, %s206
    %s226 = sphi 0, %s228
    %s229 = sphi 0, %s226
    %s230 = sphi 0, %s229
    %s246 = sphi 0, %s230
  $region4: #{_lambda_.11} parent=0 // loop_header_branch
    %20 = sbr.rel (%p18) target = $region8
  $region5: #{_lambda_.11} parent=0 // loop_body
    %s22 = ssub.s32 %s17, 1
    %s23 = ssub.s32 %s17, 2
    %s24 = sadd.s32 %s17, 1
    %s25 = ssub.s32 %s17, %s24
    %p26 = scmp.eq.s32.totalorder %s25, 0
    %s28 = sadd.s32 %s27, 1
    %s29 = scalar_select %p26, %s27, %s28
    %p32 = pneg %p26
    %p33 = scmp.eq.s32.totalorder %s17, 1
    %p34 = por %p32, %p33
    %p35 = scmp.ne.s32.totalorder %s27, %s30
    %p36 = scmp.eq.s32.totalorder %s17, 0
    %p37 = por %p35, %p36
    %p38 = scmp.ne.s32.totalorder %s27, %s30
    %p39 = scmp.eq.s32.totalorder %s22, 1
    %p40 = por %p38, %p39
    %p41 = scmp.ne.s32.totalorder %s30, %s31
    %p42 = scmp.eq.s32.totalorder %s22, 0
    %p43 = por %p41, %p42
    %p44 = scmp.ne.s32.totalorder %s30, %s31
    %p45 = scmp.eq.s32.totalorder %s23, 1
    %p46 = por %p44, %p45
    %p48 = scmp.ne.s32.totalorder %s31, %s47
    %p49 = scmp.eq.s32.totalorder %s23, 0
    %p50 = por %p48, %p49
    %s52 = sadd.s32 %s51, 1
    %p55 = scmp.eq.s32.totalorder %s17, 1
    %p56 = scmp.ne.s32.totalorder %s51, %s53
    %p57 = scmp.eq.s32.totalorder %s17, 0
    %p58 = por %p56, %p57
    %p59 = scmp.ne.s32.totalorder %s51, %s53
    %p60 = scmp.eq.s32.totalorder %s22, 1
    %p61 = por %p59, %p60
    %p62 = scmp.ne.s32.totalorder %s53, %s54
    %p63 = scmp.eq.s32.totalorder %s22, 0
    %p64 = por %p62, %p63
    %p65 = scmp.ne.s32.totalorder %s53, %s54
    %p66 = scmp.eq.s32.totalorder %s23, 1
    %p67 = por %p65, %p66
    %p69 = scmp.ne.s32.totalorder %s54, %s68
    %p70 = scmp.eq.s32.totalorder %s23, 0
    %p71 = por %p69, %p70
    %s73 = sadd.s32 %s72, 1
    %p76 = scmp.eq.s32.totalorder %s17, 1
    %p77 = scmp.ne.s32.totalorder %s72, %s74
    %p78 = scmp.eq.s32.totalorder %s17, 0
    %p79 = por %p77, %p78
    %p80 = scmp.ne.s32.totalorder %s72, %s74
    %p81 = scmp.eq.s32.totalorder %s22, 1
    %p82 = por %p80, %p81
    %p83 = scmp.ne.s32.totalorder %s74, %s75
    %p84 = scmp.eq.s32.totalorder %s22, 0
    %p85 = por %p83, %p84
    %p86 = scmp.ne.s32.totalorder %s74, %s75
    %p87 = scmp.eq.s32.totalorder %s23, 1
    %p88 = por %p86, %p87
    %p90 = scmp.ne.s32.totalorder %s75, %s89
    %p91 = scmp.eq.s32.totalorder %s23, 0
    %p92 = por %p90, %p91
    %s94 = sadd.s32 %s93, 1
    %p97 = scmp.eq.s32.totalorder %s17, 1
    %p98 = scmp.ne.s32.totalorder %s93, %s95
    %p99 = scmp.eq.s32.totalorder %s17, 0
    %p100 = por %p98, %p99
    %p101 = scmp.ne.s32.totalorder %s93, %s95
    %p102 = scmp.eq.s32.totalorder %s22, 1
    %p103 = por %p101, %p102
    %p104 = scmp.ne.s32.totalorder %s95, %s96
    %p105 = scmp.eq.s32.totalorder %s22, 0
    %p106 = por %p104, %p105
    %p107 = scmp.ne.s32.totalorder %s95, %s96
    %p108 = scmp.eq.s32.totalorder %s23, 1
    %p109 = por %p107, %p108
    %p111 = scmp.ne.s32.totalorder %s96, %s110
    %p112 = scmp.eq.s32.totalorder %s23, 0
    %p113 = por %p111, %p112
    %s115 = sadd.s32 %s114, 1
    %p118 = scmp.eq.s32.totalorder %s17, 1
    %p119 = scmp.ne.s32.totalorder %s114, %s116
    %p120 = scmp.eq.s32.totalorder %s17, 0
    %p121 = por %p119, %p120
    %p122 = scmp.ne.s32.totalorder %s114, %s116
    %p123 = scmp.eq.s32.totalorder %s22, 1
    %p124 = por %p122, %p123
    %p125 = scmp.ne.s32.totalorder %s116, %s117
    %p126 = scmp.eq.s32.totalorder %s22, 0
    %p127 = por %p125, %p126
    %p128 = scmp.ne.s32.totalorder %s116, %s117
    %p129 = scmp.eq.s32.totalorder %s23, 1
    %p130 = por %p128, %p129
    %p132 = scmp.ne.s32.totalorder %s117, %s131
    %p133 = scmp.eq.s32.totalorder %s23, 0
    %p134 = por %p132, %p133
    %s136 = sadd.s32 %s135, 1
    %p139 = scmp.eq.s32.totalorder %s17, 1
    %p140 = scmp.ne.s32.totalorder %s135, %s137
    %p141 = scmp.eq.s32.totalorder %s17, 0
    %p142 = por %p140, %p141
    %p143 = scmp.ne.s32.totalorder %s135, %s137
    %p144 = scmp.eq.s32.totalorder %s22, 1
    %p145 = por %p143, %p144
    %p146 = scmp.ne.s32.totalorder %s137, %s138
    %p147 = scmp.eq.s32.totalorder %s22, 0
    %p148 = por %p146, %p147
    %p149 = scmp.ne.s32.totalorder %s137, %s138
    %p150 = scmp.eq.s32.totalorder %s23, 1
    %p151 = por %p149, %p150
    %p153 = scmp.ne.s32.totalorder %s138, %s152
    %p154 = scmp.eq.s32.totalorder %s23, 0
    %p155 = por %p153, %p154
    %s157 = sadd.s32 %s156, 1
    %p160 = scmp.eq.s32.totalorder %s17, 1
    %p161 = scmp.ne.s32.totalorder %s156, %s158
    %p162 = scmp.eq.s32.totalorder %s17, 0
    %p163 = por %p161, %p162
    %p164 = scmp.ne.s32.totalorder %s156, %s158
    %p165 = scmp.eq.s32.totalorder %s22, 1
    %p166 = por %p164, %p165
    %p167 = scmp.ne.s32.totalorder %s158, %s159
    %p168 = scmp.eq.s32.totalorder %s22, 0
    %p169 = por %p167, %p168
    %p170 = scmp.ne.s32.totalorder %s158, %s159
    %p171 = scmp.eq.s32.totalorder %s23, 1
    %p172 = por %p170, %p171
    %p174 = scmp.ne.s32.totalorder %s159, %s173
    %p175 = scmp.eq.s32.totalorder %s23, 0
    %p176 = por %p174, %p175
    %s177 = ssub.s32 %s17, %s24
    %p178 = scmp.eq.s32.totalorder %s177, 0
    %s180 = sadd.s32 %s179, 1
    %s181 = scalar_select %p178, %s179, %s180
    %p184 = pneg %p178
    %p185 = scmp.eq.s32.totalorder %s17, 1
    %p186 = por %p184, %p185
    %p187 = scmp.ne.s32.totalorder %s179, %s182
    %p188 = scmp.eq.s32.totalorder %s17, 0
    %p189 = por %p187, %p188
    %p190 = scmp.ne.s32.totalorder %s179, %s182
    %p191 = scmp.eq.s32.totalorder %s22, 1
    %p192 = por %p190, %p191
    %p193 = scmp.ne.s32.totalorder %s182, %s183
    %p194 = scmp.eq.s32.totalorder %s22, 0
    %p195 = por %p193, %p194
    %p196 = scmp.ne.s32.totalorder %s182, %s183
    %p197 = scmp.eq.s32.totalorder %s23, 1
    %p198 = por %p196, %p197
    %p200 = scmp.ne.s32.totalorder %s183, %s199
    %p201 = scmp.eq.s32.totalorder %s23, 0
    %p202 = por %p200, %p201
    %s204 = sadd.s32 %s203, 1
    %p207 = scmp.eq.s32.totalorder %s17, 1
    %p208 = scmp.ne.s32.totalorder %s203, %s205
    %p209 = scmp.eq.s32.totalorder %s17, 0
    %p210 = por %p208, %p209
    %p211 = scmp.ne.s32.totalorder %s203, %s205
    %p212 = scmp.eq.s32.totalorder %s22, 1
    %p213 = por %p211, %p212
    %p214 = scmp.ne.s32.totalorder %s205, %s206
    %p215 = scmp.eq.s32.totalorder %s22, 0
    %p216 = por %p214, %p215
    %p217 = scmp.ne.s32.totalorder %s205, %s206
    %p218 = scmp.eq.s32.totalorder %s23, 1
    %p219 = por %p217, %p218
    %p221 = scmp.ne.s32.totalorder %s206, %s220
    %p222 = scmp.eq.s32.totalorder %s23, 0
    %p223 = por %p221, %p222
    %s224 = ssub.s32 %s17, %s24
    %p225 = scmp.eq.s32.totalorder %s224, 0
    %s227 = sadd.s32 %s226, 1
    %s228 = scalar_select %p225, %s226, %s227
    %p231 = pneg %p225
    %p232 = scmp.eq.s32.totalorder %s17, 1
    %p233 = por %p231, %p232
    %p234 = scmp.ne.s32.totalorder %s226, %s229
    %p235 = scmp.eq.s32.totalorder %s17, 0
    %p236 = por %p234, %p235
    %p237 = scmp.ne.s32.totalorder %s226, %s229
    %p238 = scmp.eq.s32.totalorder %s22, 1
    %p239 = por %p237, %p238
    %p240 = scmp.ne.s32.totalorder %s229, %s230
    %p241 = scmp.eq.s32.totalorder %s22, 0
    %p242 = por %p240, %p241
    %p243 = scmp.ne.s32.totalorder %s229, %s230
    %p244 = scmp.eq.s32.totalorder %s23, 1
    %p245 = por %p243, %p244
    %p247 = scmp.ne.s32.totalorder %s230, %s246
    %p248 = scmp.eq.s32.totalorder %s23, 0
    %p249 = por %p247, %p248
    %p250 = scmp.le.s32.totalorder 1, %s17
    %p251 = scmp.lt.s32.totalorder %s17, 3
    %p252 = pnand %p250, %p251
    %p253 = pneg %p252
    // Predicated region
    $region9: #{_lambda_.11} parent=5 // pred_check
      _
    $region10: #{_lambda_.11} parent=5 // pred_check_branch
      %255 = sbr.rel (%p252) target = $region12
    $region11: #{_lambda_.11} parent=5 // pred_region
      %s256 = ssub.s32 %s17, 1
      // Predicated region
      $region13: #{_lambda_.11} parent=11 // pred_check
        %p257 = pneg %p64
      $region14: #{_lambda_.11} parent=11 // pred_check_branch
        %259 = sbr.rel (%p257) target = $region16
      $region15: #{_lambda_.11} parent=11 // pred_region
        _
      $region16: #{_lambda_.11} parent=11 // pred_fallthru
        _
      // Predicated region
      $region17: #{_lambda_.11} parent=11 // pred_check
        %p260 = pneg %p85
      $region18: #{_lambda_.11} parent=11 // pred_check_branch
        %262 = sbr.rel (%p260) target = $region20
      $region19: #{_lambda_.11} parent=11 // pred_region
        _
      $region20: #{_lambda_.11} parent=11 // pred_fallthru
        _
      // Predicated region
      $region21: #{_lambda_.11} parent=11 // pred_check
        %p263 = pneg %p106
      $region22: #{_lambda_.11} parent=11 // pred_check_branch
        %265 = sbr.rel (%p263) target = $region24
      $region23: #{_lambda_.11} parent=11 // pred_region
        _
      $region24: #{_lambda_.11} parent=11 // pred_fallthru
        _
      // Predicated region
      $region25: #{_lambda_.11} parent=11 // pred_check
        %p266 = pneg %p127
      $region26: #{_lambda_.11} parent=11 // pred_check_branch
        %268 = sbr.rel (%p266) target = $region28
      $region27: #{_lambda_.11} parent=11 // pred_region
        _
      $region28: #{_lambda_.11} parent=11 // pred_fallthru
        _
      // Predicated region
      $region29: #{_lambda_.11} parent=11 // pred_check
        %p269 = pneg %p148
      $region30: #{_lambda_.11} parent=11 // pred_check_branch
        %271 = sbr.rel (%p269) target = $region32
      $region31: #{_lambda_.11} parent=11 // pred_region
        _
      $region32: #{_lambda_.11} parent=11 // pred_fallthru
        _
      // Predicated region
      $region33: #{_lambda_.11} parent=11 // pred_check
        %p272 = pneg %p169
      $region34: #{_lambda_.11} parent=11 // pred_check_branch
        %274 = sbr.rel (%p272) target = $region36
      $region35: #{_lambda_.11} parent=11 // pred_region
        _
      $region36: #{_lambda_.11} parent=11 // pred_fallthru
        _
      // Predicated region
      $region37: #{_lambda_.11} parent=11 // pred_check
        %p275 = pneg %p216
      $region38: #{_lambda_.11} parent=11 // pred_check_branch
        %277 = sbr.rel (%p275) target = $region40
      $region39: #{_lambda_.11} parent=11 // pred_region
        _
      $region40: #{_lambda_.11} parent=11 // pred_fallthru
        _
    $region12: #{_lambda_.11} parent=5 // pred_fallthru
      _
    %p278 = scmp.lt.s32.totalorder %s17, 2
    // Predicated region
    $region41: #{_lambda_.11} parent=5 // pred_check
      %p279 = pneg %p278
    $region42: #{_lambda_.11} parent=5 // pred_check_branch
      %281 = sbr.rel (%p279) target = $region44
    $region43: #{_lambda_.11} parent=5 // pred_region
      // Predicated region
      $region45: #{_lambda_.11} parent=43 // pred_check
        %p282 = pneg %p37
      $region46: #{_lambda_.11} parent=43 // pred_check_branch
        %284 = sbr.rel (%p282) target = $region48
      $region47: #{_lambda_.11} parent=43 // pred_region
        %p285 = scmp.lt.s32.totalorder %s17, 1
        %s286 = scalar_select %p285, %s17, 1
        %s287 = smul.addr %s286, 14
        %s288 = smul.addr %s287, 4
        %s289 = scalar_lea.vmem %s0, %s288
      $region48: #{_lambda_.11} parent=43 // pred_fallthru
        _
      // Predicated region
      $region49: #{_lambda_.11} parent=43 // pred_check
        %p290 = pneg %p189
      $region50: #{_lambda_.11} parent=43 // pred_check_branch
        %292 = sbr.rel (%p290) target = $region52
      $region51: #{_lambda_.11} parent=43 // pred_region
        %p293 = scmp.lt.s32.totalorder %s17, 1
        %s294 = scalar_select %p293, %s17, 1
        %s295 = smul.addr %s294, 8
        %s296 = smul.addr %s295, 8
        %s297 = scalar_lea.vmem %s7, %s296
      $region52: #{_lambda_.11} parent=43 // pred_fallthru
        _
    $region44: #{_lambda_.11} parent=5 // pred_fallthru
      _
    %p298 = scmp.le.s32.totalorder 1, %s17
    %p299 = scmp.lt.s32.totalorder %s17, 3
    %p300 = pnand %p298, %p299
    %p301 = pneg %p300
    // Predicated region
    $region53: #{_lambda_.11} parent=5 // pred_check
      _
    $region54: #{_lambda_.11} parent=5 // pred_check_branch
      %303 = sbr.rel (%p300) target = $region56
    $region55: #{_lambda_.11} parent=5 // pred_region
      %s304 = ssub.s32 %s17, 1
      %p305 = scmp.lt.s32.totalorder %s22, 1
      %s306 = scalar_select %p305, %s22, 1
      %s307 = smul.addr %s306, 14
      %s308 = smul.addr %s307, 4
      %s309 = scalar_lea.vmem %s0, %s308
      %p310 = pneg %p43
      %p311 = pneg %p40
      %p312 = pneg %p64
      %p313 = pneg %p61
      %p314 = pneg %p85
      %p315 = pneg %p82
      %p316 = pneg %p106
      %p317 = pneg %p103
      %p318 = pneg %p127
      %p319 = pneg %p124
      %p320 = pneg %p148
      %p321 = pneg %p145
      %p322 = pneg %p169
      %p323 = pneg %p166
      %p324 = scmp.lt.s32.totalorder %s22, 1
      %s325 = scalar_select %p324, %s22, 1
      %s326 = smul.addr %s325, 8
      %s327 = smul.addr %s326, 8
      %s328 = scalar_lea.vmem %s7, %s327
      %p329 = pneg %p195
      %p330 = pneg %p192
      %p331 = pneg %p216
      %p332 = pneg %p213
      %p333 = pneg %p242
      %p334 = pneg %p239
      %p335 = scmp.lt.s32.totalorder %s22, 1
      %s336 = scalar_select %p335, %s22, 1
      %s337 = smul.addr %s336, 8
      %s338 = smul.addr %s337, 8
      %s339 = scalar_lea.vmem %s9, %s338
      %p340 = scmp.lt.s32.totalorder %s22, 1
      %s341 = scalar_select %p340, %s22, 1
      %s342 = smul.addr %s341, 14
      %s343 = smul.addr %s342, 4
      %s344 = scalar_lea.vmem %s0, %s343
      %p345 = scmp.lt.s32.totalorder %s22, 1
      %s346 = scalar_select %p345, %s22, 1
      %s347 = smul.addr %s346, 8
      %s348 = smul.addr %s347, 8
      %s349 = scalar_lea.vmem %s7, %s348
      %p350 = scmp.lt.s32.totalorder %s22, 1
      %s351 = scalar_select %p350, %s22, 1
      %s352 = smul.addr %s351, 8
      %s353 = smul.addr %s352, 8
      %s354 = scalar_lea.vmem %s9, %s353
      %v356 = vld [vmem:[%s344] sm:$0xf]
      %v357 = vld [vmem:[%s344 + $0x4] sm:$0xf]
      %v358 = vld [vmem:[%s344 + $0x8] sm:$0xf]
      %v359 = vld [vmem:[%s344 + $0xc] sm:$0xf]
      %v360 = vld [vmem:[%s344 + $0x10] sm:$0xf]
      %v361 = vld [vmem:[%s344 + $0x14] sm:$0xf]
      %v362 = vld [vmem:[%s344 + $0x18] sm:$0xf]
      %v363 = vld [vmem:[%s344 + $0x1c] sm:$0xf]
      %v364 = vld [vmem:[%s344 + $0x20] sm:$0xf]
      %v365 = vld [vmem:[%s344 + $0x24] sm:$0xf]
      %v366 = vld [vmem:[%s344 + $0x28] sm:$0x1]
      %v367 = vld [vmem:[%s344] sm:$0xe]
      %v378 = vunpack.c.l.b16 %v356
      %v379 = vunpack.c.l.b16 %v357
      %v380 = vunpack.c.l.b16 %v358
      %v381 = vunpack.c.l.b16 %v359
      %v382 = vunpack.c.l.b16 %v360
      %v383 = vunpack.c.l.b16 %v361
      %v384 = vunpack.c.l.b16 %v362
      %v385 = vunpack.c.l.b16 %v363
      %v386 = vunpack.c.l.b16 %v364
      %v387 = vunpack.c.l.b16 %v365
      %v388 = vpack.c.b16 %v379, %v378
      %v389 = vpack.c.b16 %v381, %v380
      %v390 = vpack.c.b16 %v383, %v382
      %v391 = vpack.c.b16 %v385, %v384
      %v392 = vpack.c.b16 %v387, %v386
      %v394 = vunpack.c.l.b16 %v366
      %v395 = vpack.c.b16 %v394, %v394
      %vm396 = vsmask.f32 7424
      %v398 = vshrl.u32 %v388, 16
      %v400 = vshll.u32 %v388, 16
      %v402 = vrot.slane %v400, 1
      %v403 = vor.u32 %v398, %v402
      %v405 = vshll.u32 %v389, 16
      %v407 = vrot.slane %v405, 1
      %v408 = vsel %vm396, %v403, %v407
      %v409 = vshrl.u32 %v389, 16
      %v411 = vor.u32 %v409, %v407
      %v413 = vshll.u32 %v390, 16
      %v415 = vrot.slane %v413, 1
      %v416 = vsel %vm396, %v411, %v415
      %v417 = vshrl.u32 %v390, 16
      %v419 = vor.u32 %v417, %v415
      %v421 = vshll.u32 %v391, 16
      %v423 = vrot.slane %v421, 1
      %v424 = vsel %vm396, %v419, %v423
      %v425 = vshrl.u32 %v391, 16
      %v427 = vor.u32 %v425, %v423
      %v429 = vshll.u32 %v392, 16
      %v431 = vrot.slane %v429, 1
      %v432 = vsel %vm396, %v427, %v431
      %v433 = vshrl.u32 %v392, 16
      %v435 = vor.u32 %v433, %v431
      %v437 = vshll.u32 %v395, 16
      %v439 = vrot.slane %v437, 1
      %v440 = vsel %vm396, %v435, %v439
      %441 = vrot.lane.b32.xlu0 %v408, 10
      %v442 = vpop.permute.xlu0 %441
      %443 = vrot.lane.b32.xlu0 %v416, 10
      %v444 = vpop.permute.xlu0 %443
      %445 = vrot.lane.b32.xlu0 %v424, 10
      %v446 = vpop.permute.xlu0 %445
      %447 = vrot.lane.b32.xlu0 %v432, 10
      %v448 = vpop.permute.xlu0 %447
      %449 = vrot.lane.b32.xlu0 %v440, 10
      %v450 = vpop.permute.xlu0 %449
      %v452 = vunpack.c.l.b16 %v367
      %v453 = vpack.c.b16 %v379, %v452
      %vm454 = vcmask 1046528
      %v455 = vrot.slane %v453, 1
      %v456 = vrot.slane %v389, 1
      %v457 = vsel %vm454, %v455, %v456
      %v458 = vrot.slane %v390, 1
      %v459 = vsel %vm454, %v456, %v458
      %v460 = vrot.slane %v391, 1
      %v461 = vsel %vm454, %v458, %v460
      %v462 = vrot.slane %v392, 1
      %v463 = vsel %vm454, %v460, %v462
      %v464 = vrot.slane %v395, 1
      %v465 = vsel %vm454, %v462, %v464
      %466 = vrot.lane.b32.xlu0 %v457, 20
      %v467 = vpop.permute.xlu0 %466
      %468 = vrot.lane.b32.xlu0 %v459, 20
      %v469 = vpop.permute.xlu0 %468
      %470 = vrot.lane.b32.xlu0 %v461, 20
      %v471 = vpop.permute.xlu0 %470
      %472 = vrot.lane.b32.xlu0 %v463, 20
      %v473 = vpop.permute.xlu0 %472
      %474 = vrot.lane.b32.xlu0 %v465, 20
      %v475 = vpop.permute.xlu0 %474
      %vm476 = vcmask 80896
      %v478 = vsel %vm476, %v388, %v442
      %v480 = vsel %vm476, %v389, %v444
      %v482 = vsel %vm476, %v390, %v446
      %v484 = vsel %vm476, %v391, %v448
      %v486 = vsel %vm476, %v392, %v450
      %vm487 = vcmask 162816
      %v489 = vsel %vm487, %v478, %v467
      %v491 = vsel %vm487, %v480, %v469
      %v493 = vsel %vm487, %v482, %v471
      %v495 = vsel %vm487, %v484, %v473
      %v497 = vsel %vm487, %v486, %v475
      %v498 = vld [vmem:[%s1] sm:$0xf]
      %v499 = vld [vmem:[%s1 + $0x4] sm:$0xf]
      %v500 = vld [vmem:[%s1 + $0x8] sm:$0xf]
      %v501 = vld [vmem:[%s1 + $0xc] sm:$0x7]
      %v502 = vld [vmem:[%s344 + $0x4] sm:$0xe]
      %v503 = vld [vmem:[%s344 + $0x28] sm:$0xf]
      %v504 = vld [vmem:[%s344 + $0x2c] sm:$0x1]
      %v505 = vld [vmem:[%s344 + $0x2c] sm:$0x3]
      %v506 = vld [vmem:[%s344 + $0x4] sm:$0xc]
      %v510 = vunpack.c.l.b16 %v502
      %v511 = vunpack.c.l.b16 %v503
      %v512 = vunpack.c.l.b16 %v504
      %v513 = vpack.c.b16 %v380, %v510
      %v514 = vpack.c.b16 %v382, %v381
      %v515 = vpack.c.b16 %v384, %v383
      %v516 = vpack.c.b16 %v386, %v385
      %v517 = vpack.c.b16 %v511, %v387
      %v518 = vpack.c.b16 %v512, %v512
      %v520 = vunpack.c.l.b16 %v505
      %v521 = vpack.c.b16 %v520, %v520
      %v523 = vshrl.u32 %v513, 16
      %v525 = vshll.u32 %v513, 16
      %v527 = vrot.slane %v525, 1
      %v528 = vor.u32 %v523, %v527
      %v530 = vshll.u32 %v514, 16
      %v532 = vrot.slane %v530, 1
      %v533 = vsel %vm396, %v528, %v532
      %v534 = vshrl.u32 %v514, 16
      %v536 = vor.u32 %v534, %v532
      %v538 = vshll.u32 %v515, 16
      %v540 = vrot.slane %v538, 1
      %v541 = vsel %vm396, %v536, %v540
      %v542 = vshrl.u32 %v515, 16
      %v544 = vor.u32 %v542, %v540
      %v546 = vshll.u32 %v516, 16
      %v548 = vrot.slane %v546, 1
      %v549 = vsel %vm396, %v544, %v548
      %v550 = vshrl.u32 %v516, 16
      %v552 = vor.u32 %v550, %v548
      %v554 = vshll.u32 %v517, 16
      %v556 = vrot.slane %v554, 1
      %v557 = vsel %vm396, %v552, %v556
      %v558 = vshrl.u32 %v517, 16
      %v560 = vor.u32 %v558, %v556
      %v562 = vshll.u32 %v521, 16
      %v564 = vrot.slane %v562, 1
      %v565 = vsel %vm396, %v560, %v564
      %v566 = vshrl.u32 %v521, 16
      %v568 = vor.u32 %v566, %v564
      %569 = vrot.lane.b32.xlu0 %v533, 10
      %v570 = vpop.permute.xlu0 %569
      %571 = vrot.lane.b32.xlu0 %v541, 10
      %v572 = vpop.permute.xlu0 %571
      %573 = vrot.lane.b32.xlu0 %v549, 10
      %v574 = vpop.permute.xlu0 %573
      %575 = vrot.lane.b32.xlu0 %v557, 10
      %v576 = vpop.permute.xlu0 %575
      %577 = vrot.lane.b32.xlu0 %v565, 10
      %v578 = vpop.permute.xlu0 %577
      %579 = vrot.lane.b32.xlu0 %v568, 10
      %v580 = vpop.permute.xlu0 %579
      %v582 = vunpack.c.l.b16 %v506
      %v583 = vpack.c.b16 %v380, %v582
      %v584 = vrot.slane %v583, 1
      %v585 = vrot.slane %v514, 1
      %v586 = vsel %vm454, %v584, %v585
      %v587 = vrot.slane %v515, 1
      %v588 = vsel %vm454, %v585, %v587
      %v589 = vrot.slane %v516, 1
      %v590 = vsel %vm454, %v587, %v589
      %v591 = vrot.slane %v517, 1
      %v592 = vsel %vm454, %v589, %v591
      %v593 = vrot.slane %v521, 1
      %v594 = vsel %vm454, %v591, %v593
      %595 = vrot.lane.b32.xlu0 %v586, 20
      %v596 = vpop.permute.xlu0 %595
      %597 = vrot.lane.b32.xlu0 %v588, 20
      %v598 = vpop.permute.xlu0 %597
      %599 = vrot.lane.b32.xlu0 %v590, 20
      %v600 = vpop.permute.xlu0 %599
      %601 = vrot.lane.b32.xlu0 %v592, 20
      %v602 = vpop.permute.xlu0 %601
      %603 = vrot.lane.b32.xlu0 %v594, 20
      %v604 = vpop.permute.xlu0 %603
      %605 = vrot.lane.b32.xlu0 %v593, 20
      %v606 = vpop.permute.xlu0 %605
      %v608 = vsel %vm476, %v513, %v570
      %v610 = vsel %vm476, %v514, %v572
      %v612 = vsel %vm476, %v515, %v574
      %v614 = vsel %vm476, %v516, %v576
      %v616 = vsel %vm476, %v517, %v578
      %v619 = vsel %vm476, %v518, %v580
      %v621 = vsel %vm487, %v608, %v596
      %v623 = vsel %vm487, %v610, %v598
      %v625 = vsel %vm487, %v612, %v600
      %v627 = vsel %vm487, %v614, %v602
      %v629 = vsel %vm487, %v616, %v604
      %v631 = vsel %vm487, %v619, %v606
      %s632 = scalar_lea.vmem %s1, 16
      %v633 = vld [vmem:[%s632] sm:$0xf]
      %v634 = vld [vmem:[%s632 + $0x4] sm:$0xf]
      %v635 = vld [vmem:[%s632 + $0x8] sm:$0xf]
      %v636 = vld [vmem:[%s632 + $0xc] sm:$0x7]
      %v643 = vrot.slane %v621, 1
      %v644 = vrot.slane %v623, 1
      %v645 = vsel %vm454, %v643, %v644
      %v646 = vrot.slane %v625, 1
      %v647 = vsel %vm454, %v644, %v646
      %v648 = vrot.slane %v627, 1
      %v649 = vsel %vm454, %v646, %v648
      %v650 = vrot.slane %v629, 1
      %v651 = vsel %vm454, %v648, %v650
      %v652 = vrot.slane %v631, 1
      %v653 = vsel %vm454, %v650, %v652
      %v658 = vunpack.c.l.b16 %v633
      %v659 = vunpack.c.l.b16 %v634
      %v660 = vunpack.c.l.b16 %v635
      %v661 = vunpack.c.l.b16 %v636
      %v662 = vpack.c.b16 %v659, %v658
      %v663 = vpack.c.b16 %v661, %v660
      %vm665 = vcmask 244736
      %v667 = vsel %vm665, %v645, 0
      %v670 = vsel %vm665, %v647, 0
      %v673 = vsel %vm665, %v649, 0
      %v676 = vsel %vm665, %v651, 0
      %v679 = vsel %vm665, %v653, 0
      %vm681 = vcmask 1046528
      %v683 = vsel %vm681, %v663, 0
      %685 = vmatprep.subr.bf16.mxu0 0
      %686 = vmatpush1.bf16.msra.mxu0 %v662
      %687 = vmatprep.subr.bf16.mxu0 0
      %688 = vmatpush1.bf16.msra.mxu0 %v683
      %689 = vmatprep.subr.bf16.mxu0 0
      %690 = vmatpush1.bf16.msra.mxu0 0
      %691 = vmatprep.subr.bf16.mxu0 0
      %692 = vmatpush1.bf16.msra.mxu0 0
      %693 = vmatprep.subr.bf16.mxu0 0
      %694 = vmatpush1.bf16.msra.mxu0 0
      %695 = vmatprep.subr.bf16.mxu0 0
      %696 = vmatpush1.bf16.msra.mxu0 0
      %697 = vmatprep.subr.bf16.mxu0 0
      %698 = vmatpush1.bf16.msra.mxu0 0
      %699 = vmatprep.subr.bf16.mxu0 0
      %700 = vmatpush1.bf16.msra.mxu0 0
      %701 = vmatprep.subr.bf16.mxu0 0
      %702 = vmatpush1.bf16.msra.mxu0 0
      %703 = vmatprep.subr.bf16.mxu0 0
      %704 = vmatpush1.bf16.msra.mxu0 0
      %705 = vmatprep.subr.bf16.mxu0 0
      %706 = vmatpush1.bf16.msra.mxu0 0
      %707 = vmatprep.subr.bf16.mxu0 0
      %708 = vmatpush1.bf16.msra.mxu0 0
      %709 = vmatprep.subr.bf16.mxu0 0
      %710 = vmatpush1.bf16.msra.mxu0 0
      %711 = vmatprep.subr.bf16.mxu0 0
      %712 = vmatpush1.bf16.msra.mxu0 0
      %713 = vmatprep.subr.bf16.mxu0 0
      %714 = vmatpush1.bf16.msra.mxu0 0
      %715 = vmatprep.subr.bf16.mxu0 0
      %716 = vmatpush1.bf16.msra.mxu0 0
      %717 = vmatprep.mubr.bf16.mxu0 0
      %718 = vmatmul.mubr.bf16.gmra.mrb[0].mxu0 %v667
      %v719 = vpop.f32.mrb[0].mxu0
      %v720 = vadd.f32 0.0, %v719
      %v721 = vpop.f32.mrb[0].mxu0
      %v722 = vpop.f32.mrb[0].mxu0
      %v723 = vadd.f32 0.0, %v722
      %v724 = vpop.f32.mrb[0].mxu0
      %725 = vmatprep.mubr.bf16.mxu0 0
      %726 = vmatmul.mubr.bf16.gmra.mrb[0].mxu0 %v670
      %v727 = vpop.f32.mrb[0].mxu0
      %v728 = vadd.f32 0.0, %v727
      %v729 = vpop.f32.mrb[0].mxu0
      %v730 = vpop.f32.mrb[0].mxu0
      %v731 = vadd.f32 0.0, %v730
      %v732 = vpop.f32.mrb[0].mxu0
      %733 = vmatprep.mubr.bf16.mxu0 0
      %734 = vmatmul.mubr.bf16.gmra.mrb[0].mxu0 %v673
      %v735 = vpop.f32.mrb[0].mxu0
      %v736 = vadd.f32 0.0, %v735
      %v737 = vpop.f32.mrb[0].mxu0
      %v738 = vpop.f32.mrb[0].mxu0
      %v739 = vadd.f32 0.0, %v738
      %v740 = vpop.f32.mrb[0].mxu0
      %741 = vmatprep.mubr.bf16.mxu0 0
      %742 = vmatmul.mubr.bf16.gmra.mrb[0].mxu0 %v676
      %v743 = vpop.f32.mrb[0].mxu0
      %v744 = vadd.f32 0.0, %v743
      %v745 = vpop.f32.mrb[0].mxu0
      %v746 = vpop.f32.mrb[0].mxu0
      %v747 = vadd.f32 0.0, %v746
      %v748 = vpop.f32.mrb[0].mxu0
      %749 = vmatprep.mubr.bf16.mxu0 0
      %750 = vmatmul.mubr.bf16.gmra.mrb[0].mxu0 %v679
      %v751 = vpop.f32.mrb[0].mxu0
      %v752 = vadd.f32 0.0, %v751
      %v753 = vpop.f32.mrb[0].mxu0
      %v754 = vpop.f32.mrb[0].mxu0
      %v755 = vadd.f32 0.0, %v754
      %v756 = vpop.f32.mrb[0].mxu0
      %757 = vdwg.mxu0
      %v762 = vunpack.c.l.b16 %v498
      %v763 = vunpack.c.l.b16 %v499
      %v764 = vunpack.c.l.b16 %v500
      %v765 = vunpack.c.l.b16 %v501
      %v766 = vpack.c.b16 %v763, %v762
      %v767 = vpack.c.b16 %v765, %v764
      %v769 = vsel %vm665, %v489, 0
      %v771 = vsel %vm665, %v491, 0
      %v773 = vsel %vm665, %v493, 0
      %v775 = vsel %vm665, %v495, 0
      %v777 = vsel %vm665, %v497, 0
      %v780 = vsel %vm681, %v767, 0
      %782 = vmatprep.subr.bf16.mxu0 0
      %783 = vmatpush1.bf16.msra.mxu0 %v766
      %784 = vmatprep.subr.bf16.mxu0 0
      %785 = vmatpush1.bf16.msra.mxu0 %v780
      %786 = vmatprep.subr.bf16.mxu0 0
      %787 = vmatpush1.bf16.msra.mxu0 0
      %788 = vmatprep.subr.bf16.mxu0 0
      %789 = vmatpush1.bf16.msra.mxu0 0
      %790 = vmatprep.subr.bf16.mxu0 0
      %791 = vmatpush1.bf16.msra.mxu0 0
      %792 = vmatprep.subr.bf16.mxu0 0
      %793 = vmatpush1.bf16.msra.mxu0 0
      %794 = vmatprep.subr.bf16.mxu0 0
      %795 = vmatpush1.bf16.msra.mxu0 0
      %796 = vmatprep.subr.bf16.mxu0 0
      %797 = vmatpush1.bf16.msra.mxu0 0
      %798 = vmatprep.subr.bf16.mxu0 0
      %799 = vmatpush1.bf16.msra.mxu0 0
      %800 = vmatprep.subr.bf16.mxu0 0
      %801 = vmatpush1.bf16.msra.mxu0 0
      %802 = vmatprep.subr.bf16.mxu0 0
      %803 = vmatpush1.bf16.msra.mxu0 0
      %804 = vmatprep.subr.bf16.mxu0 0
      %805 = vmatpush1.bf16.msra.mxu0 0
      %806 = vmatprep.subr.bf16.mxu0 0
      %807 = vmatpush1.bf16.msra.mxu0 0
      %808 = vmatprep.subr.bf16.mxu0 0
      %809 = vmatpush1.bf16.msra.mxu0 0
      %810 = vmatprep.subr.bf16.mxu0 0
      %811 = vmatpush1.bf16.msra.mxu0 0
      %812 = vmatprep.subr.bf16.mxu0 0
      %813 = vmatpush1.bf16.msra.mxu0 0
      %814 = vmatprep.mubr.bf16.mxu0 0
      %815 = vmatmul.mubr.bf16.gmra.mrb[0].mxu0 %v769
      %v816 = vpop.f32.mrb[0].mxu0
      %v817 = vadd.f32 %v720, %v816
      %v818 = vpop.f32.mrb[0].mxu0
      %v819 = vpop.f32.mrb[0].mxu0
      %v820 = vadd.f32 %v723, %v819
      %v821 = vpop.f32.mrb[0].mxu0
      %822 = vmatprep.mubr.bf16.mxu0 0
      %823 = vmatmul.mubr.bf16.gmra.mrb[0].mxu0 %v771
      %v824 = vpop.f32.mrb[0].mxu0
      %v825 = vadd.f32 %v728, %v824
      %v826 = vpop.f32.mrb[0].mxu0
      %v827 = vpop.f32.mrb[0].mxu0
      %v828 = vadd.f32 %v731, %v827
      %v829 = vpop.f32.mrb[0].mxu0
      %830 = vmatprep.mubr.bf16.mxu0 0
      %831 = vmatmul.mubr.bf16.gmra.mrb[0].mxu0 %v773
      %v832 = vpop.f32.mrb[0].mxu0
      %v833 = vadd.f32 %v736, %v832
      %v834 = vpop.f32.mrb[0].mxu0
      %v835 = vpop.f32.mrb[0].mxu0
      %v836 = vadd.f32 %v739, %v835
      %v837 = vpop.f32.mrb[0].mxu0
      %838 = vmatprep.mubr.bf16.mxu0 0
      %839 = vmatmul.mubr.bf16.gmra.mrb[0].mxu0 %v775
      %v840 = vpop.f32.mrb[0].mxu0
      %v841 = vadd.f32 %v744, %v840
      %v842 = vpop.f32.mrb[0].mxu0
      %v843 = vpop.f32.mrb[0].mxu0
      %v844 = vadd.f32 %v747, %v843
      %v845 = vpop.f32.mrb[0].mxu0
      %846 = vmatprep.mubr.bf16.mxu0 0
      %847 = vmatmul.mubr.bf16.gmra.mrb[0].mxu0 %v777
      %v848 = vpop.f32.mrb[0].mxu0
      %v849 = vadd.f32 %v752, %v848
      %v850 = vpop.f32.mrb[0].mxu0
      %v851 = vpop.f32.mrb[0].mxu0
      %v852 = vadd.f32 %v755, %v851
      %v853 = vpop.f32.mrb[0].mxu0
      %854 = vdwg.mxu0
      %v855 = vld [vmem:[%s344 + $0x8] sm:$0xc]
      %v856 = vld [vmem:[%s344 + $0xc] sm:$0xf]
      %v857 = vld [vmem:[%s344 + $0x10] sm:$0xf]
      %v858 = vld [vmem:[%s344 + $0x14] sm:$0xf]
      %v859 = vld [vmem:[%s344 + $0x18] sm:$0xf]
      %v860 = vld [vmem:[%s344 + $0x1c] sm:$0xf]
      %v861 = vld [vmem:[%s344 + $0x20] sm:$0xf]
      %v862 = vld [vmem:[%s344 + $0x24] sm:$0xf]
      %v863 = vld [vmem:[%s344 + $0x28] sm:$0xf]
      %v864 = vld [vmem:[%s344 + $0x2c] sm:$0xf]
      %v865 = vld [vmem:[%s344 + $0x30] sm:$0x3]
      %v866 = vld [vmem:[%s344 + $0x30] sm:$0x7]
      %v867 = vld [vmem:[%s344 + $0x8] sm:$0x8]
      %v879 = vunpack.c.l.b16 %v855
      %v880 = vunpack.c.l.b16 %v856
      %v881 = vunpack.c.l.b16 %v857
      %v882 = vunpack.c.l.b16 %v858
      %v883 = vunpack.c.l.b16 %v859
      %v884 = vunpack.c.l.b16 %v860
      %v885 = vunpack.c.l.b16 %v861
      %v886 = vunpack.c.l.b16 %v862
      %v887 = vunpack.c.l.b16 %v863
      %v888 = vunpack.c.l.b16 %v864
      %v889 = vunpack.c.l.b16 %v865
      %v890 = vpack.c.b16 %v880, %v879
      %v891 = vpack.c.b16 %v882, %v881
      %v892 = vpack.c.b16 %v884, %v883
      %v893 = vpack.c.b16 %v886, %v885
      %v894 = vpack.c.b16 %v888, %v887
      %v895 = vpack.c.b16 %v889, %v889
      %v897 = vunpack.c.l.b16 %v866
      %v898 = vpack.c.b16 %v897, %v897
      %v900 = vshrl.u32 %v890, 16
      %v902 = vshll.u32 %v890, 16
      %v904 = vrot.slane %v902, 1
      %v905 = vor.u32 %v900, %v904
      %v907 = vshll.u32 %v891, 16
      %v909 = vrot.slane %v907, 1
      %v910 = vsel %vm396, %v905, %v909
      %v911 = vshrl.u32 %v891, 16
      %v913 = vor.u32 %v911, %v909
      %v915 = vshll.u32 %v892, 16
      %v917 = vrot.slane %v915, 1
      %v918 = vsel %vm396, %v913, %v917
      %v919 = vshrl.u32 %v892, 16
      %v921 = vor.u32 %v919, %v917
      %v923 = vshll.u32 %v893, 16
      %v925 = vrot.slane %v923, 1
      %v926 = vsel %vm396, %v921, %v925
      %v927 = vshrl.u32 %v893, 16
      %v929 = vor.u32 %v927, %v925
      %v931 = vshll.u32 %v894, 16
      %v933 = vrot.slane %v931, 1
      %v934 = vsel %vm396, %v929, %v933
      %v935 = vshrl.u32 %v894, 16
      %v937 = vor.u32 %v935, %v933
      %v939 = vshll.u32 %v898, 16
      %v941 = vrot.slane %v939, 1
      %v942 = vsel %vm396, %v937, %v941
      %v943 = vshrl.u32 %v898, 16
      %v945 = vor.u32 %v943, %v941
      %946 = vrot.lane.b32.xlu0 %v910, 10
      %v947 = vpop.permute.xlu0 %946
      %948 = vrot.lane.b32.xlu0 %v918, 10
      %v949 = vpop.permute.xlu0 %948
      %950 = vrot.lane.b32.xlu0 %v926, 10
      %v951 = vpop.permute.xlu0 %950
      %952 = vrot.lane.b32.xlu0 %v934, 10
      %v953 = vpop.permute.xlu0 %952
      %954 = vrot.lane.b32.xlu0 %v942, 10
      %v955 = vpop.permute.xlu0 %954
      %956 = vrot.lane.b32.xlu0 %v945, 10
      %v957 = vpop.permute.xlu0 %956
      %v959 = vunpack.c.l.b16 %v867
      %v960 = vpack.c.b16 %v880, %v959
      %v961 = vrot.slane %v960, 1
      %v962 = vrot.slane %v891, 1
      %v963 = vsel %vm454, %v961, %v962
      %v964 = vrot.slane %v892, 1
      %v965 = vsel %vm454, %v962, %v964
      %v966 = vrot.slane %v893, 1
      %v967 = vsel %vm454, %v964, %v966
      %v968 = vrot.slane %v894, 1
      %v969 = vsel %vm454, %v966, %v968
      %v970 = vrot.slane %v898, 1
      %v971 = vsel %vm454, %v968, %v970
      %972 = vrot.lane.b32.xlu0 %v963, 20
      %v973 = vpop.permute.xlu0 %972
      %974 = vrot.lane.b32.xlu0 %v965, 20
      %v975 = vpop.permute.xlu0 %974
      %976 = vrot.lane.b32.xlu0 %v967, 20
      %v977 = vpop.permute.xlu0 %976
      %978 = vrot.lane.b32.xlu0 %v969, 20
      %v979 = vpop.permute.xlu0 %978
      %980 = vrot.lane.b32.xlu0 %v971, 20
      %v981 = vpop.permute.xlu0 %980
      %982 = vrot.lane.b32.xlu0 %v970, 20
      %v983 = vpop.permute.xlu0 %982
      %v985 = vsel %vm476, %v890, %v947
      %v987 = vsel %vm476, %v891, %v949
      %v989 = vsel %vm476, %v892, %v951
      %v991 = vsel %vm476, %v893, %v953
      %v993 = vsel %vm476, %v894, %v955
      %v996 = vsel %vm476, %v895, %v957
      %v998 = vsel %vm487, %v985, %v973
      %v1000 = vsel %vm487, %v987, %v975
      %v1002 = vsel %vm487, %v989, %v977
      %v1004 = vsel %vm487, %v991, %v979
      %v1006 = vsel %vm487, %v993, %v981
      %v1008 = vsel %vm487, %v996, %v983
      %s1009 = scalar_lea.vmem %s1, 32
      %v1010 = vld [vmem:[%s1009] sm:$0xf]
      %v1011 = vld [vmem:[%s1009 + $0x4] sm:$0xf]
      %v1012 = vld [vmem:[%s1009 + $0x8] sm:$0xf]
      %v1013 = vld [vmem:[%s1009 + $0xc] sm:$0x7]
      %vm1020 = vcmask 1045504
      %v1021 = vrot.slane %v998, 2
      %v1022 = vrot.slane %v1000, 2
      %v1023 = vsel %vm1020, %v1021, %v1022
      %v1024 = vrot.slane %v1002, 2
      %v1025 = vsel %vm1020, %v1022, %v1024
      %v1026 = vrot.slane %v1004, 2
      %v1027 = vsel %vm1020, %v1024, %v1026
      %v1028 = vrot.slane %v1006, 2
      %v1029 = vsel %vm1020, %v1026, %v1028
      %v1030 = vrot.slane %v1008, 2
      %v1031 = vsel %vm1020, %v1028, %v1030
      %v1036 = vunpack.c.l.b16 %v1010
      %v1037 = vunpack.c.l.b16 %v1011
      %v1038 = vunpack.c.l.b16 %v1012
      %v1039 = vunpack.c.l.b16 %v1013
      %v1040 = vpack.c.b16 %v1037, %v1036
      %v1041 = vpack.c.b16 %v1039, %v1038
      %v1044 = vsel %vm665, %v1023, 0
      %v1047 = vsel %vm665, %v1025, 0
      %v1050 = vsel %vm665, %v1027, 0
      %v1053 = vsel %vm665, %v1029, 0
      %v1056 = vsel %vm665, %v1031, 0
      %v1059 = vsel %vm681, %v1041, 0
      %1061 = vmatprep.subr.bf16.mxu0 0
      %1062 = vmatpush1.bf16.msra.mxu0 %v1040
      %1063 = vmatprep.subr.bf16.mxu0 0
      %1064 = vmatpush1.bf16.msra.mxu0 %v1059
      %1065 = vmatprep.subr.bf16.mxu0 0
      %1066 = vmatpush1.bf16.msra.mxu0 0
      %1067 = vmatprep.subr.bf16.mxu0 0
      %1068 = vmatpush1.bf16.msra.mxu0 0
      %1069 = vmatprep.subr.bf16.mxu0 0
      %1070 = vmatpush1.bf16.msra.mxu0 0
      %1071 = vmatprep.subr.bf16.mxu0 0
      %1072 = vmatpush1.bf16.msra.mxu0 0
      %1073 = vmatprep.subr.bf16.mxu0 0
      %1074 = vmatpush1.bf16.msra.mxu0 0
      %1075 = vmatprep.subr.bf16.mxu0 0
      %1076 = vmatpush1.bf16.msra.mxu0 0
      %1077 = vmatprep.subr.bf16.mxu0 0
      %1078 = vmatpush1.bf16.msra.mxu0 0
      %1079 = vmatprep.subr.bf16.mxu0 0
      %1080 = vmatpush1.bf16.msra.mxu0 0
      %1081 = vmatprep.subr.bf16.mxu0 0
      %1082 = vmatpush1.bf16.msra.mxu0 0
      %1083 = vmatprep.subr.bf16.mxu0 0
      %1084 = vmatpush1.bf16.msra.mxu0 0
      %1085 = vmatprep.subr.bf16.mxu0 0
      %1086 = vmatpush1.bf16.msra.mxu0 0
      %1087 = vmatprep.subr.bf16.mxu0 0
      %1088 = vmatpush1.bf16.msra.mxu0 0
      %1089 = vmatprep.subr.bf16.mxu0 0
      %1090 = vmatpush1.bf16.msra.mxu0 0
      %1091 = vmatprep.subr.bf16.mxu0 0
      %1092 = vmatpush1.bf16.msra.mxu0 0
      %1093 = vmatprep.mubr.bf16.mxu0 0
      %1094 = vmatmul.mubr.bf16.gmra.mrb[0].mxu0 %v1044
      %v1095 = vpop.f32.mrb[0].mxu0
      %v1096 = vadd.f32 0.0, %v1095
      %v1097 = vpop.f32.mrb[0].mxu0
      %v1098 = vpop.f32.mrb[0].mxu0
      %v1099 = vadd.f32 0.0, %v1098
      %v1100 = vpop.f32.mrb[0].mxu0
      %1101 = vmatprep.mubr.bf16.mxu0 0
      %1102 = vmatmul.mubr.bf16.gmra.mrb[0].mxu0 %v1047
      %v1103 = vpop.f32.mrb[0].mxu0
      %v1104 = vadd.f32 0.0, %v1103
      %v1105 = vpop.f32.mrb[0].mxu0
      %v1106 = vpop.f32.mrb[0].mxu0
      %v1107 = vadd.f32 0.0, %v1106
      %v1108 = vpop.f32.mrb[0].mxu0
      %1109 = vmatprep.mubr.bf16.mxu0 0
      %1110 = vmatmul.mubr.bf16.gmra.mrb[0].mxu0 %v1050
      %v1111 = vpop.f32.mrb[0].mxu0
      %v1112 = vadd.f32 0.0, %v1111
      %v1113 = vpop.f32.mrb[0].mxu0
      %v1114 = vpop.f32.mrb[0].mxu0
      %v1115 = vadd.f32 0.0, %v1114
      %v1116 = vpop.f32.mrb[0].mxu0
      %1117 = vmatprep.mubr.bf16.mxu0 0
      %1118 = vmatmul.mubr.bf16.gmra.mrb[0].mxu0 %v1053
      %v1119 = vpop.f32.mrb[0].mxu0
      %v1120 = vadd.f32 0.0, %v1119
      %v1121 = vpop.f32.mrb[0].mxu0
      %v1122 = vpop.f32.mrb[0].mxu0
      %v1123 = vadd.f32 0.0, %v1122
      %v1124 = vpop.f32.mrb[0].mxu0
      %1125 = vmatprep.mubr.bf16.mxu0 0
      %1126 = vmatmul.mubr.bf16.gmra.mrb[0].mxu0 %v1056
      %v1127 = vpop.f32.mrb[0].mxu0
      %v1128 = vadd.f32 0.0, %v1127
      %v1129 = vpop.f32.mrb[0].mxu0
      %v1130 = vpop.f32.mrb[0].mxu0
      %v1131 = vadd.f32 0.0, %v1130
      %v1132 = vpop.f32.mrb[0].mxu0
      %1133 = vdwg.mxu0
      %v1134 = vadd.f32 %v817, %v1096
      %v1135 = vadd.f32 %v820, %v1099
      %v1136 = vadd.f32 %v825, %v1104
      %v1137 = vadd.f32 %v828, %v1107
      %v1138 = vadd.f32 %v833, %v1112
      %v1139 = vadd.f32 %v836, %v1115
      %v1140 = vadd.f32 %v841, %v1120
      %v1141 = vadd.f32 %v844, %v1123
      %v1142 = vadd.f32 %v849, %v1128
      %v1143 = vadd.f32 %v852, %v1131
      %v1144 = vld [vmem:[%s2] sm:$0x1]
      %v1146 = vlaneseq
      %v1147 = vshrl.u32 %v1146, 7
      %v1148 = vsub.s32 0, %v1147
      %v1149 = vrot.slane %v1144, %v1148
      %v1151 = vadd.f32 %v1134, %v1149
      %v1152 = vadd.f32 %v1135, %v1149
      %v1153 = vadd.f32 %v1136, %v1149
      %v1154 = vadd.f32 %v1137, %v1149
      %v1155 = vadd.f32 %v1138, %v1149
      %v1156 = vadd.f32 %v1139, %v1149
      %v1157 = vadd.f32 %v1140, %v1149
      %v1158 = vadd.f32 %v1141, %v1149
      %v1159 = vadd.f32 %v1142, %v1149
      %v1160 = vadd.f32 %v1143, %v1149
      %vm1163 = vcmask 1045504
      %v1164 = vrot.slane %v1152, 2
      %v1165 = vrot.slane %v1153, 2
      %v1166 = vsel %vm1163, %v1164, %v1165
      %vm1169 = vcmask 1043456
      %v1170 = vrot.slane %v1153, 4
      %v1171 = vrot.slane %v1154, 4
      %v1172 = vsel %vm1169, %v1170, %v1171
      %vm1175 = vcmask 1041408
      %v1176 = vrot.slane %v1154, 6
      %v1177 = vrot.slane %v1155, 6
      %v1178 = vsel %vm1175, %v1176, %v1177
      %v1182 = vrot.slane %v1157, 2
      %v1183 = vrot.slane %v1158, 2
      %v1184 = vsel %vm1163, %v1182, %v1183
      %v1187 = vrot.slane %v1158, 4
      %v1188 = vrot.slane %v1159, 4
      %v1189 = vsel %vm1169, %v1187, %v1188
      %v1192 = vrot.slane %v1159, 6
      %v1193 = vrot.slane %v1160, 6
      %v1194 = vsel %vm1175, %v1192, %v1193
      %vm1196 = vcmask 261120
      %v1197 = vsel %vm1196, %v1151, 0.0
      %v1198 = vsel %vm1196, %v1166, 0.0
      %v1199 = vadd.f32 %v1197, %v1198
      %v1200 = vsel %vm1196, %v1172, 0.0
      %v1201 = vadd.f32 %v1199, %v1200
      %v1202 = vsel %vm1196, %v1178, 0.0
      %v1203 = vadd.f32 %v1201, %v1202
      %v1204 = vsel %vm1196, %v1156, 0.0
      %v1205 = vadd.f32 %v1203, %v1204
      %v1206 = vsel %vm1196, %v1184, 0.0
      %v1207 = vadd.f32 %v1205, %v1206
      %v1208 = vsel %vm1196, %v1189, 0.0
      %v1209 = vadd.f32 %v1207, %v1208
      %v1210 = vsel %vm1196, %v1194, 0.0
      %v1211 = vadd.f32 %v1209, %v1210
      %v1212 = vrot.slane %v1211, 4
      %v1213 = vadd.f32 %v1211, %v1212
      %v1214 = vrot.slane %v1213, 2
      %v1215 = vadd.f32 %v1213, %v1214
      %v1216 = vrot.slane %v1215, 1
      %v1217 = vadd.f32 %v1215, %v1216
      %v1218 = vrcp.pop 64.0
      %v1219 = vmul.f32 %v1217, %v1218
      %v1220 = vld [vmem:[%s3] sm:$0x1]
      %v1221 = vmul.f32 %v1219, %v1220
      %vm1222 = vcmask 253952
      %v1223 = vsel %vm1222, %v1221, 0.0
      %1224 = vadd.xlane.f32.xlu0 %v1223
      %v1225 = vpop.xlane.xlu0 %1224
      %v1226 = vld [vmem:[#allocation2] sm:$0x1]
      %v1227 = vadd.f32 %v1225, %v1226
      %v1228 = vmax.f32 %v1227, 0.0
      %v1229 = vld [vmem:[%s5] sm:$0x1]
      %1231 = vset.pattern.permute.xlu0 0
      %1232 = vperm.xlu0 %1231, %v1228
      %v1233 = vpop.permute.xlu0 %1232
      %v1235 = vmul.f32 %v1233, %v1229
      %v1236 = vadd.f32 %v1235, 0.0
      %v1237 = vld [vmem:[%s6] sm:$0x1]
      %v1238 = vadd.f32 %v1236, %v1237
      %v1239 = vxor.u32 %v1238, 2147483648
      %v1240 = vmul.f32 %v1239, 1.442695
      %v1241 = vpow.pop %v1240
      %v1242 = vadd.f32 %v1241, 1.0
      %v1243 = vrcp.pop %v1242
      %v1244 = vmul.f32 1.0, %v1243
      %v1245 = vlaneseq
      %v1246 = vshrl.u32 %v1245, 7
      %v1247 = vsub.s32 0, %v1246
      %v1248 = vrot.slane %v1244, %v1247
      %v1249 = vmul.f32 %v1151, %v1248
      %v1250 = vmul.f32 %v1166, %v1248
      %v1251 = vmul.f32 %v1172, %v1248
      %v1252 = vmul.f32 %v1178, %v1248
      %v1253 = vmul.f32 %v1156, %v1248
      %v1254 = vmul.f32 %v1184, %v1248
      %v1255 = vmul.f32 %v1189, %v1248
      %v1256 = vmul.f32 %v1194, %v1248
      %v1257 = vld [vmem:[%s349] sm:$0xff]
      %v1258 = vld [vmem:[%s349 + $0x8] sm:$0xff]
      %v1259 = vld [vmem:[%s349 + $0x10] sm:$0xff]
      %v1260 = vld [vmem:[%s349 + $0x18] sm:$0xff]
      %v1261 = vld [vmem:[%s349 + $0x20] sm:$0xff]
      %v1262 = vld [vmem:[%s349 + $0x28] sm:$0xff]
      %v1263 = vld [vmem:[%s349 + $0x30] sm:$0xff]
      %v1264 = vld [vmem:[%s349 + $0x38] sm:$0xff]
      %v1265 = vld [vmem:[%s8] sm:$0x1]
      %v1267 = vlaneseq
      %v1268 = vshrl.u32 %v1267, 7
      %v1269 = vsub.s32 0, %v1268
      %v1270 = vrot.slane %v1265, %v1269
      %v1272 = vmul.f32 %v1257, %v1270
      %v1273 = vmul.f32 %v1258, %v1270
      %v1274 = vmul.f32 %v1259, %v1270
      %v1275 = vmul.f32 %v1260, %v1270
      %v1276 = vmul.f32 %v1261, %v1270
      %v1277 = vmul.f32 %v1262, %v1270
      %v1278 = vmul.f32 %v1263, %v1270
      %v1279 = vmul.f32 %v1264, %v1270
      %v1280 = vadd.f32 %v1272, %v1249
      %v1281 = vadd.f32 %v1273, %v1250
      %v1282 = vadd.f32 %v1274, %v1251
      %v1283 = vadd.f32 %v1275, %v1252
      %v1284 = vadd.f32 %v1276, %v1253
      %v1285 = vadd.f32 %v1277, %v1254
      %v1286 = vadd.f32 %v1278, %v1255
      %v1287 = vadd.f32 %v1279, %v1256
      %1288 = vst.msk [vmem:[%s354] sm:$0xff] %vm1196, %v1280
      %1289 = vst.msk [vmem:[%s354 + $0x8] sm:$0xff] %vm1196, %v1281
      %1290 = vst.msk [vmem:[%s354 + $0x10] sm:$0xff] %vm1196, %v1282
      %1291 = vst.msk [vmem:[%s354 + $0x18] sm:$0xff] %vm1196, %v1283
      %1292 = vst.msk [vmem:[%s354 + $0x20] sm:$0xff] %vm1196, %v1284
      %1293 = vst.msk [vmem:[%s354 + $0x28] sm:$0xff] %vm1196, %v1285
      %1294 = vst.msk [vmem:[%s354 + $0x30] sm:$0xff] %vm1196, %v1286
      %1295 = vst.msk [vmem:[%s354 + $0x38] sm:$0xff] %vm1196, %v1287
      %p1296 = scmp.lt.s32.totalorder %s22, 1
      %s1297 = scalar_select %p1296, %s22, 1
      %s1298 = smul.addr %s1297, 8
      %s1299 = smul.addr %s1298, 8
      %s1300 = scalar_lea.vmem %s9, %s1299
      // Predicated region
      $region57: #{_lambda_.11} parent=55 // pred_check
        %p1301 = pneg %p239
      $region58: #{_lambda_.11} parent=55 // pred_check_branch
        %1303 = sbr.rel (%p1301) target = $region60
      $region59: #{_lambda_.11} parent=55 // pred_region
        _
      $region60: #{_lambda_.11} parent=55 // pred_fallthru
        _
    $region56: #{_lambda_.11} parent=5 // pred_fallthru
      _
    %p1304 = scmp.le.s32.totalorder 2, %s17
    // Predicated region
    $region61: #{_lambda_.11} parent=5 // pred_check
      %p1305 = pneg %p1304
    $region62: #{_lambda_.11} parent=5 // pred_check_branch
      %1307 = sbr.rel (%p1305) target = $region64
    $region63: #{_lambda_.11} parent=5 // pred_region
      %s1308 = ssub.s32 %s17, 2
      // Predicated region
      $region65: #{_lambda_.11} parent=63 // pred_check
        %p1309 = pneg %p245
      $region66: #{_lambda_.11} parent=63 // pred_check_branch
        %1311 = sbr.rel (%p1309) target = $region68
      $region67: #{_lambda_.11} parent=63 // pred_region
        %p1312 = scmp.lt.s32.totalorder %s23, 1
        %s1313 = scalar_select %p1312, %s23, 1
        %s1314 = smul.addr %s1313, 8
        %s1315 = smul.addr %s1314, 8
        %s1316 = scalar_lea.vmem %s9, %s1315
      $region68: #{_lambda_.11} parent=63 // pred_fallthru
        _
    $region64: #{_lambda_.11} parent=5 // pred_fallthru
      _
  $region6: #{_lambda_.11} parent=0 // loop_footer
    %s21 = sadd.s32 1, %s17
  $region7: #{_lambda_.11} parent=0 // loop_footer_branch
    %16 = sbr.rel target = $region3
  $region8: #{_lambda_.11} parent=0 // loop_exit
    _

</llo_original>
